<compile_context>
chip_gen: v7x
topology: tpu7x:2x2x1
jax: 0.10.0
libtpu: 0.0.40
codegen_flags: <defaults>
</compile_context>

<pallas_src>
import numpy as np

import jax
import jax.numpy as jnp
from jax import lax
from jax.experimental import pallas as pl
from jax.experimental.pallas import tpu as pltpu

# ----------------------------- fixed sizes -----------------------------
H = W = 16
S = H * W                 # 256 flattened pixels (lane dim for conv_1 / conv_2)
H2 = W2 = 8
S2 = H2 * W2              # 64 pooled pixels
S2P = 128                 # pooled features kept 128-lane wide (lanes >= 64 are zero)
C_IN, C1, C2, C3 = 3, 8, 8, 16

NORM_MEAN = np.array([0.485, 0.456, 0.406], np.float32)
NORM_STD = np.array([0.229, 0.224, 0.225], np.float32)


# -------------------- host-built constant 0/1 matrices --------------------
def _conv_shift_matrices(h, w, lanes):
    """m[tap, a, p] = 1 iff flattened source pixel a equals output pixel p shifted
    by tap (dh, dw) AND the source is inside the image (zero padding otherwise)."""
    s = h * w
    m = np.zeros((9, lanes, lanes), np.float32)
    for dh in range(3):
        for dw in range(3):
            t = dh * 3 + dw
            for p in range(s):
                ph, pw = divmod(p, w)
                sh, sw = ph + dh - 1, pw + dw - 1
                if 0 <= sh < h and 0 <= sw < w:
                    m[t, sh * w + sw, p] = 1.0
    return m


def _pool_matrices():
    # shift-by-one along flattened 16x16 (for horizontal pair-max)
    mph = np.zeros((S, S), np.float32)
    for p in range(S - 1):
        mph[p + 1, p] = 1.0
    # keep columns with even w; output index h*8 + w2  (256 -> 128 lanes)
    sel1 = np.zeros((S, S2P), np.float32)
    for h in range(H):
        for w2 in range(W2):
            sel1[h * W + 2 * w2, h * W2 + w2] = 1.0
    # shift-by-eight along the h*8 + w2 index (for vertical pair-max)
    mpv = np.zeros((S2P, S2P), np.float32)
    for p in range(S2P - W2):
        mpv[p + W2, p] = 1.0
    # keep rows with even h; output index h2*8 + w2 (< 64), lanes >= 64 stay zero
    sel2 = np.zeros((S2P, S2P), np.float32)
    for h2 in range(H2):
        for w2 in range(W2):
            sel2[(2 * h2) * W2 + w2, h2 * W2 + w2] = 1.0
    return mph, sel1, mpv, sel2


_M1 = jnp.asarray(_conv_shift_matrices(H, W, S))        # (9, 256, 256) conv_1/conv_2
_M3 = jnp.asarray(_conv_shift_matrices(H2, W2, S2P))    # (9, 128, 128) conv_3
_MPH, _SEL1, _MPV, _SEL2 = (jnp.asarray(a) for a in _pool_matrices())
_MEAN = jnp.asarray(NORM_MEAN).reshape(C_IN, 1)
_ISTD = jnp.asarray(1.0 / NORM_STD).reshape(C_IN, 1)


# ----------------------------- Pallas kernel -----------------------------
def _dot(a, b):
    return lax.dot_general(a, b, (((1,), (0,)), ((), ())),
                           preferred_element_type=jnp.float32)


def _fused_forward_kernel(
    x_ref, mean_ref, istd_ref,
    w1_ref, b1_ref, w2_ref, b2_ref, w3_ref, b3_ref,
    m1_ref, m3_ref, mph_ref, sel1_ref, mpv_ref, sel2_ref,
    tg1_ref, tg2_ref, tc3_ref,
    y3_ref, g1_ref, g2_ref, sl1_ref, sl2_ref, cl3_ref,
):
    def conv3x3(feat, w_ref, b_ref, m_ref):
        acc = None
        for tap in range(9):
            shifted = _dot(feat, m_ref[tap])     # (cin, lanes): shifted + zero padded
            part = _dot(w_ref[tap], shifted)     # (cout, lanes)
            acc = part if acc is None else acc + part
        return acc + b_ref[...]                  # bias (cout, 1) broadcasts over lanes

    def mse_to_ref(diff, n, out_ref):
        sq = diff * diff
        out_ref[...] = (jnp.sum(jnp.sum(sq, axis=1, keepdims=True),
                                axis=0, keepdims=True) * (1.0 / n))

    # Normalization fused into the kernel (the shift matrices zero-pad the
    # *normalized* image, matching nn.Conv2d(padding=1) after Normalization).
    xn = (x_ref[...] - mean_ref[...]) * istd_ref[...]               # (3, 256)

    # conv_1 + style_loss_1 (gram of the pre-ReLU conv_1 features)
    y1 = conv3x3(xn, w1_ref, b1_ref, m1_ref)                        # (8, 256)
    g1 = lax.dot_general(y1, y1, (((1,), (1,)), ((), ())),
                         preferred_element_type=jnp.float32) * (1.0 / (C1 * S))
    g1_ref[...] = g1
    mse_to_ref(g1 - tg1_ref[...], C1 * C1, sl1_ref)

    # relu_1 -> conv_2 + style_loss_2
    y2 = conv3x3(jnp.maximum(y1, 0.0), w2_ref, b2_ref, m1_ref)      # (8, 256)
    g2 = lax.dot_general(y2, y2, (((1,), (1,)), ((), ())),
                         preferred_element_type=jnp.float32) * (1.0 / (C2 * S))
    g2_ref[...] = g2
    mse_to_ref(g2 - tg2_ref[...], C2 * C2, sl2_ref)

    # relu_2 -> pool_2 (2x2 max pool: pair-max + MXU decimation, lanes stay wide)
    y2r = jnp.maximum(y2, 0.0)
    hp = jnp.maximum(y2r, _dot(y2r, mph_ref[...]))                  # max(y[p], y[p+1])
    z = _dot(hp, sel1_ref[...])                                     # (8, 128) keep even w
    vp = jnp.maximum(z, _dot(z, mpv_ref[...]))                      # max(z[q], z[q+8])
    pooled = _dot(vp, sel2_ref[...])                                # (8, 128), lanes>=64 = 0

    # conv_3 + content_loss_3
    y3 = conv3x3(pooled, w3_ref, b3_ref, m3_ref)                    # (16, 128)
    y3_ref[...] = y3
    lane = lax.broadcasted_iota(jnp.int32, (C3, S2P), 1)
    d3 = jnp.where(lane < S2, y3 - tc3_ref[...], 0.0)
    mse_to_ref(d3, C3 * S2, cl3_ref)


# ----------------------------- wrappers -----------------------------
def _full_spec(shape):
    return pl.BlockSpec(shape, lambda: (0,) * len(shape))


def _fused_forward(x_cs, pt, tg1, tg2, tc3):
    inputs = (
        x_cs, _MEAN, _ISTD,
        pt["w1"], pt["b1"], pt["w2"], pt["b2"], pt["w3"], pt["b3"],
        _M1, _M3, _MPH, _SEL1, _MPV, _SEL2,
        tg1, tg2, tc3,
    )
    out_shapes = (
        jax.ShapeDtypeStruct((C3, S2P), jnp.float32),   # conv_3 features (lane padded)
        jax.ShapeDtypeStruct((C1, C1), jnp.float32),    # gram(conv_1)
        jax.ShapeDtypeStruct((C2, C2), jnp.float32),    # gram(conv_2)
        jax.ShapeDtypeStruct((1, 1), jnp.float32),      # style_loss_1
        jax.ShapeDtypeStruct((1, 1), jnp.float32),      # style_loss_2
        jax.ShapeDtypeStruct((1, 1), jnp.float32),      # content_loss_3
    )
    return pl.pallas_call(
        _fused_forward_kernel,
        out_shape=out_shapes,
        in_specs=[_full_spec(a.shape) for a in inputs],
        out_specs=tuple(_full_spec(s.shape) for s in out_shapes),
        compiler_params=pltpu.CompilerParams(vmem_limit_bytes=64 * 1024 * 1024),
    )(*inputs)


def _prep_params(params):
    def wmat(w):
        cout, cin = w.shape[0], w.shape[1]
        # (Cout, Cin, 3, 3) -> (9, Cout, Cin), tap index = dh*3 + dw
        return jnp.transpose(w, (2, 3, 0, 1)).reshape(9, cout, cin).astype(jnp.float32)

    return {
        "w1": wmat(params["w1"]), "b1": params["b1"].reshape(C1, 1).astype(jnp.float32),
        "w2": wmat(params["w2"]), "b2": params["b2"].reshape(C2, 1).astype(jnp.float32),
        "w3": wmat(params["w3"]), "b3": params["b3"].reshape(C3, 1).astype(jnp.float32),
    }


@jax.jit
def _run_model(x_nchw, params, tg1, tg2, tc3):
    pt = _prep_params(params)
    x_cs = x_nchw.reshape(C_IN, S).astype(jnp.float32)   # (C, H*W) channel-major, N == 1
    y3p, g1, g2, sl1, sl2, cl3 = _fused_forward(x_cs, pt, tg1, tg2, tc3)
    y3 = y3p[:, :S2].reshape(1, C3, H2, W2)
    return y3, y3p, g1, g2, sl1[0, 0], sl2[0, 0], cl3[0, 0]


class StyleTransferModel:
    """Pallas/TPU port of the truncated feature extractor (fixed batch size 1)."""

    def __init__(self, params, content_image, style_image):
        assert content_image.shape == (1, C_IN, H, W)
        assert style_image.shape == (1, C_IN, H, W)
        self.params = params
        zg = jnp.zeros((C1, C1), jnp.float32)
        zc = jnp.zeros((C3, S2P), jnp.float32)
        # Style targets: grams of conv_1 / conv_2 features of the style image.
        _, _, g1_s, g2_s, _, _, _ = _run_model(style_image, params, zg, zg, zc)
        self.target_g1, self.target_g2 = g1_s, g2_s
        # Content target: conv_3 feature map of the content image (lane-padded form).
        _, y3p_c, _, _, _, _, _ = _run_model(content_image, params, zg, zg, zc)
        self.target_c3 = y3p_c

    def forward(self, x):
        assert x.shape == (1, C_IN, H, W)
        y3, _, _, _, sl1, sl2, cl3 = _run_model(
            x, self.params, self.target_g1, self.target_g2, self.target_c3)
        # Loss modules are pass-through; losses are concrete outputs of the jitted
        # runner (never tracers), stored as attributes like the torch module.
        self.style_loss_1 = sl1
        self.style_loss_2 = sl2
        self.content_loss_3 = cl3
        return y3


if __name__ == "__main__":
    key = jax.random.PRNGKey(0)
    k = jax.random.split(key, 8)

    params = {
        "w1": 0.1 * jax.random.normal(k[0], (C1, C_IN, 3, 3), jnp.float32),
        "b1": 0.1 * jax.random.normal(k[1], (C1,), jnp.float32),
        "w2": 0.1 * jax.random.normal(k[2], (C2, C1, 3, 3), jnp.float32),
        "b2": 0.1 * jax.random.normal(k[3], (C2,), jnp.float32),
        "w3": 0.1 * jax.random.normal(k[4], (C3, C2, 3, 3), jnp.float32),
        "b3": 0.1 * jax.random.normal(k[5], (C3,), jnp.float32),
    }

    x = jax.random.uniform(k[6], (1, C_IN, H, W), jnp.float32)
    content_image = jax.random.uniform(k[7], (1, C_IN, H, W), jnp.float32)
    style_image = jax.random.uniform(jax.random.PRNGKey(1), (1, C_IN, H, W), jnp.float32)

    model = StyleTransferModel(params, content_image, style_image)
    out = model.forward(x)
    jax.block_until_ready(out)
    jax.block_until_ready(model.style_loss_1)
    jax.block_until_ready(model.style_loss_2)
    jax.block_until_ready(model.content_loss_3)

    assert out.shape == (1, C3, H2, W2)
    assert out.dtype == jnp.float32
    print("KERNEL_OK")
</pallas_src>

<mosaic_0001>
module attributes {stable_mosaic.version = 11 : i64} {
  func.func @_fused_forward_kernel(%arg0: memref<3x256xf32, #tpu.memory_space<vmem>>, %arg1: memref<3x1xf32, #tpu.memory_space<vmem>>, %arg2: memref<3x1xf32, #tpu.memory_space<vmem>>, %arg3: memref<9x8x3xf32, #tpu.memory_space<vmem>>, %arg4: memref<8x1xf32, #tpu.memory_space<vmem>>, %arg5: memref<9x8x8xf32, #tpu.memory_space<vmem>>, %arg6: memref<8x1xf32, #tpu.memory_space<vmem>>, %arg7: memref<9x16x8xf32, #tpu.memory_space<vmem>>, %arg8: memref<16x1xf32, #tpu.memory_space<vmem>>, %arg9: memref<9x256x256xf32, #tpu.memory_space<vmem>>, %arg10: memref<9x128x128xf32, #tpu.memory_space<vmem>>, %arg11: memref<256x256xf32, #tpu.memory_space<vmem>>, %arg12: memref<256x128xf32, #tpu.memory_space<vmem>>, %arg13: memref<128x128xf32, #tpu.memory_space<vmem>>, %arg14: memref<128x128xf32, #tpu.memory_space<vmem>>, %arg15: memref<8x8xf32, #tpu.memory_space<vmem>>, %arg16: memref<8x8xf32, #tpu.memory_space<vmem>>, %arg17: memref<16x128xf32, #tpu.memory_space<vmem>>, %arg18: memref<16x128xf32, #tpu.memory_space<vmem>>, %arg19: memref<8x8xf32, #tpu.memory_space<vmem>>, %arg20: memref<8x8xf32, #tpu.memory_space<vmem>>, %arg21: memref<1x1xf32, #tpu.memory_space<vmem>>, %arg22: memref<1x1xf32, #tpu.memory_space<vmem>>, %arg23: memref<1x1xf32, #tpu.memory_space<vmem>>) attributes {dimension_semantics = [], scalar_prefetch = 0 : i64, scratch_operands = 0 : i64, tpu.core_type = #tpu.core_type<tc>} {
    %c0 = arith.constant 0 : index
    %c0_0 = arith.constant 0 : index
    %0 = vector.load %arg0[%c0, %c0_0] : memref<3x256xf32, #tpu.memory_space<vmem>>, vector<3x256xf32>
    %c0_1 = arith.constant 0 : index
    %c0_2 = arith.constant 0 : index
    %1 = vector.load %arg1[%c0_1, %c0_2] : memref<3x1xf32, #tpu.memory_space<vmem>>, vector<3x1xf32>
    %2 = vector.broadcast %1 : vector<3x1xf32> to vector<3x256xf32>
    %3 = arith.subf %0, %2 : vector<3x256xf32>
    %c0_3 = arith.constant 0 : index
    %c0_4 = arith.constant 0 : index
    %4 = vector.load %arg2[%c0_3, %c0_4] : memref<3x1xf32, #tpu.memory_space<vmem>>, vector<3x1xf32>
    %5 = vector.broadcast %4 : vector<3x1xf32> to vector<3x256xf32>
    %6 = arith.mulf %3, %5 : vector<3x256xf32>
    %c0_5 = arith.constant 0 : index
    %c0_6 = arith.constant 0 : index
    %c0_7 = arith.constant 0 : index
    %7 = vector.load %arg9[%c0_5, %c0_6, %c0_7] : memref<9x256x256xf32, #tpu.memory_space<vmem>>, vector<1x256x256xf32>
    %8 = vector.shape_cast %7 : vector<1x256x256xf32> to vector<256x256xf32>
    %cst = arith.constant dense<0.000000e+00> : vector<3x256xf32>
    %9 = tpu.matmul %6, %8, %cst {dimension_numbers = #tpu.dot_dimension_numbers<[1], [0], [0], [1], [0, 0, 1, 1], [], []>} : vector<3x256xf32>, vector<256x256xf32>, vector<3x256xf32> -> vector<3x256xf32>
    %c0_8 = arith.constant 0 : index
    %c0_9 = arith.constant 0 : index
    %c0_10 = arith.constant 0 : index
    %10 = vector.load %arg3[%c0_8, %c0_9, %c0_10] : memref<9x8x3xf32, #tpu.memory_space<vmem>>, vector<1x8x3xf32>
    %11 = vector.shape_cast %10 : vector<1x8x3xf32> to vector<8x3xf32>
    %cst_11 = arith.constant dense<0.000000e+00> : vector<8x256xf32>
    %12 = tpu.matmul %11, %9, %cst_11 {dimension_numbers = #tpu.dot_dimension_numbers<[1], [0], [0], [1], [0, 0, 1, 1], [], []>} : vector<8x3xf32>, vector<3x256xf32>, vector<8x256xf32> -> vector<8x256xf32>
    %c1 = arith.constant 1 : index
    %c0_12 = arith.constant 0 : index
    %c0_13 = arith.constant 0 : index
    %13 = vector.load %arg9[%c1, %c0_12, %c0_13] : memref<9x256x256xf32, #tpu.memory_space<vmem>>, vector<1x256x256xf32>
    %14 = vector.shape_cast %13 : vector<1x256x256xf32> to vector<256x256xf32>
    %cst_14 = arith.constant dense<0.000000e+00> : vector<3x256xf32>
    %15 = tpu.matmul %6, %14, %cst_14 {dimension_numbers = #tpu.dot_dimension_numbers<[1], [0], [0], [1], [0, 0, 1, 1], [], []>} : vector<3x256xf32>, vector<256x256xf32>, vector<3x256xf32> -> vector<3x256xf32>
    %c1_15 = arith.constant 1 : index
    %c0_16 = arith.constant 0 : index
    %c0_17 = arith.constant 0 : index
    %16 = vector.load %arg3[%c1_15, %c0_16, %c0_17] : memref<9x8x3xf32, #tpu.memory_space<vmem>>, vector<1x8x3xf32>
    %17 = vector.shape_cast %16 : vector<1x8x3xf32> to vector<8x3xf32>
    %cst_18 = arith.constant dense<0.000000e+00> : vector<8x256xf32>
    %18 = tpu.matmul %17, %15, %cst_18 {dimension_numbers = #tpu.dot_dimension_numbers<[1], [0], [0], [1], [0, 0, 1, 1], [], []>} : vector<8x3xf32>, vector<3x256xf32>, vector<8x256xf32> -> vector<8x256xf32>
    %19 = arith.addf %12, %18 : vector<8x256xf32>
    %c2 = arith.constant 2 : index
    %c0_19 = arith.constant 0 : index
    %c0_20 = arith.constant 0 : index
    %20 = vector.load %arg9[%c2, %c0_19, %c0_20] : memref<9x256x256xf32, #tpu.memory_space<vmem>>, vector<1x256x256xf32>
    %21 = vector.shape_cast %20 : vector<1x256x256xf32> to vector<256x256xf32>
    %cst_21 = arith.constant dense<0.000000e+00> : vector<3x256xf32>
    %22 = tpu.matmul %6, %21, %cst_21 {dimension_numbers = #tpu.dot_dimension_numbers<[1], [0], [0], [1], [0, 0, 1, 1], [], []>} : vector<3x256xf32>, vector<256x256xf32>, vector<3x256xf32> -> vector<3x256xf32>
    %c2_22 = arith.constant 2 : index
    %c0_23 = arith.constant 0 : index
    %c0_24 = arith.constant 0 : index
    %23 = vector.load %arg3[%c2_22, %c0_23, %c0_24] : memref<9x8x3xf32, #tpu.memory_space<vmem>>, vector<1x8x3xf32>
    %24 = vector.shape_cast %23 : vector<1x8x3xf32> to vector<8x3xf32>
    %cst_25 = arith.constant dense<0.000000e+00> : vector<8x256xf32>
    %25 = tpu.matmul %24, %22, %cst_25 {dimension_numbers = #tpu.dot_dimension_numbers<[1], [0], [0], [1], [0, 0, 1, 1], [], []>} : vector<8x3xf32>, vector<3x256xf32>, vector<8x256xf32> -> vector<8x256xf32>
    %26 = arith.addf %19, %25 : vector<8x256xf32>
    %c3 = arith.constant 3 : index
    %c0_26 = arith.constant 0 : index
    %c0_27 = arith.constant 0 : index
    %27 = vector.load %arg9[%c3, %c0_26, %c0_27] : memref<9x256x256xf32, #tpu.memory_space<vmem>>, vector<1x256x256xf32>
    %28 = vector.shape_cast %27 : vector<1x256x256xf32> to vector<256x256xf32>
    %cst_28 = arith.constant dense<0.000000e+00> : vector<3x256xf32>
    %29 = tpu.matmul %6, %28, %cst_28 {dimension_numbers = #tpu.dot_dimension_numbers<[1], [0], [0], [1], [0, 0, 1, 1], [], []>} : vector<3x256xf32>, vector<256x256xf32>, vector<3x256xf32> -> vector<3x256xf32>
    %c3_29 = arith.constant 3 : index
    %c0_30 = arith.constant 0 : index
    %c0_31 = arith.constant 0 : index
    %30 = vector.load %arg3[%c3_29, %c0_30, %c0_31] : memref<9x8x3xf32, #tpu.memory_space<vmem>>, vector<1x8x3xf32>
    %31 = vector.shape_cast %30 : vector<1x8x3xf32> to vector<8x3xf32>
    %cst_32 = arith.constant dense<0.000000e+00> : vector<8x256xf32>
    %32 = tpu.matmul %31, %29, %cst_32 {dimension_numbers = #tpu.dot_dimension_numbers<[1], [0], [0], [1], [0, 0, 1, 1], [], []>} : vector<8x3xf32>, vector<3x256xf32>, vector<8x256xf32> -> vector<8x256xf32>
    %33 = arith.addf %26, %32 : vector<8x256xf32>
    %c4 = arith.constant 4 : index
    %c0_33 = arith.constant 0 : index
    %c0_34 = arith.constant 0 : index
    %34 = vector.load %arg9[%c4, %c0_33, %c0_34] : memref<9x256x256xf32, #tpu.memory_space<vmem>>, vector<1x256x256xf32>
    %35 = vector.shape_cast %34 : vector<1x256x256xf32> to vector<256x256xf32>
    %cst_35 = arith.constant dense<0.000000e+00> : vector<3x256xf32>
    %36 = tpu.matmul %6, %35, %cst_35 {dimension_numbers = #tpu.dot_dimension_numbers<[1], [0], [0], [1], [0, 0, 1, 1], [], []>} : vector<3x256xf32>, vector<256x256xf32>, vector<3x256xf32> -> vector<3x256xf32>
    %c4_36 = arith.constant 4 : index
    %c0_37 = arith.constant 0 : index
    %c0_38 = arith.constant 0 : index
    %37 = vector.load %arg3[%c4_36, %c0_37, %c0_38] : memref<9x8x3xf32, #tpu.memory_space<vmem>>, vector<1x8x3xf32>
    %38 = vector.shape_cast %37 : vector<1x8x3xf32> to vector<8x3xf32>
    %cst_39 = arith.constant dense<0.000000e+00> : vector<8x256xf32>
    %39 = tpu.matmul %38, %36, %cst_39 {dimension_numbers = #tpu.dot_dimension_numbers<[1], [0], [0], [1], [0, 0, 1, 1], [], []>} : vector<8x3xf32>, vector<3x256xf32>, vector<8x256xf32> -> vector<8x256xf32>
    %40 = arith.addf %33, %39 : vector<8x256xf32>
    %c5 = arith.constant 5 : index
    %c0_40 = arith.constant 0 : index
    %c0_41 = arith.constant 0 : index
    %41 = vector.load %arg9[%c5, %c0_40, %c0_41] : memref<9x256x256xf32, #tpu.memory_space<vmem>>, vector<1x256x256xf32>
    %42 = vector.shape_cast %41 : vector<1x256x256xf32> to vector<256x256xf32>
    %cst_42 = arith.constant dense<0.000000e+00> : vector<3x256xf32>
    %43 = tpu.matmul %6, %42, %cst_42 {dimension_numbers = #tpu.dot_dimension_numbers<[1], [0], [0], [1], [0, 0, 1, 1], [], []>} : vector<3x256xf32>, vector<256x256xf32>, vector<3x256xf32> -> vector<3x256xf32>
    %c5_43 = arith.constant 5 : index
    %c0_44 = arith.constant 0 : index
    %c0_45 = arith.constant 0 : index
    %44 = vector.load %arg3[%c5_43, %c0_44, %c0_45] : memref<9x8x3xf32, #tpu.memory_space<vmem>>, vector<1x8x3xf32>
    %45 = vector.shape_cast %44 : vector<1x8x3xf32> to vector<8x3xf32>
    %cst_46 = arith.constant dense<0.000000e+00> : vector<8x256xf32>
    %46 = tpu.matmul %45, %43, %cst_46 {dimension_numbers = #tpu.dot_dimension_numbers<[1], [0], [0], [1], [0, 0, 1, 1], [], []>} : vector<8x3xf32>, vector<3x256xf32>, vector<8x256xf32> -> vector<8x256xf32>
    %47 = arith.addf %40, %46 : vector<8x256xf32>
    %c6 = arith.constant 6 : index
    %c0_47 = arith.constant 0 : index
    %c0_48 = arith.constant 0 : index
    %48 = vector.load %arg9[%c6, %c0_47, %c0_48] : memref<9x256x256xf32, #tpu.memory_space<vmem>>, vector<1x256x256xf32>
    %49 = vector.shape_cast %48 : vector<1x256x256xf32> to vector<256x256xf32>
    %cst_49 = arith.constant dense<0.000000e+00> : vector<3x256xf32>
    %50 = tpu.matmul %6, %49, %cst_49 {dimension_numbers = #tpu.dot_dimension_numbers<[1], [0], [0], [1], [0, 0, 1, 1], [], []>} : vector<3x256xf32>, vector<256x256xf32>, vector<3x256xf32> -> vector<3x256xf32>
    %c6_50 = arith.constant 6 : index
    %c0_51 = arith.constant 0 : index
    %c0_52 = arith.constant 0 : index
    %51 = vector.load %arg3[%c6_50, %c0_51, %c0_52] : memref<9x8x3xf32, #tpu.memory_space<vmem>>, vector<1x8x3xf32>
    %52 = vector.shape_cast %51 : vector<1x8x3xf32> to vector<8x3xf32>
    %cst_53 = arith.constant dense<0.000000e+00> : vector<8x256xf32>
    %53 = tpu.matmul %52, %50, %cst_53 {dimension_numbers = #tpu.dot_dimension_numbers<[1], [0], [0], [1], [0, 0, 1, 1], [], []>} : vector<8x3xf32>, vector<3x256xf32>, vector<8x256xf32> -> vector<8x256xf32>
    %54 = arith.addf %47, %53 : vector<8x256xf32>
    %c7 = arith.constant 7 : index
    %c0_54 = arith.constant 0 : index
    %c0_55 = arith.constant 0 : index
    %55 = vector.load %arg9[%c7, %c0_54, %c0_55] : memref<9x256x256xf32, #tpu.memory_space<vmem>>, vector<1x256x256xf32>
    %56 = vector.shape_cast %55 : vector<1x256x256xf32> to vector<256x256xf32>
    %cst_56 = arith.constant dense<0.000000e+00> : vector<3x256xf32>
    %57 = tpu.matmul %6, %56, %cst_56 {dimension_numbers = #tpu.dot_dimension_numbers<[1], [0], [0], [1], [0, 0, 1, 1], [], []>} : vector<3x256xf32>, vector<256x256xf32>, vector<3x256xf32> -> vector<3x256xf32>
    %c7_57 = arith.constant 7 : index
    %c0_58 = arith.constant 0 : index
    %c0_59 = arith.constant 0 : index
    %58 = vector.load %arg3[%c7_57, %c0_58, %c0_59] : memref<9x8x3xf32, #tpu.memory_space<vmem>>, vector<1x8x3xf32>
    %59 = vector.shape_cast %58 : vector<1x8x3xf32> to vector<8x3xf32>
    %cst_60 = arith.constant dense<0.000000e+00> : vector<8x256xf32>
    %60 = tpu.matmul %59, %57, %cst_60 {dimension_numbers = #tpu.dot_dimension_numbers<[1], [0], [0], [1], [0, 0, 1, 1], [], []>} : vector<8x3xf32>, vector<3x256xf32>, vector<8x256xf32> -> vector<8x256xf32>
    %61 = arith.addf %54, %60 : vector<8x256xf32>
    %c8 = arith.constant 8 : index
    %c0_61 = arith.constant 0 : index
    %c0_62 = arith.constant 0 : index
    %62 = vector.load %arg9[%c8, %c0_61, %c0_62] : memref<9x256x256xf32, #tpu.memory_space<vmem>>, vector<1x256x256xf32>
    %63 = vector.shape_cast %62 : vector<1x256x256xf32> to vector<256x256xf32>
    %cst_63 = arith.constant dense<0.000000e+00> : vector<3x256xf32>
    %64 = tpu.matmul %6, %63, %cst_63 {dimension_numbers = #tpu.dot_dimension_numbers<[1], [0], [0], [1], [0, 0, 1, 1], [], []>} : vector<3x256xf32>, vector<256x256xf32>, vector<3x256xf32> -> vector<3x256xf32>
    %c8_64 = arith.constant 8 : index
    %c0_65 = arith.constant 0 : index
    %c0_66 = arith.constant 0 : index
    %65 = vector.load %arg3[%c8_64, %c0_65, %c0_66] : memref<9x8x3xf32, #tpu.memory_space<vmem>>, vector<1x8x3xf32>
    %66 = vector.shape_cast %65 : vector<1x8x3xf32> to vector<8x3xf32>
    %cst_67 = arith.constant dense<0.000000e+00> : vector<8x256xf32>
    %67 = tpu.matmul %66, %64, %cst_67 {dimension_numbers = #tpu.dot_dimension_numbers<[1], [0], [0], [1], [0, 0, 1, 1], [], []>} : vector<8x3xf32>, vector<3x256xf32>, vector<8x256xf32> -> vector<8x256xf32>
    %68 = arith.addf %61, %67 : vector<8x256xf32>
    %c0_68 = arith.constant 0 : index
    %c0_69 = arith.constant 0 : index
    %69 = vector.load %arg4[%c0_68, %c0_69] : memref<8x1xf32, #tpu.memory_space<vmem>>, vector<8x1xf32>
    %70 = vector.broadcast %69 : vector<8x1xf32> to vector<8x256xf32>
    %71 = arith.addf %68, %70 : vector<8x256xf32>
    %cst_70 = arith.constant dense<0.000000e+00> : vector<8x8xf32>
    %72 = tpu.matmul %71, %71, %cst_70 {dimension_numbers = #tpu.dot_dimension_numbers<[1], [1], [0], [0], [0, 0, 1, 0], [], []>} : vector<8x256xf32>, vector<8x256xf32>, vector<8x8xf32> -> vector<8x8xf32>
    %cst_71 = arith.constant 4.8828125E-4 : f32
    %73 = vector.broadcast %cst_71 : f32 to vector<8x8xf32>
    %74 = arith.mulf %72, %73 : vector<8x8xf32>
    %c0_72 = arith.constant 0 : index
    %c0_73 = arith.constant 0 : index
    %75 = vector.load %arg19[%c0_72, %c0_73] : memref<8x8xf32, #tpu.memory_space<vmem>>, vector<8x8xf32>
    tpu.vector_store %arg19[%c0_72, %c0_73], %74 {strides = array<i32>} : memref<8x8xf32, #tpu.memory_space<vmem>>, vector<8x8xf32>,
    %c0_74 = arith.constant 0 : index
    %c0_75 = arith.constant 0 : index
    %76 = vector.load %arg15[%c0_74, %c0_75] : memref<8x8xf32, #tpu.memory_space<vmem>>, vector<8x8xf32>
    %77 = arith.subf %74, %76 : vector<8x8xf32>
    %78 = arith.mulf %77, %77 : vector<8x8xf32>
    %cst_76 = arith.constant dense<0.000000e+00> : vector<8xf32>
    %79 = vector.multi_reduction <add>, %78, %cst_76 [1] : vector<8x8xf32> to vector<8xf32>
    %80 = vector.shape_cast %79 : vector<8xf32> to vector<8x1xf32>
    %cst_77 = arith.constant dense<0.000000e+00> : vector<1xf32>
    %81 = vector.multi_reduction <add>, %80, %cst_77 [0] : vector<8x1xf32> to vector<1xf32>
    %82 = vector.shape_cast %81 : vector<1xf32> to vector<1x1xf32>
    %cst_78 = arith.constant 1.562500e-02 : f32
    %83 = vector.broadcast %cst_78 : f32 to vector<1x1xf32>
    %84 = arith.mulf %82, %83 : vector<1x1xf32>
    %c0_79 = arith.constant 0 : index
    %c0_80 = arith.constant 0 : index
    %85 = vector.load %arg21[%c0_79, %c0_80] : memref<1x1xf32, #tpu.memory_space<vmem>>, vector<1x1xf32>
    tpu.vector_store %arg21[%c0_79, %c0_80], %84 {strides = array<i32>} : memref<1x1xf32, #tpu.memory_space<vmem>>, vector<1x1xf32>,
    %cst_81 = arith.constant 0.000000e+00 : f32
    %86 = vector.broadcast %cst_81 : f32 to vector<8x256xf32>
    %87 = arith.maximumf %71, %86 : vector<8x256xf32>
    %c0_82 = arith.constant 0 : index
    %c0_83 = arith.constant 0 : index
    %c0_84 = arith.constant 0 : index
    %88 = vector.load %arg9[%c0_82, %c0_83, %c0_84] : memref<9x256x256xf32, #tpu.memory_space<vmem>>, vector<1x256x256xf32>
    %89 = vector.shape_cast %88 : vector<1x256x256xf32> to vector<256x256xf32>
    %cst_85 = arith.constant dense<0.000000e+00> : vector<8x256xf32>
    %90 = tpu.matmul %87, %89, %cst_85 {dimension_numbers = #tpu.dot_dimension_numbers<[1], [0], [0], [1], [0, 0, 1, 1], [], []>} : vector<8x256xf32>, vector<256x256xf32>, vector<8x256xf32> -> vector<8x256xf32>
    %c0_86 = arith.constant 0 : index
    %c0_87 = arith.constant 0 : index
    %c0_88 = arith.constant 0 : index
    %91 = vector.load %arg5[%c0_86, %c0_87, %c0_88] : memref<9x8x8xf32, #tpu.memory_space<vmem>>, vector<1x8x8xf32>
    %92 = vector.shape_cast %91 : vector<1x8x8xf32> to vector<8x8xf32>
    %cst_89 = arith.constant dense<0.000000e+00> : vector<8x256xf32>
    %93 = tpu.matmul %92, %90, %cst_89 {dimension_numbers = #tpu.dot_dimension_numbers<[1], [0], [0], [1], [0, 0, 1, 1], [], []>} : vector<8x8xf32>, vector<8x256xf32>, vector<8x256xf32> -> vector<8x256xf32>
    %c1_90 = arith.constant 1 : index
    %c0_91 = arith.constant 0 : index
    %c0_92 = arith.constant 0 : index
    %94 = vector.load %arg9[%c1_90, %c0_91, %c0_92] : memref<9x256x256xf32, #tpu.memory_space<vmem>>, vector<1x256x256xf32>
    %95 = vector.shape_cast %94 : vector<1x256x256xf32> to vector<256x256xf32>
    %cst_93 = arith.constant dense<0.000000e+00> : vector<8x256xf32>
    %96 = tpu.matmul %87, %95, %cst_93 {dimension_numbers = #tpu.dot_dimension_numbers<[1], [0], [0], [1], [0, 0, 1, 1], [], []>} : vector<8x256xf32>, vector<256x256xf32>, vector<8x256xf32> -> vector<8x256xf32>
    %c1_94 = arith.constant 1 : index
    %c0_95 = arith.constant 0 : index
    %c0_96 = arith.constant 0 : index
    %97 = vector.load %arg5[%c1_94, %c0_95, %c0_96] : memref<9x8x8xf32, #tpu.memory_space<vmem>>, vector<1x8x8xf32>
    %98 = vector.shape_cast %97 : vector<1x8x8xf32> to vector<8x8xf32>
    %cst_97 = arith.constant dense<0.000000e+00> : vector<8x256xf32>
    %99 = tpu.matmul %98, %96, %cst_97 {dimension_numbers = #tpu.dot_dimension_numbers<[1], [0], [0], [1], [0, 0, 1, 1], [], []>} : vector<8x8xf32>, vector<8x256xf32>, vector<8x256xf32> -> vector<8x256xf32>
    %100 = arith.addf %93, %99 : vector<8x256xf32>
    %c2_98 = arith.constant 2 : index
    %c0_99 = arith.constant 0 : index
    %c0_100 = arith.constant 0 : index
    %101 = vector.load %arg9[%c2_98, %c0_99, %c0_100] : memref<9x256x256xf32, #tpu.memory_space<vmem>>, vector<1x256x256xf32>
    %102 = vector.shape_cast %101 : vector<1x256x256xf32> to vector<256x256xf32>
    %cst_101 = arith.constant dense<0.000000e+00> : vector<8x256xf32>
    %103 = tpu.matmul %87, %102, %cst_101 {dimension_numbers = #tpu.dot_dimension_numbers<[1], [0], [0], [1], [0, 0, 1, 1], [], []>} : vector<8x256xf32>, vector<256x256xf32>, vector<8x256xf32> -> vector<8x256xf32>
    %c2_102 = arith.constant 2 : index
    %c0_103 = arith.constant 0 : index
    %c0_104 = arith.constant 0 : index
    %104 = vector.load %arg5[%c2_102, %c0_103, %c0_104] : memref<9x8x8xf32, #tpu.memory_space<vmem>>, vector<1x8x8xf32>
    %105 = vector.shape_cast %104 : vector<1x8x8xf32> to vector<8x8xf32>
    %cst_105 = arith.constant dense<0.000000e+00> : vector<8x256xf32>
    %106 = tpu.matmul %105, %103, %cst_105 {dimension_numbers = #tpu.dot_dimension_numbers<[1], [0], [0], [1], [0, 0, 1, 1], [], []>} : vector<8x8xf32>, vector<8x256xf32>, vector<8x256xf32> -> vector<8x256xf32>
    %107 = arith.addf %100, %106 : vector<8x256xf32>
    %c3_106 = arith.constant 3 : index
    %c0_107 = arith.constant 0 : index
    %c0_108 = arith.constant 0 : index
    %108 = vector.load %arg9[%c3_106, %c0_107, %c0_108] : memref<9x256x256xf32, #tpu.memory_space<vmem>>, vector<1x256x256xf32>
    %109 = vector.shape_cast %108 : vector<1x256x256xf32> to vector<256x256xf32>
    %cst_109 = arith.constant dense<0.000000e+00> : vector<8x256xf32>
    %110 = tpu.matmul %87, %109, %cst_109 {dimension_numbers = #tpu.dot_dimension_numbers<[1], [0], [0], [1], [0, 0, 1, 1], [], []>} : vector<8x256xf32>, vector<256x256xf32>, vector<8x256xf32> -> vector<8x256xf32>
    %c3_110 = arith.constant 3 : index
    %c0_111 = arith.constant 0 : index
    %c0_112 = arith.constant 0 : index
    %111 = vector.load %arg5[%c3_110, %c0_111, %c0_112] : memref<9x8x8xf32, #tpu.memory_space<vmem>>, vector<1x8x8xf32>
    %112 = vector.shape_cast %111 : vector<1x8x8xf32> to vector<8x8xf32>
    %cst_113 = arith.constant dense<0.000000e+00> : vector<8x256xf32>
    %113 = tpu.matmul %112, %110, %cst_113 {dimension_numbers = #tpu.dot_dimension_numbers<[1], [0], [0], [1], [0, 0, 1, 1], [], []>} : vector<8x8xf32>, vector<8x256xf32>, vector<8x256xf32> -> vector<8x256xf32>
    %114 = arith.addf %107, %113 : vector<8x256xf32>
    %c4_114 = arith.constant 4 : index
    %c0_115 = arith.constant 0 : index
    %c0_116 = arith.constant 0 : index
    %115 = vector.load %arg9[%c4_114, %c0_115, %c0_116] : memref<9x256x256xf32, #tpu.memory_space<vmem>>, vector<1x256x256xf32>
    %116 = vector.shape_cast %115 : vector<1x256x256xf32> to vector<256x256xf32>
    %cst_117 = arith.constant dense<0.000000e+00> : vector<8x256xf32>
    %117 = tpu.matmul %87, %116, %cst_117 {dimension_numbers = #tpu.dot_dimension_numbers<[1], [0], [0], [1], [0, 0, 1, 1], [], []>} : vector<8x256xf32>, vector<256x256xf32>, vector<8x256xf32> -> vector<8x256xf32>
    %c4_118 = arith.constant 4 : index
    %c0_119 = arith.constant 0 : index
    %c0_120 = arith.constant 0 : index
    %118 = vector.load %arg5[%c4_118, %c0_119, %c0_120] : memref<9x8x8xf32, #tpu.memory_space<vmem>>, vector<1x8x8xf32>
    %119 = vector.shape_cast %118 : vector<1x8x8xf32> to vector<8x8xf32>
    %cst_121 = arith.constant dense<0.000000e+00> : vector<8x256xf32>
    %120 = tpu.matmul %119, %117, %cst_121 {dimension_numbers = #tpu.dot_dimension_numbers<[1], [0], [0], [1], [0, 0, 1, 1], [], []>} : vector<8x8xf32>, vector<8x256xf32>, vector<8x256xf32> -> vector<8x256xf32>
    %121 = arith.addf %114, %120 : vector<8x256xf32>
    %c5_122 = arith.constant 5 : index
    %c0_123 = arith.constant 0 : index
    %c0_124 = arith.constant 0 : index
    %122 = vector.load %arg9[%c5_122, %c0_123, %c0_124] : memref<9x256x256xf32, #tpu.memory_space<vmem>>, vector<1x256x256xf32>
    %123 = vector.shape_cast %122 : vector<1x256x256xf32> to vector<256x256xf32>
    %cst_125 = arith.constant dense<0.000000e+00> : vector<8x256xf32>
    %124 = tpu.matmul %87, %123, %cst_125 {dimension_numbers = #tpu.dot_dimension_numbers<[1], [0], [0], [1], [0, 0, 1, 1], [], []>} : vector<8x256xf32>, vector<256x256xf32>, vector<8x256xf32> -> vector<8x256xf32>
    %c5_126 = arith.constant 5 : index
    %c0_127 = arith.constant 0 : index
    %c0_128 = arith.constant 0 : index
    %125 = vector.load %arg5[%c5_126, %c0_127, %c0_128] : memref<9x8x8xf32, #tpu.memory_space<vmem>>, vector<1x8x8xf32>
    %126 = vector.shape_cast %125 : vector<1x8x8xf32> to vector<8x8xf32>
    %cst_129 = arith.constant dense<0.000000e+00> : vector<8x256xf32>
    %127 = tpu.matmul %126, %124, %cst_129 {dimension_numbers = #tpu.dot_dimension_numbers<[1], [0], [0], [1], [0, 0, 1, 1], [], []>} : vector<8x8xf32>, vector<8x256xf32>, vector<8x256xf32> -> vector<8x256xf32>
    %128 = arith.addf %121, %127 : vector<8x256xf32>
    %c6_130 = arith.constant 6 : index
    %c0_131 = arith.constant 0 : index
    %c0_132 = arith.constant 0 : index
    %129 = vector.load %arg9[%c6_130, %c0_131, %c0_132] : memref<9x256x256xf32, #tpu.memory_space<vmem>>, vector<1x256x256xf32>
    %130 = vector.shape_cast %129 : vector<1x256x256xf32> to vector<256x256xf32>
    %cst_133 = arith.constant dense<0.000000e+00> : vector<8x256xf32>
    %131 = tpu.matmul %87, %130, %cst_133 {dimension_numbers = #tpu.dot_dimension_numbers<[1], [0], [0], [1], [0, 0, 1, 1], [], []>} : vector<8x256xf32>, vector<256x256xf32>, vector<8x256xf32> -> vector<8x256xf32>
    %c6_134 = arith.constant 6 : index
    %c0_135 = arith.constant 0 : index
    %c0_136 = arith.constant 0 : index
    %132 = vector.load %arg5[%c6_134, %c0_135, %c0_136] : memref<9x8x8xf32, #tpu.memory_space<vmem>>, vector<1x8x8xf32>
    %133 = vector.shape_cast %132 : vector<1x8x8xf32> to vector<8x8xf32>
    %cst_137 = arith.constant dense<0.000000e+00> : vector<8x256xf32>
    %134 = tpu.matmul %133, %131, %cst_137 {dimension_numbers = #tpu.dot_dimension_numbers<[1], [0], [0], [1], [0, 0, 1, 1], [], []>} : vector<8x8xf32>, vector<8x256xf32>, vector<8x256xf32> -> vector<8x256xf32>
    %135 = arith.addf %128, %134 : vector<8x256xf32>
    %c7_138 = arith.constant 7 : index
    %c0_139 = arith.constant 0 : index
    %c0_140 = arith.constant 0 : index
    %136 = vector.load %arg9[%c7_138, %c0_139, %c0_140] : memref<9x256x256xf32, #tpu.memory_space<vmem>>, vector<1x256x256xf32>
    %137 = vector.shape_cast %136 : vector<1x256x256xf32> to vector<256x256xf32>
    %cst_141 = arith.constant dense<0.000000e+00> : vector<8x256xf32>
    %138 = tpu.matmul %87, %137, %cst_141 {dimension_numbers = #tpu.dot_dimension_numbers<[1], [0], [0], [1], [0, 0, 1, 1], [], []>} : vector<8x256xf32>, vector<256x256xf32>, vector<8x256xf32> -> vector<8x256xf32>
    %c7_142 = arith.constant 7 : index
    %c0_143 = arith.constant 0 : index
    %c0_144 = arith.constant 0 : index
    %139 = vector.load %arg5[%c7_142, %c0_143, %c0_144] : memref<9x8x8xf32, #tpu.memory_space<vmem>>, vector<1x8x8xf32>
    %140 = vector.shape_cast %139 : vector<1x8x8xf32> to vector<8x8xf32>
    %cst_145 = arith.constant dense<0.000000e+00> : vector<8x256xf32>
    %141 = tpu.matmul %140, %138, %cst_145 {dimension_numbers = #tpu.dot_dimension_numbers<[1], [0], [0], [1], [0, 0, 1, 1], [], []>} : vector<8x8xf32>, vector<8x256xf32>, vector<8x256xf32> -> vector<8x256xf32>
    %142 = arith.addf %135, %141 : vector<8x256xf32>
    %c8_146 = arith.constant 8 : index
    %c0_147 = arith.constant 0 : index
    %c0_148 = arith.constant 0 : index
    %143 = vector.load %arg9[%c8_146, %c0_147, %c0_148] : memref<9x256x256xf32, #tpu.memory_space<vmem>>, vector<1x256x256xf32>
    %144 = vector.shape_cast %143 : vector<1x256x256xf32> to vector<256x256xf32>
    %cst_149 = arith.constant dense<0.000000e+00> : vector<8x256xf32>
    %145 = tpu.matmul %87, %144, %cst_149 {dimension_numbers = #tpu.dot_dimension_numbers<[1], [0], [0], [1], [0, 0, 1, 1], [], []>} : vector<8x256xf32>, vector<256x256xf32>, vector<8x256xf32> -> vector<8x256xf32>
    %c8_150 = arith.constant 8 : index
    %c0_151 = arith.constant 0 : index
    %c0_152 = arith.constant 0 : index
    %146 = vector.load %arg5[%c8_150, %c0_151, %c0_152] : memref<9x8x8xf32, #tpu.memory_space<vmem>>, vector<1x8x8xf32>
    %147 = vector.shape_cast %146 : vector<1x8x8xf32> to vector<8x8xf32>
    %cst_153 = arith.constant dense<0.000000e+00> : vector<8x256xf32>
    %148 = tpu.matmul %147, %145, %cst_153 {dimension_numbers = #tpu.dot_dimension_numbers<[1], [0], [0], [1], [0, 0, 1, 1], [], []>} : vector<8x8xf32>, vector<8x256xf32>, vector<8x256xf32> -> vector<8x256xf32>
    %149 = arith.addf %142, %148 : vector<8x256xf32>
    %c0_154 = arith.constant 0 : index
    %c0_155 = arith.constant 0 : index
    %150 = vector.load %arg6[%c0_154, %c0_155] : memref<8x1xf32, #tpu.memory_space<vmem>>, vector<8x1xf32>
    %151 = vector.broadcast %150 : vector<8x1xf32> to vector<8x256xf32>
    %152 = arith.addf %149, %151 : vector<8x256xf32>
    %cst_156 = arith.constant dense<0.000000e+00> : vector<8x8xf32>
    %153 = tpu.matmul %152, %152, %cst_156 {dimension_numbers = #tpu.dot_dimension_numbers<[1], [1], [0], [0], [0, 0, 1, 0], [], []>} : vector<8x256xf32>, vector<8x256xf32>, vector<8x8xf32> -> vector<8x8xf32>
    %cst_157 = arith.constant 4.8828125E-4 : f32
    %154 = vector.broadcast %cst_157 : f32 to vector<8x8xf32>
    %155 = arith.mulf %153, %154 : vector<8x8xf32>
    %c0_158 = arith.constant 0 : index
    %c0_159 = arith.constant 0 : index
    %156 = vector.load %arg20[%c0_158, %c0_159] : memref<8x8xf32, #tpu.memory_space<vmem>>, vector<8x8xf32>
    tpu.vector_store %arg20[%c0_158, %c0_159], %155 {strides = array<i32>} : memref<8x8xf32, #tpu.memory_space<vmem>>, vector<8x8xf32>,
    %c0_160 = arith.constant 0 : index
    %c0_161 = arith.constant 0 : index
    %157 = vector.load %arg16[%c0_160, %c0_161] : memref<8x8xf32, #tpu.memory_space<vmem>>, vector<8x8xf32>
    %158 = arith.subf %155, %157 : vector<8x8xf32>
    %159 = arith.mulf %158, %158 : vector<8x8xf32>
    %cst_162 = arith.constant dense<0.000000e+00> : vector<8xf32>
    %160 = vector.multi_reduction <add>, %159, %cst_162 [1] : vector<8x8xf32> to vector<8xf32>
    %161 = vector.shape_cast %160 : vector<8xf32> to vector<8x1xf32>
    %cst_163 = arith.constant dense<0.000000e+00> : vector<1xf32>
    %162 = vector.multi_reduction <add>, %161, %cst_163 [0] : vector<8x1xf32> to vector<1xf32>
    %163 = vector.shape_cast %162 : vector<1xf32> to vector<1x1xf32>
    %cst_164 = arith.constant 1.562500e-02 : f32
    %164 = vector.broadcast %cst_164 : f32 to vector<1x1xf32>
    %165 = arith.mulf %163, %164 : vector<1x1xf32>
    %c0_165 = arith.constant 0 : index
    %c0_166 = arith.constant 0 : index
    %166 = vector.load %arg22[%c0_165, %c0_166] : memref<1x1xf32, #tpu.memory_space<vmem>>, vector<1x1xf32>
    tpu.vector_store %arg22[%c0_165, %c0_166], %165 {strides = array<i32>} : memref<1x1xf32, #tpu.memory_space<vmem>>, vector<1x1xf32>,
    %cst_167 = arith.constant 0.000000e+00 : f32
    %167 = vector.broadcast %cst_167 : f32 to vector<8x256xf32>
    %168 = arith.maximumf %152, %167 : vector<8x256xf32>
    %c0_168 = arith.constant 0 : index
    %c0_169 = arith.constant 0 : index
    %169 = vector.load %arg11[%c0_168, %c0_169] : memref<256x256xf32, #tpu.memory_space<vmem>>, vector<256x256xf32>
    %cst_170 = arith.constant dense<0.000000e+00> : vector<8x256xf32>
    %170 = tpu.matmul %168, %169, %cst_170 {dimension_numbers = #tpu.dot_dimension_numbers<[1], [0], [0], [1], [0, 0, 1, 1], [], []>} : vector<8x256xf32>, vector<256x256xf32>, vector<8x256xf32> -> vector<8x256xf32>
    %171 = arith.maximumf %168, %170 : vector<8x256xf32>
    %c0_171 = arith.constant 0 : index
    %c0_172 = arith.constant 0 : index
    %172 = vector.load %arg12[%c0_171, %c0_172] : memref<256x128xf32, #tpu.memory_space<vmem>>, vector<256x128xf32>
    %cst_173 = arith.constant dense<0.000000e+00> : vector<8x128xf32>
    %173 = tpu.matmul %171, %172, %cst_173 {dimension_numbers = #tpu.dot_dimension_numbers<[1], [0], [0], [1], [0, 0, 1, 1], [], []>} : vector<8x256xf32>, vector<256x128xf32>, vector<8x128xf32> -> vector<8x128xf32>
    %c0_174 = arith.constant 0 : index
    %c0_175 = arith.constant 0 : index
    %174 = vector.load %arg13[%c0_174, %c0_175] : memref<128x128xf32, #tpu.memory_space<vmem>>, vector<128x128xf32>
    %cst_176 = arith.constant dense<0.000000e+00> : vector<8x128xf32>
    %175 = tpu.matmul %173, %174, %cst_176 {dimension_numbers = #tpu.dot_dimension_numbers<[1], [0], [0], [1], [0, 0, 1, 1], [], []>} : vector<8x128xf32>, vector<128x128xf32>, vector<8x128xf32> -> vector<8x128xf32>
    %176 = arith.maximumf %173, %175 : vector<8x128xf32>
    %c0_177 = arith.constant 0 : index
    %c0_178 = arith.constant 0 : index
    %177 = vector.load %arg14[%c0_177, %c0_178] : memref<128x128xf32, #tpu.memory_space<vmem>>, vector<128x128xf32>
    %cst_179 = arith.constant dense<0.000000e+00> : vector<8x128xf32>
    %178 = tpu.matmul %176, %177, %cst_179 {dimension_numbers = #tpu.dot_dimension_numbers<[1], [0], [0], [1], [0, 0, 1, 1], [], []>} : vector<8x128xf32>, vector<128x128xf32>, vector<8x128xf32> -> vector<8x128xf32>
    %c0_180 = arith.constant 0 : index
    %c0_181 = arith.constant 0 : index
    %c0_182 = arith.constant 0 : index
    %179 = vector.load %arg10[%c0_180, %c0_181, %c0_182] : memref<9x128x128xf32, #tpu.memory_space<vmem>>, vector<1x128x128xf32>
    %180 = vector.shape_cast %179 : vector<1x128x128xf32> to vector<128x128xf32>
    %cst_183 = arith.constant dense<0.000000e+00> : vector<8x128xf32>
    %181 = tpu.matmul %178, %180, %cst_183 {dimension_numbers = #tpu.dot_dimension_numbers<[1], [0], [0], [1], [0, 0, 1, 1], [], []>} : vector<8x128xf32>, vector<128x128xf32>, vector<8x128xf32> -> vector<8x128xf32>
    %c0_184 = arith.constant 0 : index
    %c0_185 = arith.constant 0 : index
    %c0_186 = arith.constant 0 : index
    %182 = vector.load %arg7[%c0_184, %c0_185, %c0_186] : memref<9x16x8xf32, #tpu.memory_space<vmem>>, vector<1x16x8xf32>
    %183 = vector.shape_cast %182 : vector<1x16x8xf32> to vector<16x8xf32>
    %cst_187 = arith.constant dense<0.000000e+00> : vector<16x128xf32>
    %184 = tpu.matmul %183, %181, %cst_187 {dimension_numbers = #tpu.dot_dimension_numbers<[1], [0], [0], [1], [0, 0, 1, 1], [], []>} : vector<16x8xf32>, vector<8x128xf32>, vector<16x128xf32> -> vector<16x128xf32>
    %c1_188 = arith.constant 1 : index
    %c0_189 = arith.constant 0 : index
    %c0_190 = arith.constant 0 : index
    %185 = vector.load %arg10[%c1_188, %c0_189, %c0_190] : memref<9x128x128xf32, #tpu.memory_space<vmem>>, vector<1x128x128xf32>
    %186 = vector.shape_cast %185 : vector<1x128x128xf32> to vector<128x128xf32>
    %cst_191 = arith.constant dense<0.000000e+00> : vector<8x128xf32>
    %187 = tpu.matmul %178, %186, %cst_191 {dimension_numbers = #tpu.dot_dimension_numbers<[1], [0], [0], [1], [0, 0, 1, 1], [], []>} : vector<8x128xf32>, vector<128x128xf32>, vector<8x128xf32> -> vector<8x128xf32>
    %c1_192 = arith.constant 1 : index
    %c0_193 = arith.constant 0 : index
    %c0_194 = arith.constant 0 : index
    %188 = vector.load %arg7[%c1_192, %c0_193, %c0_194] : memref<9x16x8xf32, #tpu.memory_space<vmem>>, vector<1x16x8xf32>
    %189 = vector.shape_cast %188 : vector<1x16x8xf32> to vector<16x8xf32>
    %cst_195 = arith.constant dense<0.000000e+00> : vector<16x128xf32>
    %190 = tpu.matmul %189, %187, %cst_195 {dimension_numbers = #tpu.dot_dimension_numbers<[1], [0], [0], [1], [0, 0, 1, 1], [], []>} : vector<16x8xf32>, vector<8x128xf32>, vector<16x128xf32> -> vector<16x128xf32>
    %191 = arith.addf %184, %190 : vector<16x128xf32>
    %c2_196 = arith.constant 2 : index
    %c0_197 = arith.constant 0 : index
    %c0_198 = arith.constant 0 : index
    %192 = vector.load %arg10[%c2_196, %c0_197, %c0_198] : memref<9x128x128xf32, #tpu.memory_space<vmem>>, vector<1x128x128xf32>
    %193 = vector.shape_cast %192 : vector<1x128x128xf32> to vector<128x128xf32>
    %cst_199 = arith.constant dense<0.000000e+00> : vector<8x128xf32>
    %194 = tpu.matmul %178, %193, %cst_199 {dimension_numbers = #tpu.dot_dimension_numbers<[1], [0], [0], [1], [0, 0, 1, 1], [], []>} : vector<8x128xf32>, vector<128x128xf32>, vector<8x128xf32> -> vector<8x128xf32>
    %c2_200 = arith.constant 2 : index
    %c0_201 = arith.constant 0 : index
    %c0_202 = arith.constant 0 : index
    %195 = vector.load %arg7[%c2_200, %c0_201, %c0_202] : memref<9x16x8xf32, #tpu.memory_space<vmem>>, vector<1x16x8xf32>
    %196 = vector.shape_cast %195 : vector<1x16x8xf32> to vector<16x8xf32>
    %cst_203 = arith.constant dense<0.000000e+00> : vector<16x128xf32>
    %197 = tpu.matmul %196, %194, %cst_203 {dimension_numbers = #tpu.dot_dimension_numbers<[1], [0], [0], [1], [0, 0, 1, 1], [], []>} : vector<16x8xf32>, vector<8x128xf32>, vector<16x128xf32> -> vector<16x128xf32>
    %198 = arith.addf %191, %197 : vector<16x128xf32>
    %c3_204 = arith.constant 3 : index
    %c0_205 = arith.constant 0 : index
    %c0_206 = arith.constant 0 : index
    %199 = vector.load %arg10[%c3_204, %c0_205, %c0_206] : memref<9x128x128xf32, #tpu.memory_space<vmem>>, vector<1x128x128xf32>
    %200 = vector.shape_cast %199 : vector<1x128x128xf32> to vector<128x128xf32>
    %cst_207 = arith.constant dense<0.000000e+00> : vector<8x128xf32>
    %201 = tpu.matmul %178, %200, %cst_207 {dimension_numbers = #tpu.dot_dimension_numbers<[1], [0], [0], [1], [0, 0, 1, 1], [], []>} : vector<8x128xf32>, vector<128x128xf32>, vector<8x128xf32> -> vector<8x128xf32>
    %c3_208 = arith.constant 3 : index
    %c0_209 = arith.constant 0 : index
    %c0_210 = arith.constant 0 : index
    %202 = vector.load %arg7[%c3_208, %c0_209, %c0_210] : memref<9x16x8xf32, #tpu.memory_space<vmem>>, vector<1x16x8xf32>
    %203 = vector.shape_cast %202 : vector<1x16x8xf32> to vector<16x8xf32>
    %cst_211 = arith.constant dense<0.000000e+00> : vector<16x128xf32>
    %204 = tpu.matmul %203, %201, %cst_211 {dimension_numbers = #tpu.dot_dimension_numbers<[1], [0], [0], [1], [0, 0, 1, 1], [], []>} : vector<16x8xf32>, vector<8x128xf32>, vector<16x128xf32> -> vector<16x128xf32>
    %205 = arith.addf %198, %204 : vector<16x128xf32>
    %c4_212 = arith.constant 4 : index
    %c0_213 = arith.constant 0 : index
    %c0_214 = arith.constant 0 : index
    %206 = vector.load %arg10[%c4_212, %c0_213, %c0_214] : memref<9x128x128xf32, #tpu.memory_space<vmem>>, vector<1x128x128xf32>
    %207 = vector.shape_cast %206 : vector<1x128x128xf32> to vector<128x128xf32>
    %cst_215 = arith.constant dense<0.000000e+00> : vector<8x128xf32>
    %208 = tpu.matmul %178, %207, %cst_215 {dimension_numbers = #tpu.dot_dimension_numbers<[1], [0], [0], [1], [0, 0, 1, 1], [], []>} : vector<8x128xf32>, vector<128x128xf32>, vector<8x128xf32> -> vector<8x128xf32>
    %c4_216 = arith.constant 4 : index
    %c0_217 = arith.constant 0 : index
    %c0_218 = arith.constant 0 : index
    %209 = vector.load %arg7[%c4_216, %c0_217, %c0_218] : memref<9x16x8xf32, #tpu.memory_space<vmem>>, vector<1x16x8xf32>
    %210 = vector.shape_cast %209 : vector<1x16x8xf32> to vector<16x8xf32>
    %cst_219 = arith.constant dense<0.000000e+00> : vector<16x128xf32>
    %211 = tpu.matmul %210, %208, %cst_219 {dimension_numbers = #tpu.dot_dimension_numbers<[1], [0], [0], [1], [0, 0, 1, 1], [], []>} : vector<16x8xf32>, vector<8x128xf32>, vector<16x128xf32> -> vector<16x128xf32>
    %212 = arith.addf %205, %211 : vector<16x128xf32>
    %c5_220 = arith.constant 5 : index
    %c0_221 = arith.constant 0 : index
    %c0_222 = arith.constant 0 : index
    %213 = vector.load %arg10[%c5_220, %c0_221, %c0_222] : memref<9x128x128xf32, #tpu.memory_space<vmem>>, vector<1x128x128xf32>
    %214 = vector.shape_cast %213 : vector<1x128x128xf32> to vector<128x128xf32>
    %cst_223 = arith.constant dense<0.000000e+00> : vector<8x128xf32>
    %215 = tpu.matmul %178, %214, %cst_223 {dimension_numbers = #tpu.dot_dimension_numbers<[1], [0], [0], [1], [0, 0, 1, 1], [], []>} : vector<8x128xf32>, vector<128x128xf32>, vector<8x128xf32> -> vector<8x128xf32>
    %c5_224 = arith.constant 5 : index
    %c0_225 = arith.constant 0 : index
    %c0_226 = arith.constant 0 : index
    %216 = vector.load %arg7[%c5_224, %c0_225, %c0_226] : memref<9x16x8xf32, #tpu.memory_space<vmem>>, vector<1x16x8xf32>
    %217 = vector.shape_cast %216 : vector<1x16x8xf32> to vector<16x8xf32>
    %cst_227 = arith.constant dense<0.000000e+00> : vector<16x128xf32>
    %218 = tpu.matmul %217, %215, %cst_227 {dimension_numbers = #tpu.dot_dimension_numbers<[1], [0], [0], [1], [0, 0, 1, 1], [], []>} : vector<16x8xf32>, vector<8x128xf32>, vector<16x128xf32> -> vector<16x128xf32>
    %219 = arith.addf %212, %218 : vector<16x128xf32>
    %c6_228 = arith.constant 6 : index
    %c0_229 = arith.constant 0 : index
    %c0_230 = arith.constant 0 : index
    %220 = vector.load %arg10[%c6_228, %c0_229, %c0_230] : memref<9x128x128xf32, #tpu.memory_space<vmem>>, vector<1x128x128xf32>
    %221 = vector.shape_cast %220 : vector<1x128x128xf32> to vector<128x128xf32>
    %cst_231 = arith.constant dense<0.000000e+00> : vector<8x128xf32>
    %222 = tpu.matmul %178, %221, %cst_231 {dimension_numbers = #tpu.dot_dimension_numbers<[1], [0], [0], [1], [0, 0, 1, 1], [], []>} : vector<8x128xf32>, vector<128x128xf32>, vector<8x128xf32> -> vector<8x128xf32>
    %c6_232 = arith.constant 6 : index
    %c0_233 = arith.constant 0 : index
    %c0_234 = arith.constant 0 : index
    %223 = vector.load %arg7[%c6_232, %c0_233, %c0_234] : memref<9x16x8xf32, #tpu.memory_space<vmem>>, vector<1x16x8xf32>
    %224 = vector.shape_cast %223 : vector<1x16x8xf32> to vector<16x8xf32>
    %cst_235 = arith.constant dense<0.000000e+00> : vector<16x128xf32>
    %225 = tpu.matmul %224, %222, %cst_235 {dimension_numbers = #tpu.dot_dimension_numbers<[1], [0], [0], [1], [0, 0, 1, 1], [], []>} : vector<16x8xf32>, vector<8x128xf32>, vector<16x128xf32> -> vector<16x128xf32>
    %226 = arith.addf %219, %225 : vector<16x128xf32>
    %c7_236 = arith.constant 7 : index
    %c0_237 = arith.constant 0 : index
    %c0_238 = arith.constant 0 : index
    %227 = vector.load %arg10[%c7_236, %c0_237, %c0_238] : memref<9x128x128xf32, #tpu.memory_space<vmem>>, vector<1x128x128xf32>
    %228 = vector.shape_cast %227 : vector<1x128x128xf32> to vector<128x128xf32>
    %cst_239 = arith.constant dense<0.000000e+00> : vector<8x128xf32>
    %229 = tpu.matmul %178, %228, %cst_239 {dimension_numbers = #tpu.dot_dimension_numbers<[1], [0], [0], [1], [0, 0, 1, 1], [], []>} : vector<8x128xf32>, vector<128x128xf32>, vector<8x128xf32> -> vector<8x128xf32>
    %c7_240 = arith.constant 7 : index
    %c0_241 = arith.constant 0 : index
    %c0_242 = arith.constant 0 : index
    %230 = vector.load %arg7[%c7_240, %c0_241, %c0_242] : memref<9x16x8xf32, #tpu.memory_space<vmem>>, vector<1x16x8xf32>
    %231 = vector.shape_cast %230 : vector<1x16x8xf32> to vector<16x8xf32>
    %cst_243 = arith.constant dense<0.000000e+00> : vector<16x128xf32>
    %232 = tpu.matmul %231, %229, %cst_243 {dimension_numbers = #tpu.dot_dimension_numbers<[1], [0], [0], [1], [0, 0, 1, 1], [], []>} : vector<16x8xf32>, vector<8x128xf32>, vector<16x128xf32> -> vector<16x128xf32>
    %233 = arith.addf %226, %232 : vector<16x128xf32>
    %c8_244 = arith.constant 8 : index
    %c0_245 = arith.constant 0 : index
    %c0_246 = arith.constant 0 : index
    %234 = vector.load %arg10[%c8_244, %c0_245, %c0_246] : memref<9x128x128xf32, #tpu.memory_space<vmem>>, vector<1x128x128xf32>
    %235 = vector.shape_cast %234 : vector<1x128x128xf32> to vector<128x128xf32>
    %cst_247 = arith.constant dense<0.000000e+00> : vector<8x128xf32>
    %236 = tpu.matmul %178, %235, %cst_247 {dimension_numbers = #tpu.dot_dimension_numbers<[1], [0], [0], [1], [0, 0, 1, 1], [], []>} : vector<8x128xf32>, vector<128x128xf32>, vector<8x128xf32> -> vector<8x128xf32>
    %c8_248 = arith.constant 8 : index
    %c0_249 = arith.constant 0 : index
    %c0_250 = arith.constant 0 : index
    %237 = vector.load %arg7[%c8_248, %c0_249, %c0_250] : memref<9x16x8xf32, #tpu.memory_space<vmem>>, vector<1x16x8xf32>
    %238 = vector.shape_cast %237 : vector<1x16x8xf32> to vector<16x8xf32>
    %cst_251 = arith.constant dense<0.000000e+00> : vector<16x128xf32>
    %239 = tpu.matmul %238, %236, %cst_251 {dimension_numbers = #tpu.dot_dimension_numbers<[1], [0], [0], [1], [0, 0, 1, 1], [], []>} : vector<16x8xf32>, vector<8x128xf32>, vector<16x128xf32> -> vector<16x128xf32>
    %240 = arith.addf %233, %239 : vector<16x128xf32>
    %c0_252 = arith.constant 0 : index
    %c0_253 = arith.constant 0 : index
    %241 = vector.load %arg8[%c0_252, %c0_253] : memref<16x1xf32, #tpu.memory_space<vmem>>, vector<16x1xf32>
    %242 = vector.broadcast %241 : vector<16x1xf32> to vector<16x128xf32>
    %243 = arith.addf %240, %242 : vector<16x128xf32>
    %c0_254 = arith.constant 0 : index
    %c0_255 = arith.constant 0 : index
    %244 = vector.load %arg18[%c0_254, %c0_255] : memref<16x128xf32, #tpu.memory_space<vmem>>, vector<16x128xf32>
    tpu.vector_store %arg18[%c0_254, %c0_255], %243 {strides = array<i32>} : memref<16x128xf32, #tpu.memory_space<vmem>>, vector<16x128xf32>,
    %245 = tpu.iota {dimensions = array<i32: 1>} : vector<16x128xi32>
    %c64_i32 = arith.constant 64 : i32
    %246 = vector.broadcast %c64_i32 : i32 to vector<16x128xi32>
    %247 = arith.cmpi slt, %245, %246 : vector<16x128xi32>
    %c0_256 = arith.constant 0 : index
    %c0_257 = arith.constant 0 : index
    %248 = vector.load %arg17[%c0_256, %c0_257] : memref<16x128xf32, #tpu.memory_space<vmem>>, vector<16x128xf32>
    %249 = arith.subf %243, %248 : vector<16x128xf32>
    %cst_258 = arith.constant 0.000000e+00 : f32
    %250 = vector.broadcast %cst_258 : f32 to vector<16x128xf32>
    %251 = arith.select %247, %249, %250 : vector<16x128xi1>, vector<16x128xf32>
    %252 = arith.mulf %251, %251 : vector<16x128xf32>
    %cst_259 = arith.constant dense<0.000000e+00> : vector<16xf32>
    %253 = vector.multi_reduction <add>, %252, %cst_259 [1] : vector<16x128xf32> to vector<16xf32>
    %254 = vector.shape_cast %253 : vector<16xf32> to vector<16x1xf32>
    %cst_260 = arith.constant dense<0.000000e+00> : vector<1xf32>
    %255 = vector.multi_reduction <add>, %254, %cst_260 [0] : vector<16x1xf32> to vector<1xf32>
    %256 = vector.shape_cast %255 : vector<1xf32> to vector<1x1xf32>
    %cst_261 = arith.constant 9.765625E-4 : f32
    %257 = vector.broadcast %cst_261 : f32 to vector<1x1xf32>
    %258 = arith.mulf %256, %257 : vector<1x1xf32>
    %c0_262 = arith.constant 0 : index
    %c0_263 = arith.constant 0 : index
    %259 = vector.load %arg23[%c0_262, %c0_263] : memref<1x1xf32, #tpu.memory_space<vmem>>, vector<1x1xf32>
    tpu.vector_store %arg23[%c0_262, %c0_263], %258 {strides = array<i32>} : memref<1x1xf32, #tpu.memory_space<vmem>>, vector<1x1xf32>,
    return
  }
}

</mosaic_0001>

<llo_original>
// kernel: _run_model.1
$region0: #{_run_model.1}
  #allocation0 [shape = 'u32[]', space=smem, size = 0x4, offset = 0x4, fixed_abs, tag = 'smem constant byte address 0x4 - core index']
  #allocation1 [shape = 'u32[144,128]{1,0:T(1,128)}', space=vmem, size = 0x12000, scoped, tag = 'internal scratch']
  %s0 = inlined_call_operand.hbm [shape: f32[3,256], index: 0, kind: input, shape index: {}]
  %s1 = inlined_call_operand.hbm [shape: f32[3,1], index: 1, kind: input, shape index: {}]
  %s2 = inlined_call_operand.hbm [shape: f32[3,1], index: 2, kind: input, shape index: {}]
  %s3 = inlined_call_operand.hbm [shape: f32[9,8,3], index: 3, kind: input, shape index: {}]
  %s4 = inlined_call_operand.hbm [shape: f32[8,1], index: 4, kind: input, shape index: {}]
  %s5 = inlined_call_operand.hbm [shape: f32[9,8,8], index: 5, kind: input, shape index: {}]
  %s6 = inlined_call_operand.hbm [shape: f32[8,1], index: 6, kind: input, shape index: {}]
  %s7 = inlined_call_operand.hbm [shape: f32[9,16,8], index: 7, kind: input, shape index: {}]
  %s8 = inlined_call_operand.hbm [shape: f32[16,1], index: 8, kind: input, shape index: {}]
  %s9 = inlined_call_operand.hbm [shape: f32[9,256,256], index: 9, kind: input, shape index: {}]
  %s10 = inlined_call_operand.hbm [shape: f32[9,128,128], index: 10, kind: input, shape index: {}]
  %s11 = inlined_call_operand.hbm [shape: f32[256,256], index: 11, kind: input, shape index: {}]
  %s12 = inlined_call_operand.hbm [shape: f32[256,128], index: 12, kind: input, shape index: {}]
  %s13 = inlined_call_operand.hbm [shape: f32[128,128], index: 13, kind: input, shape index: {}]
  %s14 = inlined_call_operand.hbm [shape: f32[128,128], index: 14, kind: input, shape index: {}]
  %s15 = inlined_call_operand.hbm [shape: f32[8,8], index: 15, kind: input, shape index: {}]
  %s16 = inlined_call_operand.hbm [shape: f32[8,8], index: 16, kind: input, shape index: {}]
  %s17 = inlined_call_operand.hbm [shape: f32[16,128], index: 17, kind: input, shape index: {}]
  %s18 = inlined_call_operand.hbm [shape: f32[16,128], index: 18, kind: output, shape index: {0}]
  %s19 = inlined_call_operand.hbm [shape: f32[8,8], index: 19, kind: output, shape index: {1}]
  %s20 = inlined_call_operand.hbm [shape: f32[8,8], index: 20, kind: output, shape index: {2}]
  %s21 = inlined_call_operand.hbm [shape: f32[1,1], index: 21, kind: output, shape index: {3}]
  %s22 = inlined_call_operand.hbm [shape: f32[1,1], index: 22, kind: output, shape index: {4}]
  %s23 = inlined_call_operand.hbm [shape: f32[1,1], index: 23, kind: output, shape index: {5}]
  %24 = xla_tuple %s18, %s19, %s20, %s21, %s22, %s23
  %s25 = sld [smem:[#allocation0]]
  $region194: #{_run_model.1} parent=0
    _
  %s27 = ssub.s32 1, %s25
  %s28 = scalar_select 0, %s27, %s25
  $region1: #{_run_model.1} parent=0
    #allocation2 [shape = 'u8[4096]{0}', space=vmem, size = 0x1000, scoped, tag = 'input window, operand 0, single buffered']
    #allocation3 [shape = 's32[1]{0}', space=sflag, size = 0x4, scoped, tag = 'scoped memory for _run_model.1']
    #allocation4 [shape = 's32[1]{0}', space=sflag, size = 0x4, scoped, tag = 'scoped memory for _run_model.1']
    #allocation5 [shape = 'u8[2048]{0}', space=vmem, size = 0x800, scoped, tag = 'input window, operand 1, single buffered']
    #allocation6 [shape = 's32[1]{0}', space=sflag, size = 0x4, scoped, tag = 'scoped memory for _run_model.1']
    #allocation7 [shape = 'u8[2048]{0}', space=vmem, size = 0x800, scoped, tag = 'input window, operand 2, single buffered']
    #allocation8 [shape = 'u8[36864]{0}', space=vmem, size = 0x9000, scoped, tag = 'input window, operand 3, single buffered']
    #allocation9 [shape = 's32[1]{0}', space=sflag, size = 0x4, scoped, tag = 'scoped memory for _run_model.1']
    #allocation10 [shape = 'u8[4096]{0}', space=vmem, size = 0x1000, scoped, tag = 'input window, operand 4, single buffered']
    #allocation11 [shape = 'u8[36864]{0}', space=vmem, size = 0x9000, scoped, tag = 'input window, operand 5, single buffered']
    #allocation12 [shape = 's32[1]{0}', space=sflag, size = 0x4, scoped, tag = 'scoped memory for _run_model.1']
    #allocation13 [shape = 'u8[4096]{0}', space=vmem, size = 0x1000, scoped, tag = 'input window, operand 6, single buffered']
    #allocation14 [shape = 'u8[73728]{0}', space=vmem, size = 0x12000, scoped, tag = 'input window, operand 7, single buffered']
    #allocation15 [shape = 's32[1]{0}', space=sflag, size = 0x4, scoped, tag = 'scoped memory for _run_model.1']
    #allocation16 [shape = 'u8[8192]{0}', space=vmem, size = 0x2000, scoped, tag = 'input window, operand 8, single buffered']
    #allocation17 [shape = 'u8[2359296]{0}', space=vmem, size = 0x240000, scoped, tag = 'input window, operand 9, single buffered']
    #allocation18 [shape = 's32[1]{0}', space=sflag, size = 0x4, scoped, tag = 'scoped memory for _run_model.1']
    #allocation19 [shape = 'u8[589824]{0}', space=vmem, size = 0x90000, scoped, tag = 'input window, operand 10, single buffered']
    #allocation20 [shape = 'u8[262144]{0}', space=vmem, size = 0x40000, scoped, tag = 'input window, operand 11, single buffered']
    #allocation21 [shape = 's32[1]{0}', space=sflag, size = 0x4, scoped, tag = 'scoped memory for _run_model.1']
    #allocation22 [shape = 'u8[131072]{0}', space=vmem, size = 0x20000, scoped, tag = 'input window, operand 12, single buffered']
    #allocation23 [shape = 'u8[65536]{0}', space=vmem, size = 0x10000, scoped, tag = 'input window, operand 13, single buffered']
    #allocation24 [shape = 's32[1]{0}', space=sflag, size = 0x4, scoped, tag = 'scoped memory for _run_model.1']
    #allocation25 [shape = 'u8[65536]{0}', space=vmem, size = 0x10000, scoped, tag = 'input window, operand 14, single buffered']
    #allocation26 [shape = 'u8[4096]{0}', space=vmem, size = 0x1000, scoped, tag = 'input window, operand 15, single buffered']
    #allocation27 [shape = 's32[1]{0}', space=sflag, size = 0x4, scoped, tag = 'scoped memory for _run_model.1']
    #allocation28 [shape = 'u8[4096]{0}', space=vmem, size = 0x1000, scoped, tag = 'input window, operand 16, single buffered']
    #allocation29 [shape = 'u8[8192]{0}', space=vmem, size = 0x2000, scoped, tag = 'input window, operand 17, single buffered']
    #allocation30 [shape = 's32[1]{0}', space=sflag, size = 0x4, scoped, tag = 'scoped memory for _run_model.1']
    #allocation31 [shape = 'u8[8192]{0}', space=vmem, size = 0x2000, scoped, tag = 'output window, operand 0, single buffered']
    #allocation32 [shape = 'u8[4096]{0}', space=vmem, size = 0x1000, scoped, tag = 'output window, operand 1, single buffered']
    #allocation33 [shape = 's32[1]{0}', space=sflag, size = 0x4, scoped, tag = 'scoped memory for _run_model.1']
    #allocation34 [shape = 'u8[4096]{0}', space=vmem, size = 0x1000, scoped, tag = 'output window, operand 2, single buffered']
    #allocation35 [shape = 'u8[512]{0}', space=vmem, size = 0x400, scoped, tag = 'output window, operand 3, single buffered']
    #allocation36 [shape = 's32[1]{0}', space=sflag, size = 0x4, scoped, tag = 'scoped memory for _run_model.1']
    #allocation37 [shape = 'u8[512]{0}', space=vmem, size = 0x400, scoped, tag = 'output window, operand 4, single buffered']
    #allocation38 [shape = 'u8[512]{0}', space=vmem, size = 0x400, scoped, tag = 'output window, operand 5, single buffered']
    #allocation39 [shape = 's32[1]{0}', space=sflag, size = 0x4, scoped, tag = 'scoped memory for _run_model.1']
    %29 = vsyncpa [#allocation3], 0
    %30 = vsyncpa [#allocation6], 0
    %31 = vsyncpa [#allocation9], 0
    %32 = vsyncpa [#allocation12], 0
    %33 = vsyncpa [#allocation15], 0
    %34 = vsyncpa [#allocation18], 0
    %35 = vsyncpa [#allocation21], 0
    %36 = vsyncpa [#allocation24], 0
    %37 = vsyncpa [#allocation27], 0
    %38 = vsyncpa [#allocation30], 0
    %39 = vsyncpa [#allocation4], 0
    %40 = vsyncpa [#allocation33], 0
    %41 = vsyncpa [#allocation36], 0
    %42 = vsyncpa [#allocation39], 0
    // Predicated region
    $region2: #{_run_model.1} parent=1 // pred_check
      _
    $region3: #{_run_model.1} parent=1 // pred_check_branch
      %44 = sbr.rel (0) target = $region5
    $region4: #{_run_model.1} parent=1 // pred_region
      %s46 = ssub.s32 128, 128
      %47 = vsyncadd [#allocation3], %s46
      %s49 = sshll.u32 [#allocation2], 4
      %s50 = int_to_ptr.vmem [resolvable:$true] %s49
      %52 = dma.hbm_to_vmem [thread:$0]  %s0, 128, %s50, [#allocation3]
    $region5: #{_run_model.1} parent=1 // pred_fallthru
      _
    // Predicated region
    $region6: #{_run_model.1} parent=1 // pred_check
      _
    $region7: #{_run_model.1} parent=1 // pred_check_branch
      %54 = sbr.rel (0) target = $region9
    $region8: #{_run_model.1} parent=1 // pred_region
      %s56 = ssub.s32 64, 64
      %57 = vsyncadd [#allocation6], %s56
      %s59 = sshll.u32 [#allocation5], 4
      %s60 = int_to_ptr.vmem [resolvable:$true] %s59
      %62 = dma.hbm_to_vmem [thread:$0]  %s1, 64, %s60, [#allocation6]
    $region9: #{_run_model.1} parent=1 // pred_fallthru
      _
    // Predicated region
    $region10: #{_run_model.1} parent=1 // pred_check
      _
    $region11: #{_run_model.1} parent=1 // pred_check_branch
      %64 = sbr.rel (0) target = $region13
    $region12: #{_run_model.1} parent=1 // pred_region
      %s66 = ssub.s32 64, 64
      %67 = vsyncadd [#allocation6], %s66
      %s69 = sshll.u32 [#allocation7], 4
      %s70 = int_to_ptr.vmem [resolvable:$true] %s69
      %72 = dma.hbm_to_vmem [thread:$0]  %s2, 64, %s70, [#allocation6]
    $region13: #{_run_model.1} parent=1 // pred_fallthru
      _
    // Predicated region
    $region14: #{_run_model.1} parent=1 // pred_check
      _
    $region15: #{_run_model.1} parent=1 // pred_check_branch
      %74 = sbr.rel (0) target = $region17
    $region16: #{_run_model.1} parent=1 // pred_region
      %s76 = ssub.s32 1152, 1152
      %77 = vsyncadd [#allocation9], %s76
      %s78 = sshll.u32 [#allocation8], 4
      %s79 = int_to_ptr.vmem [resolvable:$true] %s78
      %84 = dma.hbm_to_vmem [thread:$0]  %s3, 1152, %s79, [#allocation9], 128, 128, 8
    $region17: #{_run_model.1} parent=1 // pred_fallthru
      _
    // Predicated region
    $region18: #{_run_model.1} parent=1 // pred_check
      _
    $region19: #{_run_model.1} parent=1 // pred_check_branch
      %86 = sbr.rel (0) target = $region21
    $region20: #{_run_model.1} parent=1 // pred_region
      %s88 = ssub.s32 128, 128
      %89 = vsyncadd [#allocation9], %s88
      %s91 = sshll.u32 [#allocation10], 4
      %s92 = int_to_ptr.vmem [resolvable:$true] %s91
      %94 = dma.hbm_to_vmem [thread:$0]  %s4, 128, %s92, [#allocation9]
    $region21: #{_run_model.1} parent=1 // pred_fallthru
      _
    // Predicated region
    $region22: #{_run_model.1} parent=1 // pred_check
      _
    $region23: #{_run_model.1} parent=1 // pred_check_branch
      %96 = sbr.rel (0) target = $region25
    $region24: #{_run_model.1} parent=1 // pred_region
      %s98 = ssub.s32 1152, 1152
      %99 = vsyncadd [#allocation12], %s98
      %s100 = sshll.u32 [#allocation11], 4
      %s101 = int_to_ptr.vmem [resolvable:$true] %s100
      %106 = dma.hbm_to_vmem [thread:$0]  %s5, 1152, %s101, [#allocation12], 128, 128, 8
    $region25: #{_run_model.1} parent=1 // pred_fallthru
      _
    // Predicated region
    $region26: #{_run_model.1} parent=1 // pred_check
      _
    $region27: #{_run_model.1} parent=1 // pred_check_branch
      %108 = sbr.rel (0) target = $region29
    $region28: #{_run_model.1} parent=1 // pred_region
      %s110 = ssub.s32 128, 128
      %111 = vsyncadd [#allocation12], %s110
      %s113 = sshll.u32 [#allocation13], 4
      %s114 = int_to_ptr.vmem [resolvable:$true] %s113
      %116 = dma.hbm_to_vmem [thread:$0]  %s6, 128, %s114, [#allocation12]
    $region29: #{_run_model.1} parent=1 // pred_fallthru
      _
    // Predicated region
    $region30: #{_run_model.1} parent=1 // pred_check
      _
    $region31: #{_run_model.1} parent=1 // pred_check_branch
      %118 = sbr.rel (0) target = $region33
    $region32: #{_run_model.1} parent=1 // pred_region
      %s120 = ssub.s32 2304, 2304
      %121 = vsyncadd [#allocation15], %s120
      %s122 = sshll.u32 [#allocation14], 4
      %s123 = int_to_ptr.vmem [resolvable:$true] %s122
      %128 = dma.hbm_to_vmem [thread:$0]  %s7, 2304, %s123, [#allocation15], 128, 128, 8
    $region33: #{_run_model.1} parent=1 // pred_fallthru
      _
    // Predicated region
    $region34: #{_run_model.1} parent=1 // pred_check
      _
    $region35: #{_run_model.1} parent=1 // pred_check_branch
      %130 = sbr.rel (0) target = $region37
    $region36: #{_run_model.1} parent=1 // pred_region
      %s132 = ssub.s32 256, 256
      %133 = vsyncadd [#allocation15], %s132
      %s134 = sshll.u32 [#allocation16], 4
      %s135 = int_to_ptr.vmem [resolvable:$true] %s134
      %140 = dma.hbm_to_vmem [thread:$0]  %s8, 256, %s135, [#allocation15], 128, 128, 8
    $region37: #{_run_model.1} parent=1 // pred_fallthru
      _
    // Predicated region
    $region38: #{_run_model.1} parent=1 // pred_check
      _
    $region39: #{_run_model.1} parent=1 // pred_check_branch
      %142 = sbr.rel (0) target = $region41
    $region40: #{_run_model.1} parent=1 // pred_region
      %s144 = ssub.s32 73728, 73728
      %145 = vsyncadd [#allocation18], %s144
      %s146 = sshll.u32 [#allocation17], 4
      %s147 = int_to_ptr.vmem [resolvable:$true] %s146
      %152 = dma.hbm_to_vmem [thread:$0]  %s9, 73728, %s147, [#allocation18], 256, 256, 16
    $region41: #{_run_model.1} parent=1 // pred_fallthru
      _
    // Predicated region
    $region42: #{_run_model.1} parent=1 // pred_check
      _
    $region43: #{_run_model.1} parent=1 // pred_check_branch
      %154 = sbr.rel (0) target = $region45
    $region44: #{_run_model.1} parent=1 // pred_region
      %s156 = ssub.s32 18432, 18432
      %157 = vsyncadd [#allocation18], %s156
      %s158 = sshll.u32 [#allocation19], 4
      %s159 = int_to_ptr.vmem [resolvable:$true] %s158
      %164 = dma.hbm_to_vmem [thread:$0]  %s10, 18432, %s159, [#allocation18], 128, 128, 8
    $region45: #{_run_model.1} parent=1 // pred_fallthru
      _
    // Predicated region
    $region46: #{_run_model.1} parent=1 // pred_check
      _
    $region47: #{_run_model.1} parent=1 // pred_check_branch
      %166 = sbr.rel (0) target = $region49
    $region48: #{_run_model.1} parent=1 // pred_region
      %s168 = ssub.s32 8192, 8192
      %169 = vsyncadd [#allocation21], %s168
      %s170 = sshll.u32 [#allocation20], 4
      %s171 = int_to_ptr.vmem [resolvable:$true] %s170
      %176 = dma.hbm_to_vmem [thread:$0]  %s11, 8192, %s171, [#allocation21], 256, 256, 16
    $region49: #{_run_model.1} parent=1 // pred_fallthru
      _
    // Predicated region
    $region50: #{_run_model.1} parent=1 // pred_check
      _
    $region51: #{_run_model.1} parent=1 // pred_check_branch
      %178 = sbr.rel (0) target = $region53
    $region52: #{_run_model.1} parent=1 // pred_region
      %s180 = ssub.s32 4096, 4096
      %181 = vsyncadd [#allocation21], %s180
      %s182 = sshll.u32 [#allocation22], 4
      %s183 = int_to_ptr.vmem [resolvable:$true] %s182
      %188 = dma.hbm_to_vmem [thread:$0]  %s12, 4096, %s183, [#allocation21], 128, 128, 8
    $region53: #{_run_model.1} parent=1 // pred_fallthru
      _
    // Predicated region
    $region54: #{_run_model.1} parent=1 // pred_check
      _
    $region55: #{_run_model.1} parent=1 // pred_check_branch
      %190 = sbr.rel (0) target = $region57
    $region56: #{_run_model.1} parent=1 // pred_region
      %s192 = ssub.s32 2048, 2048
      %193 = vsyncadd [#allocation24], %s192
      %s194 = sshll.u32 [#allocation23], 4
      %s195 = int_to_ptr.vmem [resolvable:$true] %s194
      %200 = dma.hbm_to_vmem [thread:$0]  %s13, 2048, %s195, [#allocation24], 128, 128, 8
    $region57: #{_run_model.1} parent=1 // pred_fallthru
      _
    // Predicated region
    $region58: #{_run_model.1} parent=1 // pred_check
      _
    $region59: #{_run_model.1} parent=1 // pred_check_branch
      %202 = sbr.rel (0) target = $region61
    $region60: #{_run_model.1} parent=1 // pred_region
      %s204 = ssub.s32 2048, 2048
      %205 = vsyncadd [#allocation24], %s204
      %s206 = sshll.u32 [#allocation25], 4
      %s207 = int_to_ptr.vmem [resolvable:$true] %s206
      %212 = dma.hbm_to_vmem [thread:$0]  %s14, 2048, %s207, [#allocation24], 128, 128, 8
    $region61: #{_run_model.1} parent=1 // pred_fallthru
      _
    // Predicated region
    $region62: #{_run_model.1} parent=1 // pred_check
      _
    $region63: #{_run_model.1} parent=1 // pred_check_branch
      %214 = sbr.rel (0) target = $region65
    $region64: #{_run_model.1} parent=1 // pred_region
      %s216 = ssub.s32 128, 128
      %217 = vsyncadd [#allocation27], %s216
      %s219 = sshll.u32 [#allocation26], 4
      %s220 = int_to_ptr.vmem [resolvable:$true] %s219
      %222 = dma.hbm_to_vmem [thread:$0]  %s15, 128, %s220, [#allocation27]
    $region65: #{_run_model.1} parent=1 // pred_fallthru
      _
    // Predicated region
    $region66: #{_run_model.1} parent=1 // pred_check
      _
    $region67: #{_run_model.1} parent=1 // pred_check_branch
      %224 = sbr.rel (0) target = $region69
    $region68: #{_run_model.1} parent=1 // pred_region
      %s226 = ssub.s32 128, 128
      %227 = vsyncadd [#allocation27], %s226
      %s229 = sshll.u32 [#allocation28], 4
      %s230 = int_to_ptr.vmem [resolvable:$true] %s229
      %232 = dma.hbm_to_vmem [thread:$0]  %s16, 128, %s230, [#allocation27]
    $region69: #{_run_model.1} parent=1 // pred_fallthru
      _
    // Predicated region
    $region70: #{_run_model.1} parent=1 // pred_check
      _
    $region71: #{_run_model.1} parent=1 // pred_check_branch
      %234 = sbr.rel (0) target = $region73
    $region72: #{_run_model.1} parent=1 // pred_region
      %s236 = ssub.s32 256, 256
      %237 = vsyncadd [#allocation30], %s236
      %s238 = sshll.u32 [#allocation29], 4
      %s239 = int_to_ptr.vmem [resolvable:$true] %s238
      %244 = dma.hbm_to_vmem [thread:$0]  %s17, 256, %s239, [#allocation30], 128, 128, 8
    $region73: #{_run_model.1} parent=1 // pred_fallthru
      _
    // Predicated region
    $region74: #{_run_model.1} parent=1 // pred_check
      _
    $region75: #{_run_model.1} parent=1 // pred_check_branch
      %246 = sbr.rel (0) target = $region77
    $region76: #{_run_model.1} parent=1 // pred_region
      %247 = dma.done [#allocation3], 128
    $region77: #{_run_model.1} parent=1 // pred_fallthru
      _
    // Predicated region
    $region78: #{_run_model.1} parent=1 // pred_check
      _
    $region79: #{_run_model.1} parent=1 // pred_check_branch
      %249 = sbr.rel (0) target = $region81
    $region80: #{_run_model.1} parent=1 // pred_region
      %250 = dma.done [#allocation6], 64
    $region81: #{_run_model.1} parent=1 // pred_fallthru
      _
    // Predicated region
    $region82: #{_run_model.1} parent=1 // pred_check
      _
    $region83: #{_run_model.1} parent=1 // pred_check_branch
      %252 = sbr.rel (0) target = $region85
    $region84: #{_run_model.1} parent=1 // pred_region
      %253 = dma.done [#allocation6], 64
    $region85: #{_run_model.1} parent=1 // pred_fallthru
      _
    // Predicated region
    $region86: #{_run_model.1} parent=1 // pred_check
      _
    $region87: #{_run_model.1} parent=1 // pred_check_branch
      %255 = sbr.rel (0) target = $region89
    $region88: #{_run_model.1} parent=1 // pred_region
      %256 = dma.done [#allocation9], 1152
    $region89: #{_run_model.1} parent=1 // pred_fallthru
      _
    // Predicated region
    $region90: #{_run_model.1} parent=1 // pred_check
      _
    $region91: #{_run_model.1} parent=1 // pred_check_branch
      %258 = sbr.rel (0) target = $region93
    $region92: #{_run_model.1} parent=1 // pred_region
      %259 = dma.done [#allocation9], 128
    $region93: #{_run_model.1} parent=1 // pred_fallthru
      _
    // Predicated region
    $region94: #{_run_model.1} parent=1 // pred_check
      _
    $region95: #{_run_model.1} parent=1 // pred_check_branch
      %261 = sbr.rel (0) target = $region97
    $region96: #{_run_model.1} parent=1 // pred_region
      %262 = dma.done [#allocation12], 1152
    $region97: #{_run_model.1} parent=1 // pred_fallthru
      _
    // Predicated region
    $region98: #{_run_model.1} parent=1 // pred_check
      _
    $region99: #{_run_model.1} parent=1 // pred_check_branch
      %264 = sbr.rel (0) target = $region101
    $region100: #{_run_model.1} parent=1 // pred_region
      %265 = dma.done [#allocation12], 128
    $region101: #{_run_model.1} parent=1 // pred_fallthru
      _
    // Predicated region
    $region102: #{_run_model.1} parent=1 // pred_check
      _
    $region103: #{_run_model.1} parent=1 // pred_check_branch
      %267 = sbr.rel (0) target = $region105
    $region104: #{_run_model.1} parent=1 // pred_region
      %268 = dma.done [#allocation15], 2304
    $region105: #{_run_model.1} parent=1 // pred_fallthru
      _
    // Predicated region
    $region106: #{_run_model.1} parent=1 // pred_check
      _
    $region107: #{_run_model.1} parent=1 // pred_check_branch
      %270 = sbr.rel (0) target = $region109
    $region108: #{_run_model.1} parent=1 // pred_region
      %271 = dma.done [#allocation15], 256
    $region109: #{_run_model.1} parent=1 // pred_fallthru
      _
    // Predicated region
    $region110: #{_run_model.1} parent=1 // pred_check
      _
    $region111: #{_run_model.1} parent=1 // pred_check_branch
      %273 = sbr.rel (0) target = $region113
    $region112: #{_run_model.1} parent=1 // pred_region
      %274 = dma.done [#allocation18], 73728
    $region113: #{_run_model.1} parent=1 // pred_fallthru
      _
    // Predicated region
    $region114: #{_run_model.1} parent=1 // pred_check
      _
    $region115: #{_run_model.1} parent=1 // pred_check_branch
      %276 = sbr.rel (0) target = $region117
    $region116: #{_run_model.1} parent=1 // pred_region
      %277 = dma.done [#allocation18], 18432
    $region117: #{_run_model.1} parent=1 // pred_fallthru
      _
    // Predicated region
    $region118: #{_run_model.1} parent=1 // pred_check
      _
    $region119: #{_run_model.1} parent=1 // pred_check_branch
      %279 = sbr.rel (0) target = $region121
    $region120: #{_run_model.1} parent=1 // pred_region
      %280 = dma.done [#allocation21], 8192
    $region121: #{_run_model.1} parent=1 // pred_fallthru
      _
    // Predicated region
    $region122: #{_run_model.1} parent=1 // pred_check
      _
    $region123: #{_run_model.1} parent=1 // pred_check_branch
      %282 = sbr.rel (0) target = $region125
    $region124: #{_run_model.1} parent=1 // pred_region
      %283 = dma.done [#allocation21], 4096
    $region125: #{_run_model.1} parent=1 // pred_fallthru
      _
    // Predicated region
    $region126: #{_run_model.1} parent=1 // pred_check
      _
    $region127: #{_run_model.1} parent=1 // pred_check_branch
      %285 = sbr.rel (0) target = $region129
    $region128: #{_run_model.1} parent=1 // pred_region
      %286 = dma.done [#allocation24], 2048
    $region129: #{_run_model.1} parent=1 // pred_fallthru
      _
    // Predicated region
    $region130: #{_run_model.1} parent=1 // pred_check
      _
    $region131: #{_run_model.1} parent=1 // pred_check_branch
      %288 = sbr.rel (0) target = $region133
    $region132: #{_run_model.1} parent=1 // pred_region
      %289 = dma.done [#allocation24], 2048
    $region133: #{_run_model.1} parent=1 // pred_fallthru
      _
    // Predicated region
    $region134: #{_run_model.1} parent=1 // pred_check
      _
    $region135: #{_run_model.1} parent=1 // pred_check_branch
      %291 = sbr.rel (0) target = $region137
    $region136: #{_run_model.1} parent=1 // pred_region
      %292 = dma.done [#allocation27], 128
    $region137: #{_run_model.1} parent=1 // pred_fallthru
      _
    // Predicated region
    $region138: #{_run_model.1} parent=1 // pred_check
      _
    $region139: #{_run_model.1} parent=1 // pred_check_branch
      %294 = sbr.rel (0) target = $region141
    $region140: #{_run_model.1} parent=1 // pred_region
      %295 = dma.done [#allocation27], 128
    $region141: #{_run_model.1} parent=1 // pred_fallthru
      _
    // Predicated region
    $region142: #{_run_model.1} parent=1 // pred_check
      _
    $region143: #{_run_model.1} parent=1 // pred_check_branch
      %297 = sbr.rel (0) target = $region145
    $region144: #{_run_model.1} parent=1 // pred_region
      %298 = dma.done [#allocation30], 256
    $region145: #{_run_model.1} parent=1 // pred_fallthru
      _
    %v299 = vld [vmem:[#allocation2] sm:$0x77]
    %v300 = vld [vmem:[#allocation5] sm:$0x7]
    %302 = vset.pattern.permute.xlu0 0
    %303 = vperm.xlu0 %302, %v300
    %v304 = vpop.permute.xlu0 %303
    %v306 = vunpack.c.l.s4 839922192
    %v307 = vunpack.c.0.s8 %v306
    %v308 = vlaneseq
    %v309 = vshrl.u32 %v308, 7
    %v310 = vsub.s32 %v307, %v309
    %v311 = vrot.slane %v304, %v310
    %v313 = vsub.f32 %v299, %v311
    %v314 = vld [vmem:[#allocation7] sm:$0x7]
    %316 = vset.pattern.permute.xlu0 0
    %317 = vperm.xlu0 %316, %v314
    %v318 = vpop.permute.xlu0 %317
    %v320 = vunpack.c.l.s4 839922192
    %v321 = vunpack.c.0.s8 %v320
    %v322 = vlaneseq
    %v323 = vshrl.u32 %v322, 7
    %v324 = vsub.s32 %v321, %v323
    %v325 = vrot.slane %v318, %v324
    %v327 = vmul.f32 %v313, %v325
    %v328 = vld [vmem:[#allocation17] sm:$0xff]
    %v329 = vld [vmem:[#allocation17 + $0x8] sm:$0xff]
    %v330 = vld [vmem:[#allocation17 + $0x10] sm:$0xff]
    %v331 = vld [vmem:[#allocation17 + $0x18] sm:$0xff]
    %v332 = vld [vmem:[#allocation17 + $0x20] sm:$0xff]
    %v333 = vld [vmem:[#allocation17 + $0x28] sm:$0xff]
    %v334 = vld [vmem:[#allocation17 + $0x30] sm:$0xff]
    %v335 = vld [vmem:[#allocation17 + $0x38] sm:$0xff]
    %v336 = vld [vmem:[#allocation17 + $0x40] sm:$0xff]
    %v337 = vld [vmem:[#allocation17 + $0x48] sm:$0xff]
    %v338 = vld [vmem:[#allocation17 + $0x50] sm:$0xff]
    %v339 = vld [vmem:[#allocation17 + $0x58] sm:$0xff]
    %v340 = vld [vmem:[#allocation17 + $0x60] sm:$0xff]
    %v341 = vld [vmem:[#allocation17 + $0x68] sm:$0xff]
    %v342 = vld [vmem:[#allocation17 + $0x70] sm:$0xff]
    %v343 = vld [vmem:[#allocation17 + $0x78] sm:$0xff]
    %v344 = vld [vmem:[#allocation17 + $0x80] sm:$0xff]
    %v345 = vld [vmem:[#allocation17 + $0x88] sm:$0xff]
    %v346 = vld [vmem:[#allocation17 + $0x90] sm:$0xff]
    %v347 = vld [vmem:[#allocation17 + $0x98] sm:$0xff]
    %v348 = vld [vmem:[#allocation17 + $0xa0] sm:$0xff]
    %v349 = vld [vmem:[#allocation17 + $0xa8] sm:$0xff]
    %v350 = vld [vmem:[#allocation17 + $0xb0] sm:$0xff]
    %v351 = vld [vmem:[#allocation17 + $0xb8] sm:$0xff]
    %v352 = vld [vmem:[#allocation17 + $0xc0] sm:$0xff]
    %v353 = vld [vmem:[#allocation17 + $0xc8] sm:$0xff]
    %v354 = vld [vmem:[#allocation17 + $0xd0] sm:$0xff]
    %v355 = vld [vmem:[#allocation17 + $0xd8] sm:$0xff]
    %v356 = vld [vmem:[#allocation17 + $0xe0] sm:$0xff]
    %v357 = vld [vmem:[#allocation17 + $0xe8] sm:$0xff]
    %v358 = vld [vmem:[#allocation17 + $0xf0] sm:$0xff]
    %v359 = vld [vmem:[#allocation17 + $0xf8] sm:$0xff]
    %v360 = vld [vmem:[#allocation17 + $0x100] sm:$0xff]
    %v361 = vld [vmem:[#allocation17 + $0x108] sm:$0xff]
    %v362 = vld [vmem:[#allocation17 + $0x110] sm:$0xff]
    %v363 = vld [vmem:[#allocation17 + $0x118] sm:$0xff]
    %v364 = vld [vmem:[#allocation17 + $0x120] sm:$0xff]
    %v365 = vld [vmem:[#allocation17 + $0x128] sm:$0xff]
    %v366 = vld [vmem:[#allocation17 + $0x130] sm:$0xff]
    %v367 = vld [vmem:[#allocation17 + $0x138] sm:$0xff]
    %v368 = vld [vmem:[#allocation17 + $0x140] sm:$0xff]
    %v369 = vld [vmem:[#allocation17 + $0x148] sm:$0xff]
    %v370 = vld [vmem:[#allocation17 + $0x150] sm:$0xff]
    %v371 = vld [vmem:[#allocation17 + $0x158] sm:$0xff]
    %v372 = vld [vmem:[#allocation17 + $0x160] sm:$0xff]
    %v373 = vld [vmem:[#allocation17 + $0x168] sm:$0xff]
    %v374 = vld [vmem:[#allocation17 + $0x170] sm:$0xff]
    %v375 = vld [vmem:[#allocation17 + $0x178] sm:$0xff]
    %v376 = vld [vmem:[#allocation17 + $0x180] sm:$0xff]
    %v377 = vld [vmem:[#allocation17 + $0x188] sm:$0xff]
    %v378 = vld [vmem:[#allocation17 + $0x190] sm:$0xff]
    %v379 = vld [vmem:[#allocation17 + $0x198] sm:$0xff]
    %v380 = vld [vmem:[#allocation17 + $0x1a0] sm:$0xff]
    %v381 = vld [vmem:[#allocation17 + $0x1a8] sm:$0xff]
    %v382 = vld [vmem:[#allocation17 + $0x1b0] sm:$0xff]
    %v383 = vld [vmem:[#allocation17 + $0x1b8] sm:$0xff]
    %v384 = vld [vmem:[#allocation17 + $0x1c0] sm:$0xff]
    %v385 = vld [vmem:[#allocation17 + $0x1c8] sm:$0xff]
    %v386 = vld [vmem:[#allocation17 + $0x1d0] sm:$0xff]
    %v387 = vld [vmem:[#allocation17 + $0x1d8] sm:$0xff]
    %v388 = vld [vmem:[#allocation17 + $0x1e0] sm:$0xff]
    %v389 = vld [vmem:[#allocation17 + $0x1e8] sm:$0xff]
    %v390 = vld [vmem:[#allocation17 + $0x1f0] sm:$0xff]
    %v391 = vld [vmem:[#allocation17 + $0x1f8] sm:$0xff]
    %v393 = vcombine.high %v327, %v327
    %395 = vmatprep.subr.mxu0 %v329
    %396 = vmatpush1.msra.mxu0 %v328
    %397 = vmatprep.subr.mxu0 %v331
    %398 = vmatpush1.msra.mxu0 %v330
    %399 = vmatprep.subr.mxu0 %v333
    %400 = vmatpush1.msra.mxu0 %v332
    %401 = vmatprep.subr.mxu0 %v335
    %402 = vmatpush1.msra.mxu0 %v334
    %403 = vmatprep.subr.mxu0 %v337
    %404 = vmatpush1.msra.mxu0 %v336
    %405 = vmatprep.subr.mxu0 %v339
    %406 = vmatpush1.msra.mxu0 %v338
    %407 = vmatprep.subr.mxu0 %v341
    %408 = vmatpush1.msra.mxu0 %v340
    %409 = vmatprep.subr.mxu0 %v343
    %410 = vmatpush1.msra.mxu0 %v342
    %411 = vmatprep.subr.mxu0 %v345
    %412 = vmatpush1.msra.mxu0 %v344
    %413 = vmatprep.subr.mxu0 %v347
    %414 = vmatpush1.msra.mxu0 %v346
    %415 = vmatprep.subr.mxu0 %v349
    %416 = vmatpush1.msra.mxu0 %v348
    %417 = vmatprep.subr.mxu0 %v351
    %418 = vmatpush1.msra.mxu0 %v350
    %419 = vmatprep.subr.mxu0 %v353
    %420 = vmatpush1.msra.mxu0 %v352
    %421 = vmatprep.subr.mxu0 %v355
    %422 = vmatpush1.msra.mxu0 %v354
    %423 = vmatprep.subr.mxu0 %v357
    %424 = vmatpush1.msra.mxu0 %v356
    %425 = vmatprep.subr.mxu0 %v359
    %426 = vmatpush1.msra.mxu0 %v358
    %427 = vmatprep.subr.mxu0 %v361
    %428 = vmatpush1.msra.mxu0 %v360
    %429 = vmatprep.subr.mxu0 %v363
    %430 = vmatpush1.msra.mxu0 %v362
    %431 = vmatprep.subr.mxu0 %v365
    %432 = vmatpush1.msra.mxu0 %v364
    %433 = vmatprep.subr.mxu0 %v367
    %434 = vmatpush1.msra.mxu0 %v366
    %435 = vmatprep.subr.mxu0 %v369
    %436 = vmatpush1.msra.mxu0 %v368
    %437 = vmatprep.subr.mxu0 %v371
    %438 = vmatpush1.msra.mxu0 %v370
    %439 = vmatprep.subr.mxu0 %v373
    %440 = vmatpush1.msra.mxu0 %v372
    %441 = vmatprep.subr.mxu0 %v375
    %442 = vmatpush1.msra.mxu0 %v374
    %443 = vmatprep.subr.mxu0 %v377
    %444 = vmatpush1.msra.mxu0 %v376
    %445 = vmatprep.subr.mxu0 %v379
    %446 = vmatpush1.msra.mxu0 %v378
    %447 = vmatprep.subr.mxu0 %v381
    %448 = vmatpush1.msra.mxu0 %v380
    %449 = vmatprep.subr.mxu0 %v383
    %450 = vmatpush1.msra.mxu0 %v382
    %451 = vmatprep.subr.mxu0 %v385
    %452 = vmatpush1.msra.mxu0 %v384
    %453 = vmatprep.subr.mxu0 %v387
    %454 = vmatpush1.msra.mxu0 %v386
    %455 = vmatprep.subr.mxu0 %v389
    %456 = vmatpush1.msra.mxu0 %v388
    %457 = vmatprep.subr.mxu0 %v391
    %458 = vmatpush1.msra.mxu0 %v390
    %459 = vmatprep.mubr.f32.mxu0 %v393
    %460 = vmatmul.mubr.f32.gmra.mrb[0].mxu0 %v327
    %v461 = vpop.f32.mrb[0].mxu0
    %v462 = vadd.f32 0.0, %v461
    %v463 = vpop.f32.mrb[0].mxu0
    %v464 = vadd.f32 0.0, %v463
    %465 = vdwg.mxu0
    %v466 = vld [vmem:[#allocation8] sm:$0xff]
    %s467 = scalar_lea.vmem [#allocation17], 512
    %v468 = vld [vmem:[%s467] sm:$0xff]
    %v469 = vld [vmem:[%s467 + $0x8] sm:$0xff]
    %v470 = vld [vmem:[%s467 + $0x10] sm:$0xff]
    %v471 = vld [vmem:[%s467 + $0x18] sm:$0xff]
    %v472 = vld [vmem:[%s467 + $0x20] sm:$0xff]
    %v473 = vld [vmem:[%s467 + $0x28] sm:$0xff]
    %v474 = vld [vmem:[%s467 + $0x30] sm:$0xff]
    %v475 = vld [vmem:[%s467 + $0x38] sm:$0xff]
    %v476 = vld [vmem:[%s467 + $0x40] sm:$0xff]
    %v477 = vld [vmem:[%s467 + $0x48] sm:$0xff]
    %v478 = vld [vmem:[%s467 + $0x50] sm:$0xff]
    %v479 = vld [vmem:[%s467 + $0x58] sm:$0xff]
    %v480 = vld [vmem:[%s467 + $0x60] sm:$0xff]
    %v481 = vld [vmem:[%s467 + $0x68] sm:$0xff]
    %v482 = vld [vmem:[%s467 + $0x70] sm:$0xff]
    %v483 = vld [vmem:[%s467 + $0x78] sm:$0xff]
    %v484 = vld [vmem:[%s467 + $0x80] sm:$0xff]
    %v485 = vld [vmem:[%s467 + $0x88] sm:$0xff]
    %v486 = vld [vmem:[%s467 + $0x90] sm:$0xff]
    %v487 = vld [vmem:[%s467 + $0x98] sm:$0xff]
    %v488 = vld [vmem:[%s467 + $0xa0] sm:$0xff]
    %v489 = vld [vmem:[%s467 + $0xa8] sm:$0xff]
    %v490 = vld [vmem:[%s467 + $0xb0] sm:$0xff]
    %v491 = vld [vmem:[%s467 + $0xb8] sm:$0xff]
    %v492 = vld [vmem:[%s467 + $0xc0] sm:$0xff]
    %v493 = vld [vmem:[%s467 + $0xc8] sm:$0xff]
    %v494 = vld [vmem:[%s467 + $0xd0] sm:$0xff]
    %v495 = vld [vmem:[%s467 + $0xd8] sm:$0xff]
    %v496 = vld [vmem:[%s467 + $0xe0] sm:$0xff]
    %v497 = vld [vmem:[%s467 + $0xe8] sm:$0xff]
    %v498 = vld [vmem:[%s467 + $0xf0] sm:$0xff]
    %v499 = vld [vmem:[%s467 + $0xf8] sm:$0xff]
    %v500 = vld [vmem:[%s467 + $0x100] sm:$0xff]
    %v501 = vld [vmem:[%s467 + $0x108] sm:$0xff]
    %v502 = vld [vmem:[%s467 + $0x110] sm:$0xff]
    %v503 = vld [vmem:[%s467 + $0x118] sm:$0xff]
    %v504 = vld [vmem:[%s467 + $0x120] sm:$0xff]
    %v505 = vld [vmem:[%s467 + $0x128] sm:$0xff]
    %v506 = vld [vmem:[%s467 + $0x130] sm:$0xff]
    %v507 = vld [vmem:[%s467 + $0x138] sm:$0xff]
    %v508 = vld [vmem:[%s467 + $0x140] sm:$0xff]
    %v509 = vld [vmem:[%s467 + $0x148] sm:$0xff]
    %v510 = vld [vmem:[%s467 + $0x150] sm:$0xff]
    %v511 = vld [vmem:[%s467 + $0x158] sm:$0xff]
    %v512 = vld [vmem:[%s467 + $0x160] sm:$0xff]
    %v513 = vld [vmem:[%s467 + $0x168] sm:$0xff]
    %v514 = vld [vmem:[%s467 + $0x170] sm:$0xff]
    %v515 = vld [vmem:[%s467 + $0x178] sm:$0xff]
    %v516 = vld [vmem:[%s467 + $0x180] sm:$0xff]
    %v517 = vld [vmem:[%s467 + $0x188] sm:$0xff]
    %v518 = vld [vmem:[%s467 + $0x190] sm:$0xff]
    %v519 = vld [vmem:[%s467 + $0x198] sm:$0xff]
    %v520 = vld [vmem:[%s467 + $0x1a0] sm:$0xff]
    %v521 = vld [vmem:[%s467 + $0x1a8] sm:$0xff]
    %v522 = vld [vmem:[%s467 + $0x1b0] sm:$0xff]
    %v523 = vld [vmem:[%s467 + $0x1b8] sm:$0xff]
    %v524 = vld [vmem:[%s467 + $0x1c0] sm:$0xff]
    %v525 = vld [vmem:[%s467 + $0x1c8] sm:$0xff]
    %v526 = vld [vmem:[%s467 + $0x1d0] sm:$0xff]
    %v527 = vld [vmem:[%s467 + $0x1d8] sm:$0xff]
    %v528 = vld [vmem:[%s467 + $0x1e0] sm:$0xff]
    %v529 = vld [vmem:[%s467 + $0x1e8] sm:$0xff]
    %v530 = vld [vmem:[%s467 + $0x1f0] sm:$0xff]
    %v531 = vld [vmem:[%s467 + $0x1f8] sm:$0xff]
    %532 = vmatprep.subr.mxu0 %v469
    %533 = vmatpush1.msra.mxu0 %v468
    %534 = vmatprep.subr.mxu0 %v471
    %535 = vmatpush1.msra.mxu0 %v470
    %536 = vmatprep.subr.mxu0 %v473
    %537 = vmatpush1.msra.mxu0 %v472
    %538 = vmatprep.subr.mxu0 %v475
    %539 = vmatpush1.msra.mxu0 %v474
    %540 = vmatprep.subr.mxu0 %v477
    %541 = vmatpush1.msra.mxu0 %v476
    %542 = vmatprep.subr.mxu0 %v479
    %543 = vmatpush1.msra.mxu0 %v478
    %544 = vmatprep.subr.mxu0 %v481
    %545 = vmatpush1.msra.mxu0 %v480
    %546 = vmatprep.subr.mxu0 %v483
    %547 = vmatpush1.msra.mxu0 %v482
    %548 = vmatprep.subr.mxu0 %v485
    %549 = vmatpush1.msra.mxu0 %v484
    %550 = vmatprep.subr.mxu0 %v487
    %551 = vmatpush1.msra.mxu0 %v486
    %552 = vmatprep.subr.mxu0 %v489
    %553 = vmatpush1.msra.mxu0 %v488
    %554 = vmatprep.subr.mxu0 %v491
    %555 = vmatpush1.msra.mxu0 %v490
    %556 = vmatprep.subr.mxu0 %v493
    %557 = vmatpush1.msra.mxu0 %v492
    %558 = vmatprep.subr.mxu0 %v495
    %559 = vmatpush1.msra.mxu0 %v494
    %560 = vmatprep.subr.mxu0 %v497
    %561 = vmatpush1.msra.mxu0 %v496
    %562 = vmatprep.subr.mxu0 %v499
    %563 = vmatpush1.msra.mxu0 %v498
    %564 = vmatprep.subr.mxu0 %v501
    %565 = vmatpush1.msra.mxu0 %v500
    %566 = vmatprep.subr.mxu0 %v503
    %567 = vmatpush1.msra.mxu0 %v502
    %568 = vmatprep.subr.mxu0 %v505
    %569 = vmatpush1.msra.mxu0 %v504
    %570 = vmatprep.subr.mxu0 %v507
    %571 = vmatpush1.msra.mxu0 %v506
    %572 = vmatprep.subr.mxu0 %v509
    %573 = vmatpush1.msra.mxu0 %v508
    %574 = vmatprep.subr.mxu0 %v511
    %575 = vmatpush1.msra.mxu0 %v510
    %576 = vmatprep.subr.mxu0 %v513
    %577 = vmatpush1.msra.mxu0 %v512
    %578 = vmatprep.subr.mxu0 %v515
    %579 = vmatpush1.msra.mxu0 %v514
    %580 = vmatprep.subr.mxu0 %v517
    %581 = vmatpush1.msra.mxu0 %v516
    %582 = vmatprep.subr.mxu0 %v519
    %583 = vmatpush1.msra.mxu0 %v518
    %584 = vmatprep.subr.mxu0 %v521
    %585 = vmatpush1.msra.mxu0 %v520
    %586 = vmatprep.subr.mxu0 %v523
    %587 = vmatpush1.msra.mxu0 %v522
    %588 = vmatprep.subr.mxu0 %v525
    %589 = vmatpush1.msra.mxu0 %v524
    %590 = vmatprep.subr.mxu0 %v527
    %591 = vmatpush1.msra.mxu0 %v526
    %592 = vmatprep.subr.mxu0 %v529
    %593 = vmatpush1.msra.mxu0 %v528
    %594 = vmatprep.subr.mxu0 %v531
    %595 = vmatpush1.msra.mxu0 %v530
    %596 = vmatprep.mubr.f32.mxu0 %v393
    %597 = vmatmul.mubr.f32.gmra.mrb[0].mxu0 %v327
    %v598 = vpop.f32.mrb[0].mxu0
    %v599 = vadd.f32 0.0, %v598
    %v600 = vpop.f32.mrb[0].mxu0
    %v601 = vadd.f32 0.0, %v600
    %602 = vdwg.mxu0
    %s603 = scalar_lea.vmem [#allocation8], 8
    %v604 = vld [vmem:[%s603] sm:$0xff]
    %vm605 = vcmask 23552
    %v607 = vsel %vm605, %v604, 0
    %vm609 = vcmask 1042432
    %v611 = vsel %vm609, %v599, 0
    %v614 = vsel %vm609, %v601, 0
    %616 = vmatprep.subr.mxu0 %v614
    %617 = vmatpush1.msra.mxu0 %v611
    %618 = vmatprep.subr.mxu0 0.0
    %619 = vmatpush1.msra.mxu0 0.0
    %620 = vmatprep.subr.mxu0 0.0
    %621 = vmatpush1.msra.mxu0 0.0
    %622 = vmatprep.subr.mxu0 0.0
    %623 = vmatpush1.msra.mxu0 0.0
    %624 = vmatprep.subr.mxu0 0.0
    %625 = vmatpush1.msra.mxu0 0.0
    %626 = vmatprep.subr.mxu0 0.0
    %627 = vmatpush1.msra.mxu0 0.0
    %628 = vmatprep.subr.mxu0 0.0
    %629 = vmatpush1.msra.mxu0 0.0
    %630 = vmatprep.subr.mxu0 0.0
    %631 = vmatpush1.msra.mxu0 0.0
    %632 = vmatprep.subr.mxu0 0.0
    %633 = vmatpush1.msra.mxu0 0.0
    %634 = vmatprep.subr.mxu0 0.0
    %635 = vmatpush1.msra.mxu0 0.0
    %636 = vmatprep.subr.mxu0 0.0
    %637 = vmatpush1.msra.mxu0 0.0
    %638 = vmatprep.subr.mxu0 0.0
    %639 = vmatpush1.msra.mxu0 0.0
    %640 = vmatprep.subr.mxu0 0.0
    %641 = vmatpush1.msra.mxu0 0.0
    %642 = vmatprep.subr.mxu0 0.0
    %643 = vmatpush1.msra.mxu0 0.0
    %644 = vmatprep.subr.mxu0 0.0
    %645 = vmatpush1.msra.mxu0 0.0
    %646 = vmatprep.subr.mxu0 0.0
    %647 = vmatpush1.msra.mxu0 0.0
    %648 = vmatprep.subr.mxu0 0.0
    %649 = vmatpush1.msra.mxu0 0.0
    %650 = vmatprep.subr.mxu0 0.0
    %651 = vmatpush1.msra.mxu0 0.0
    %652 = vmatprep.subr.mxu0 0.0
    %653 = vmatpush1.msra.mxu0 0.0
    %654 = vmatprep.subr.mxu0 0.0
    %655 = vmatpush1.msra.mxu0 0.0
    %656 = vmatprep.subr.mxu0 0.0
    %657 = vmatpush1.msra.mxu0 0.0
    %658 = vmatprep.subr.mxu0 0.0
    %659 = vmatpush1.msra.mxu0 0.0
    %660 = vmatprep.subr.mxu0 0.0
    %661 = vmatpush1.msra.mxu0 0.0
    %662 = vmatprep.subr.mxu0 0.0
    %663 = vmatpush1.msra.mxu0 0.0
    %664 = vmatprep.subr.mxu0 0.0
    %665 = vmatpush1.msra.mxu0 0.0
    %666 = vmatprep.subr.mxu0 0.0
    %667 = vmatpush1.msra.mxu0 0.0
    %668 = vmatprep.subr.mxu0 0.0
    %669 = vmatpush1.msra.mxu0 0.0
    %670 = vmatprep.subr.mxu0 0.0
    %671 = vmatpush1.msra.mxu0 0.0
    %672 = vmatprep.subr.mxu0 0.0
    %673 = vmatpush1.msra.mxu0 0.0
    %674 = vmatprep.subr.mxu0 0.0
    %675 = vmatpush1.msra.mxu0 0.0
    %676 = vmatprep.subr.mxu0 0.0
    %677 = vmatpush1.msra.mxu0 0.0
    %678 = vmatprep.subr.mxu0 0.0
    %679 = vmatpush1.msra.mxu0 0.0
    %680 = vmatprep.mubr.f32.mxu0 0.0
    %681 = vmatmul.mubr.f32.gmra.mrb[0].mxu0 %v607
    %v682 = vpop.f32.mrb[0].mxu0
    %v683 = vadd.f32 0.0, %v682
    %v684 = vpop.f32.mrb[0].mxu0
    %v685 = vadd.f32 0.0, %v684
    %686 = vdwg.mxu0
    %v688 = vsel %vm605, %v466, 0
    %v691 = vsel %vm609, %v462, 0
    %v694 = vsel %vm609, %v464, 0
    %696 = vmatprep.subr.mxu0 %v694
    %697 = vmatpush1.msra.mxu0 %v691
    %698 = vmatprep.subr.mxu0 0.0
    %699 = vmatpush1.msra.mxu0 0.0
    %700 = vmatprep.subr.mxu0 0.0
    %701 = vmatpush1.msra.mxu0 0.0
    %702 = vmatprep.subr.mxu0 0.0
    %703 = vmatpush1.msra.mxu0 0.0
    %704 = vmatprep.subr.mxu0 0.0
    %705 = vmatpush1.msra.mxu0 0.0
    %706 = vmatprep.subr.mxu0 0.0
    %707 = vmatpush1.msra.mxu0 0.0
    %708 = vmatprep.subr.mxu0 0.0
    %709 = vmatpush1.msra.mxu0 0.0
    %710 = vmatprep.subr.mxu0 0.0
    %711 = vmatpush1.msra.mxu0 0.0
    %712 = vmatprep.subr.mxu0 0.0
    %713 = vmatpush1.msra.mxu0 0.0
    %714 = vmatprep.subr.mxu0 0.0
    %715 = vmatpush1.msra.mxu0 0.0
    %716 = vmatprep.subr.mxu0 0.0
    %717 = vmatpush1.msra.mxu0 0.0
    %718 = vmatprep.subr.mxu0 0.0
    %719 = vmatpush1.msra.mxu0 0.0
    %720 = vmatprep.subr.mxu0 0.0
    %721 = vmatpush1.msra.mxu0 0.0
    %722 = vmatprep.subr.mxu0 0.0
    %723 = vmatpush1.msra.mxu0 0.0
    %724 = vmatprep.subr.mxu0 0.0
    %725 = vmatpush1.msra.mxu0 0.0
    %726 = vmatprep.subr.mxu0 0.0
    %727 = vmatpush1.msra.mxu0 0.0
    %728 = vmatprep.subr.mxu0 0.0
    %729 = vmatpush1.msra.mxu0 0.0
    %730 = vmatprep.subr.mxu0 0.0
    %731 = vmatpush1.msra.mxu0 0.0
    %732 = vmatprep.subr.mxu0 0.0
    %733 = vmatpush1.msra.mxu0 0.0
    %734 = vmatprep.subr.mxu0 0.0
    %735 = vmatpush1.msra.mxu0 0.0
    %736 = vmatprep.subr.mxu0 0.0
    %737 = vmatpush1.msra.mxu0 0.0
    %738 = vmatprep.subr.mxu0 0.0
    %739 = vmatpush1.msra.mxu0 0.0
    %740 = vmatprep.subr.mxu0 0.0
    %741 = vmatpush1.msra.mxu0 0.0
    %742 = vmatprep.subr.mxu0 0.0
    %743 = vmatpush1.msra.mxu0 0.0
    %744 = vmatprep.subr.mxu0 0.0
    %745 = vmatpush1.msra.mxu0 0.0
    %746 = vmatprep.subr.mxu0 0.0
    %747 = vmatpush1.msra.mxu0 0.0
    %748 = vmatprep.subr.mxu0 0.0
    %749 = vmatpush1.msra.mxu0 0.0
    %750 = vmatprep.subr.mxu0 0.0
    %751 = vmatpush1.msra.mxu0 0.0
    %752 = vmatprep.subr.mxu0 0.0
    %753 = vmatpush1.msra.mxu0 0.0
    %754 = vmatprep.subr.mxu0 0.0
    %755 = vmatpush1.msra.mxu0 0.0
    %756 = vmatprep.subr.mxu0 0.0
    %757 = vmatpush1.msra.mxu0 0.0
    %758 = vmatprep.subr.mxu0 0.0
    %759 = vmatpush1.msra.mxu0 0.0
    %760 = vmatprep.mubr.f32.mxu0 0.0
    %761 = vmatmul.mubr.f32.gmra.mrb[0].mxu0 %v688
    %v762 = vpop.f32.mrb[0].mxu0
    %v763 = vadd.f32 %v683, %v762
    %v764 = vpop.f32.mrb[0].mxu0
    %v765 = vadd.f32 %v685, %v764
    %766 = vdwg.mxu0
    %s767 = scalar_lea.vmem [#allocation17], 1024
    %v768 = vld [vmem:[%s767] sm:$0xff]
    %v769 = vld [vmem:[%s767 + $0x8] sm:$0xff]
    %v770 = vld [vmem:[%s767 + $0x10] sm:$0xff]
    %v771 = vld [vmem:[%s767 + $0x18] sm:$0xff]
    %v772 = vld [vmem:[%s767 + $0x20] sm:$0xff]
    %v773 = vld [vmem:[%s767 + $0x28] sm:$0xff]
    %v774 = vld [vmem:[%s767 + $0x30] sm:$0xff]
    %v775 = vld [vmem:[%s767 + $0x38] sm:$0xff]
    %v776 = vld [vmem:[%s767 + $0x40] sm:$0xff]
    %v777 = vld [vmem:[%s767 + $0x48] sm:$0xff]
    %v778 = vld [vmem:[%s767 + $0x50] sm:$0xff]
    %v779 = vld [vmem:[%s767 + $0x58] sm:$0xff]
    %v780 = vld [vmem:[%s767 + $0x60] sm:$0xff]
    %v781 = vld [vmem:[%s767 + $0x68] sm:$0xff]
    %v782 = vld [vmem:[%s767 + $0x70] sm:$0xff]
    %v783 = vld [vmem:[%s767 + $0x78] sm:$0xff]
    %v784 = vld [vmem:[%s767 + $0x80] sm:$0xff]
    %v785 = vld [vmem:[%s767 + $0x88] sm:$0xff]
    %v786 = vld [vmem:[%s767 + $0x90] sm:$0xff]
    %v787 = vld [vmem:[%s767 + $0x98] sm:$0xff]
    %v788 = vld [vmem:[%s767 + $0xa0] sm:$0xff]
    %v789 = vld [vmem:[%s767 + $0xa8] sm:$0xff]
    %v790 = vld [vmem:[%s767 + $0xb0] sm:$0xff]
    %v791 = vld [vmem:[%s767 + $0xb8] sm:$0xff]
    %v792 = vld [vmem:[%s767 + $0xc0] sm:$0xff]
    %v793 = vld [vmem:[%s767 + $0xc8] sm:$0xff]
    %v794 = vld [vmem:[%s767 + $0xd0] sm:$0xff]
    %v795 = vld [vmem:[%s767 + $0xd8] sm:$0xff]
    %v796 = vld [vmem:[%s767 + $0xe0] sm:$0xff]
    %v797 = vld [vmem:[%s767 + $0xe8] sm:$0xff]
    %v798 = vld [vmem:[%s767 + $0xf0] sm:$0xff]
    %v799 = vld [vmem:[%s767 + $0xf8] sm:$0xff]
    %v800 = vld [vmem:[%s767 + $0x100] sm:$0xff]
    %v801 = vld [vmem:[%s767 + $0x108] sm:$0xff]
    %v802 = vld [vmem:[%s767 + $0x110] sm:$0xff]
    %v803 = vld [vmem:[%s767 + $0x118] sm:$0xff]
    %v804 = vld [vmem:[%s767 + $0x120] sm:$0xff]
    %v805 = vld [vmem:[%s767 + $0x128] sm:$0xff]
    %v806 = vld [vmem:[%s767 + $0x130] sm:$0xff]
    %v807 = vld [vmem:[%s767 + $0x138] sm:$0xff]
    %v808 = vld [vmem:[%s767 + $0x140] sm:$0xff]
    %v809 = vld [vmem:[%s767 + $0x148] sm:$0xff]
    %v810 = vld [vmem:[%s767 + $0x150] sm:$0xff]
    %v811 = vld [vmem:[%s767 + $0x158] sm:$0xff]
    %v812 = vld [vmem:[%s767 + $0x160] sm:$0xff]
    %v813 = vld [vmem:[%s767 + $0x168] sm:$0xff]
    %v814 = vld [vmem:[%s767 + $0x170] sm:$0xff]
    %v815 = vld [vmem:[%s767 + $0x178] sm:$0xff]
    %v816 = vld [vmem:[%s767 + $0x180] sm:$0xff]
    %v817 = vld [vmem:[%s767 + $0x188] sm:$0xff]
    %v818 = vld [vmem:[%s767 + $0x190] sm:$0xff]
    %v819 = vld [vmem:[%s767 + $0x198] sm:$0xff]
    %v820 = vld [vmem:[%s767 + $0x1a0] sm:$0xff]
    %v821 = vld [vmem:[%s767 + $0x1a8] sm:$0xff]
    %v822 = vld [vmem:[%s767 + $0x1b0] sm:$0xff]
    %v823 = vld [vmem:[%s767 + $0x1b8] sm:$0xff]
    %v824 = vld [vmem:[%s767 + $0x1c0] sm:$0xff]
    %v825 = vld [vmem:[%s767 + $0x1c8] sm:$0xff]
    %v826 = vld [vmem:[%s767 + $0x1d0] sm:$0xff]
    %v827 = vld [vmem:[%s767 + $0x1d8] sm:$0xff]
    %v828 = vld [vmem:[%s767 + $0x1e0] sm:$0xff]
    %v829 = vld [vmem:[%s767 + $0x1e8] sm:$0xff]
    %v830 = vld [vmem:[%s767 + $0x1f0] sm:$0xff]
    %v831 = vld [vmem:[%s767 + $0x1f8] sm:$0xff]
    %832 = vmatprep.subr.mxu0 %v769
    %833 = vmatpush1.msra.mxu0 %v768
    %834 = vmatprep.subr.mxu0 %v771
    %835 = vmatpush1.msra.mxu0 %v770
    %836 = vmatprep.subr.mxu0 %v773
    %837 = vmatpush1.msra.mxu0 %v772
    %838 = vmatprep.subr.mxu0 %v775
    %839 = vmatpush1.msra.mxu0 %v774
    %840 = vmatprep.subr.mxu0 %v777
    %841 = vmatpush1.msra.mxu0 %v776
    %842 = vmatprep.subr.mxu0 %v779
    %843 = vmatpush1.msra.mxu0 %v778
    %844 = vmatprep.subr.mxu0 %v781
    %845 = vmatpush1.msra.mxu0 %v780
    %846 = vmatprep.subr.mxu0 %v783
    %847 = vmatpush1.msra.mxu0 %v782
    %848 = vmatprep.subr.mxu0 %v785
    %849 = vmatpush1.msra.mxu0 %v784
    %850 = vmatprep.subr.mxu0 %v787
    %851 = vmatpush1.msra.mxu0 %v786
    %852 = vmatprep.subr.mxu0 %v789
    %853 = vmatpush1.msra.mxu0 %v788
    %854 = vmatprep.subr.mxu0 %v791
    %855 = vmatpush1.msra.mxu0 %v790
    %856 = vmatprep.subr.mxu0 %v793
    %857 = vmatpush1.msra.mxu0 %v792
    %858 = vmatprep.subr.mxu0 %v795
    %859 = vmatpush1.msra.mxu0 %v794
    %860 = vmatprep.subr.mxu0 %v797
    %861 = vmatpush1.msra.mxu0 %v796
    %862 = vmatprep.subr.mxu0 %v799
    %863 = vmatpush1.msra.mxu0 %v798
    %864 = vmatprep.subr.mxu0 %v801
    %865 = vmatpush1.msra.mxu0 %v800
    %866 = vmatprep.subr.mxu0 %v803
    %867 = vmatpush1.msra.mxu0 %v802
    %868 = vmatprep.subr.mxu0 %v805
    %869 = vmatpush1.msra.mxu0 %v804
    %870 = vmatprep.subr.mxu0 %v807
    %871 = vmatpush1.msra.mxu0 %v806
    %872 = vmatprep.subr.mxu0 %v809
    %873 = vmatpush1.msra.mxu0 %v808
    %874 = vmatprep.subr.mxu0 %v811
    %875 = vmatpush1.msra.mxu0 %v810
    %876 = vmatprep.subr.mxu0 %v813
    %877 = vmatpush1.msra.mxu0 %v812
    %878 = vmatprep.subr.mxu0 %v815
    %879 = vmatpush1.msra.mxu0 %v814
    %880 = vmatprep.subr.mxu0 %v817
    %881 = vmatpush1.msra.mxu0 %v816
    %882 = vmatprep.subr.mxu0 %v819
    %883 = vmatpush1.msra.mxu0 %v818
    %884 = vmatprep.subr.mxu0 %v821
    %885 = vmatpush1.msra.mxu0 %v820
    %886 = vmatprep.subr.mxu0 %v823
    %887 = vmatpush1.msra.mxu0 %v822
    %888 = vmatprep.subr.mxu0 %v825
    %889 = vmatpush1.msra.mxu0 %v824
    %890 = vmatprep.subr.mxu0 %v827
    %891 = vmatpush1.msra.mxu0 %v826
    %892 = vmatprep.subr.mxu0 %v829
    %893 = vmatpush1.msra.mxu0 %v828
    %894 = vmatprep.subr.mxu0 %v831
    %895 = vmatpush1.msra.mxu0 %v830
    %896 = vmatprep.mubr.f32.mxu0 %v393
    %897 = vmatmul.mubr.f32.gmra.mrb[0].mxu0 %v327
    %v898 = vpop.f32.mrb[0].mxu0
    %v899 = vadd.f32 0.0, %v898
    %v900 = vpop.f32.mrb[0].mxu0
    %v901 = vadd.f32 0.0, %v900
    %902 = vdwg.mxu0
    %s903 = scalar_lea.vmem [#allocation8], 16
    %v904 = vld [vmem:[%s903] sm:$0xff]
    %v906 = vsel %vm605, %v904, 0
    %v909 = vsel %vm609, %v899, 0
    %v912 = vsel %vm609, %v901, 0
    %914 = vmatprep.subr.mxu0 %v912
    %915 = vmatpush1.msra.mxu0 %v909
    %916 = vmatprep.subr.mxu0 0.0
    %917 = vmatpush1.msra.mxu0 0.0
    %918 = vmatprep.subr.mxu0 0.0
    %919 = vmatpush1.msra.mxu0 0.0
    %920 = vmatprep.subr.mxu0 0.0
    %921 = vmatpush1.msra.mxu0 0.0
    %922 = vmatprep.subr.mxu0 0.0
    %923 = vmatpush1.msra.mxu0 0.0
    %924 = vmatprep.subr.mxu0 0.0
    %925 = vmatpush1.msra.mxu0 0.0
    %926 = vmatprep.subr.mxu0 0.0
    %927 = vmatpush1.msra.mxu0 0.0
    %928 = vmatprep.subr.mxu0 0.0
    %929 = vmatpush1.msra.mxu0 0.0
    %930 = vmatprep.subr.mxu0 0.0
    %931 = vmatpush1.msra.mxu0 0.0
    %932 = vmatprep.subr.mxu0 0.0
    %933 = vmatpush1.msra.mxu0 0.0
    %934 = vmatprep.subr.mxu0 0.0
    %935 = vmatpush1.msra.mxu0 0.0
    %936 = vmatprep.subr.mxu0 0.0
    %937 = vmatpush1.msra.mxu0 0.0
    %938 = vmatprep.subr.mxu0 0.0
    %939 = vmatpush1.msra.mxu0 0.0
    %940 = vmatprep.subr.mxu0 0.0
    %941 = vmatpush1.msra.mxu0 0.0
    %942 = vmatprep.subr.mxu0 0.0
    %943 = vmatpush1.msra.mxu0 0.0
    %944 = vmatprep.subr.mxu0 0.0
    %945 = vmatpush1.msra.mxu0 0.0
    %946 = vmatprep.subr.mxu0 0.0
    %947 = vmatpush1.msra.mxu0 0.0
    %948 = vmatprep.subr.mxu0 0.0
    %949 = vmatpush1.msra.mxu0 0.0
    %950 = vmatprep.subr.mxu0 0.0
    %951 = vmatpush1.msra.mxu0 0.0
    %952 = vmatprep.subr.mxu0 0.0
    %953 = vmatpush1.msra.mxu0 0.0
    %954 = vmatprep.subr.mxu0 0.0
    %955 = vmatpush1.msra.mxu0 0.0
    %956 = vmatprep.subr.mxu0 0.0
    %957 = vmatpush1.msra.mxu0 0.0
    %958 = vmatprep.subr.mxu0 0.0
    %959 = vmatpush1.msra.mxu0 0.0
    %960 = vmatprep.subr.mxu0 0.0
    %961 = vmatpush1.msra.mxu0 0.0
    %962 = vmatprep.subr.mxu0 0.0
    %963 = vmatpush1.msra.mxu0 0.0
    %964 = vmatprep.subr.mxu0 0.0
    %965 = vmatpush1.msra.mxu0 0.0
    %966 = vmatprep.subr.mxu0 0.0
    %967 = vmatpush1.msra.mxu0 0.0
    %968 = vmatprep.subr.mxu0 0.0
    %969 = vmatpush1.msra.mxu0 0.0
    %970 = vmatprep.subr.mxu0 0.0
    %971 = vmatpush1.msra.mxu0 0.0
    %972 = vmatprep.subr.mxu0 0.0
    %973 = vmatpush1.msra.mxu0 0.0
    %974 = vmatprep.subr.mxu0 0.0
    %975 = vmatpush1.msra.mxu0 0.0
    %976 = vmatprep.subr.mxu0 0.0
    %977 = vmatpush1.msra.mxu0 0.0
    %978 = vmatprep.mubr.f32.mxu0 0.0
    %979 = vmatmul.mubr.f32.gmra.mrb[0].mxu0 %v906
    %v980 = vpop.f32.mrb[0].mxu0
    %v981 = vadd.f32 0.0, %v980
    %v982 = vpop.f32.mrb[0].mxu0
    %v983 = vadd.f32 0.0, %v982
    %984 = vdwg.mxu0
    %v985 = vadd.f32 %v763, %v981
    %v986 = vadd.f32 %v765, %v983
    %s987 = scalar_lea.vmem [#allocation17], 1536
    %v988 = vld [vmem:[%s987] sm:$0xff]
    %v989 = vld [vmem:[%s987 + $0x8] sm:$0xff]
    %v990 = vld [vmem:[%s987 + $0x10] sm:$0xff]
    %v991 = vld [vmem:[%s987 + $0x18] sm:$0xff]
    %v992 = vld [vmem:[%s987 + $0x20] sm:$0xff]
    %v993 = vld [vmem:[%s987 + $0x28] sm:$0xff]
    %v994 = vld [vmem:[%s987 + $0x30] sm:$0xff]
    %v995 = vld [vmem:[%s987 + $0x38] sm:$0xff]
    %v996 = vld [vmem:[%s987 + $0x40] sm:$0xff]
    %v997 = vld [vmem:[%s987 + $0x48] sm:$0xff]
    %v998 = vld [vmem:[%s987 + $0x50] sm:$0xff]
    %v999 = vld [vmem:[%s987 + $0x58] sm:$0xff]
    %v1000 = vld [vmem:[%s987 + $0x60] sm:$0xff]
    %v1001 = vld [vmem:[%s987 + $0x68] sm:$0xff]
    %v1002 = vld [vmem:[%s987 + $0x70] sm:$0xff]
    %v1003 = vld [vmem:[%s987 + $0x78] sm:$0xff]
    %v1004 = vld [vmem:[%s987 + $0x80] sm:$0xff]
    %v1005 = vld [vmem:[%s987 + $0x88] sm:$0xff]
    %v1006 = vld [vmem:[%s987 + $0x90] sm:$0xff]
    %v1007 = vld [vmem:[%s987 + $0x98] sm:$0xff]
    %v1008 = vld [vmem:[%s987 + $0xa0] sm:$0xff]
    %v1009 = vld [vmem:[%s987 + $0xa8] sm:$0xff]
    %v1010 = vld [vmem:[%s987 + $0xb0] sm:$0xff]
    %v1011 = vld [vmem:[%s987 + $0xb8] sm:$0xff]
    %v1012 = vld [vmem:[%s987 + $0xc0] sm:$0xff]
    %v1013 = vld [vmem:[%s987 + $0xc8] sm:$0xff]
    %v1014 = vld [vmem:[%s987 + $0xd0] sm:$0xff]
    %v1015 = vld [vmem:[%s987 + $0xd8] sm:$0xff]
    %v1016 = vld [vmem:[%s987 + $0xe0] sm:$0xff]
    %v1017 = vld [vmem:[%s987 + $0xe8] sm:$0xff]
    %v1018 = vld [vmem:[%s987 + $0xf0] sm:$0xff]
    %v1019 = vld [vmem:[%s987 + $0xf8] sm:$0xff]
    %v1020 = vld [vmem:[%s987 + $0x100] sm:$0xff]
    %v1021 = vld [vmem:[%s987 + $0x108] sm:$0xff]
    %v1022 = vld [vmem:[%s987 + $0x110] sm:$0xff]
    %v1023 = vld [vmem:[%s987 + $0x118] sm:$0xff]
    %v1024 = vld [vmem:[%s987 + $0x120] sm:$0xff]
    %v1025 = vld [vmem:[%s987 + $0x128] sm:$0xff]
    %v1026 = vld [vmem:[%s987 + $0x130] sm:$0xff]
    %v1027 = vld [vmem:[%s987 + $0x138] sm:$0xff]
    %v1028 = vld [vmem:[%s987 + $0x140] sm:$0xff]
    %v1029 = vld [vmem:[%s987 + $0x148] sm:$0xff]
    %v1030 = vld [vmem:[%s987 + $0x150] sm:$0xff]
    %v1031 = vld [vmem:[%s987 + $0x158] sm:$0xff]
    %v1032 = vld [vmem:[%s987 + $0x160] sm:$0xff]
    %v1033 = vld [vmem:[%s987 + $0x168] sm:$0xff]
    %v1034 = vld [vmem:[%s987 + $0x170] sm:$0xff]
    %v1035 = vld [vmem:[%s987 + $0x178] sm:$0xff]
    %v1036 = vld [vmem:[%s987 + $0x180] sm:$0xff]
    %v1037 = vld [vmem:[%s987 + $0x188] sm:$0xff]
    %v1038 = vld [vmem:[%s987 + $0x190] sm:$0xff]
    %v1039 = vld [vmem:[%s987 + $0x198] sm:$0xff]
    %v1040 = vld [vmem:[%s987 + $0x1a0] sm:$0xff]
    %v1041 = vld [vmem:[%s987 + $0x1a8] sm:$0xff]
    %v1042 = vld [vmem:[%s987 + $0x1b0] sm:$0xff]
    %v1043 = vld [vmem:[%s987 + $0x1b8] sm:$0xff]
    %v1044 = vld [vmem:[%s987 + $0x1c0] sm:$0xff]
    %v1045 = vld [vmem:[%s987 + $0x1c8] sm:$0xff]
    %v1046 = vld [vmem:[%s987 + $0x1d0] sm:$0xff]
    %v1047 = vld [vmem:[%s987 + $0x1d8] sm:$0xff]
    %v1048 = vld [vmem:[%s987 + $0x1e0] sm:$0xff]
    %v1049 = vld [vmem:[%s987 + $0x1e8] sm:$0xff]
    %v1050 = vld [vmem:[%s987 + $0x1f0] sm:$0xff]
    %v1051 = vld [vmem:[%s987 + $0x1f8] sm:$0xff]
    %1052 = vmatprep.subr.mxu0 %v989
    %1053 = vmatpush1.msra.mxu0 %v988
    %1054 = vmatprep.subr.mxu0 %v991
    %1055 = vmatpush1.msra.mxu0 %v990
    %1056 = vmatprep.subr.mxu0 %v993
    %1057 = vmatpush1.msra.mxu0 %v992
    %1058 = vmatprep.subr.mxu0 %v995
    %1059 = vmatpush1.msra.mxu0 %v994
    %1060 = vmatprep.subr.mxu0 %v997
    %1061 = vmatpush1.msra.mxu0 %v996
    %1062 = vmatprep.subr.mxu0 %v999
    %1063 = vmatpush1.msra.mxu0 %v998
    %1064 = vmatprep.subr.mxu0 %v1001
    %1065 = vmatpush1.msra.mxu0 %v1000
    %1066 = vmatprep.subr.mxu0 %v1003
    %1067 = vmatpush1.msra.mxu0 %v1002
    %1068 = vmatprep.subr.mxu0 %v1005
    %1069 = vmatpush1.msra.mxu0 %v1004
    %1070 = vmatprep.subr.mxu0 %v1007
    %1071 = vmatpush1.msra.mxu0 %v1006
    %1072 = vmatprep.subr.mxu0 %v1009
    %1073 = vmatpush1.msra.mxu0 %v1008
    %1074 = vmatprep.subr.mxu0 %v1011
    %1075 = vmatpush1.msra.mxu0 %v1010
    %1076 = vmatprep.subr.mxu0 %v1013
    %1077 = vmatpush1.msra.mxu0 %v1012
    %1078 = vmatprep.subr.mxu0 %v1015
    %1079 = vmatpush1.msra.mxu0 %v1014
    %1080 = vmatprep.subr.mxu0 %v1017
    %1081 = vmatpush1.msra.mxu0 %v1016
    %1082 = vmatprep.subr.mxu0 %v1019
    %1083 = vmatpush1.msra.mxu0 %v1018
    %1084 = vmatprep.subr.mxu0 %v1021
    %1085 = vmatpush1.msra.mxu0 %v1020
    %1086 = vmatprep.subr.mxu0 %v1023
    %1087 = vmatpush1.msra.mxu0 %v1022
    %1088 = vmatprep.subr.mxu0 %v1025
    %1089 = vmatpush1.msra.mxu0 %v1024
    %1090 = vmatprep.subr.mxu0 %v1027
    %1091 = vmatpush1.msra.mxu0 %v1026
    %1092 = vmatprep.subr.mxu0 %v1029
    %1093 = vmatpush1.msra.mxu0 %v1028
    %1094 = vmatprep.subr.mxu0 %v1031
    %1095 = vmatpush1.msra.mxu0 %v1030
    %1096 = vmatprep.subr.mxu0 %v1033
    %1097 = vmatpush1.msra.mxu0 %v1032
    %1098 = vmatprep.subr.mxu0 %v1035
    %1099 = vmatpush1.msra.mxu0 %v1034
    %1100 = vmatprep.subr.mxu0 %v1037
    %1101 = vmatpush1.msra.mxu0 %v1036
    %1102 = vmatprep.subr.mxu0 %v1039
    %1103 = vmatpush1.msra.mxu0 %v1038
    %1104 = vmatprep.subr.mxu0 %v1041
    %1105 = vmatpush1.msra.mxu0 %v1040
    %1106 = vmatprep.subr.mxu0 %v1043
    %1107 = vmatpush1.msra.mxu0 %v1042
    %1108 = vmatprep.subr.mxu0 %v1045
    %1109 = vmatpush1.msra.mxu0 %v1044
    %1110 = vmatprep.subr.mxu0 %v1047
    %1111 = vmatpush1.msra.mxu0 %v1046
    %1112 = vmatprep.subr.mxu0 %v1049
    %1113 = vmatpush1.msra.mxu0 %v1048
    %1114 = vmatprep.subr.mxu0 %v1051
    %1115 = vmatpush1.msra.mxu0 %v1050
    %1116 = vmatprep.mubr.f32.mxu0 %v393
    %1117 = vmatmul.mubr.f32.gmra.mrb[0].mxu0 %v327
    %v1118 = vpop.f32.mrb[0].mxu0
    %v1119 = vadd.f32 0.0, %v1118
    %v1120 = vpop.f32.mrb[0].mxu0
    %v1121 = vadd.f32 0.0, %v1120
    %1122 = vdwg.mxu0
    %s1123 = scalar_lea.vmem [#allocation8], 24
    %v1124 = vld [vmem:[%s1123] sm:$0xff]
    %v1126 = vsel %vm605, %v1124, 0
    %v1129 = vsel %vm609, %v1119, 0
    %v1132 = vsel %vm609, %v1121, 0
    %1134 = vmatprep.subr.mxu0 %v1132
    %1135 = vmatpush1.msra.mxu0 %v1129
    %1136 = vmatprep.subr.mxu0 0.0
    %1137 = vmatpush1.msra.mxu0 0.0
    %1138 = vmatprep.subr.mxu0 0.0
    %1139 = vmatpush1.msra.mxu0 0.0
    %1140 = vmatprep.subr.mxu0 0.0
    %1141 = vmatpush1.msra.mxu0 0.0
    %1142 = vmatprep.subr.mxu0 0.0
    %1143 = vmatpush1.msra.mxu0 0.0
    %1144 = vmatprep.subr.mxu0 0.0
    %1145 = vmatpush1.msra.mxu0 0.0
    %1146 = vmatprep.subr.mxu0 0.0
    %1147 = vmatpush1.msra.mxu0 0.0
    %1148 = vmatprep.subr.mxu0 0.0
    %1149 = vmatpush1.msra.mxu0 0.0
    %1150 = vmatprep.subr.mxu0 0.0
    %1151 = vmatpush1.msra.mxu0 0.0
    %1152 = vmatprep.subr.mxu0 0.0
    %1153 = vmatpush1.msra.mxu0 0.0
    %1154 = vmatprep.subr.mxu0 0.0
    %1155 = vmatpush1.msra.mxu0 0.0
    %1156 = vmatprep.subr.mxu0 0.0
    %1157 = vmatpush1.msra.mxu0 0.0
    %1158 = vmatprep.subr.mxu0 0.0
    %1159 = vmatpush1.msra.mxu0 0.0
    %1160 = vmatprep.subr.mxu0 0.0
    %1161 = vmatpush1.msra.mxu0 0.0
    %1162 = vmatprep.subr.mxu0 0.0
    %1163 = vmatpush1.msra.mxu0 0.0
    %1164 = vmatprep.subr.mxu0 0.0
    %1165 = vmatpush1.msra.mxu0 0.0
    %1166 = vmatprep.subr.mxu0 0.0
    %1167 = vmatpush1.msra.mxu0 0.0
    %1168 = vmatprep.subr.mxu0 0.0
    %1169 = vmatpush1.msra.mxu0 0.0
    %1170 = vmatprep.subr.mxu0 0.0
    %1171 = vmatpush1.msra.mxu0 0.0
    %1172 = vmatprep.subr.mxu0 0.0
    %1173 = vmatpush1.msra.mxu0 0.0
    %1174 = vmatprep.subr.mxu0 0.0
    %1175 = vmatpush1.msra.mxu0 0.0
    %1176 = vmatprep.subr.mxu0 0.0
    %1177 = vmatpush1.msra.mxu0 0.0
    %1178 = vmatprep.subr.mxu0 0.0
    %1179 = vmatpush1.msra.mxu0 0.0
    %1180 = vmatprep.subr.mxu0 0.0
    %1181 = vmatpush1.msra.mxu0 0.0
    %1182 = vmatprep.subr.mxu0 0.0
    %1183 = vmatpush1.msra.mxu0 0.0
    %1184 = vmatprep.subr.mxu0 0.0
    %1185 = vmatpush1.msra.mxu0 0.0
    %1186 = vmatprep.subr.mxu0 0.0
    %1187 = vmatpush1.msra.mxu0 0.0
    %1188 = vmatprep.subr.mxu0 0.0
    %1189 = vmatpush1.msra.mxu0 0.0
    %1190 = vmatprep.subr.mxu0 0.0
    %1191 = vmatpush1.msra.mxu0 0.0
    %1192 = vmatprep.subr.mxu0 0.0
    %1193 = vmatpush1.msra.mxu0 0.0
    %1194 = vmatprep.subr.mxu0 0.0
    %1195 = vmatpush1.msra.mxu0 0.0
    %1196 = vmatprep.subr.mxu0 0.0
    %1197 = vmatpush1.msra.mxu0 0.0
    %1198 = vmatprep.mubr.f32.mxu0 0.0
    %1199 = vmatmul.mubr.f32.gmra.mrb[0].mxu0 %v1126
    %v1200 = vpop.f32.mrb[0].mxu0
    %v1201 = vadd.f32 0.0, %v1200
    %v1202 = vpop.f32.mrb[0].mxu0
    %v1203 = vadd.f32 0.0, %v1202
    %1204 = vdwg.mxu0
    %v1205 = vadd.f32 %v985, %v1201
    %v1206 = vadd.f32 %v986, %v1203
    %s1207 = scalar_lea.vmem [#allocation17], 2048
    %v1208 = vld [vmem:[%s1207] sm:$0xff]
    %v1209 = vld [vmem:[%s1207 + $0x8] sm:$0xff]
    %v1210 = vld [vmem:[%s1207 + $0x10] sm:$0xff]
    %v1211 = vld [vmem:[%s1207 + $0x18] sm:$0xff]
    %v1212 = vld [vmem:[%s1207 + $0x20] sm:$0xff]
    %v1213 = vld [vmem:[%s1207 + $0x28] sm:$0xff]
    %v1214 = vld [vmem:[%s1207 + $0x30] sm:$0xff]
    %v1215 = vld [vmem:[%s1207 + $0x38] sm:$0xff]
    %v1216 = vld [vmem:[%s1207 + $0x40] sm:$0xff]
    %v1217 = vld [vmem:[%s1207 + $0x48] sm:$0xff]
    %v1218 = vld [vmem:[%s1207 + $0x50] sm:$0xff]
    %v1219 = vld [vmem:[%s1207 + $0x58] sm:$0xff]
    %v1220 = vld [vmem:[%s1207 + $0x60] sm:$0xff]
    %v1221 = vld [vmem:[%s1207 + $0x68] sm:$0xff]
    %v1222 = vld [vmem:[%s1207 + $0x70] sm:$0xff]
    %v1223 = vld [vmem:[%s1207 + $0x78] sm:$0xff]
    %v1224 = vld [vmem:[%s1207 + $0x80] sm:$0xff]
    %v1225 = vld [vmem:[%s1207 + $0x88] sm:$0xff]
    %v1226 = vld [vmem:[%s1207 + $0x90] sm:$0xff]
    %v1227 = vld [vmem:[%s1207 + $0x98] sm:$0xff]
    %v1228 = vld [vmem:[%s1207 + $0xa0] sm:$0xff]
    %v1229 = vld [vmem:[%s1207 + $0xa8] sm:$0xff]
    %v1230 = vld [vmem:[%s1207 + $0xb0] sm:$0xff]
    %v1231 = vld [vmem:[%s1207 + $0xb8] sm:$0xff]
    %v1232 = vld [vmem:[%s1207 + $0xc0] sm:$0xff]
    %v1233 = vld [vmem:[%s1207 + $0xc8] sm:$0xff]
    %v1234 = vld [vmem:[%s1207 + $0xd0] sm:$0xff]
    %v1235 = vld [vmem:[%s1207 + $0xd8] sm:$0xff]
    %v1236 = vld [vmem:[%s1207 + $0xe0] sm:$0xff]
    %v1237 = vld [vmem:[%s1207 + $0xe8] sm:$0xff]
    %v1238 = vld [vmem:[%s1207 + $0xf0] sm:$0xff]
    %v1239 = vld [vmem:[%s1207 + $0xf8] sm:$0xff]
    %v1240 = vld [vmem:[%s1207 + $0x100] sm:$0xff]
    %v1241 = vld [vmem:[%s1207 + $0x108] sm:$0xff]
    %v1242 = vld [vmem:[%s1207 + $0x110] sm:$0xff]
    %v1243 = vld [vmem:[%s1207 + $0x118] sm:$0xff]
    %v1244 = vld [vmem:[%s1207 + $0x120] sm:$0xff]
    %v1245 = vld [vmem:[%s1207 + $0x128] sm:$0xff]
    %v1246 = vld [vmem:[%s1207 + $0x130] sm:$0xff]
    %v1247 = vld [vmem:[%s1207 + $0x138] sm:$0xff]
    %v1248 = vld [vmem:[%s1207 + $0x140] sm:$0xff]
    %v1249 = vld [vmem:[%s1207 + $0x148] sm:$0xff]
    %v1250 = vld [vmem:[%s1207 + $0x150] sm:$0xff]
    %v1251 = vld [vmem:[%s1207 + $0x158] sm:$0xff]
    %v1252 = vld [vmem:[%s1207 + $0x160] sm:$0xff]
    %v1253 = vld [vmem:[%s1207 + $0x168] sm:$0xff]
    %v1254 = vld [vmem:[%s1207 + $0x170] sm:$0xff]
    %v1255 = vld [vmem:[%s1207 + $0x178] sm:$0xff]
    %v1256 = vld [vmem:[%s1207 + $0x180] sm:$0xff]
    %v1257 = vld [vmem:[%s1207 + $0x188] sm:$0xff]
    %v1258 = vld [vmem:[%s1207 + $0x190] sm:$0xff]
    %v1259 = vld [vmem:[%s1207 + $0x198] sm:$0xff]
    %v1260 = vld [vmem:[%s1207 + $0x1a0] sm:$0xff]
    %v1261 = vld [vmem:[%s1207 + $0x1a8] sm:$0xff]
    %v1262 = vld [vmem:[%s1207 + $0x1b0] sm:$0xff]
    %v1263 = vld [vmem:[%s1207 + $0x1b8] sm:$0xff]
    %v1264 = vld [vmem:[%s1207 + $0x1c0] sm:$0xff]
    %v1265 = vld [vmem:[%s1207 + $0x1c8] sm:$0xff]
    %v1266 = vld [vmem:[%s1207 + $0x1d0] sm:$0xff]
    %v1267 = vld [vmem:[%s1207 + $0x1d8] sm:$0xff]
    %v1268 = vld [vmem:[%s1207 + $0x1e0] sm:$0xff]
    %v1269 = vld [vmem:[%s1207 + $0x1e8] sm:$0xff]
    %v1270 = vld [vmem:[%s1207 + $0x1f0] sm:$0xff]
    %v1271 = vld [vmem:[%s1207 + $0x1f8] sm:$0xff]
    %1272 = vmatprep.subr.mxu0 %v1209
    %1273 = vmatpush1.msra.mxu0 %v1208
    %1274 = vmatprep.subr.mxu0 %v1211
    %1275 = vmatpush1.msra.mxu0 %v1210
    %1276 = vmatprep.subr.mxu0 %v1213
    %1277 = vmatpush1.msra.mxu0 %v1212
    %1278 = vmatprep.subr.mxu0 %v1215
    %1279 = vmatpush1.msra.mxu0 %v1214
    %1280 = vmatprep.subr.mxu0 %v1217
    %1281 = vmatpush1.msra.mxu0 %v1216
    %1282 = vmatprep.subr.mxu0 %v1219
    %1283 = vmatpush1.msra.mxu0 %v1218
    %1284 = vmatprep.subr.mxu0 %v1221
    %1285 = vmatpush1.msra.mxu0 %v1220
    %1286 = vmatprep.subr.mxu0 %v1223
    %1287 = vmatpush1.msra.mxu0 %v1222
    %1288 = vmatprep.subr.mxu0 %v1225
    %1289 = vmatpush1.msra.mxu0 %v1224
    %1290 = vmatprep.subr.mxu0 %v1227
    %1291 = vmatpush1.msra.mxu0 %v1226
    %1292 = vmatprep.subr.mxu0 %v1229
    %1293 = vmatpush1.msra.mxu0 %v1228
    %1294 = vmatprep.subr.mxu0 %v1231
    %1295 = vmatpush1.msra.mxu0 %v1230
    %1296 = vmatprep.subr.mxu0 %v1233
    %1297 = vmatpush1.msra.mxu0 %v1232
    %1298 = vmatprep.subr.mxu0 %v1235
    %1299 = vmatpush1.msra.mxu0 %v1234
    %1300 = vmatprep.subr.mxu0 %v1237
    %1301 = vmatpush1.msra.mxu0 %v1236
    %1302 = vmatprep.subr.mxu0 %v1239
    %1303 = vmatpush1.msra.mxu0 %v1238
    %1304 = vmatprep.subr.mxu0 %v1241
    %1305 = vmatpush1.msra.mxu0 %v1240
    %1306 = vmatprep.subr.mxu0 %v1243
    %1307 = vmatpush1.msra.mxu0 %v1242
    %1308 = vmatprep.subr.mxu0 %v1245
    %1309 = vmatpush1.msra.mxu0 %v1244
    %1310 = vmatprep.subr.mxu0 %v1247
    %1311 = vmatpush1.msra.mxu0 %v1246
    %1312 = vmatprep.subr.mxu0 %v1249
    %1313 = vmatpush1.msra.mxu0 %v1248
    %1314 = vmatprep.subr.mxu0 %v1251
    %1315 = vmatpush1.msra.mxu0 %v1250
    %1316 = vmatprep.subr.mxu0 %v1253
    %1317 = vmatpush1.msra.mxu0 %v1252
    %1318 = vmatprep.subr.mxu0 %v1255
    %1319 = vmatpush1.msra.mxu0 %v1254
    %1320 = vmatprep.subr.mxu0 %v1257
    %1321 = vmatpush1.msra.mxu0 %v1256
    %1322 = vmatprep.subr.mxu0 %v1259
    %1323 = vmatpush1.msra.mxu0 %v1258
    %1324 = vmatprep.subr.mxu0 %v1261
    %1325 = vmatpush1.msra.mxu0 %v1260
    %1326 = vmatprep.subr.mxu0 %v1263
    %1327 = vmatpush1.msra.mxu0 %v1262
    %1328 = vmatprep.subr.mxu0 %v1265
    %1329 = vmatpush1.msra.mxu0 %v1264
    %1330 = vmatprep.subr.mxu0 %v1267
    %1331 = vmatpush1.msra.mxu0 %v1266
    %1332 = vmatprep.subr.mxu0 %v1269
    %1333 = vmatpush1.msra.mxu0 %v1268
    %1334 = vmatprep.subr.mxu0 %v1271
    %1335 = vmatpush1.msra.mxu0 %v1270
    %1336 = vmatprep.mubr.f32.mxu0 %v393
    %1337 = vmatmul.mubr.f32.gmra.mrb[0].mxu0 %v327
    %v1338 = vpop.f32.mrb[0].mxu0
    %v1339 = vadd.f32 0.0, %v1338
    %v1340 = vpop.f32.mrb[0].mxu0
    %v1341 = vadd.f32 0.0, %v1340
    %1342 = vdwg.mxu0
    %s1343 = scalar_lea.vmem [#allocation8], 32
    %v1344 = vld [vmem:[%s1343] sm:$0xff]
    %v1346 = vsel %vm605, %v1344, 0
    %v1349 = vsel %vm609, %v1339, 0
    %v1352 = vsel %vm609, %v1341, 0
    %1354 = vmatprep.subr.mxu0 %v1352
    %1355 = vmatpush1.msra.mxu0 %v1349
    %1356 = vmatprep.subr.mxu0 0.0
    %1357 = vmatpush1.msra.mxu0 0.0
    %1358 = vmatprep.subr.mxu0 0.0
    %1359 = vmatpush1.msra.mxu0 0.0
    %1360 = vmatprep.subr.mxu0 0.0
    %1361 = vmatpush1.msra.mxu0 0.0
    %1362 = vmatprep.subr.mxu0 0.0
    %1363 = vmatpush1.msra.mxu0 0.0
    %1364 = vmatprep.subr.mxu0 0.0
    %1365 = vmatpush1.msra.mxu0 0.0
    %1366 = vmatprep.subr.mxu0 0.0
    %1367 = vmatpush1.msra.mxu0 0.0
    %1368 = vmatprep.subr.mxu0 0.0
    %1369 = vmatpush1.msra.mxu0 0.0
    %1370 = vmatprep.subr.mxu0 0.0
    %1371 = vmatpush1.msra.mxu0 0.0
    %1372 = vmatprep.subr.mxu0 0.0
    %1373 = vmatpush1.msra.mxu0 0.0
    %1374 = vmatprep.subr.mxu0 0.0
    %1375 = vmatpush1.msra.mxu0 0.0
    %1376 = vmatprep.subr.mxu0 0.0
    %1377 = vmatpush1.msra.mxu0 0.0
    %1378 = vmatprep.subr.mxu0 0.0
    %1379 = vmatpush1.msra.mxu0 0.0
    %1380 = vmatprep.subr.mxu0 0.0
    %1381 = vmatpush1.msra.mxu0 0.0
    %1382 = vmatprep.subr.mxu0 0.0
    %1383 = vmatpush1.msra.mxu0 0.0
    %1384 = vmatprep.subr.mxu0 0.0
    %1385 = vmatpush1.msra.mxu0 0.0
    %1386 = vmatprep.subr.mxu0 0.0
    %1387 = vmatpush1.msra.mxu0 0.0
    %1388 = vmatprep.subr.mxu0 0.0
    %1389 = vmatpush1.msra.mxu0 0.0
    %1390 = vmatprep.subr.mxu0 0.0
    %1391 = vmatpush1.msra.mxu0 0.0
    %1392 = vmatprep.subr.mxu0 0.0
    %1393 = vmatpush1.msra.mxu0 0.0
    %1394 = vmatprep.subr.mxu0 0.0
    %1395 = vmatpush1.msra.mxu0 0.0
    %1396 = vmatprep.subr.mxu0 0.0
    %1397 = vmatpush1.msra.mxu0 0.0
    %1398 = vmatprep.subr.mxu0 0.0
    %1399 = vmatpush1.msra.mxu0 0.0
    %1400 = vmatprep.subr.mxu0 0.0
    %1401 = vmatpush1.msra.mxu0 0.0
    %1402 = vmatprep.subr.mxu0 0.0
    %1403 = vmatpush1.msra.mxu0 0.0
    %1404 = vmatprep.subr.mxu0 0.0
    %1405 = vmatpush1.msra.mxu0 0.0
    %1406 = vmatprep.subr.mxu0 0.0
    %1407 = vmatpush1.msra.mxu0 0.0
    %1408 = vmatprep.subr.mxu0 0.0
    %1409 = vmatpush1.msra.mxu0 0.0
    %1410 = vmatprep.subr.mxu0 0.0
    %1411 = vmatpush1.msra.mxu0 0.0
    %1412 = vmatprep.subr.mxu0 0.0
    %1413 = vmatpush1.msra.mxu0 0.0
    %1414 = vmatprep.subr.mxu0 0.0
    %1415 = vmatpush1.msra.mxu0 0.0
    %1416 = vmatprep.subr.mxu0 0.0
    %1417 = vmatpush1.msra.mxu0 0.0
    %1418 = vmatprep.mubr.f32.mxu0 0.0
    %1419 = vmatmul.mubr.f32.gmra.mrb[0].mxu0 %v1346
    %v1420 = vpop.f32.mrb[0].mxu0
    %v1421 = vadd.f32 0.0, %v1420
    %v1422 = vpop.f32.mrb[0].mxu0
    %v1423 = vadd.f32 0.0, %v1422
    %1424 = vdwg.mxu0
    %v1425 = vadd.f32 %v1205, %v1421
    %v1426 = vadd.f32 %v1206, %v1423
    %s1427 = scalar_lea.vmem [#allocation17], 2560
    %v1428 = vld [vmem:[%s1427] sm:$0xff]
    %v1429 = vld [vmem:[%s1427 + $0x8] sm:$0xff]
    %v1430 = vld [vmem:[%s1427 + $0x10] sm:$0xff]
    %v1431 = vld [vmem:[%s1427 + $0x18] sm:$0xff]
    %v1432 = vld [vmem:[%s1427 + $0x20] sm:$0xff]
    %v1433 = vld [vmem:[%s1427 + $0x28] sm:$0xff]
    %v1434 = vld [vmem:[%s1427 + $0x30] sm:$0xff]
    %v1435 = vld [vmem:[%s1427 + $0x38] sm:$0xff]
    %v1436 = vld [vmem:[%s1427 + $0x40] sm:$0xff]
    %v1437 = vld [vmem:[%s1427 + $0x48] sm:$0xff]
    %v1438 = vld [vmem:[%s1427 + $0x50] sm:$0xff]
    %v1439 = vld [vmem:[%s1427 + $0x58] sm:$0xff]
    %v1440 = vld [vmem:[%s1427 + $0x60] sm:$0xff]
    %v1441 = vld [vmem:[%s1427 + $0x68] sm:$0xff]
    %v1442 = vld [vmem:[%s1427 + $0x70] sm:$0xff]
    %v1443 = vld [vmem:[%s1427 + $0x78] sm:$0xff]
    %v1444 = vld [vmem:[%s1427 + $0x80] sm:$0xff]
    %v1445 = vld [vmem:[%s1427 + $0x88] sm:$0xff]
    %v1446 = vld [vmem:[%s1427 + $0x90] sm:$0xff]
    %v1447 = vld [vmem:[%s1427 + $0x98] sm:$0xff]
    %v1448 = vld [vmem:[%s1427 + $0xa0] sm:$0xff]
    %v1449 = vld [vmem:[%s1427 + $0xa8] sm:$0xff]
    %v1450 = vld [vmem:[%s1427 + $0xb0] sm:$0xff]
    %v1451 = vld [vmem:[%s1427 + $0xb8] sm:$0xff]
    %v1452 = vld [vmem:[%s1427 + $0xc0] sm:$0xff]
    %v1453 = vld [vmem:[%s1427 + $0xc8] sm:$0xff]
    %v1454 = vld [vmem:[%s1427 + $0xd0] sm:$0xff]
    %v1455 = vld [vmem:[%s1427 + $0xd8] sm:$0xff]
    %v1456 = vld [vmem:[%s1427 + $0xe0] sm:$0xff]
    %v1457 = vld [vmem:[%s1427 + $0xe8] sm:$0xff]
    %v1458 = vld [vmem:[%s1427 + $0xf0] sm:$0xff]
    %v1459 = vld [vmem:[%s1427 + $0xf8] sm:$0xff]
    %v1460 = vld [vmem:[%s1427 + $0x100] sm:$0xff]
    %v1461 = vld [vmem:[%s1427 + $0x108] sm:$0xff]
    %v1462 = vld [vmem:[%s1427 + $0x110] sm:$0xff]
    %v1463 = vld [vmem:[%s1427 + $0x118] sm:$0xff]
    %v1464 = vld [vmem:[%s1427 + $0x120] sm:$0xff]
    %v1465 = vld [vmem:[%s1427 + $0x128] sm:$0xff]
    %v1466 = vld [vmem:[%s1427 + $0x130] sm:$0xff]
    %v1467 = vld [vmem:[%s1427 + $0x138] sm:$0xff]
    %v1468 = vld [vmem:[%s1427 + $0x140] sm:$0xff]
    %v1469 = vld [vmem:[%s1427 + $0x148] sm:$0xff]
    %v1470 = vld [vmem:[%s1427 + $0x150] sm:$0xff]
    %v1471 = vld [vmem:[%s1427 + $0x158] sm:$0xff]
    %v1472 = vld [vmem:[%s1427 + $0x160] sm:$0xff]
    %v1473 = vld [vmem:[%s1427 + $0x168] sm:$0xff]
    %v1474 = vld [vmem:[%s1427 + $0x170] sm:$0xff]
    %v1475 = vld [vmem:[%s1427 + $0x178] sm:$0xff]
    %v1476 = vld [vmem:[%s1427 + $0x180] sm:$0xff]
    %v1477 = vld [vmem:[%s1427 + $0x188] sm:$0xff]
    %v1478 = vld [vmem:[%s1427 + $0x190] sm:$0xff]
    %v1479 = vld [vmem:[%s1427 + $0x198] sm:$0xff]
    %v1480 = vld [vmem:[%s1427 + $0x1a0] sm:$0xff]
    %v1481 = vld [vmem:[%s1427 + $0x1a8] sm:$0xff]
    %v1482 = vld [vmem:[%s1427 + $0x1b0] sm:$0xff]
    %v1483 = vld [vmem:[%s1427 + $0x1b8] sm:$0xff]
    %v1484 = vld [vmem:[%s1427 + $0x1c0] sm:$0xff]
    %v1485 = vld [vmem:[%s1427 + $0x1c8] sm:$0xff]
    %v1486 = vld [vmem:[%s1427 + $0x1d0] sm:$0xff]
    %v1487 = vld [vmem:[%s1427 + $0x1d8] sm:$0xff]
    %v1488 = vld [vmem:[%s1427 + $0x1e0] sm:$0xff]
    %v1489 = vld [vmem:[%s1427 + $0x1e8] sm:$0xff]
    %v1490 = vld [vmem:[%s1427 + $0x1f0] sm:$0xff]
    %v1491 = vld [vmem:[%s1427 + $0x1f8] sm:$0xff]
    %1492 = vmatprep.subr.mxu0 %v1429
    %1493 = vmatpush1.msra.mxu0 %v1428
    %1494 = vmatprep.subr.mxu0 %v1431
    %1495 = vmatpush1.msra.mxu0 %v1430
    %1496 = vmatprep.subr.mxu0 %v1433
    %1497 = vmatpush1.msra.mxu0 %v1432
    %1498 = vmatprep.subr.mxu0 %v1435
    %1499 = vmatpush1.msra.mxu0 %v1434
    %1500 = vmatprep.subr.mxu0 %v1437
    %1501 = vmatpush1.msra.mxu0 %v1436
    %1502 = vmatprep.subr.mxu0 %v1439
    %1503 = vmatpush1.msra.mxu0 %v1438
    %1504 = vmatprep.subr.mxu0 %v1441
    %1505 = vmatpush1.msra.mxu0 %v1440
    %1506 = vmatprep.subr.mxu0 %v1443
    %1507 = vmatpush1.msra.mxu0 %v1442
    %1508 = vmatprep.subr.mxu0 %v1445
    %1509 = vmatpush1.msra.mxu0 %v1444
    %1510 = vmatprep.subr.mxu0 %v1447
    %1511 = vmatpush1.msra.mxu0 %v1446
    %1512 = vmatprep.subr.mxu0 %v1449
    %1513 = vmatpush1.msra.mxu0 %v1448
    %1514 = vmatprep.subr.mxu0 %v1451
    %1515 = vmatpush1.msra.mxu0 %v1450
    %1516 = vmatprep.subr.mxu0 %v1453
    %1517 = vmatpush1.msra.mxu0 %v1452
    %1518 = vmatprep.subr.mxu0 %v1455
    %1519 = vmatpush1.msra.mxu0 %v1454
    %1520 = vmatprep.subr.mxu0 %v1457
    %1521 = vmatpush1.msra.mxu0 %v1456
    %1522 = vmatprep.subr.mxu0 %v1459
    %1523 = vmatpush1.msra.mxu0 %v1458
    %1524 = vmatprep.subr.mxu0 %v1461
    %1525 = vmatpush1.msra.mxu0 %v1460
    %1526 = vmatprep.subr.mxu0 %v1463
    %1527 = vmatpush1.msra.mxu0 %v1462
    %1528 = vmatprep.subr.mxu0 %v1465
    %1529 = vmatpush1.msra.mxu0 %v1464
    %1530 = vmatprep.subr.mxu0 %v1467
    %1531 = vmatpush1.msra.mxu0 %v1466
    %1532 = vmatprep.subr.mxu0 %v1469
    %1533 = vmatpush1.msra.mxu0 %v1468
    %1534 = vmatprep.subr.mxu0 %v1471
    %1535 = vmatpush1.msra.mxu0 %v1470
    %1536 = vmatprep.subr.mxu0 %v1473
    %1537 = vmatpush1.msra.mxu0 %v1472
    %1538 = vmatprep.subr.mxu0 %v1475
    %1539 = vmatpush1.msra.mxu0 %v1474
    %1540 = vmatprep.subr.mxu0 %v1477
    %1541 = vmatpush1.msra.mxu0 %v1476
    %1542 = vmatprep.subr.mxu0 %v1479
    %1543 = vmatpush1.msra.mxu0 %v1478
    %1544 = vmatprep.subr.mxu0 %v1481
    %1545 = vmatpush1.msra.mxu0 %v1480
    %1546 = vmatprep.subr.mxu0 %v1483
    %1547 = vmatpush1.msra.mxu0 %v1482
    %1548 = vmatprep.subr.mxu0 %v1485
    %1549 = vmatpush1.msra.mxu0 %v1484
    %1550 = vmatprep.subr.mxu0 %v1487
    %1551 = vmatpush1.msra.mxu0 %v1486
    %1552 = vmatprep.subr.mxu0 %v1489
    %1553 = vmatpush1.msra.mxu0 %v1488
    %1554 = vmatprep.subr.mxu0 %v1491
    %1555 = vmatpush1.msra.mxu0 %v1490
    %1556 = vmatprep.mubr.f32.mxu0 %v393
    %1557 = vmatmul.mubr.f32.gmra.mrb[0].mxu0 %v327
    %v1558 = vpop.f32.mrb[0].mxu0
    %v1559 = vadd.f32 0.0, %v1558
    %v1560 = vpop.f32.mrb[0].mxu0
    %v1561 = vadd.f32 0.0, %v1560
    %1562 = vdwg.mxu0
    %s1563 = scalar_lea.vmem [#allocation8], 40
    %v1564 = vld [vmem:[%s1563] sm:$0xff]
    %v1566 = vsel %vm605, %v1564, 0
    %v1569 = vsel %vm609, %v1559, 0
    %v1572 = vsel %vm609, %v1561, 0
    %1574 = vmatprep.subr.mxu0 %v1572
    %1575 = vmatpush1.msra.mxu0 %v1569
    %1576 = vmatprep.subr.mxu0 0.0
    %1577 = vmatpush1.msra.mxu0 0.0
    %1578 = vmatprep.subr.mxu0 0.0
    %1579 = vmatpush1.msra.mxu0 0.0
    %1580 = vmatprep.subr.mxu0 0.0
    %1581 = vmatpush1.msra.mxu0 0.0
    %1582 = vmatprep.subr.mxu0 0.0
    %1583 = vmatpush1.msra.mxu0 0.0
    %1584 = vmatprep.subr.mxu0 0.0
    %1585 = vmatpush1.msra.mxu0 0.0
    %1586 = vmatprep.subr.mxu0 0.0
    %1587 = vmatpush1.msra.mxu0 0.0
    %1588 = vmatprep.subr.mxu0 0.0
    %1589 = vmatpush1.msra.mxu0 0.0
    %1590 = vmatprep.subr.mxu0 0.0
    %1591 = vmatpush1.msra.mxu0 0.0
    %1592 = vmatprep.subr.mxu0 0.0
    %1593 = vmatpush1.msra.mxu0 0.0
    %1594 = vmatprep.subr.mxu0 0.0
    %1595 = vmatpush1.msra.mxu0 0.0
    %1596 = vmatprep.subr.mxu0 0.0
    %1597 = vmatpush1.msra.mxu0 0.0
    %1598 = vmatprep.subr.mxu0 0.0
    %1599 = vmatpush1.msra.mxu0 0.0
    %1600 = vmatprep.subr.mxu0 0.0
    %1601 = vmatpush1.msra.mxu0 0.0
    %1602 = vmatprep.subr.mxu0 0.0
    %1603 = vmatpush1.msra.mxu0 0.0
    %1604 = vmatprep.subr.mxu0 0.0
    %1605 = vmatpush1.msra.mxu0 0.0
    %1606 = vmatprep.subr.mxu0 0.0
    %1607 = vmatpush1.msra.mxu0 0.0
    %1608 = vmatprep.subr.mxu0 0.0
    %1609 = vmatpush1.msra.mxu0 0.0
    %1610 = vmatprep.subr.mxu0 0.0
    %1611 = vmatpush1.msra.mxu0 0.0
    %1612 = vmatprep.subr.mxu0 0.0
    %1613 = vmatpush1.msra.mxu0 0.0
    %1614 = vmatprep.subr.mxu0 0.0
    %1615 = vmatpush1.msra.mxu0 0.0
    %1616 = vmatprep.subr.mxu0 0.0
    %1617 = vmatpush1.msra.mxu0 0.0
    %1618 = vmatprep.subr.mxu0 0.0
    %1619 = vmatpush1.msra.mxu0 0.0
    %1620 = vmatprep.subr.mxu0 0.0
    %1621 = vmatpush1.msra.mxu0 0.0
    %1622 = vmatprep.subr.mxu0 0.0
    %1623 = vmatpush1.msra.mxu0 0.0
    %1624 = vmatprep.subr.mxu0 0.0
    %1625 = vmatpush1.msra.mxu0 0.0
    %1626 = vmatprep.subr.mxu0 0.0
    %1627 = vmatpush1.msra.mxu0 0.0
    %1628 = vmatprep.subr.mxu0 0.0
    %1629 = vmatpush1.msra.mxu0 0.0
    %1630 = vmatprep.subr.mxu0 0.0
    %1631 = vmatpush1.msra.mxu0 0.0
    %1632 = vmatprep.subr.mxu0 0.0
    %1633 = vmatpush1.msra.mxu0 0.0
    %1634 = vmatprep.subr.mxu0 0.0
    %1635 = vmatpush1.msra.mxu0 0.0
    %1636 = vmatprep.subr.mxu0 0.0
    %1637 = vmatpush1.msra.mxu0 0.0
    %1638 = vmatprep.mubr.f32.mxu0 0.0
    %1639 = vmatmul.mubr.f32.gmra.mrb[0].mxu0 %v1566
    %v1640 = vpop.f32.mrb[0].mxu0
    %v1641 = vadd.f32 0.0, %v1640
    %v1642 = vpop.f32.mrb[0].mxu0
    %v1643 = vadd.f32 0.0, %v1642
    %1644 = vdwg.mxu0
    %v1645 = vadd.f32 %v1425, %v1641
    %v1646 = vadd.f32 %v1426, %v1643
    %s1647 = scalar_lea.vmem [#allocation17], 3072
    %v1648 = vld [vmem:[%s1647] sm:$0xff]
    %v1649 = vld [vmem:[%s1647 + $0x8] sm:$0xff]
    %v1650 = vld [vmem:[%s1647 + $0x10] sm:$0xff]
    %v1651 = vld [vmem:[%s1647 + $0x18] sm:$0xff]
    %v1652 = vld [vmem:[%s1647 + $0x20] sm:$0xff]
    %v1653 = vld [vmem:[%s1647 + $0x28] sm:$0xff]
    %v1654 = vld [vmem:[%s1647 + $0x30] sm:$0xff]
    %v1655 = vld [vmem:[%s1647 + $0x38] sm:$0xff]
    %v1656 = vld [vmem:[%s1647 + $0x40] sm:$0xff]
    %v1657 = vld [vmem:[%s1647 + $0x48] sm:$0xff]
    %v1658 = vld [vmem:[%s1647 + $0x50] sm:$0xff]
    %v1659 = vld [vmem:[%s1647 + $0x58] sm:$0xff]
    %v1660 = vld [vmem:[%s1647 + $0x60] sm:$0xff]
    %v1661 = vld [vmem:[%s1647 + $0x68] sm:$0xff]
    %v1662 = vld [vmem:[%s1647 + $0x70] sm:$0xff]
    %v1663 = vld [vmem:[%s1647 + $0x78] sm:$0xff]
    %v1664 = vld [vmem:[%s1647 + $0x80] sm:$0xff]
    %v1665 = vld [vmem:[%s1647 + $0x88] sm:$0xff]
    %v1666 = vld [vmem:[%s1647 + $0x90] sm:$0xff]
    %v1667 = vld [vmem:[%s1647 + $0x98] sm:$0xff]
    %v1668 = vld [vmem:[%s1647 + $0xa0] sm:$0xff]
    %v1669 = vld [vmem:[%s1647 + $0xa8] sm:$0xff]
    %v1670 = vld [vmem:[%s1647 + $0xb0] sm:$0xff]
    %v1671 = vld [vmem:[%s1647 + $0xb8] sm:$0xff]
    %v1672 = vld [vmem:[%s1647 + $0xc0] sm:$0xff]
    %v1673 = vld [vmem:[%s1647 + $0xc8] sm:$0xff]
    %v1674 = vld [vmem:[%s1647 + $0xd0] sm:$0xff]
    %v1675 = vld [vmem:[%s1647 + $0xd8] sm:$0xff]
    %v1676 = vld [vmem:[%s1647 + $0xe0] sm:$0xff]
    %v1677 = vld [vmem:[%s1647 + $0xe8] sm:$0xff]
    %v1678 = vld [vmem:[%s1647 + $0xf0] sm:$0xff]
    %v1679 = vld [vmem:[%s1647 + $0xf8] sm:$0xff]
    %v1680 = vld [vmem:[%s1647 + $0x100] sm:$0xff]
    %v1681 = vld [vmem:[%s1647 + $0x108] sm:$0xff]
    %v1682 = vld [vmem:[%s1647 + $0x110] sm:$0xff]
    %v1683 = vld [vmem:[%s1647 + $0x118] sm:$0xff]
    %v1684 = vld [vmem:[%s1647 + $0x120] sm:$0xff]
    %v1685 = vld [vmem:[%s1647 + $0x128] sm:$0xff]
    %v1686 = vld [vmem:[%s1647 + $0x130] sm:$0xff]
    %v1687 = vld [vmem:[%s1647 + $0x138] sm:$0xff]
    %v1688 = vld [vmem:[%s1647 + $0x140] sm:$0xff]
    %v1689 = vld [vmem:[%s1647 + $0x148] sm:$0xff]
    %v1690 = vld [vmem:[%s1647 + $0x150] sm:$0xff]
    %v1691 = vld [vmem:[%s1647 + $0x158] sm:$0xff]
    %v1692 = vld [vmem:[%s1647 + $0x160] sm:$0xff]
    %v1693 = vld [vmem:[%s1647 + $0x168] sm:$0xff]
    %v1694 = vld [vmem:[%s1647 + $0x170] sm:$0xff]
    %v1695 = vld [vmem:[%s1647 + $0x178] sm:$0xff]
    %v1696 = vld [vmem:[%s1647 + $0x180] sm:$0xff]
    %v1697 = vld [vmem:[%s1647 + $0x188] sm:$0xff]
    %v1698 = vld [vmem:[%s1647 + $0x190] sm:$0xff]
    %v1699 = vld [vmem:[%s1647 + $0x198] sm:$0xff]
    %v1700 = vld [vmem:[%s1647 + $0x1a0] sm:$0xff]
    %v1701 = vld [vmem:[%s1647 + $0x1a8] sm:$0xff]
    %v1702 = vld [vmem:[%s1647 + $0x1b0] sm:$0xff]
    %v1703 = vld [vmem:[%s1647 + $0x1b8] sm:$0xff]
    %v1704 = vld [vmem:[%s1647 + $0x1c0] sm:$0xff]
    %v1705 = vld [vmem:[%s1647 + $0x1c8] sm:$0xff]
    %v1706 = vld [vmem:[%s1647 + $0x1d0] sm:$0xff]
    %v1707 = vld [vmem:[%s1647 + $0x1d8] sm:$0xff]
    %v1708 = vld [vmem:[%s1647 + $0x1e0] sm:$0xff]
    %v1709 = vld [vmem:[%s1647 + $0x1e8] sm:$0xff]
    %v1710 = vld [vmem:[%s1647 + $0x1f0] sm:$0xff]
    %v1711 = vld [vmem:[%s1647 + $0x1f8] sm:$0xff]
    %1712 = vmatprep.subr.mxu0 %v1649
    %1713 = vmatpush1.msra.mxu0 %v1648
    %1714 = vmatprep.subr.mxu0 %v1651
    %1715 = vmatpush1.msra.mxu0 %v1650
    %1716 = vmatprep.subr.mxu0 %v1653
    %1717 = vmatpush1.msra.mxu0 %v1652
    %1718 = vmatprep.subr.mxu0 %v1655
    %1719 = vmatpush1.msra.mxu0 %v1654
    %1720 = vmatprep.subr.mxu0 %v1657
    %1721 = vmatpush1.msra.mxu0 %v1656
    %1722 = vmatprep.subr.mxu0 %v1659
    %1723 = vmatpush1.msra.mxu0 %v1658
    %1724 = vmatprep.subr.mxu0 %v1661
    %1725 = vmatpush1.msra.mxu0 %v1660
    %1726 = vmatprep.subr.mxu0 %v1663
    %1727 = vmatpush1.msra.mxu0 %v1662
    %1728 = vmatprep.subr.mxu0 %v1665
    %1729 = vmatpush1.msra.mxu0 %v1664
    %1730 = vmatprep.subr.mxu0 %v1667
    %1731 = vmatpush1.msra.mxu0 %v1666
    %1732 = vmatprep.subr.mxu0 %v1669
    %1733 = vmatpush1.msra.mxu0 %v1668
    %1734 = vmatprep.subr.mxu0 %v1671
    %1735 = vmatpush1.msra.mxu0 %v1670
    %1736 = vmatprep.subr.mxu0 %v1673
    %1737 = vmatpush1.msra.mxu0 %v1672
    %1738 = vmatprep.subr.mxu0 %v1675
    %1739 = vmatpush1.msra.mxu0 %v1674
    %1740 = vmatprep.subr.mxu0 %v1677
    %1741 = vmatpush1.msra.mxu0 %v1676
    %1742 = vmatprep.subr.mxu0 %v1679
    %1743 = vmatpush1.msra.mxu0 %v1678
    %1744 = vmatprep.subr.mxu0 %v1681
    %1745 = vmatpush1.msra.mxu0 %v1680
    %1746 = vmatprep.subr.mxu0 %v1683
    %1747 = vmatpush1.msra.mxu0 %v1682
    %1748 = vmatprep.subr.mxu0 %v1685
    %1749 = vmatpush1.msra.mxu0 %v1684
    %1750 = vmatprep.subr.mxu0 %v1687
    %1751 = vmatpush1.msra.mxu0 %v1686
    %1752 = vmatprep.subr.mxu0 %v1689
    %1753 = vmatpush1.msra.mxu0 %v1688
    %1754 = vmatprep.subr.mxu0 %v1691
    %1755 = vmatpush1.msra.mxu0 %v1690
    %1756 = vmatprep.subr.mxu0 %v1693
    %1757 = vmatpush1.msra.mxu0 %v1692
    %1758 = vmatprep.subr.mxu0 %v1695
    %1759 = vmatpush1.msra.mxu0 %v1694
    %1760 = vmatprep.subr.mxu0 %v1697
    %1761 = vmatpush1.msra.mxu0 %v1696
    %1762 = vmatprep.subr.mxu0 %v1699
    %1763 = vmatpush1.msra.mxu0 %v1698
    %1764 = vmatprep.subr.mxu0 %v1701
    %1765 = vmatpush1.msra.mxu0 %v1700
    %1766 = vmatprep.subr.mxu0 %v1703
    %1767 = vmatpush1.msra.mxu0 %v1702
    %1768 = vmatprep.subr.mxu0 %v1705
    %1769 = vmatpush1.msra.mxu0 %v1704
    %1770 = vmatprep.subr.mxu0 %v1707
    %1771 = vmatpush1.msra.mxu0 %v1706
    %1772 = vmatprep.subr.mxu0 %v1709
    %1773 = vmatpush1.msra.mxu0 %v1708
    %1774 = vmatprep.subr.mxu0 %v1711
    %1775 = vmatpush1.msra.mxu0 %v1710
    %1776 = vmatprep.mubr.f32.mxu0 %v393
    %1777 = vmatmul.mubr.f32.gmra.mrb[0].mxu0 %v327
    %v1778 = vpop.f32.mrb[0].mxu0
    %v1779 = vadd.f32 0.0, %v1778
    %v1780 = vpop.f32.mrb[0].mxu0
    %v1781 = vadd.f32 0.0, %v1780
    %1782 = vdwg.mxu0
    %s1783 = scalar_lea.vmem [#allocation8], 48
    %v1784 = vld [vmem:[%s1783] sm:$0xff]
    %v1786 = vsel %vm605, %v1784, 0
    %v1789 = vsel %vm609, %v1779, 0
    %v1792 = vsel %vm609, %v1781, 0
    %1794 = vmatprep.subr.mxu0 %v1792
    %1795 = vmatpush1.msra.mxu0 %v1789
    %1796 = vmatprep.subr.mxu0 0.0
    %1797 = vmatpush1.msra.mxu0 0.0
    %1798 = vmatprep.subr.mxu0 0.0
    %1799 = vmatpush1.msra.mxu0 0.0
    %1800 = vmatprep.subr.mxu0 0.0
    %1801 = vmatpush1.msra.mxu0 0.0
    %1802 = vmatprep.subr.mxu0 0.0
    %1803 = vmatpush1.msra.mxu0 0.0
    %1804 = vmatprep.subr.mxu0 0.0
    %1805 = vmatpush1.msra.mxu0 0.0
    %1806 = vmatprep.subr.mxu0 0.0
    %1807 = vmatpush1.msra.mxu0 0.0
    %1808 = vmatprep.subr.mxu0 0.0
    %1809 = vmatpush1.msra.mxu0 0.0
    %1810 = vmatprep.subr.mxu0 0.0
    %1811 = vmatpush1.msra.mxu0 0.0
    %1812 = vmatprep.subr.mxu0 0.0
    %1813 = vmatpush1.msra.mxu0 0.0
    %1814 = vmatprep.subr.mxu0 0.0
    %1815 = vmatpush1.msra.mxu0 0.0
    %1816 = vmatprep.subr.mxu0 0.0
    %1817 = vmatpush1.msra.mxu0 0.0
    %1818 = vmatprep.subr.mxu0 0.0
    %1819 = vmatpush1.msra.mxu0 0.0
    %1820 = vmatprep.subr.mxu0 0.0
    %1821 = vmatpush1.msra.mxu0 0.0
    %1822 = vmatprep.subr.mxu0 0.0
    %1823 = vmatpush1.msra.mxu0 0.0
    %1824 = vmatprep.subr.mxu0 0.0
    %1825 = vmatpush1.msra.mxu0 0.0
    %1826 = vmatprep.subr.mxu0 0.0
    %1827 = vmatpush1.msra.mxu0 0.0
    %1828 = vmatprep.subr.mxu0 0.0
    %1829 = vmatpush1.msra.mxu0 0.0
    %1830 = vmatprep.subr.mxu0 0.0
    %1831 = vmatpush1.msra.mxu0 0.0
    %1832 = vmatprep.subr.mxu0 0.0
    %1833 = vmatpush1.msra.mxu0 0.0
    %1834 = vmatprep.subr.mxu0 0.0
    %1835 = vmatpush1.msra.mxu0 0.0
    %1836 = vmatprep.subr.mxu0 0.0
    %1837 = vmatpush1.msra.mxu0 0.0
    %1838 = vmatprep.subr.mxu0 0.0
    %1839 = vmatpush1.msra.mxu0 0.0
    %1840 = vmatprep.subr.mxu0 0.0
    %1841 = vmatpush1.msra.mxu0 0.0
    %1842 = vmatprep.subr.mxu0 0.0
    %1843 = vmatpush1.msra.mxu0 0.0
    %1844 = vmatprep.subr.mxu0 0.0
    %1845 = vmatpush1.msra.mxu0 0.0
    %1846 = vmatprep.subr.mxu0 0.0
    %1847 = vmatpush1.msra.mxu0 0.0
    %1848 = vmatprep.subr.mxu0 0.0
    %1849 = vmatpush1.msra.mxu0 0.0
    %1850 = vmatprep.subr.mxu0 0.0
    %1851 = vmatpush1.msra.mxu0 0.0
    %1852 = vmatprep.subr.mxu0 0.0
    %1853 = vmatpush1.msra.mxu0 0.0
    %1854 = vmatprep.subr.mxu0 0.0
    %1855 = vmatpush1.msra.mxu0 0.0
    %1856 = vmatprep.subr.mxu0 0.0
    %1857 = vmatpush1.msra.mxu0 0.0
    %1858 = vmatprep.mubr.f32.mxu0 0.0
    %1859 = vmatmul.mubr.f32.gmra.mrb[0].mxu0 %v1786
    %v1860 = vpop.f32.mrb[0].mxu0
    %v1861 = vadd.f32 0.0, %v1860
    %v1862 = vpop.f32.mrb[0].mxu0
    %v1863 = vadd.f32 0.0, %v1862
    %1864 = vdwg.mxu0
    %v1865 = vadd.f32 %v1645, %v1861
    %v1866 = vadd.f32 %v1646, %v1863
    %s1867 = scalar_lea.vmem [#allocation17], 3584
    %v1868 = vld [vmem:[%s1867] sm:$0xff]
    %v1869 = vld [vmem:[%s1867 + $0x8] sm:$0xff]
    %v1870 = vld [vmem:[%s1867 + $0x10] sm:$0xff]
    %v1871 = vld [vmem:[%s1867 + $0x18] sm:$0xff]
    %v1872 = vld [vmem:[%s1867 + $0x20] sm:$0xff]
    %v1873 = vld [vmem:[%s1867 + $0x28] sm:$0xff]
    %v1874 = vld [vmem:[%s1867 + $0x30] sm:$0xff]
    %v1875 = vld [vmem:[%s1867 + $0x38] sm:$0xff]
    %v1876 = vld [vmem:[%s1867 + $0x40] sm:$0xff]
    %v1877 = vld [vmem:[%s1867 + $0x48] sm:$0xff]
    %v1878 = vld [vmem:[%s1867 + $0x50] sm:$0xff]
    %v1879 = vld [vmem:[%s1867 + $0x58] sm:$0xff]
    %v1880 = vld [vmem:[%s1867 + $0x60] sm:$0xff]
    %v1881 = vld [vmem:[%s1867 + $0x68] sm:$0xff]
    %v1882 = vld [vmem:[%s1867 + $0x70] sm:$0xff]
    %v1883 = vld [vmem:[%s1867 + $0x78] sm:$0xff]
    %v1884 = vld [vmem:[%s1867 + $0x80] sm:$0xff]
    %v1885 = vld [vmem:[%s1867 + $0x88] sm:$0xff]
    %v1886 = vld [vmem:[%s1867 + $0x90] sm:$0xff]
    %v1887 = vld [vmem:[%s1867 + $0x98] sm:$0xff]
    %v1888 = vld [vmem:[%s1867 + $0xa0] sm:$0xff]
    %v1889 = vld [vmem:[%s1867 + $0xa8] sm:$0xff]
    %v1890 = vld [vmem:[%s1867 + $0xb0] sm:$0xff]
    %v1891 = vld [vmem:[%s1867 + $0xb8] sm:$0xff]
    %v1892 = vld [vmem:[%s1867 + $0xc0] sm:$0xff]
    %v1893 = vld [vmem:[%s1867 + $0xc8] sm:$0xff]
    %v1894 = vld [vmem:[%s1867 + $0xd0] sm:$0xff]
    %v1895 = vld [vmem:[%s1867 + $0xd8] sm:$0xff]
    %v1896 = vld [vmem:[%s1867 + $0xe0] sm:$0xff]
    %v1897 = vld [vmem:[%s1867 + $0xe8] sm:$0xff]
    %v1898 = vld [vmem:[%s1867 + $0xf0] sm:$0xff]
    %v1899 = vld [vmem:[%s1867 + $0xf8] sm:$0xff]
    %v1900 = vld [vmem:[%s1867 + $0x100] sm:$0xff]
    %v1901 = vld [vmem:[%s1867 + $0x108] sm:$0xff]
    %v1902 = vld [vmem:[%s1867 + $0x110] sm:$0xff]
    %v1903 = vld [vmem:[%s1867 + $0x118] sm:$0xff]
    %v1904 = vld [vmem:[%s1867 + $0x120] sm:$0xff]
    %v1905 = vld [vmem:[%s1867 + $0x128] sm:$0xff]
    %v1906 = vld [vmem:[%s1867 + $0x130] sm:$0xff]
    %v1907 = vld [vmem:[%s1867 + $0x138] sm:$0xff]
    %v1908 = vld [vmem:[%s1867 + $0x140] sm:$0xff]
    %v1909 = vld [vmem:[%s1867 + $0x148] sm:$0xff]
    %v1910 = vld [vmem:[%s1867 + $0x150] sm:$0xff]
    %v1911 = vld [vmem:[%s1867 + $0x158] sm:$0xff]
    %v1912 = vld [vmem:[%s1867 + $0x160] sm:$0xff]
    %v1913 = vld [vmem:[%s1867 + $0x168] sm:$0xff]
    %v1914 = vld [vmem:[%s1867 + $0x170] sm:$0xff]
    %v1915 = vld [vmem:[%s1867 + $0x178] sm:$0xff]
    %v1916 = vld [vmem:[%s1867 + $0x180] sm:$0xff]
    %v1917 = vld [vmem:[%s1867 + $0x188] sm:$0xff]
    %v1918 = vld [vmem:[%s1867 + $0x190] sm:$0xff]
    %v1919 = vld [vmem:[%s1867 + $0x198] sm:$0xff]
    %v1920 = vld [vmem:[%s1867 + $0x1a0] sm:$0xff]
    %v1921 = vld [vmem:[%s1867 + $0x1a8] sm:$0xff]
    %v1922 = vld [vmem:[%s1867 + $0x1b0] sm:$0xff]
    %v1923 = vld [vmem:[%s1867 + $0x1b8] sm:$0xff]
    %v1924 = vld [vmem:[%s1867 + $0x1c0] sm:$0xff]
    %v1925 = vld [vmem:[%s1867 + $0x1c8] sm:$0xff]
    %v1926 = vld [vmem:[%s1867 + $0x1d0] sm:$0xff]
    %v1927 = vld [vmem:[%s1867 + $0x1d8] sm:$0xff]
    %v1928 = vld [vmem:[%s1867 + $0x1e0] sm:$0xff]
    %v1929 = vld [vmem:[%s1867 + $0x1e8] sm:$0xff]
    %v1930 = vld [vmem:[%s1867 + $0x1f0] sm:$0xff]
    %v1931 = vld [vmem:[%s1867 + $0x1f8] sm:$0xff]
    %1932 = vmatprep.subr.mxu0 %v1869
    %1933 = vmatpush1.msra.mxu0 %v1868
    %1934 = vmatprep.subr.mxu0 %v1871
    %1935 = vmatpush1.msra.mxu0 %v1870
    %1936 = vmatprep.subr.mxu0 %v1873
    %1937 = vmatpush1.msra.mxu0 %v1872
    %1938 = vmatprep.subr.mxu0 %v1875
    %1939 = vmatpush1.msra.mxu0 %v1874
    %1940 = vmatprep.subr.mxu0 %v1877
    %1941 = vmatpush1.msra.mxu0 %v1876
    %1942 = vmatprep.subr.mxu0 %v1879
    %1943 = vmatpush1.msra.mxu0 %v1878
    %1944 = vmatprep.subr.mxu0 %v1881
    %1945 = vmatpush1.msra.mxu0 %v1880
    %1946 = vmatprep.subr.mxu0 %v1883
    %1947 = vmatpush1.msra.mxu0 %v1882
    %1948 = vmatprep.subr.mxu0 %v1885
    %1949 = vmatpush1.msra.mxu0 %v1884
    %1950 = vmatprep.subr.mxu0 %v1887
    %1951 = vmatpush1.msra.mxu0 %v1886
    %1952 = vmatprep.subr.mxu0 %v1889
    %1953 = vmatpush1.msra.mxu0 %v1888
    %1954 = vmatprep.subr.mxu0 %v1891
    %1955 = vmatpush1.msra.mxu0 %v1890
    %1956 = vmatprep.subr.mxu0 %v1893
    %1957 = vmatpush1.msra.mxu0 %v1892
    %1958 = vmatprep.subr.mxu0 %v1895
    %1959 = vmatpush1.msra.mxu0 %v1894
    %1960 = vmatprep.subr.mxu0 %v1897
    %1961 = vmatpush1.msra.mxu0 %v1896
    %1962 = vmatprep.subr.mxu0 %v1899
    %1963 = vmatpush1.msra.mxu0 %v1898
    %1964 = vmatprep.subr.mxu0 %v1901
    %1965 = vmatpush1.msra.mxu0 %v1900
    %1966 = vmatprep.subr.mxu0 %v1903
    %1967 = vmatpush1.msra.mxu0 %v1902
    %1968 = vmatprep.subr.mxu0 %v1905
    %1969 = vmatpush1.msra.mxu0 %v1904
    %1970 = vmatprep.subr.mxu0 %v1907
    %1971 = vmatpush1.msra.mxu0 %v1906
    %1972 = vmatprep.subr.mxu0 %v1909
    %1973 = vmatpush1.msra.mxu0 %v1908
    %1974 = vmatprep.subr.mxu0 %v1911
    %1975 = vmatpush1.msra.mxu0 %v1910
    %1976 = vmatprep.subr.mxu0 %v1913
    %1977 = vmatpush1.msra.mxu0 %v1912
    %1978 = vmatprep.subr.mxu0 %v1915
    %1979 = vmatpush1.msra.mxu0 %v1914
    %1980 = vmatprep.subr.mxu0 %v1917
    %1981 = vmatpush1.msra.mxu0 %v1916
    %1982 = vmatprep.subr.mxu0 %v1919
    %1983 = vmatpush1.msra.mxu0 %v1918
    %1984 = vmatprep.subr.mxu0 %v1921
    %1985 = vmatpush1.msra.mxu0 %v1920
    %1986 = vmatprep.subr.mxu0 %v1923
    %1987 = vmatpush1.msra.mxu0 %v1922
    %1988 = vmatprep.subr.mxu0 %v1925
    %1989 = vmatpush1.msra.mxu0 %v1924
    %1990 = vmatprep.subr.mxu0 %v1927
    %1991 = vmatpush1.msra.mxu0 %v1926
    %1992 = vmatprep.subr.mxu0 %v1929
    %1993 = vmatpush1.msra.mxu0 %v1928
    %1994 = vmatprep.subr.mxu0 %v1931
    %1995 = vmatpush1.msra.mxu0 %v1930
    %1996 = vmatprep.mubr.f32.mxu0 %v393
    %1997 = vmatmul.mubr.f32.gmra.mrb[0].mxu0 %v327
    %v1998 = vpop.f32.mrb[0].mxu0
    %v1999 = vadd.f32 0.0, %v1998
    %v2000 = vpop.f32.mrb[0].mxu0
    %v2001 = vadd.f32 0.0, %v2000
    %2002 = vdwg.mxu0
    %s2003 = scalar_lea.vmem [#allocation8], 56
    %v2004 = vld [vmem:[%s2003] sm:$0xff]
    %v2006 = vsel %vm605, %v2004, 0
    %v2009 = vsel %vm609, %v1999, 0
    %v2012 = vsel %vm609, %v2001, 0
    %2014 = vmatprep.subr.mxu0 %v2012
    %2015 = vmatpush1.msra.mxu0 %v2009
    %2016 = vmatprep.subr.mxu0 0.0
    %2017 = vmatpush1.msra.mxu0 0.0
    %2018 = vmatprep.subr.mxu0 0.0
    %2019 = vmatpush1.msra.mxu0 0.0
    %2020 = vmatprep.subr.mxu0 0.0
    %2021 = vmatpush1.msra.mxu0 0.0
    %2022 = vmatprep.subr.mxu0 0.0
    %2023 = vmatpush1.msra.mxu0 0.0
    %2024 = vmatprep.subr.mxu0 0.0
    %2025 = vmatpush1.msra.mxu0 0.0
    %2026 = vmatprep.subr.mxu0 0.0
    %2027 = vmatpush1.msra.mxu0 0.0
    %2028 = vmatprep.subr.mxu0 0.0
    %2029 = vmatpush1.msra.mxu0 0.0
    %2030 = vmatprep.subr.mxu0 0.0
    %2031 = vmatpush1.msra.mxu0 0.0
    %2032 = vmatprep.subr.mxu0 0.0
    %2033 = vmatpush1.msra.mxu0 0.0
    %2034 = vmatprep.subr.mxu0 0.0
    %2035 = vmatpush1.msra.mxu0 0.0
    %2036 = vmatprep.subr.mxu0 0.0
    %2037 = vmatpush1.msra.mxu0 0.0
    %2038 = vmatprep.subr.mxu0 0.0
    %2039 = vmatpush1.msra.mxu0 0.0
    %2040 = vmatprep.subr.mxu0 0.0
    %2041 = vmatpush1.msra.mxu0 0.0
    %2042 = vmatprep.subr.mxu0 0.0
    %2043 = vmatpush1.msra.mxu0 0.0
    %2044 = vmatprep.subr.mxu0 0.0
    %2045 = vmatpush1.msra.mxu0 0.0
    %2046 = vmatprep.subr.mxu0 0.0
    %2047 = vmatpush1.msra.mxu0 0.0
    %2048 = vmatprep.subr.mxu0 0.0
    %2049 = vmatpush1.msra.mxu0 0.0
    %2050 = vmatprep.subr.mxu0 0.0
    %2051 = vmatpush1.msra.mxu0 0.0
    %2052 = vmatprep.subr.mxu0 0.0
    %2053 = vmatpush1.msra.mxu0 0.0
    %2054 = vmatprep.subr.mxu0 0.0
    %2055 = vmatpush1.msra.mxu0 0.0
    %2056 = vmatprep.subr.mxu0 0.0
    %2057 = vmatpush1.msra.mxu0 0.0
    %2058 = vmatprep.subr.mxu0 0.0
    %2059 = vmatpush1.msra.mxu0 0.0
    %2060 = vmatprep.subr.mxu0 0.0
    %2061 = vmatpush1.msra.mxu0 0.0
    %2062 = vmatprep.subr.mxu0 0.0
    %2063 = vmatpush1.msra.mxu0 0.0
    %2064 = vmatprep.subr.mxu0 0.0
    %2065 = vmatpush1.msra.mxu0 0.0
    %2066 = vmatprep.subr.mxu0 0.0
    %2067 = vmatpush1.msra.mxu0 0.0
    %2068 = vmatprep.subr.mxu0 0.0
    %2069 = vmatpush1.msra.mxu0 0.0
    %2070 = vmatprep.subr.mxu0 0.0
    %2071 = vmatpush1.msra.mxu0 0.0
    %2072 = vmatprep.subr.mxu0 0.0
    %2073 = vmatpush1.msra.mxu0 0.0
    %2074 = vmatprep.subr.mxu0 0.0
    %2075 = vmatpush1.msra.mxu0 0.0
    %2076 = vmatprep.subr.mxu0 0.0
    %2077 = vmatpush1.msra.mxu0 0.0
    %2078 = vmatprep.mubr.f32.mxu0 0.0
    %2079 = vmatmul.mubr.f32.gmra.mrb[0].mxu0 %v2006
    %v2080 = vpop.f32.mrb[0].mxu0
    %v2081 = vadd.f32 0.0, %v2080
    %v2082 = vpop.f32.mrb[0].mxu0
    %v2083 = vadd.f32 0.0, %v2082
    %2084 = vdwg.mxu0
    %v2085 = vadd.f32 %v1865, %v2081
    %v2086 = vadd.f32 %v1866, %v2083
    %s2087 = scalar_lea.vmem [#allocation17], 4096
    %v2088 = vld [vmem:[%s2087] sm:$0xff]
    %v2089 = vld [vmem:[%s2087 + $0x8] sm:$0xff]
    %v2090 = vld [vmem:[%s2087 + $0x10] sm:$0xff]
    %v2091 = vld [vmem:[%s2087 + $0x18] sm:$0xff]
    %v2092 = vld [vmem:[%s2087 + $0x20] sm:$0xff]
    %v2093 = vld [vmem:[%s2087 + $0x28] sm:$0xff]
    %v2094 = vld [vmem:[%s2087 + $0x30] sm:$0xff]
    %v2095 = vld [vmem:[%s2087 + $0x38] sm:$0xff]
    %v2096 = vld [vmem:[%s2087 + $0x40] sm:$0xff]
    %v2097 = vld [vmem:[%s2087 + $0x48] sm:$0xff]
    %v2098 = vld [vmem:[%s2087 + $0x50] sm:$0xff]
    %v2099 = vld [vmem:[%s2087 + $0x58] sm:$0xff]
    %v2100 = vld [vmem:[%s2087 + $0x60] sm:$0xff]
    %v2101 = vld [vmem:[%s2087 + $0x68] sm:$0xff]
    %v2102 = vld [vmem:[%s2087 + $0x70] sm:$0xff]
    %v2103 = vld [vmem:[%s2087 + $0x78] sm:$0xff]
    %v2104 = vld [vmem:[%s2087 + $0x80] sm:$0xff]
    %v2105 = vld [vmem:[%s2087 + $0x88] sm:$0xff]
    %v2106 = vld [vmem:[%s2087 + $0x90] sm:$0xff]
    %v2107 = vld [vmem:[%s2087 + $0x98] sm:$0xff]
    %v2108 = vld [vmem:[%s2087 + $0xa0] sm:$0xff]
    %v2109 = vld [vmem:[%s2087 + $0xa8] sm:$0xff]
    %v2110 = vld [vmem:[%s2087 + $0xb0] sm:$0xff]
    %v2111 = vld [vmem:[%s2087 + $0xb8] sm:$0xff]
    %v2112 = vld [vmem:[%s2087 + $0xc0] sm:$0xff]
    %v2113 = vld [vmem:[%s2087 + $0xc8] sm:$0xff]
    %v2114 = vld [vmem:[%s2087 + $0xd0] sm:$0xff]
    %v2115 = vld [vmem:[%s2087 + $0xd8] sm:$0xff]
    %v2116 = vld [vmem:[%s2087 + $0xe0] sm:$0xff]
    %v2117 = vld [vmem:[%s2087 + $0xe8] sm:$0xff]
    %v2118 = vld [vmem:[%s2087 + $0xf0] sm:$0xff]
    %v2119 = vld [vmem:[%s2087 + $0xf8] sm:$0xff]
    %v2120 = vld [vmem:[%s2087 + $0x100] sm:$0xff]
    %v2121 = vld [vmem:[%s2087 + $0x108] sm:$0xff]
    %v2122 = vld [vmem:[%s2087 + $0x110] sm:$0xff]
    %v2123 = vld [vmem:[%s2087 + $0x118] sm:$0xff]
    %v2124 = vld [vmem:[%s2087 + $0x120] sm:$0xff]
    %v2125 = vld [vmem:[%s2087 + $0x128] sm:$0xff]
    %v2126 = vld [vmem:[%s2087 + $0x130] sm:$0xff]
    %v2127 = vld [vmem:[%s2087 + $0x138] sm:$0xff]
    %v2128 = vld [vmem:[%s2087 + $0x140] sm:$0xff]
    %v2129 = vld [vmem:[%s2087 + $0x148] sm:$0xff]
    %v2130 = vld [vmem:[%s2087 + $0x150] sm:$0xff]
    %v2131 = vld [vmem:[%s2087 + $0x158] sm:$0xff]
    %v2132 = vld [vmem:[%s2087 + $0x160] sm:$0xff]
    %v2133 = vld [vmem:[%s2087 + $0x168] sm:$0xff]
    %v2134 = vld [vmem:[%s2087 + $0x170] sm:$0xff]
    %v2135 = vld [vmem:[%s2087 + $0x178] sm:$0xff]
    %v2136 = vld [vmem:[%s2087 + $0x180] sm:$0xff]
    %v2137 = vld [vmem:[%s2087 + $0x188] sm:$0xff]
    %v2138 = vld [vmem:[%s2087 + $0x190] sm:$0xff]
    %v2139 = vld [vmem:[%s2087 + $0x198] sm:$0xff]
    %v2140 = vld [vmem:[%s2087 + $0x1a0] sm:$0xff]
    %v2141 = vld [vmem:[%s2087 + $0x1a8] sm:$0xff]
    %v2142 = vld [vmem:[%s2087 + $0x1b0] sm:$0xff]
    %v2143 = vld [vmem:[%s2087 + $0x1b8] sm:$0xff]
    %v2144 = vld [vmem:[%s2087 + $0x1c0] sm:$0xff]
    %v2145 = vld [vmem:[%s2087 + $0x1c8] sm:$0xff]
    %v2146 = vld [vmem:[%s2087 + $0x1d0] sm:$0xff]
    %v2147 = vld [vmem:[%s2087 + $0x1d8] sm:$0xff]
    %v2148 = vld [vmem:[%s2087 + $0x1e0] sm:$0xff]
    %v2149 = vld [vmem:[%s2087 + $0x1e8] sm:$0xff]
    %v2150 = vld [vmem:[%s2087 + $0x1f0] sm:$0xff]
    %v2151 = vld [vmem:[%s2087 + $0x1f8] sm:$0xff]
    %2152 = vmatprep.subr.mxu0 %v2089
    %2153 = vmatpush1.msra.mxu0 %v2088
    %2154 = vmatprep.subr.mxu0 %v2091
    %2155 = vmatpush1.msra.mxu0 %v2090
    %2156 = vmatprep.subr.mxu0 %v2093
    %2157 = vmatpush1.msra.mxu0 %v2092
    %2158 = vmatprep.subr.mxu0 %v2095
    %2159 = vmatpush1.msra.mxu0 %v2094
    %2160 = vmatprep.subr.mxu0 %v2097
    %2161 = vmatpush1.msra.mxu0 %v2096
    %2162 = vmatprep.subr.mxu0 %v2099
    %2163 = vmatpush1.msra.mxu0 %v2098
    %2164 = vmatprep.subr.mxu0 %v2101
    %2165 = vmatpush1.msra.mxu0 %v2100
    %2166 = vmatprep.subr.mxu0 %v2103
    %2167 = vmatpush1.msra.mxu0 %v2102
    %2168 = vmatprep.subr.mxu0 %v2105
    %2169 = vmatpush1.msra.mxu0 %v2104
    %2170 = vmatprep.subr.mxu0 %v2107
    %2171 = vmatpush1.msra.mxu0 %v2106
    %2172 = vmatprep.subr.mxu0 %v2109
    %2173 = vmatpush1.msra.mxu0 %v2108
    %2174 = vmatprep.subr.mxu0 %v2111
    %2175 = vmatpush1.msra.mxu0 %v2110
    %2176 = vmatprep.subr.mxu0 %v2113
    %2177 = vmatpush1.msra.mxu0 %v2112
    %2178 = vmatprep.subr.mxu0 %v2115
    %2179 = vmatpush1.msra.mxu0 %v2114
    %2180 = vmatprep.subr.mxu0 %v2117
    %2181 = vmatpush1.msra.mxu0 %v2116
    %2182 = vmatprep.subr.mxu0 %v2119
    %2183 = vmatpush1.msra.mxu0 %v2118
    %2184 = vmatprep.subr.mxu0 %v2121
    %2185 = vmatpush1.msra.mxu0 %v2120
    %2186 = vmatprep.subr.mxu0 %v2123
    %2187 = vmatpush1.msra.mxu0 %v2122
    %2188 = vmatprep.subr.mxu0 %v2125
    %2189 = vmatpush1.msra.mxu0 %v2124
    %2190 = vmatprep.subr.mxu0 %v2127
    %2191 = vmatpush1.msra.mxu0 %v2126
    %2192 = vmatprep.subr.mxu0 %v2129
    %2193 = vmatpush1.msra.mxu0 %v2128
    %2194 = vmatprep.subr.mxu0 %v2131
    %2195 = vmatpush1.msra.mxu0 %v2130
    %2196 = vmatprep.subr.mxu0 %v2133
    %2197 = vmatpush1.msra.mxu0 %v2132
    %2198 = vmatprep.subr.mxu0 %v2135
    %2199 = vmatpush1.msra.mxu0 %v2134
    %2200 = vmatprep.subr.mxu0 %v2137
    %2201 = vmatpush1.msra.mxu0 %v2136
    %2202 = vmatprep.subr.mxu0 %v2139
    %2203 = vmatpush1.msra.mxu0 %v2138
    %2204 = vmatprep.subr.mxu0 %v2141
    %2205 = vmatpush1.msra.mxu0 %v2140
    %2206 = vmatprep.subr.mxu0 %v2143
    %2207 = vmatpush1.msra.mxu0 %v2142
    %2208 = vmatprep.subr.mxu0 %v2145
    %2209 = vmatpush1.msra.mxu0 %v2144
    %2210 = vmatprep.subr.mxu0 %v2147
    %2211 = vmatpush1.msra.mxu0 %v2146
    %2212 = vmatprep.subr.mxu0 %v2149
    %2213 = vmatpush1.msra.mxu0 %v2148
    %2214 = vmatprep.subr.mxu0 %v2151
    %2215 = vmatpush1.msra.mxu0 %v2150
    %2216 = vmatprep.mubr.f32.mxu0 %v393
    %2217 = vmatmul.mubr.f32.gmra.mrb[0].mxu0 %v327
    %v2218 = vpop.f32.mrb[0].mxu0
    %v2219 = vadd.f32 0.0, %v2218
    %v2220 = vpop.f32.mrb[0].mxu0
    %v2221 = vadd.f32 0.0, %v2220
    %2222 = vdwg.mxu0
    %s2223 = scalar_lea.vmem [#allocation8], 64
    %v2224 = vld [vmem:[%s2223] sm:$0xff]
    %v2226 = vsel %vm605, %v2224, 0
    %v2229 = vsel %vm609, %v2219, 0
    %v2232 = vsel %vm609, %v2221, 0
    %2234 = vmatprep.subr.mxu0 %v2232
    %2235 = vmatpush1.msra.mxu0 %v2229
    %2236 = vmatprep.subr.mxu0 0.0
    %2237 = vmatpush1.msra.mxu0 0.0
    %2238 = vmatprep.subr.mxu0 0.0
    %2239 = vmatpush1.msra.mxu0 0.0
    %2240 = vmatprep.subr.mxu0 0.0
    %2241 = vmatpush1.msra.mxu0 0.0
    %2242 = vmatprep.subr.mxu0 0.0
    %2243 = vmatpush1.msra.mxu0 0.0
    %2244 = vmatprep.subr.mxu0 0.0
    %2245 = vmatpush1.msra.mxu0 0.0
    %2246 = vmatprep.subr.mxu0 0.0
    %2247 = vmatpush1.msra.mxu0 0.0
    %2248 = vmatprep.subr.mxu0 0.0
    %2249 = vmatpush1.msra.mxu0 0.0
    %2250 = vmatprep.subr.mxu0 0.0
    %2251 = vmatpush1.msra.mxu0 0.0
    %2252 = vmatprep.subr.mxu0 0.0
    %2253 = vmatpush1.msra.mxu0 0.0
    %2254 = vmatprep.subr.mxu0 0.0
    %2255 = vmatpush1.msra.mxu0 0.0
    %2256 = vmatprep.subr.mxu0 0.0
    %2257 = vmatpush1.msra.mxu0 0.0
    %2258 = vmatprep.subr.mxu0 0.0
    %2259 = vmatpush1.msra.mxu0 0.0
    %2260 = vmatprep.subr.mxu0 0.0
    %2261 = vmatpush1.msra.mxu0 0.0
    %2262 = vmatprep.subr.mxu0 0.0
    %2263 = vmatpush1.msra.mxu0 0.0
    %2264 = vmatprep.subr.mxu0 0.0
    %2265 = vmatpush1.msra.mxu0 0.0
    %2266 = vmatprep.subr.mxu0 0.0
    %2267 = vmatpush1.msra.mxu0 0.0
    %2268 = vmatprep.subr.mxu0 0.0
    %2269 = vmatpush1.msra.mxu0 0.0
    %2270 = vmatprep.subr.mxu0 0.0
    %2271 = vmatpush1.msra.mxu0 0.0
    %2272 = vmatprep.subr.mxu0 0.0
    %2273 = vmatpush1.msra.mxu0 0.0
    %2274 = vmatprep.subr.mxu0 0.0
    %2275 = vmatpush1.msra.mxu0 0.0
    %2276 = vmatprep.subr.mxu0 0.0
    %2277 = vmatpush1.msra.mxu0 0.0
    %2278 = vmatprep.subr.mxu0 0.0
    %2279 = vmatpush1.msra.mxu0 0.0
    %2280 = vmatprep.subr.mxu0 0.0
    %2281 = vmatpush1.msra.mxu0 0.0
    %2282 = vmatprep.subr.mxu0 0.0
    %2283 = vmatpush1.msra.mxu0 0.0
    %2284 = vmatprep.subr.mxu0 0.0
    %2285 = vmatpush1.msra.mxu0 0.0
    %2286 = vmatprep.subr.mxu0 0.0
    %2287 = vmatpush1.msra.mxu0 0.0
    %2288 = vmatprep.subr.mxu0 0.0
    %2289 = vmatpush1.msra.mxu0 0.0
    %2290 = vmatprep.subr.mxu0 0.0
    %2291 = vmatpush1.msra.mxu0 0.0
    %2292 = vmatprep.subr.mxu0 0.0
    %2293 = vmatpush1.msra.mxu0 0.0
    %2294 = vmatprep.subr.mxu0 0.0
    %2295 = vmatpush1.msra.mxu0 0.0
    %2296 = vmatprep.subr.mxu0 0.0
    %2297 = vmatpush1.msra.mxu0 0.0
    %2298 = vmatprep.mubr.f32.mxu0 0.0
    %2299 = vmatmul.mubr.f32.gmra.mrb[0].mxu0 %v2226
    %v2300 = vpop.f32.mrb[0].mxu0
    %v2301 = vadd.f32 0.0, %v2300
    %v2302 = vpop.f32.mrb[0].mxu0
    %v2303 = vadd.f32 0.0, %v2302
    %2304 = vdwg.mxu0
    %v2305 = vadd.f32 %v2085, %v2301
    %v2306 = vadd.f32 %v2086, %v2303
    %v2307 = vld [vmem:[#allocation10] sm:$0xff]
    %2309 = vset.pattern.permute.xlu0 0
    %2310 = vperm.xlu0 %2309, %v2307
    %v2311 = vpop.permute.xlu0 %2310
    %v2313 = vadd.f32 %v2305, %v2311
    %v2314 = vadd.f32 %v2306, %v2311
    %2315 = vmatprep.subr.mxu0 %v2314
    %2316 = vmatpush1.xpose.msra.mxu0 %v2313
    %2317 = vmatprep.subr.mxu0 0.0
    %2318 = vmatpush1.xpose.msra.mxu0 0.0
    %2319 = vmatprep.subr.mxu0 0.0
    %2320 = vmatpush1.xpose.msra.mxu0 0.0
    %2321 = vmatprep.subr.mxu0 0.0
    %2322 = vmatpush1.xpose.msra.mxu0 0.0
    %2323 = vmatprep.subr.mxu0 0.0
    %2324 = vmatpush1.xpose.msra.mxu0 0.0
    %2325 = vmatprep.subr.mxu0 0.0
    %2326 = vmatpush1.xpose.msra.mxu0 0.0
    %2327 = vmatprep.subr.mxu0 0.0
    %2328 = vmatpush1.xpose.msra.mxu0 0.0
    %2329 = vmatprep.subr.mxu0 0.0
    %2330 = vmatpush1.xpose.msra.mxu0 0.0
    %2331 = vmatprep.subr.mxu0 0.0
    %2332 = vmatpush1.xpose.msra.mxu0 0.0
    %2333 = vmatprep.subr.mxu0 0.0
    %2334 = vmatpush1.xpose.msra.mxu0 0.0
    %2335 = vmatprep.subr.mxu0 0.0
    %2336 = vmatpush1.xpose.msra.mxu0 0.0
    %2337 = vmatprep.subr.mxu0 0.0
    %2338 = vmatpush1.xpose.msra.mxu0 0.0
    %2339 = vmatprep.subr.mxu0 0.0
    %2340 = vmatpush1.xpose.msra.mxu0 0.0
    %2341 = vmatprep.subr.mxu0 0.0
    %2342 = vmatpush1.xpose.msra.mxu0 0.0
    %2343 = vmatprep.subr.mxu0 0.0
    %2344 = vmatpush1.xpose.msra.mxu0 0.0
    %2345 = vmatprep.subr.mxu0 0.0
    %2346 = vmatpush1.xpose.msra.mxu0 0.0
    %2347 = vmatprep.subr.mxu0 0.0
    %2348 = vmatpush1.xpose.msra.mxu0 0.0
    %2349 = vmatprep.subr.mxu0 0.0
    %2350 = vmatpush1.xpose.msra.mxu0 0.0
    %2351 = vmatprep.subr.mxu0 0.0
    %2352 = vmatpush1.xpose.msra.mxu0 0.0
    %2353 = vmatprep.subr.mxu0 0.0
    %2354 = vmatpush1.xpose.msra.mxu0 0.0
    %2355 = vmatprep.subr.mxu0 0.0
    %2356 = vmatpush1.xpose.msra.mxu0 0.0
    %2357 = vmatprep.subr.mxu0 0.0
    %2358 = vmatpush1.xpose.msra.mxu0 0.0
    %2359 = vmatprep.subr.mxu0 0.0
    %2360 = vmatpush1.xpose.msra.mxu0 0.0
    %2361 = vmatprep.subr.mxu0 0.0
    %2362 = vmatpush1.xpose.msra.mxu0 0.0
    %2363 = vmatprep.subr.mxu0 0.0
    %2364 = vmatpush1.xpose.msra.mxu0 0.0
    %2365 = vmatprep.subr.mxu0 0.0
    %2366 = vmatpush1.xpose.msra.mxu0 0.0
    %2367 = vmatprep.subr.mxu0 0.0
    %2368 = vmatpush1.xpose.msra.mxu0 0.0
    %2369 = vmatprep.subr.mxu0 0.0
    %2370 = vmatpush1.xpose.msra.mxu0 0.0
    %2371 = vmatprep.subr.mxu0 0.0
    %2372 = vmatpush1.xpose.msra.mxu0 0.0
    %2373 = vmatprep.subr.mxu0 0.0
    %2374 = vmatpush1.xpose.msra.mxu0 0.0
    %2375 = vmatprep.subr.mxu0 0.0
    %2376 = vmatpush1.xpose.msra.mxu0 0.0
    %2377 = vmatprep.subr.mxu0 0.0
    %2378 = vmatpush1.xpose.msra.mxu0 0.0
    %2379 = vmatprep.mubr.f32.mxu0 %v2314
    %2380 = vmatmul.mubr.f32.gmra.mrb[0].mxu0 %v2313
    %v2381 = vpop.f32.mrb[0].mxu0
    %v2382 = vadd.f32 0.0, %v2381
    %v2383 = vpop.f32.mrb[0].mxu0
    %2384 = vdwg.mxu0
    %v2385 = vmul.f32 %v2382, 0.00048828125
    %vm2386 = vcmask 64512
    %2387 = vst.msk [vmem:[#allocation32] sm:$0xff] %vm2386, %v2385
    %v2388 = vld [vmem:[#allocation26] sm:$0xff]
    %v2389 = vsub.f32 %v2385, %v2388
    %v2390 = vmul.f32 %v2389, %v2389
    %v2391 = vsel %vm2386, %v2390, 0.0
    %2392 = vadd.xlane.f32.xlu0 %v2391
    %v2393 = vpop.xlane.xlu0 %2392
    %v2394 = vrot.slane %v2393, 4
    %v2395 = vadd.f32 %v2393, %v2394
    %v2396 = vrot.slane %v2395, 2
    %v2397 = vadd.f32 %v2395, %v2396
    %v2398 = vrot.slane %v2397, 1
    %v2399 = vadd.f32 %v2397, %v2398
    %v2400 = vmul.f32 %v2399, 0.015625
    %vm2401 = vcmask 0
    %2402 = vst.msk [vmem:[#allocation35] sm:$0x1] %vm2401, %v2400
    %v2403 = vmax.f32 %v2313, 0.0
    %v2404 = vmax.f32 %v2314, 0.0
    %v2405 = vld [vmem:[#allocation17] sm:$0xff]
    %v2406 = vld [vmem:[#allocation17 + $0x8] sm:$0xff]
    %v2407 = vld [vmem:[#allocation17 + $0x10] sm:$0xff]
    %v2408 = vld [vmem:[#allocation17 + $0x18] sm:$0xff]
    %v2409 = vld [vmem:[#allocation17 + $0x20] sm:$0xff]
    %v2410 = vld [vmem:[#allocation17 + $0x28] sm:$0xff]
    %v2411 = vld [vmem:[#allocation17 + $0x30] sm:$0xff]
    %v2412 = vld [vmem:[#allocation17 + $0x38] sm:$0xff]
    %v2413 = vld [vmem:[#allocation17 + $0x40] sm:$0xff]
    %v2414 = vld [vmem:[#allocation17 + $0x48] sm:$0xff]
    %v2415 = vld [vmem:[#allocation17 + $0x50] sm:$0xff]
    %v2416 = vld [vmem:[#allocation17 + $0x58] sm:$0xff]
    %v2417 = vld [vmem:[#allocation17 + $0x60] sm:$0xff]
    %v2418 = vld [vmem:[#allocation17 + $0x68] sm:$0xff]
    %v2419 = vld [vmem:[#allocation17 + $0x70] sm:$0xff]
    %v2420 = vld [vmem:[#allocation17 + $0x78] sm:$0xff]
    %v2421 = vld [vmem:[#allocation17 + $0x80] sm:$0xff]
    %v2422 = vld [vmem:[#allocation17 + $0x88] sm:$0xff]
    %v2423 = vld [vmem:[#allocation17 + $0x90] sm:$0xff]
    %v2424 = vld [vmem:[#allocation17 + $0x98] sm:$0xff]
    %v2425 = vld [vmem:[#allocation17 + $0xa0] sm:$0xff]
    %v2426 = vld [vmem:[#allocation17 + $0xa8] sm:$0xff]
    %v2427 = vld [vmem:[#allocation17 + $0xb0] sm:$0xff]
    %v2428 = vld [vmem:[#allocation17 + $0xb8] sm:$0xff]
    %v2429 = vld [vmem:[#allocation17 + $0xc0] sm:$0xff]
    %v2430 = vld [vmem:[#allocation17 + $0xc8] sm:$0xff]
    %v2431 = vld [vmem:[#allocation17 + $0xd0] sm:$0xff]
    %v2432 = vld [vmem:[#allocation17 + $0xd8] sm:$0xff]
    %v2433 = vld [vmem:[#allocation17 + $0xe0] sm:$0xff]
    %v2434 = vld [vmem:[#allocation17 + $0xe8] sm:$0xff]
    %v2435 = vld [vmem:[#allocation17 + $0xf0] sm:$0xff]
    %v2436 = vld [vmem:[#allocation17 + $0xf8] sm:$0xff]
    %v2437 = vld [vmem:[#allocation17 + $0x100] sm:$0xff]
    %v2438 = vld [vmem:[#allocation17 + $0x108] sm:$0xff]
    %v2439 = vld [vmem:[#allocation17 + $0x110] sm:$0xff]
    %v2440 = vld [vmem:[#allocation17 + $0x118] sm:$0xff]
    %v2441 = vld [vmem:[#allocation17 + $0x120] sm:$0xff]
    %v2442 = vld [vmem:[#allocation17 + $0x128] sm:$0xff]
    %v2443 = vld [vmem:[#allocation17 + $0x130] sm:$0xff]
    %v2444 = vld [vmem:[#allocation17 + $0x138] sm:$0xff]
    %v2445 = vld [vmem:[#allocation17 + $0x140] sm:$0xff]
    %v2446 = vld [vmem:[#allocation17 + $0x148] sm:$0xff]
    %v2447 = vld [vmem:[#allocation17 + $0x150] sm:$0xff]
    %v2448 = vld [vmem:[#allocation17 + $0x158] sm:$0xff]
    %v2449 = vld [vmem:[#allocation17 + $0x160] sm:$0xff]
    %v2450 = vld [vmem:[#allocation17 + $0x168] sm:$0xff]
    %v2451 = vld [vmem:[#allocation17 + $0x170] sm:$0xff]
    %v2452 = vld [vmem:[#allocation17 + $0x178] sm:$0xff]
    %v2453 = vld [vmem:[#allocation17 + $0x180] sm:$0xff]
    %v2454 = vld [vmem:[#allocation17 + $0x188] sm:$0xff]
    %v2455 = vld [vmem:[#allocation17 + $0x190] sm:$0xff]
    %v2456 = vld [vmem:[#allocation17 + $0x198] sm:$0xff]
    %v2457 = vld [vmem:[#allocation17 + $0x1a0] sm:$0xff]
    %v2458 = vld [vmem:[#allocation17 + $0x1a8] sm:$0xff]
    %v2459 = vld [vmem:[#allocation17 + $0x1b0] sm:$0xff]
    %v2460 = vld [vmem:[#allocation17 + $0x1b8] sm:$0xff]
    %v2461 = vld [vmem:[#allocation17 + $0x1c0] sm:$0xff]
    %v2462 = vld [vmem:[#allocation17 + $0x1c8] sm:$0xff]
    %v2463 = vld [vmem:[#allocation17 + $0x1d0] sm:$0xff]
    %v2464 = vld [vmem:[#allocation17 + $0x1d8] sm:$0xff]
    %v2465 = vld [vmem:[#allocation17 + $0x1e0] sm:$0xff]
    %v2466 = vld [vmem:[#allocation17 + $0x1e8] sm:$0xff]
    %v2467 = vld [vmem:[#allocation17 + $0x1f0] sm:$0xff]
    %v2468 = vld [vmem:[#allocation17 + $0x1f8] sm:$0xff]
    %2469 = vmatprep.subr.mxu0 %v2406
    %2470 = vmatpush1.msra.mxu0 %v2405
    %2471 = vmatprep.subr.mxu0 %v2408
    %2472 = vmatpush1.msra.mxu0 %v2407
    %2473 = vmatprep.subr.mxu0 %v2410
    %2474 = vmatpush1.msra.mxu0 %v2409
    %2475 = vmatprep.subr.mxu0 %v2412
    %2476 = vmatpush1.msra.mxu0 %v2411
    %2477 = vmatprep.subr.mxu0 %v2414
    %2478 = vmatpush1.msra.mxu0 %v2413
    %2479 = vmatprep.subr.mxu0 %v2416
    %2480 = vmatpush1.msra.mxu0 %v2415
    %2481 = vmatprep.subr.mxu0 %v2418
    %2482 = vmatpush1.msra.mxu0 %v2417
    %2483 = vmatprep.subr.mxu0 %v2420
    %2484 = vmatpush1.msra.mxu0 %v2419
    %2485 = vmatprep.subr.mxu0 %v2422
    %2486 = vmatpush1.msra.mxu0 %v2421
    %2487 = vmatprep.subr.mxu0 %v2424
    %2488 = vmatpush1.msra.mxu0 %v2423
    %2489 = vmatprep.subr.mxu0 %v2426
    %2490 = vmatpush1.msra.mxu0 %v2425
    %2491 = vmatprep.subr.mxu0 %v2428
    %2492 = vmatpush1.msra.mxu0 %v2427
    %2493 = vmatprep.subr.mxu0 %v2430
    %2494 = vmatpush1.msra.mxu0 %v2429
    %2495 = vmatprep.subr.mxu0 %v2432
    %2496 = vmatpush1.msra.mxu0 %v2431
    %2497 = vmatprep.subr.mxu0 %v2434
    %2498 = vmatpush1.msra.mxu0 %v2433
    %2499 = vmatprep.subr.mxu0 %v2436
    %2500 = vmatpush1.msra.mxu0 %v2435
    %2501 = vmatprep.subr.mxu0 %v2438
    %2502 = vmatpush1.msra.mxu0 %v2437
    %2503 = vmatprep.subr.mxu0 %v2440
    %2504 = vmatpush1.msra.mxu0 %v2439
    %2505 = vmatprep.subr.mxu0 %v2442
    %2506 = vmatpush1.msra.mxu0 %v2441
    %2507 = vmatprep.subr.mxu0 %v2444
    %2508 = vmatpush1.msra.mxu0 %v2443
    %2509 = vmatprep.subr.mxu0 %v2446
    %2510 = vmatpush1.msra.mxu0 %v2445
    %2511 = vmatprep.subr.mxu0 %v2448
    %2512 = vmatpush1.msra.mxu0 %v2447
    %2513 = vmatprep.subr.mxu0 %v2450
    %2514 = vmatpush1.msra.mxu0 %v2449
    %2515 = vmatprep.subr.mxu0 %v2452
    %2516 = vmatpush1.msra.mxu0 %v2451
    %2517 = vmatprep.subr.mxu0 %v2454
    %2518 = vmatpush1.msra.mxu0 %v2453
    %2519 = vmatprep.subr.mxu0 %v2456
    %2520 = vmatpush1.msra.mxu0 %v2455
    %2521 = vmatprep.subr.mxu0 %v2458
    %2522 = vmatpush1.msra.mxu0 %v2457
    %2523 = vmatprep.subr.mxu0 %v2460
    %2524 = vmatpush1.msra.mxu0 %v2459
    %2525 = vmatprep.subr.mxu0 %v2462
    %2526 = vmatpush1.msra.mxu0 %v2461
    %2527 = vmatprep.subr.mxu0 %v2464
    %2528 = vmatpush1.msra.mxu0 %v2463
    %2529 = vmatprep.subr.mxu0 %v2466
    %2530 = vmatpush1.msra.mxu0 %v2465
    %2531 = vmatprep.subr.mxu0 %v2468
    %2532 = vmatpush1.msra.mxu0 %v2467
    %2533 = vmatprep.mubr.f32.mxu0 %v2404
    %2534 = vmatmul.mubr.f32.gmra.mrb[0].mxu0 %v2403
    %v2535 = vpop.f32.mrb[0].mxu0
    %v2536 = vadd.f32 0.0, %v2535
    %v2537 = vpop.f32.mrb[0].mxu0
    %v2538 = vadd.f32 0.0, %v2537
    %2539 = vdwg.mxu0
    %v2540 = vld [vmem:[#allocation11] sm:$0xff]
    %v2541 = vld [vmem:[%s467] sm:$0xff]
    %v2542 = vld [vmem:[%s467 + $0x8] sm:$0xff]
    %v2543 = vld [vmem:[%s467 + $0x10] sm:$0xff]
    %v2544 = vld [vmem:[%s467 + $0x18] sm:$0xff]
    %v2545 = vld [vmem:[%s467 + $0x20] sm:$0xff]
    %v2546 = vld [vmem:[%s467 + $0x28] sm:$0xff]
    %v2547 = vld [vmem:[%s467 + $0x30] sm:$0xff]
    %v2548 = vld [vmem:[%s467 + $0x38] sm:$0xff]
    %v2549 = vld [vmem:[%s467 + $0x40] sm:$0xff]
    %v2550 = vld [vmem:[%s467 + $0x48] sm:$0xff]
    %v2551 = vld [vmem:[%s467 + $0x50] sm:$0xff]
    %v2552 = vld [vmem:[%s467 + $0x58] sm:$0xff]
    %v2553 = vld [vmem:[%s467 + $0x60] sm:$0xff]
    %v2554 = vld [vmem:[%s467 + $0x68] sm:$0xff]
    %v2555 = vld [vmem:[%s467 + $0x70] sm:$0xff]
    %v2556 = vld [vmem:[%s467 + $0x78] sm:$0xff]
    %v2557 = vld [vmem:[%s467 + $0x80] sm:$0xff]
    %v2558 = vld [vmem:[%s467 + $0x88] sm:$0xff]
    %v2559 = vld [vmem:[%s467 + $0x90] sm:$0xff]
    %v2560 = vld [vmem:[%s467 + $0x98] sm:$0xff]
    %v2561 = vld [vmem:[%s467 + $0xa0] sm:$0xff]
    %v2562 = vld [vmem:[%s467 + $0xa8] sm:$0xff]
    %v2563 = vld [vmem:[%s467 + $0xb0] sm:$0xff]
    %v2564 = vld [vmem:[%s467 + $0xb8] sm:$0xff]
    %v2565 = vld [vmem:[%s467 + $0xc0] sm:$0xff]
    %v2566 = vld [vmem:[%s467 + $0xc8] sm:$0xff]
    %v2567 = vld [vmem:[%s467 + $0xd0] sm:$0xff]
    %v2568 = vld [vmem:[%s467 + $0xd8] sm:$0xff]
    %v2569 = vld [vmem:[%s467 + $0xe0] sm:$0xff]
    %v2570 = vld [vmem:[%s467 + $0xe8] sm:$0xff]
    %v2571 = vld [vmem:[%s467 + $0xf0] sm:$0xff]
    %v2572 = vld [vmem:[%s467 + $0xf8] sm:$0xff]
    %v2573 = vld [vmem:[%s467 + $0x100] sm:$0xff]
    %v2574 = vld [vmem:[%s467 + $0x108] sm:$0xff]
    %v2575 = vld [vmem:[%s467 + $0x110] sm:$0xff]
    %v2576 = vld [vmem:[%s467 + $0x118] sm:$0xff]
    %v2577 = vld [vmem:[%s467 + $0x120] sm:$0xff]
    %v2578 = vld [vmem:[%s467 + $0x128] sm:$0xff]
    %v2579 = vld [vmem:[%s467 + $0x130] sm:$0xff]
    %v2580 = vld [vmem:[%s467 + $0x138] sm:$0xff]
    %v2581 = vld [vmem:[%s467 + $0x140] sm:$0xff]
    %v2582 = vld [vmem:[%s467 + $0x148] sm:$0xff]
    %v2583 = vld [vmem:[%s467 + $0x150] sm:$0xff]
    %v2584 = vld [vmem:[%s467 + $0x158] sm:$0xff]
    %v2585 = vld [vmem:[%s467 + $0x160] sm:$0xff]
    %v2586 = vld [vmem:[%s467 + $0x168] sm:$0xff]
    %v2587 = vld [vmem:[%s467 + $0x170] sm:$0xff]
    %v2588 = vld [vmem:[%s467 + $0x178] sm:$0xff]
    %v2589 = vld [vmem:[%s467 + $0x180] sm:$0xff]
    %v2590 = vld [vmem:[%s467 + $0x188] sm:$0xff]
    %v2591 = vld [vmem:[%s467 + $0x190] sm:$0xff]
    %v2592 = vld [vmem:[%s467 + $0x198] sm:$0xff]
    %v2593 = vld [vmem:[%s467 + $0x1a0] sm:$0xff]
    %v2594 = vld [vmem:[%s467 + $0x1a8] sm:$0xff]
    %v2595 = vld [vmem:[%s467 + $0x1b0] sm:$0xff]
    %v2596 = vld [vmem:[%s467 + $0x1b8] sm:$0xff]
    %v2597 = vld [vmem:[%s467 + $0x1c0] sm:$0xff]
    %v2598 = vld [vmem:[%s467 + $0x1c8] sm:$0xff]
    %v2599 = vld [vmem:[%s467 + $0x1d0] sm:$0xff]
    %v2600 = vld [vmem:[%s467 + $0x1d8] sm:$0xff]
    %v2601 = vld [vmem:[%s467 + $0x1e0] sm:$0xff]
    %v2602 = vld [vmem:[%s467 + $0x1e8] sm:$0xff]
    %v2603 = vld [vmem:[%s467 + $0x1f0] sm:$0xff]
    %v2604 = vld [vmem:[%s467 + $0x1f8] sm:$0xff]
    %2605 = vmatprep.subr.mxu0 %v2542
    %2606 = vmatpush1.msra.mxu0 %v2541
    %2607 = vmatprep.subr.mxu0 %v2544
    %2608 = vmatpush1.msra.mxu0 %v2543
    %2609 = vmatprep.subr.mxu0 %v2546
    %2610 = vmatpush1.msra.mxu0 %v2545
    %2611 = vmatprep.subr.mxu0 %v2548
    %2612 = vmatpush1.msra.mxu0 %v2547
    %2613 = vmatprep.subr.mxu0 %v2550
    %2614 = vmatpush1.msra.mxu0 %v2549
    %2615 = vmatprep.subr.mxu0 %v2552
    %2616 = vmatpush1.msra.mxu0 %v2551
    %2617 = vmatprep.subr.mxu0 %v2554
    %2618 = vmatpush1.msra.mxu0 %v2553
    %2619 = vmatprep.subr.mxu0 %v2556
    %2620 = vmatpush1.msra.mxu0 %v2555
    %2621 = vmatprep.subr.mxu0 %v2558
    %2622 = vmatpush1.msra.mxu0 %v2557
    %2623 = vmatprep.subr.mxu0 %v2560
    %2624 = vmatpush1.msra.mxu0 %v2559
    %2625 = vmatprep.subr.mxu0 %v2562
    %2626 = vmatpush1.msra.mxu0 %v2561
    %2627 = vmatprep.subr.mxu0 %v2564
    %2628 = vmatpush1.msra.mxu0 %v2563
    %2629 = vmatprep.subr.mxu0 %v2566
    %2630 = vmatpush1.msra.mxu0 %v2565
    %2631 = vmatprep.subr.mxu0 %v2568
    %2632 = vmatpush1.msra.mxu0 %v2567
    %2633 = vmatprep.subr.mxu0 %v2570
    %2634 = vmatpush1.msra.mxu0 %v2569
    %2635 = vmatprep.subr.mxu0 %v2572
    %2636 = vmatpush1.msra.mxu0 %v2571
    %2637 = vmatprep.subr.mxu0 %v2574
    %2638 = vmatpush1.msra.mxu0 %v2573
    %2639 = vmatprep.subr.mxu0 %v2576
    %2640 = vmatpush1.msra.mxu0 %v2575
    %2641 = vmatprep.subr.mxu0 %v2578
    %2642 = vmatpush1.msra.mxu0 %v2577
    %2643 = vmatprep.subr.mxu0 %v2580
    %2644 = vmatpush1.msra.mxu0 %v2579
    %2645 = vmatprep.subr.mxu0 %v2582
    %2646 = vmatpush1.msra.mxu0 %v2581
    %2647 = vmatprep.subr.mxu0 %v2584
    %2648 = vmatpush1.msra.mxu0 %v2583
    %2649 = vmatprep.subr.mxu0 %v2586
    %2650 = vmatpush1.msra.mxu0 %v2585
    %2651 = vmatprep.subr.mxu0 %v2588
    %2652 = vmatpush1.msra.mxu0 %v2587
    %2653 = vmatprep.subr.mxu0 %v2590
    %2654 = vmatpush1.msra.mxu0 %v2589
    %2655 = vmatprep.subr.mxu0 %v2592
    %2656 = vmatpush1.msra.mxu0 %v2591
    %2657 = vmatprep.subr.mxu0 %v2594
    %2658 = vmatpush1.msra.mxu0 %v2593
    %2659 = vmatprep.subr.mxu0 %v2596
    %2660 = vmatpush1.msra.mxu0 %v2595
    %2661 = vmatprep.subr.mxu0 %v2598
    %2662 = vmatpush1.msra.mxu0 %v2597
    %2663 = vmatprep.subr.mxu0 %v2600
    %2664 = vmatpush1.msra.mxu0 %v2599
    %2665 = vmatprep.subr.mxu0 %v2602
    %2666 = vmatpush1.msra.mxu0 %v2601
    %2667 = vmatprep.subr.mxu0 %v2604
    %2668 = vmatpush1.msra.mxu0 %v2603
    %2669 = vmatprep.mubr.f32.mxu0 %v2404
    %2670 = vmatmul.mubr.f32.gmra.mrb[0].mxu0 %v2403
    %v2671 = vpop.f32.mrb[0].mxu0
    %v2672 = vadd.f32 0.0, %v2671
    %v2673 = vpop.f32.mrb[0].mxu0
    %v2674 = vadd.f32 0.0, %v2673
    %2675 = vdwg.mxu0
    %s2676 = scalar_lea.vmem [#allocation11], 8
    %v2677 = vld [vmem:[%s2676] sm:$0xff]
    %v2679 = vsel %vm2386, %v2677, 0
    %2681 = vmatprep.subr.mxu0 %v2674
    %2682 = vmatpush1.msra.mxu0 %v2672
    %2683 = vmatprep.subr.mxu0 0.0
    %2684 = vmatpush1.msra.mxu0 0.0
    %2685 = vmatprep.subr.mxu0 0.0
    %2686 = vmatpush1.msra.mxu0 0.0
    %2687 = vmatprep.subr.mxu0 0.0
    %2688 = vmatpush1.msra.mxu0 0.0
    %2689 = vmatprep.subr.mxu0 0.0
    %2690 = vmatpush1.msra.mxu0 0.0
    %2691 = vmatprep.subr.mxu0 0.0
    %2692 = vmatpush1.msra.mxu0 0.0
    %2693 = vmatprep.subr.mxu0 0.0
    %2694 = vmatpush1.msra.mxu0 0.0
    %2695 = vmatprep.subr.mxu0 0.0
    %2696 = vmatpush1.msra.mxu0 0.0
    %2697 = vmatprep.subr.mxu0 0.0
    %2698 = vmatpush1.msra.mxu0 0.0
    %2699 = vmatprep.subr.mxu0 0.0
    %2700 = vmatpush1.msra.mxu0 0.0
    %2701 = vmatprep.subr.mxu0 0.0
    %2702 = vmatpush1.msra.mxu0 0.0
    %2703 = vmatprep.subr.mxu0 0.0
    %2704 = vmatpush1.msra.mxu0 0.0
    %2705 = vmatprep.subr.mxu0 0.0
    %2706 = vmatpush1.msra.mxu0 0.0
    %2707 = vmatprep.subr.mxu0 0.0
    %2708 = vmatpush1.msra.mxu0 0.0
    %2709 = vmatprep.subr.mxu0 0.0
    %2710 = vmatpush1.msra.mxu0 0.0
    %2711 = vmatprep.subr.mxu0 0.0
    %2712 = vmatpush1.msra.mxu0 0.0
    %2713 = vmatprep.subr.mxu0 0.0
    %2714 = vmatpush1.msra.mxu0 0.0
    %2715 = vmatprep.subr.mxu0 0.0
    %2716 = vmatpush1.msra.mxu0 0.0
    %2717 = vmatprep.subr.mxu0 0.0
    %2718 = vmatpush1.msra.mxu0 0.0
    %2719 = vmatprep.subr.mxu0 0.0
    %2720 = vmatpush1.msra.mxu0 0.0
    %2721 = vmatprep.subr.mxu0 0.0
    %2722 = vmatpush1.msra.mxu0 0.0
    %2723 = vmatprep.subr.mxu0 0.0
    %2724 = vmatpush1.msra.mxu0 0.0
    %2725 = vmatprep.subr.mxu0 0.0
    %2726 = vmatpush1.msra.mxu0 0.0
    %2727 = vmatprep.subr.mxu0 0.0
    %2728 = vmatpush1.msra.mxu0 0.0
    %2729 = vmatprep.subr.mxu0 0.0
    %2730 = vmatpush1.msra.mxu0 0.0
    %2731 = vmatprep.subr.mxu0 0.0
    %2732 = vmatpush1.msra.mxu0 0.0
    %2733 = vmatprep.subr.mxu0 0.0
    %2734 = vmatpush1.msra.mxu0 0.0
    %2735 = vmatprep.subr.mxu0 0.0
    %2736 = vmatpush1.msra.mxu0 0.0
    %2737 = vmatprep.subr.mxu0 0.0
    %2738 = vmatpush1.msra.mxu0 0.0
    %2739 = vmatprep.subr.mxu0 0.0
    %2740 = vmatpush1.msra.mxu0 0.0
    %2741 = vmatprep.subr.mxu0 0.0
    %2742 = vmatpush1.msra.mxu0 0.0
    %2743 = vmatprep.subr.mxu0 0.0
    %2744 = vmatpush1.msra.mxu0 0.0
    %2745 = vmatprep.mubr.f32.mxu0 0.0
    %2746 = vmatmul.mubr.f32.gmra.mrb[0].mxu0 %v2679
    %v2747 = vpop.f32.mrb[0].mxu0
    %v2748 = vadd.f32 0.0, %v2747
    %v2749 = vpop.f32.mrb[0].mxu0
    %v2750 = vadd.f32 0.0, %v2749
    %2751 = vdwg.mxu0
    %v2753 = vsel %vm2386, %v2540, 0
    %2755 = vmatprep.subr.mxu0 %v2538
    %2756 = vmatpush1.msra.mxu0 %v2536
    %2757 = vmatprep.subr.mxu0 0.0
    %2758 = vmatpush1.msra.mxu0 0.0
    %2759 = vmatprep.subr.mxu0 0.0
    %2760 = vmatpush1.msra.mxu0 0.0
    %2761 = vmatprep.subr.mxu0 0.0
    %2762 = vmatpush1.msra.mxu0 0.0
    %2763 = vmatprep.subr.mxu0 0.0
    %2764 = vmatpush1.msra.mxu0 0.0
    %2765 = vmatprep.subr.mxu0 0.0
    %2766 = vmatpush1.msra.mxu0 0.0
    %2767 = vmatprep.subr.mxu0 0.0
    %2768 = vmatpush1.msra.mxu0 0.0
    %2769 = vmatprep.subr.mxu0 0.0
    %2770 = vmatpush1.msra.mxu0 0.0
    %2771 = vmatprep.subr.mxu0 0.0
    %2772 = vmatpush1.msra.mxu0 0.0
    %2773 = vmatprep.subr.mxu0 0.0
    %2774 = vmatpush1.msra.mxu0 0.0
    %2775 = vmatprep.subr.mxu0 0.0
    %2776 = vmatpush1.msra.mxu0 0.0
    %2777 = vmatprep.subr.mxu0 0.0
    %2778 = vmatpush1.msra.mxu0 0.0
    %2779 = vmatprep.subr.mxu0 0.0
    %2780 = vmatpush1.msra.mxu0 0.0
    %2781 = vmatprep.subr.mxu0 0.0
    %2782 = vmatpush1.msra.mxu0 0.0
    %2783 = vmatprep.subr.mxu0 0.0
    %2784 = vmatpush1.msra.mxu0 0.0
    %2785 = vmatprep.subr.mxu0 0.0
    %2786 = vmatpush1.msra.mxu0 0.0
    %2787 = vmatprep.subr.mxu0 0.0
    %2788 = vmatpush1.msra.mxu0 0.0
    %2789 = vmatprep.subr.mxu0 0.0
    %2790 = vmatpush1.msra.mxu0 0.0
    %2791 = vmatprep.subr.mxu0 0.0
    %2792 = vmatpush1.msra.mxu0 0.0
    %2793 = vmatprep.subr.mxu0 0.0
    %2794 = vmatpush1.msra.mxu0 0.0
    %2795 = vmatprep.subr.mxu0 0.0
    %2796 = vmatpush1.msra.mxu0 0.0
    %2797 = vmatprep.subr.mxu0 0.0
    %2798 = vmatpush1.msra.mxu0 0.0
    %2799 = vmatprep.subr.mxu0 0.0
    %2800 = vmatpush1.msra.mxu0 0.0
    %2801 = vmatprep.subr.mxu0 0.0
    %2802 = vmatpush1.msra.mxu0 0.0
    %2803 = vmatprep.subr.mxu0 0.0
    %2804 = vmatpush1.msra.mxu0 0.0
    %2805 = vmatprep.subr.mxu0 0.0
    %2806 = vmatpush1.msra.mxu0 0.0
    %2807 = vmatprep.subr.mxu0 0.0
    %2808 = vmatpush1.msra.mxu0 0.0
    %2809 = vmatprep.subr.mxu0 0.0
    %2810 = vmatpush1.msra.mxu0 0.0
    %2811 = vmatprep.subr.mxu0 0.0
    %2812 = vmatpush1.msra.mxu0 0.0
    %2813 = vmatprep.subr.mxu0 0.0
    %2814 = vmatpush1.msra.mxu0 0.0
    %2815 = vmatprep.subr.mxu0 0.0
    %2816 = vmatpush1.msra.mxu0 0.0
    %2817 = vmatprep.subr.mxu0 0.0
    %2818 = vmatpush1.msra.mxu0 0.0
    %2819 = vmatprep.mubr.f32.mxu0 0.0
    %2820 = vmatmul.mubr.f32.gmra.mrb[0].mxu0 %v2753
    %v2821 = vpop.f32.mrb[0].mxu0
    %v2822 = vadd.f32 %v2748, %v2821
    %v2823 = vpop.f32.mrb[0].mxu0
    %v2824 = vadd.f32 %v2750, %v2823
    %2825 = vdwg.mxu0
    %v2826 = vld [vmem:[%s767] sm:$0xff]
    %v2827 = vld [vmem:[%s767 + $0x8] sm:$0xff]
    %v2828 = vld [vmem:[%s767 + $0x10] sm:$0xff]
    %v2829 = vld [vmem:[%s767 + $0x18] sm:$0xff]
    %v2830 = vld [vmem:[%s767 + $0x20] sm:$0xff]
    %v2831 = vld [vmem:[%s767 + $0x28] sm:$0xff]
    %v2832 = vld [vmem:[%s767 + $0x30] sm:$0xff]
    %v2833 = vld [vmem:[%s767 + $0x38] sm:$0xff]
    %v2834 = vld [vmem:[%s767 + $0x40] sm:$0xff]
    %v2835 = vld [vmem:[%s767 + $0x48] sm:$0xff]
    %v2836 = vld [vmem:[%s767 + $0x50] sm:$0xff]
    %v2837 = vld [vmem:[%s767 + $0x58] sm:$0xff]
    %v2838 = vld [vmem:[%s767 + $0x60] sm:$0xff]
    %v2839 = vld [vmem:[%s767 + $0x68] sm:$0xff]
    %v2840 = vld [vmem:[%s767 + $0x70] sm:$0xff]
    %v2841 = vld [vmem:[%s767 + $0x78] sm:$0xff]
    %v2842 = vld [vmem:[%s767 + $0x80] sm:$0xff]
    %v2843 = vld [vmem:[%s767 + $0x88] sm:$0xff]
    %v2844 = vld [vmem:[%s767 + $0x90] sm:$0xff]
    %v2845 = vld [vmem:[%s767 + $0x98] sm:$0xff]
    %v2846 = vld [vmem:[%s767 + $0xa0] sm:$0xff]
    %v2847 = vld [vmem:[%s767 + $0xa8] sm:$0xff]
    %v2848 = vld [vmem:[%s767 + $0xb0] sm:$0xff]
    %v2849 = vld [vmem:[%s767 + $0xb8] sm:$0xff]
    %v2850 = vld [vmem:[%s767 + $0xc0] sm:$0xff]
    %v2851 = vld [vmem:[%s767 + $0xc8] sm:$0xff]
    %v2852 = vld [vmem:[%s767 + $0xd0] sm:$0xff]
    %v2853 = vld [vmem:[%s767 + $0xd8] sm:$0xff]
    %v2854 = vld [vmem:[%s767 + $0xe0] sm:$0xff]
    %v2855 = vld [vmem:[%s767 + $0xe8] sm:$0xff]
    %v2856 = vld [vmem:[%s767 + $0xf0] sm:$0xff]
    %v2857 = vld [vmem:[%s767 + $0xf8] sm:$0xff]
    %v2858 = vld [vmem:[%s767 + $0x100] sm:$0xff]
    %v2859 = vld [vmem:[%s767 + $0x108] sm:$0xff]
    %v2860 = vld [vmem:[%s767 + $0x110] sm:$0xff]
    %v2861 = vld [vmem:[%s767 + $0x118] sm:$0xff]
    %v2862 = vld [vmem:[%s767 + $0x120] sm:$0xff]
    %v2863 = vld [vmem:[%s767 + $0x128] sm:$0xff]
    %v2864 = vld [vmem:[%s767 + $0x130] sm:$0xff]
    %v2865 = vld [vmem:[%s767 + $0x138] sm:$0xff]
    %v2866 = vld [vmem:[%s767 + $0x140] sm:$0xff]
    %v2867 = vld [vmem:[%s767 + $0x148] sm:$0xff]
    %v2868 = vld [vmem:[%s767 + $0x150] sm:$0xff]
    %v2869 = vld [vmem:[%s767 + $0x158] sm:$0xff]
    %v2870 = vld [vmem:[%s767 + $0x160] sm:$0xff]
    %v2871 = vld [vmem:[%s767 + $0x168] sm:$0xff]
    %v2872 = vld [vmem:[%s767 + $0x170] sm:$0xff]
    %v2873 = vld [vmem:[%s767 + $0x178] sm:$0xff]
    %v2874 = vld [vmem:[%s767 + $0x180] sm:$0xff]
    %v2875 = vld [vmem:[%s767 + $0x188] sm:$0xff]
    %v2876 = vld [vmem:[%s767 + $0x190] sm:$0xff]
    %v2877 = vld [vmem:[%s767 + $0x198] sm:$0xff]
    %v2878 = vld [vmem:[%s767 + $0x1a0] sm:$0xff]
    %v2879 = vld [vmem:[%s767 + $0x1a8] sm:$0xff]
    %v2880 = vld [vmem:[%s767 + $0x1b0] sm:$0xff]
    %v2881 = vld [vmem:[%s767 + $0x1b8] sm:$0xff]
    %v2882 = vld [vmem:[%s767 + $0x1c0] sm:$0xff]
    %v2883 = vld [vmem:[%s767 + $0x1c8] sm:$0xff]
    %v2884 = vld [vmem:[%s767 + $0x1d0] sm:$0xff]
    %v2885 = vld [vmem:[%s767 + $0x1d8] sm:$0xff]
    %v2886 = vld [vmem:[%s767 + $0x1e0] sm:$0xff]
    %v2887 = vld [vmem:[%s767 + $0x1e8] sm:$0xff]
    %v2888 = vld [vmem:[%s767 + $0x1f0] sm:$0xff]
    %v2889 = vld [vmem:[%s767 + $0x1f8] sm:$0xff]
    %2890 = vmatprep.subr.mxu0 %v2827
    %2891 = vmatpush1.msra.mxu0 %v2826
    %2892 = vmatprep.subr.mxu0 %v2829
    %2893 = vmatpush1.msra.mxu0 %v2828
    %2894 = vmatprep.subr.mxu0 %v2831
    %2895 = vmatpush1.msra.mxu0 %v2830
    %2896 = vmatprep.subr.mxu0 %v2833
    %2897 = vmatpush1.msra.mxu0 %v2832
    %2898 = vmatprep.subr.mxu0 %v2835
    %2899 = vmatpush1.msra.mxu0 %v2834
    %2900 = vmatprep.subr.mxu0 %v2837
    %2901 = vmatpush1.msra.mxu0 %v2836
    %2902 = vmatprep.subr.mxu0 %v2839
    %2903 = vmatpush1.msra.mxu0 %v2838
    %2904 = vmatprep.subr.mxu0 %v2841
    %2905 = vmatpush1.msra.mxu0 %v2840
    %2906 = vmatprep.subr.mxu0 %v2843
    %2907 = vmatpush1.msra.mxu0 %v2842
    %2908 = vmatprep.subr.mxu0 %v2845
    %2909 = vmatpush1.msra.mxu0 %v2844
    %2910 = vmatprep.subr.mxu0 %v2847
    %2911 = vmatpush1.msra.mxu0 %v2846
    %2912 = vmatprep.subr.mxu0 %v2849
    %2913 = vmatpush1.msra.mxu0 %v2848
    %2914 = vmatprep.subr.mxu0 %v2851
    %2915 = vmatpush1.msra.mxu0 %v2850
    %2916 = vmatprep.subr.mxu0 %v2853
    %2917 = vmatpush1.msra.mxu0 %v2852
    %2918 = vmatprep.subr.mxu0 %v2855
    %2919 = vmatpush1.msra.mxu0 %v2854
    %2920 = vmatprep.subr.mxu0 %v2857
    %2921 = vmatpush1.msra.mxu0 %v2856
    %2922 = vmatprep.subr.mxu0 %v2859
    %2923 = vmatpush1.msra.mxu0 %v2858
    %2924 = vmatprep.subr.mxu0 %v2861
    %2925 = vmatpush1.msra.mxu0 %v2860
    %2926 = vmatprep.subr.mxu0 %v2863
    %2927 = vmatpush1.msra.mxu0 %v2862
    %2928 = vmatprep.subr.mxu0 %v2865
    %2929 = vmatpush1.msra.mxu0 %v2864
    %2930 = vmatprep.subr.mxu0 %v2867
    %2931 = vmatpush1.msra.mxu0 %v2866
    %2932 = vmatprep.subr.mxu0 %v2869
    %2933 = vmatpush1.msra.mxu0 %v2868
    %2934 = vmatprep.subr.mxu0 %v2871
    %2935 = vmatpush1.msra.mxu0 %v2870
    %2936 = vmatprep.subr.mxu0 %v2873
    %2937 = vmatpush1.msra.mxu0 %v2872
    %2938 = vmatprep.subr.mxu0 %v2875
    %2939 = vmatpush1.msra.mxu0 %v2874
    %2940 = vmatprep.subr.mxu0 %v2877
    %2941 = vmatpush1.msra.mxu0 %v2876
    %2942 = vmatprep.subr.mxu0 %v2879
    %2943 = vmatpush1.msra.mxu0 %v2878
    %2944 = vmatprep.subr.mxu0 %v2881
    %2945 = vmatpush1.msra.mxu0 %v2880
    %2946 = vmatprep.subr.mxu0 %v2883
    %2947 = vmatpush1.msra.mxu0 %v2882
    %2948 = vmatprep.subr.mxu0 %v2885
    %2949 = vmatpush1.msra.mxu0 %v2884
    %2950 = vmatprep.subr.mxu0 %v2887
    %2951 = vmatpush1.msra.mxu0 %v2886
    %2952 = vmatprep.subr.mxu0 %v2889
    %2953 = vmatpush1.msra.mxu0 %v2888
    %2954 = vmatprep.mubr.f32.mxu0 %v2404
    %2955 = vmatmul.mubr.f32.gmra.mrb[0].mxu0 %v2403
    %v2956 = vpop.f32.mrb[0].mxu0
    %v2957 = vadd.f32 0.0, %v2956
    %v2958 = vpop.f32.mrb[0].mxu0
    %v2959 = vadd.f32 0.0, %v2958
    %2960 = vdwg.mxu0
    %s2961 = scalar_lea.vmem [#allocation11], 16
    %v2962 = vld [vmem:[%s2961] sm:$0xff]
    %v2964 = vsel %vm2386, %v2962, 0
    %2966 = vmatprep.subr.mxu0 %v2959
    %2967 = vmatpush1.msra.mxu0 %v2957
    %2968 = vmatprep.subr.mxu0 0.0
    %2969 = vmatpush1.msra.mxu0 0.0
    %2970 = vmatprep.subr.mxu0 0.0
    %2971 = vmatpush1.msra.mxu0 0.0
    %2972 = vmatprep.subr.mxu0 0.0
    %2973 = vmatpush1.msra.mxu0 0.0
    %2974 = vmatprep.subr.mxu0 0.0
    %2975 = vmatpush1.msra.mxu0 0.0
    %2976 = vmatprep.subr.mxu0 0.0
    %2977 = vmatpush1.msra.mxu0 0.0
    %2978 = vmatprep.subr.mxu0 0.0
    %2979 = vmatpush1.msra.mxu0 0.0
    %2980 = vmatprep.subr.mxu0 0.0
    %2981 = vmatpush1.msra.mxu0 0.0
    %2982 = vmatprep.subr.mxu0 0.0
    %2983 = vmatpush1.msra.mxu0 0.0
    %2984 = vmatprep.subr.mxu0 0.0
    %2985 = vmatpush1.msra.mxu0 0.0
    %2986 = vmatprep.subr.mxu0 0.0
    %2987 = vmatpush1.msra.mxu0 0.0
    %2988 = vmatprep.subr.mxu0 0.0
    %2989 = vmatpush1.msra.mxu0 0.0
    %2990 = vmatprep.subr.mxu0 0.0
    %2991 = vmatpush1.msra.mxu0 0.0
    %2992 = vmatprep.subr.mxu0 0.0
    %2993 = vmatpush1.msra.mxu0 0.0
    %2994 = vmatprep.subr.mxu0 0.0
    %2995 = vmatpush1.msra.mxu0 0.0
    %2996 = vmatprep.subr.mxu0 0.0
    %2997 = vmatpush1.msra.mxu0 0.0
    %2998 = vmatprep.subr.mxu0 0.0
    %2999 = vmatpush1.msra.mxu0 0.0
    %3000 = vmatprep.subr.mxu0 0.0
    %3001 = vmatpush1.msra.mxu0 0.0
    %3002 = vmatprep.subr.mxu0 0.0
    %3003 = vmatpush1.msra.mxu0 0.0
    %3004 = vmatprep.subr.mxu0 0.0
    %3005 = vmatpush1.msra.mxu0 0.0
    %3006 = vmatprep.subr.mxu0 0.0
    %3007 = vmatpush1.msra.mxu0 0.0
    %3008 = vmatprep.subr.mxu0 0.0
    %3009 = vmatpush1.msra.mxu0 0.0
    %3010 = vmatprep.subr.mxu0 0.0
    %3011 = vmatpush1.msra.mxu0 0.0
    %3012 = vmatprep.subr.mxu0 0.0
    %3013 = vmatpush1.msra.mxu0 0.0
    %3014 = vmatprep.subr.mxu0 0.0
    %3015 = vmatpush1.msra.mxu0 0.0
    %3016 = vmatprep.subr.mxu0 0.0
    %3017 = vmatpush1.msra.mxu0 0.0
    %3018 = vmatprep.subr.mxu0 0.0
    %3019 = vmatpush1.msra.mxu0 0.0
    %3020 = vmatprep.subr.mxu0 0.0
    %3021 = vmatpush1.msra.mxu0 0.0
    %3022 = vmatprep.subr.mxu0 0.0
    %3023 = vmatpush1.msra.mxu0 0.0
    %3024 = vmatprep.subr.mxu0 0.0
    %3025 = vmatpush1.msra.mxu0 0.0
    %3026 = vmatprep.subr.mxu0 0.0
    %3027 = vmatpush1.msra.mxu0 0.0
    %3028 = vmatprep.subr.mxu0 0.0
    %3029 = vmatpush1.msra.mxu0 0.0
    %3030 = vmatprep.mubr.f32.mxu0 0.0
    %3031 = vmatmul.mubr.f32.gmra.mrb[0].mxu0 %v2964
    %v3032 = vpop.f32.mrb[0].mxu0
    %v3033 = vadd.f32 0.0, %v3032
    %v3034 = vpop.f32.mrb[0].mxu0
    %v3035 = vadd.f32 0.0, %v3034
    %3036 = vdwg.mxu0
    %v3037 = vadd.f32 %v2822, %v3033
    %v3038 = vadd.f32 %v2824, %v3035
    %v3039 = vld [vmem:[%s987] sm:$0xff]
    %v3040 = vld [vmem:[%s987 + $0x8] sm:$0xff]
    %v3041 = vld [vmem:[%s987 + $0x10] sm:$0xff]
    %v3042 = vld [vmem:[%s987 + $0x18] sm:$0xff]
    %v3043 = vld [vmem:[%s987 + $0x20] sm:$0xff]
    %v3044 = vld [vmem:[%s987 + $0x28] sm:$0xff]
    %v3045 = vld [vmem:[%s987 + $0x30] sm:$0xff]
    %v3046 = vld [vmem:[%s987 + $0x38] sm:$0xff]
    %v3047 = vld [vmem:[%s987 + $0x40] sm:$0xff]
    %v3048 = vld [vmem:[%s987 + $0x48] sm:$0xff]
    %v3049 = vld [vmem:[%s987 + $0x50] sm:$0xff]
    %v3050 = vld [vmem:[%s987 + $0x58] sm:$0xff]
    %v3051 = vld [vmem:[%s987 + $0x60] sm:$0xff]
    %v3052 = vld [vmem:[%s987 + $0x68] sm:$0xff]
    %v3053 = vld [vmem:[%s987 + $0x70] sm:$0xff]
    %v3054 = vld [vmem:[%s987 + $0x78] sm:$0xff]
    %v3055 = vld [vmem:[%s987 + $0x80] sm:$0xff]
    %v3056 = vld [vmem:[%s987 + $0x88] sm:$0xff]
    %v3057 = vld [vmem:[%s987 + $0x90] sm:$0xff]
    %v3058 = vld [vmem:[%s987 + $0x98] sm:$0xff]
    %v3059 = vld [vmem:[%s987 + $0xa0] sm:$0xff]
    %v3060 = vld [vmem:[%s987 + $0xa8] sm:$0xff]
    %v3061 = vld [vmem:[%s987 + $0xb0] sm:$0xff]
    %v3062 = vld [vmem:[%s987 + $0xb8] sm:$0xff]
    %v3063 = vld [vmem:[%s987 + $0xc0] sm:$0xff]
    %v3064 = vld [vmem:[%s987 + $0xc8] sm:$0xff]
    %v3065 = vld [vmem:[%s987 + $0xd0] sm:$0xff]
    %v3066 = vld [vmem:[%s987 + $0xd8] sm:$0xff]
    %v3067 = vld [vmem:[%s987 + $0xe0] sm:$0xff]
    %v3068 = vld [vmem:[%s987 + $0xe8] sm:$0xff]
    %v3069 = vld [vmem:[%s987 + $0xf0] sm:$0xff]
    %v3070 = vld [vmem:[%s987 + $0xf8] sm:$0xff]
    %v3071 = vld [vmem:[%s987 + $0x100] sm:$0xff]
    %v3072 = vld [vmem:[%s987 + $0x108] sm:$0xff]
    %v3073 = vld [vmem:[%s987 + $0x110] sm:$0xff]
    %v3074 = vld [vmem:[%s987 + $0x118] sm:$0xff]
    %v3075 = vld [vmem:[%s987 + $0x120] sm:$0xff]
    %v3076 = vld [vmem:[%s987 + $0x128] sm:$0xff]
    %v3077 = vld [vmem:[%s987 + $0x130] sm:$0xff]
    %v3078 = vld [vmem:[%s987 + $0x138] sm:$0xff]
    %v3079 = vld [vmem:[%s987 + $0x140] sm:$0xff]
    %v3080 = vld [vmem:[%s987 + $0x148] sm:$0xff]
    %v3081 = vld [vmem:[%s987 + $0x150] sm:$0xff]
    %v3082 = vld [vmem:[%s987 + $0x158] sm:$0xff]
    %v3083 = vld [vmem:[%s987 + $0x160] sm:$0xff]
    %v3084 = vld [vmem:[%s987 + $0x168] sm:$0xff]
    %v3085 = vld [vmem:[%s987 + $0x170] sm:$0xff]
    %v3086 = vld [vmem:[%s987 + $0x178] sm:$0xff]
    %v3087 = vld [vmem:[%s987 + $0x180] sm:$0xff]
    %v3088 = vld [vmem:[%s987 + $0x188] sm:$0xff]
    %v3089 = vld [vmem:[%s987 + $0x190] sm:$0xff]
    %v3090 = vld [vmem:[%s987 + $0x198] sm:$0xff]
    %v3091 = vld [vmem:[%s987 + $0x1a0] sm:$0xff]
    %v3092 = vld [vmem:[%s987 + $0x1a8] sm:$0xff]
    %v3093 = vld [vmem:[%s987 + $0x1b0] sm:$0xff]
    %v3094 = vld [vmem:[%s987 + $0x1b8] sm:$0xff]
    %v3095 = vld [vmem:[%s987 + $0x1c0] sm:$0xff]
    %v3096 = vld [vmem:[%s987 + $0x1c8] sm:$0xff]
    %v3097 = vld [vmem:[%s987 + $0x1d0] sm:$0xff]
    %v3098 = vld [vmem:[%s987 + $0x1d8] sm:$0xff]
    %v3099 = vld [vmem:[%s987 + $0x1e0] sm:$0xff]
    %v3100 = vld [vmem:[%s987 + $0x1e8] sm:$0xff]
    %v3101 = vld [vmem:[%s987 + $0x1f0] sm:$0xff]
    %v3102 = vld [vmem:[%s987 + $0x1f8] sm:$0xff]
    %3103 = vmatprep.subr.mxu0 %v3040
    %3104 = vmatpush1.msra.mxu0 %v3039
    %3105 = vmatprep.subr.mxu0 %v3042
    %3106 = vmatpush1.msra.mxu0 %v3041
    %3107 = vmatprep.subr.mxu0 %v3044
    %3108 = vmatpush1.msra.mxu0 %v3043
    %3109 = vmatprep.subr.mxu0 %v3046
    %3110 = vmatpush1.msra.mxu0 %v3045
    %3111 = vmatprep.subr.mxu0 %v3048
    %3112 = vmatpush1.msra.mxu0 %v3047
    %3113 = vmatprep.subr.mxu0 %v3050
    %3114 = vmatpush1.msra.mxu0 %v3049
    %3115 = vmatprep.subr.mxu0 %v3052
    %3116 = vmatpush1.msra.mxu0 %v3051
    %3117 = vmatprep.subr.mxu0 %v3054
    %3118 = vmatpush1.msra.mxu0 %v3053
    %3119 = vmatprep.subr.mxu0 %v3056
    %3120 = vmatpush1.msra.mxu0 %v3055
    %3121 = vmatprep.subr.mxu0 %v3058
    %3122 = vmatpush1.msra.mxu0 %v3057
    %3123 = vmatprep.subr.mxu0 %v3060
    %3124 = vmatpush1.msra.mxu0 %v3059
    %3125 = vmatprep.subr.mxu0 %v3062
    %3126 = vmatpush1.msra.mxu0 %v3061
    %3127 = vmatprep.subr.mxu0 %v3064
    %3128 = vmatpush1.msra.mxu0 %v3063
    %3129 = vmatprep.subr.mxu0 %v3066
    %3130 = vmatpush1.msra.mxu0 %v3065
    %3131 = vmatprep.subr.mxu0 %v3068
    %3132 = vmatpush1.msra.mxu0 %v3067
    %3133 = vmatprep.subr.mxu0 %v3070
    %3134 = vmatpush1.msra.mxu0 %v3069
    %3135 = vmatprep.subr.mxu0 %v3072
    %3136 = vmatpush1.msra.mxu0 %v3071
    %3137 = vmatprep.subr.mxu0 %v3074
    %3138 = vmatpush1.msra.mxu0 %v3073
    %3139 = vmatprep.subr.mxu0 %v3076
    %3140 = vmatpush1.msra.mxu0 %v3075
    %3141 = vmatprep.subr.mxu0 %v3078
    %3142 = vmatpush1.msra.mxu0 %v3077
    %3143 = vmatprep.subr.mxu0 %v3080
    %3144 = vmatpush1.msra.mxu0 %v3079
    %3145 = vmatprep.subr.mxu0 %v3082
    %3146 = vmatpush1.msra.mxu0 %v3081
    %3147 = vmatprep.subr.mxu0 %v3084
    %3148 = vmatpush1.msra.mxu0 %v3083
    %3149 = vmatprep.subr.mxu0 %v3086
    %3150 = vmatpush1.msra.mxu0 %v3085
    %3151 = vmatprep.subr.mxu0 %v3088
    %3152 = vmatpush1.msra.mxu0 %v3087
    %3153 = vmatprep.subr.mxu0 %v3090
    %3154 = vmatpush1.msra.mxu0 %v3089
    %3155 = vmatprep.subr.mxu0 %v3092
    %3156 = vmatpush1.msra.mxu0 %v3091
    %3157 = vmatprep.subr.mxu0 %v3094
    %3158 = vmatpush1.msra.mxu0 %v3093
    %3159 = vmatprep.subr.mxu0 %v3096
    %3160 = vmatpush1.msra.mxu0 %v3095
    %3161 = vmatprep.subr.mxu0 %v3098
    %3162 = vmatpush1.msra.mxu0 %v3097
    %3163 = vmatprep.subr.mxu0 %v3100
    %3164 = vmatpush1.msra.mxu0 %v3099
    %3165 = vmatprep.subr.mxu0 %v3102
    %3166 = vmatpush1.msra.mxu0 %v3101
    %3167 = vmatprep.mubr.f32.mxu0 %v2404
    %3168 = vmatmul.mubr.f32.gmra.mrb[0].mxu0 %v2403
    %v3169 = vpop.f32.mrb[0].mxu0
    %v3170 = vadd.f32 0.0, %v3169
    %v3171 = vpop.f32.mrb[0].mxu0
    %v3172 = vadd.f32 0.0, %v3171
    %3173 = vdwg.mxu0
    %s3174 = scalar_lea.vmem [#allocation11], 24
    %v3175 = vld [vmem:[%s3174] sm:$0xff]
    %v3177 = vsel %vm2386, %v3175, 0
    %3179 = vmatprep.subr.mxu0 %v3172
    %3180 = vmatpush1.msra.mxu0 %v3170
    %3181 = vmatprep.subr.mxu0 0.0
    %3182 = vmatpush1.msra.mxu0 0.0
    %3183 = vmatprep.subr.mxu0 0.0
    %3184 = vmatpush1.msra.mxu0 0.0
    %3185 = vmatprep.subr.mxu0 0.0
    %3186 = vmatpush1.msra.mxu0 0.0
    %3187 = vmatprep.subr.mxu0 0.0
    %3188 = vmatpush1.msra.mxu0 0.0
    %3189 = vmatprep.subr.mxu0 0.0
    %3190 = vmatpush1.msra.mxu0 0.0
    %3191 = vmatprep.subr.mxu0 0.0
    %3192 = vmatpush1.msra.mxu0 0.0
    %3193 = vmatprep.subr.mxu0 0.0
    %3194 = vmatpush1.msra.mxu0 0.0
    %3195 = vmatprep.subr.mxu0 0.0
    %3196 = vmatpush1.msra.mxu0 0.0
    %3197 = vmatprep.subr.mxu0 0.0
    %3198 = vmatpush1.msra.mxu0 0.0
    %3199 = vmatprep.subr.mxu0 0.0
    %3200 = vmatpush1.msra.mxu0 0.0
    %3201 = vmatprep.subr.mxu0 0.0
    %3202 = vmatpush1.msra.mxu0 0.0
    %3203 = vmatprep.subr.mxu0 0.0
    %3204 = vmatpush1.msra.mxu0 0.0
    %3205 = vmatprep.subr.mxu0 0.0
    %3206 = vmatpush1.msra.mxu0 0.0
    %3207 = vmatprep.subr.mxu0 0.0
    %3208 = vmatpush1.msra.mxu0 0.0
    %3209 = vmatprep.subr.mxu0 0.0
    %3210 = vmatpush1.msra.mxu0 0.0
    %3211 = vmatprep.subr.mxu0 0.0
    %3212 = vmatpush1.msra.mxu0 0.0
    %3213 = vmatprep.subr.mxu0 0.0
    %3214 = vmatpush1.msra.mxu0 0.0
    %3215 = vmatprep.subr.mxu0 0.0
    %3216 = vmatpush1.msra.mxu0 0.0
    %3217 = vmatprep.subr.mxu0 0.0
    %3218 = vmatpush1.msra.mxu0 0.0
    %3219 = vmatprep.subr.mxu0 0.0
    %3220 = vmatpush1.msra.mxu0 0.0
    %3221 = vmatprep.subr.mxu0 0.0
    %3222 = vmatpush1.msra.mxu0 0.0
    %3223 = vmatprep.subr.mxu0 0.0
    %3224 = vmatpush1.msra.mxu0 0.0
    %3225 = vmatprep.subr.mxu0 0.0
    %3226 = vmatpush1.msra.mxu0 0.0
    %3227 = vmatprep.subr.mxu0 0.0
    %3228 = vmatpush1.msra.mxu0 0.0
    %3229 = vmatprep.subr.mxu0 0.0
    %3230 = vmatpush1.msra.mxu0 0.0
    %3231 = vmatprep.subr.mxu0 0.0
    %3232 = vmatpush1.msra.mxu0 0.0
    %3233 = vmatprep.subr.mxu0 0.0
    %3234 = vmatpush1.msra.mxu0 0.0
    %3235 = vmatprep.subr.mxu0 0.0
    %3236 = vmatpush1.msra.mxu0 0.0
    %3237 = vmatprep.subr.mxu0 0.0
    %3238 = vmatpush1.msra.mxu0 0.0
    %3239 = vmatprep.subr.mxu0 0.0
    %3240 = vmatpush1.msra.mxu0 0.0
    %3241 = vmatprep.subr.mxu0 0.0
    %3242 = vmatpush1.msra.mxu0 0.0
    %3243 = vmatprep.mubr.f32.mxu0 0.0
    %3244 = vmatmul.mubr.f32.gmra.mrb[0].mxu0 %v3177
    %v3245 = vpop.f32.mrb[0].mxu0
    %v3246 = vadd.f32 0.0, %v3245
    %v3247 = vpop.f32.mrb[0].mxu0
    %v3248 = vadd.f32 0.0, %v3247
    %3249 = vdwg.mxu0
    %v3250 = vadd.f32 %v3037, %v3246
    %v3251 = vadd.f32 %v3038, %v3248
    %v3252 = vld [vmem:[%s1207] sm:$0xff]
    %v3253 = vld [vmem:[%s1207 + $0x8] sm:$0xff]
    %v3254 = vld [vmem:[%s1207 + $0x10] sm:$0xff]
    %v3255 = vld [vmem:[%s1207 + $0x18] sm:$0xff]
    %v3256 = vld [vmem:[%s1207 + $0x20] sm:$0xff]
    %v3257 = vld [vmem:[%s1207 + $0x28] sm:$0xff]
    %v3258 = vld [vmem:[%s1207 + $0x30] sm:$0xff]
    %v3259 = vld [vmem:[%s1207 + $0x38] sm:$0xff]
    %v3260 = vld [vmem:[%s1207 + $0x40] sm:$0xff]
    %v3261 = vld [vmem:[%s1207 + $0x48] sm:$0xff]
    %v3262 = vld [vmem:[%s1207 + $0x50] sm:$0xff]
    %v3263 = vld [vmem:[%s1207 + $0x58] sm:$0xff]
    %v3264 = vld [vmem:[%s1207 + $0x60] sm:$0xff]
    %v3265 = vld [vmem:[%s1207 + $0x68] sm:$0xff]
    %v3266 = vld [vmem:[%s1207 + $0x70] sm:$0xff]
    %v3267 = vld [vmem:[%s1207 + $0x78] sm:$0xff]
    %v3268 = vld [vmem:[%s1207 + $0x80] sm:$0xff]
    %v3269 = vld [vmem:[%s1207 + $0x88] sm:$0xff]
    %v3270 = vld [vmem:[%s1207 + $0x90] sm:$0xff]
    %v3271 = vld [vmem:[%s1207 + $0x98] sm:$0xff]
    %v3272 = vld [vmem:[%s1207 + $0xa0] sm:$0xff]
    %v3273 = vld [vmem:[%s1207 + $0xa8] sm:$0xff]
    %v3274 = vld [vmem:[%s1207 + $0xb0] sm:$0xff]
    %v3275 = vld [vmem:[%s1207 + $0xb8] sm:$0xff]
    %v3276 = vld [vmem:[%s1207 + $0xc0] sm:$0xff]
    %v3277 = vld [vmem:[%s1207 + $0xc8] sm:$0xff]
    %v3278 = vld [vmem:[%s1207 + $0xd0] sm:$0xff]
    %v3279 = vld [vmem:[%s1207 + $0xd8] sm:$0xff]
    %v3280 = vld [vmem:[%s1207 + $0xe0] sm:$0xff]
    %v3281 = vld [vmem:[%s1207 + $0xe8] sm:$0xff]
    %v3282 = vld [vmem:[%s1207 + $0xf0] sm:$0xff]
    %v3283 = vld [vmem:[%s1207 + $0xf8] sm:$0xff]
    %v3284 = vld [vmem:[%s1207 + $0x100] sm:$0xff]
    %v3285 = vld [vmem:[%s1207 + $0x108] sm:$0xff]
    %v3286 = vld [vmem:[%s1207 + $0x110] sm:$0xff]
    %v3287 = vld [vmem:[%s1207 + $0x118] sm:$0xff]
    %v3288 = vld [vmem:[%s1207 + $0x120] sm:$0xff]
    %v3289 = vld [vmem:[%s1207 + $0x128] sm:$0xff]
    %v3290 = vld [vmem:[%s1207 + $0x130] sm:$0xff]
    %v3291 = vld [vmem:[%s1207 + $0x138] sm:$0xff]
    %v3292 = vld [vmem:[%s1207 + $0x140] sm:$0xff]
    %v3293 = vld [vmem:[%s1207 + $0x148] sm:$0xff]
    %v3294 = vld [vmem:[%s1207 + $0x150] sm:$0xff]
    %v3295 = vld [vmem:[%s1207 + $0x158] sm:$0xff]
    %v3296 = vld [vmem:[%s1207 + $0x160] sm:$0xff]
    %v3297 = vld [vmem:[%s1207 + $0x168] sm:$0xff]
    %v3298 = vld [vmem:[%s1207 + $0x170] sm:$0xff]
    %v3299 = vld [vmem:[%s1207 + $0x178] sm:$0xff]
    %v3300 = vld [vmem:[%s1207 + $0x180] sm:$0xff]
    %v3301 = vld [vmem:[%s1207 + $0x188] sm:$0xff]
    %v3302 = vld [vmem:[%s1207 + $0x190] sm:$0xff]
    %v3303 = vld [vmem:[%s1207 + $0x198] sm:$0xff]
    %v3304 = vld [vmem:[%s1207 + $0x1a0] sm:$0xff]
    %v3305 = vld [vmem:[%s1207 + $0x1a8] sm:$0xff]
    %v3306 = vld [vmem:[%s1207 + $0x1b0] sm:$0xff]
    %v3307 = vld [vmem:[%s1207 + $0x1b8] sm:$0xff]
    %v3308 = vld [vmem:[%s1207 + $0x1c0] sm:$0xff]
    %v3309 = vld [vmem:[%s1207 + $0x1c8] sm:$0xff]
    %v3310 = vld [vmem:[%s1207 + $0x1d0] sm:$0xff]
    %v3311 = vld [vmem:[%s1207 + $0x1d8] sm:$0xff]
    %v3312 = vld [vmem:[%s1207 + $0x1e0] sm:$0xff]
    %v3313 = vld [vmem:[%s1207 + $0x1e8] sm:$0xff]
    %v3314 = vld [vmem:[%s1207 + $0x1f0] sm:$0xff]
    %v3315 = vld [vmem:[%s1207 + $0x1f8] sm:$0xff]
    %3316 = vmatprep.subr.mxu0 %v3253
    %3317 = vmatpush1.msra.mxu0 %v3252
    %3318 = vmatprep.subr.mxu0 %v3255
    %3319 = vmatpush1.msra.mxu0 %v3254
    %3320 = vmatprep.subr.mxu0 %v3257
    %3321 = vmatpush1.msra.mxu0 %v3256
    %3322 = vmatprep.subr.mxu0 %v3259
    %3323 = vmatpush1.msra.mxu0 %v3258
    %3324 = vmatprep.subr.mxu0 %v3261
    %3325 = vmatpush1.msra.mxu0 %v3260
    %3326 = vmatprep.subr.mxu0 %v3263
    %3327 = vmatpush1.msra.mxu0 %v3262
    %3328 = vmatprep.subr.mxu0 %v3265
    %3329 = vmatpush1.msra.mxu0 %v3264
    %3330 = vmatprep.subr.mxu0 %v3267
    %3331 = vmatpush1.msra.mxu0 %v3266
    %3332 = vmatprep.subr.mxu0 %v3269
    %3333 = vmatpush1.msra.mxu0 %v3268
    %3334 = vmatprep.subr.mxu0 %v3271
    %3335 = vmatpush1.msra.mxu0 %v3270
    %3336 = vmatprep.subr.mxu0 %v3273
    %3337 = vmatpush1.msra.mxu0 %v3272
    %3338 = vmatprep.subr.mxu0 %v3275
    %3339 = vmatpush1.msra.mxu0 %v3274
    %3340 = vmatprep.subr.mxu0 %v3277
    %3341 = vmatpush1.msra.mxu0 %v3276
    %3342 = vmatprep.subr.mxu0 %v3279
    %3343 = vmatpush1.msra.mxu0 %v3278
    %3344 = vmatprep.subr.mxu0 %v3281
    %3345 = vmatpush1.msra.mxu0 %v3280
    %3346 = vmatprep.subr.mxu0 %v3283
    %3347 = vmatpush1.msra.mxu0 %v3282
    %3348 = vmatprep.subr.mxu0 %v3285
    %3349 = vmatpush1.msra.mxu0 %v3284
    %3350 = vmatprep.subr.mxu0 %v3287
    %3351 = vmatpush1.msra.mxu0 %v3286
    %3352 = vmatprep.subr.mxu0 %v3289
    %3353 = vmatpush1.msra.mxu0 %v3288
    %3354 = vmatprep.subr.mxu0 %v3291
    %3355 = vmatpush1.msra.mxu0 %v3290
    %3356 = vmatprep.subr.mxu0 %v3293
    %3357 = vmatpush1.msra.mxu0 %v3292
    %3358 = vmatprep.subr.mxu0 %v3295
    %3359 = vmatpush1.msra.mxu0 %v3294
    %3360 = vmatprep.subr.mxu0 %v3297
    %3361 = vmatpush1.msra.mxu0 %v3296
    %3362 = vmatprep.subr.mxu0 %v3299
    %3363 = vmatpush1.msra.mxu0 %v3298
    %3364 = vmatprep.subr.mxu0 %v3301
    %3365 = vmatpush1.msra.mxu0 %v3300
    %3366 = vmatprep.subr.mxu0 %v3303
    %3367 = vmatpush1.msra.mxu0 %v3302
    %3368 = vmatprep.subr.mxu0 %v3305
    %3369 = vmatpush1.msra.mxu0 %v3304
    %3370 = vmatprep.subr.mxu0 %v3307
    %3371 = vmatpush1.msra.mxu0 %v3306
    %3372 = vmatprep.subr.mxu0 %v3309
    %3373 = vmatpush1.msra.mxu0 %v3308
    %3374 = vmatprep.subr.mxu0 %v3311
    %3375 = vmatpush1.msra.mxu0 %v3310
    %3376 = vmatprep.subr.mxu0 %v3313
    %3377 = vmatpush1.msra.mxu0 %v3312
    %3378 = vmatprep.subr.mxu0 %v3315
    %3379 = vmatpush1.msra.mxu0 %v3314
    %3380 = vmatprep.mubr.f32.mxu0 %v2404
    %3381 = vmatmul.mubr.f32.gmra.mrb[0].mxu0 %v2403
    %v3382 = vpop.f32.mrb[0].mxu0
    %v3383 = vadd.f32 0.0, %v3382
    %v3384 = vpop.f32.mrb[0].mxu0
    %v3385 = vadd.f32 0.0, %v3384
    %3386 = vdwg.mxu0
    %s3387 = scalar_lea.vmem [#allocation11], 32
    %v3388 = vld [vmem:[%s3387] sm:$0xff]
    %v3390 = vsel %vm2386, %v3388, 0
    %3392 = vmatprep.subr.mxu0 %v3385
    %3393 = vmatpush1.msra.mxu0 %v3383
    %3394 = vmatprep.subr.mxu0 0.0
    %3395 = vmatpush1.msra.mxu0 0.0
    %3396 = vmatprep.subr.mxu0 0.0
    %3397 = vmatpush1.msra.mxu0 0.0
    %3398 = vmatprep.subr.mxu0 0.0
    %3399 = vmatpush1.msra.mxu0 0.0
    %3400 = vmatprep.subr.mxu0 0.0
    %3401 = vmatpush1.msra.mxu0 0.0
    %3402 = vmatprep.subr.mxu0 0.0
    %3403 = vmatpush1.msra.mxu0 0.0
    %3404 = vmatprep.subr.mxu0 0.0
    %3405 = vmatpush1.msra.mxu0 0.0
    %3406 = vmatprep.subr.mxu0 0.0
    %3407 = vmatpush1.msra.mxu0 0.0
    %3408 = vmatprep.subr.mxu0 0.0
    %3409 = vmatpush1.msra.mxu0 0.0
    %3410 = vmatprep.subr.mxu0 0.0
    %3411 = vmatpush1.msra.mxu0 0.0
    %3412 = vmatprep.subr.mxu0 0.0
    %3413 = vmatpush1.msra.mxu0 0.0
    %3414 = vmatprep.subr.mxu0 0.0
    %3415 = vmatpush1.msra.mxu0 0.0
    %3416 = vmatprep.subr.mxu0 0.0
    %3417 = vmatpush1.msra.mxu0 0.0
    %3418 = vmatprep.subr.mxu0 0.0
    %3419 = vmatpush1.msra.mxu0 0.0
    %3420 = vmatprep.subr.mxu0 0.0
    %3421 = vmatpush1.msra.mxu0 0.0
    %3422 = vmatprep.subr.mxu0 0.0
    %3423 = vmatpush1.msra.mxu0 0.0
    %3424 = vmatprep.subr.mxu0 0.0
    %3425 = vmatpush1.msra.mxu0 0.0
    %3426 = vmatprep.subr.mxu0 0.0
    %3427 = vmatpush1.msra.mxu0 0.0
    %3428 = vmatprep.subr.mxu0 0.0
    %3429 = vmatpush1.msra.mxu0 0.0
    %3430 = vmatprep.subr.mxu0 0.0
    %3431 = vmatpush1.msra.mxu0 0.0
    %3432 = vmatprep.subr.mxu0 0.0
    %3433 = vmatpush1.msra.mxu0 0.0
    %3434 = vmatprep.subr.mxu0 0.0
    %3435 = vmatpush1.msra.mxu0 0.0
    %3436 = vmatprep.subr.mxu0 0.0
    %3437 = vmatpush1.msra.mxu0 0.0
    %3438 = vmatprep.subr.mxu0 0.0
    %3439 = vmatpush1.msra.mxu0 0.0
    %3440 = vmatprep.subr.mxu0 0.0
    %3441 = vmatpush1.msra.mxu0 0.0
    %3442 = vmatprep.subr.mxu0 0.0
    %3443 = vmatpush1.msra.mxu0 0.0
    %3444 = vmatprep.subr.mxu0 0.0
    %3445 = vmatpush1.msra.mxu0 0.0
    %3446 = vmatprep.subr.mxu0 0.0
    %3447 = vmatpush1.msra.mxu0 0.0
    %3448 = vmatprep.subr.mxu0 0.0
    %3449 = vmatpush1.msra.mxu0 0.0
    %3450 = vmatprep.subr.mxu0 0.0
    %3451 = vmatpush1.msra.mxu0 0.0
    %3452 = vmatprep.subr.mxu0 0.0
    %3453 = vmatpush1.msra.mxu0 0.0
    %3454 = vmatprep.subr.mxu0 0.0
    %3455 = vmatpush1.msra.mxu0 0.0
    %3456 = vmatprep.mubr.f32.mxu0 0.0
    %3457 = vmatmul.mubr.f32.gmra.mrb[0].mxu0 %v3390
    %v3458 = vpop.f32.mrb[0].mxu0
    %v3459 = vadd.f32 0.0, %v3458
    %v3460 = vpop.f32.mrb[0].mxu0
    %v3461 = vadd.f32 0.0, %v3460
    %3462 = vdwg.mxu0
    %v3463 = vadd.f32 %v3250, %v3459
    %v3464 = vadd.f32 %v3251, %v3461
    %v3465 = vld [vmem:[%s1427] sm:$0xff]
    %v3466 = vld [vmem:[%s1427 + $0x8] sm:$0xff]
    %v3467 = vld [vmem:[%s1427 + $0x10] sm:$0xff]
    %v3468 = vld [vmem:[%s1427 + $0x18] sm:$0xff]
    %v3469 = vld [vmem:[%s1427 + $0x20] sm:$0xff]
    %v3470 = vld [vmem:[%s1427 + $0x28] sm:$0xff]
    %v3471 = vld [vmem:[%s1427 + $0x30] sm:$0xff]
    %v3472 = vld [vmem:[%s1427 + $0x38] sm:$0xff]
    %v3473 = vld [vmem:[%s1427 + $0x40] sm:$0xff]
    %v3474 = vld [vmem:[%s1427 + $0x48] sm:$0xff]
    %v3475 = vld [vmem:[%s1427 + $0x50] sm:$0xff]
    %v3476 = vld [vmem:[%s1427 + $0x58] sm:$0xff]
    %v3477 = vld [vmem:[%s1427 + $0x60] sm:$0xff]
    %v3478 = vld [vmem:[%s1427 + $0x68] sm:$0xff]
    %v3479 = vld [vmem:[%s1427 + $0x70] sm:$0xff]
    %v3480 = vld [vmem:[%s1427 + $0x78] sm:$0xff]
    %v3481 = vld [vmem:[%s1427 + $0x80] sm:$0xff]
    %v3482 = vld [vmem:[%s1427 + $0x88] sm:$0xff]
    %v3483 = vld [vmem:[%s1427 + $0x90] sm:$0xff]
    %v3484 = vld [vmem:[%s1427 + $0x98] sm:$0xff]
    %v3485 = vld [vmem:[%s1427 + $0xa0] sm:$0xff]
    %v3486 = vld [vmem:[%s1427 + $0xa8] sm:$0xff]
    %v3487 = vld [vmem:[%s1427 + $0xb0] sm:$0xff]
    %v3488 = vld [vmem:[%s1427 + $0xb8] sm:$0xff]
    %v3489 = vld [vmem:[%s1427 + $0xc0] sm:$0xff]
    %v3490 = vld [vmem:[%s1427 + $0xc8] sm:$0xff]
    %v3491 = vld [vmem:[%s1427 + $0xd0] sm:$0xff]
    %v3492 = vld [vmem:[%s1427 + $0xd8] sm:$0xff]
    %v3493 = vld [vmem:[%s1427 + $0xe0] sm:$0xff]
    %v3494 = vld [vmem:[%s1427 + $0xe8] sm:$0xff]
    %v3495 = vld [vmem:[%s1427 + $0xf0] sm:$0xff]
    %v3496 = vld [vmem:[%s1427 + $0xf8] sm:$0xff]
    %v3497 = vld [vmem:[%s1427 + $0x100] sm:$0xff]
    %v3498 = vld [vmem:[%s1427 + $0x108] sm:$0xff]
    %v3499 = vld [vmem:[%s1427 + $0x110] sm:$0xff]
    %v3500 = vld [vmem:[%s1427 + $0x118] sm:$0xff]
    %v3501 = vld [vmem:[%s1427 + $0x120] sm:$0xff]
    %v3502 = vld [vmem:[%s1427 + $0x128] sm:$0xff]
    %v3503 = vld [vmem:[%s1427 + $0x130] sm:$0xff]
    %v3504 = vld [vmem:[%s1427 + $0x138] sm:$0xff]
    %v3505 = vld [vmem:[%s1427 + $0x140] sm:$0xff]
    %v3506 = vld [vmem:[%s1427 + $0x148] sm:$0xff]
    %v3507 = vld [vmem:[%s1427 + $0x150] sm:$0xff]
    %v3508 = vld [vmem:[%s1427 + $0x158] sm:$0xff]
    %v3509 = vld [vmem:[%s1427 + $0x160] sm:$0xff]
    %v3510 = vld [vmem:[%s1427 + $0x168] sm:$0xff]
    %v3511 = vld [vmem:[%s1427 + $0x170] sm:$0xff]
    %v3512 = vld [vmem:[%s1427 + $0x178] sm:$0xff]
    %v3513 = vld [vmem:[%s1427 + $0x180] sm:$0xff]
    %v3514 = vld [vmem:[%s1427 + $0x188] sm:$0xff]
    %v3515 = vld [vmem:[%s1427 + $0x190] sm:$0xff]
    %v3516 = vld [vmem:[%s1427 + $0x198] sm:$0xff]
    %v3517 = vld [vmem:[%s1427 + $0x1a0] sm:$0xff]
    %v3518 = vld [vmem:[%s1427 + $0x1a8] sm:$0xff]
    %v3519 = vld [vmem:[%s1427 + $0x1b0] sm:$0xff]
    %v3520 = vld [vmem:[%s1427 + $0x1b8] sm:$0xff]
    %v3521 = vld [vmem:[%s1427 + $0x1c0] sm:$0xff]
    %v3522 = vld [vmem:[%s1427 + $0x1c8] sm:$0xff]
    %v3523 = vld [vmem:[%s1427 + $0x1d0] sm:$0xff]
    %v3524 = vld [vmem:[%s1427 + $0x1d8] sm:$0xff]
    %v3525 = vld [vmem:[%s1427 + $0x1e0] sm:$0xff]
    %v3526 = vld [vmem:[%s1427 + $0x1e8] sm:$0xff]
    %v3527 = vld [vmem:[%s1427 + $0x1f0] sm:$0xff]
    %v3528 = vld [vmem:[%s1427 + $0x1f8] sm:$0xff]
    %3529 = vmatprep.subr.mxu0 %v3466
    %3530 = vmatpush1.msra.mxu0 %v3465
    %3531 = vmatprep.subr.mxu0 %v3468
    %3532 = vmatpush1.msra.mxu0 %v3467
    %3533 = vmatprep.subr.mxu0 %v3470
    %3534 = vmatpush1.msra.mxu0 %v3469
    %3535 = vmatprep.subr.mxu0 %v3472
    %3536 = vmatpush1.msra.mxu0 %v3471
    %3537 = vmatprep.subr.mxu0 %v3474
    %3538 = vmatpush1.msra.mxu0 %v3473
    %3539 = vmatprep.subr.mxu0 %v3476
    %3540 = vmatpush1.msra.mxu0 %v3475
    %3541 = vmatprep.subr.mxu0 %v3478
    %3542 = vmatpush1.msra.mxu0 %v3477
    %3543 = vmatprep.subr.mxu0 %v3480
    %3544 = vmatpush1.msra.mxu0 %v3479
    %3545 = vmatprep.subr.mxu0 %v3482
    %3546 = vmatpush1.msra.mxu0 %v3481
    %3547 = vmatprep.subr.mxu0 %v3484
    %3548 = vmatpush1.msra.mxu0 %v3483
    %3549 = vmatprep.subr.mxu0 %v3486
    %3550 = vmatpush1.msra.mxu0 %v3485
    %3551 = vmatprep.subr.mxu0 %v3488
    %3552 = vmatpush1.msra.mxu0 %v3487
    %3553 = vmatprep.subr.mxu0 %v3490
    %3554 = vmatpush1.msra.mxu0 %v3489
    %3555 = vmatprep.subr.mxu0 %v3492
    %3556 = vmatpush1.msra.mxu0 %v3491
    %3557 = vmatprep.subr.mxu0 %v3494
    %3558 = vmatpush1.msra.mxu0 %v3493
    %3559 = vmatprep.subr.mxu0 %v3496
    %3560 = vmatpush1.msra.mxu0 %v3495
    %3561 = vmatprep.subr.mxu0 %v3498
    %3562 = vmatpush1.msra.mxu0 %v3497
    %3563 = vmatprep.subr.mxu0 %v3500
    %3564 = vmatpush1.msra.mxu0 %v3499
    %3565 = vmatprep.subr.mxu0 %v3502
    %3566 = vmatpush1.msra.mxu0 %v3501
    %3567 = vmatprep.subr.mxu0 %v3504
    %3568 = vmatpush1.msra.mxu0 %v3503
    %3569 = vmatprep.subr.mxu0 %v3506
    %3570 = vmatpush1.msra.mxu0 %v3505
    %3571 = vmatprep.subr.mxu0 %v3508
    %3572 = vmatpush1.msra.mxu0 %v3507
    %3573 = vmatprep.subr.mxu0 %v3510
    %3574 = vmatpush1.msra.mxu0 %v3509
    %3575 = vmatprep.subr.mxu0 %v3512
    %3576 = vmatpush1.msra.mxu0 %v3511
    %3577 = vmatprep.subr.mxu0 %v3514
    %3578 = vmatpush1.msra.mxu0 %v3513
    %3579 = vmatprep.subr.mxu0 %v3516
    %3580 = vmatpush1.msra.mxu0 %v3515
    %3581 = vmatprep.subr.mxu0 %v3518
    %3582 = vmatpush1.msra.mxu0 %v3517
    %3583 = vmatprep.subr.mxu0 %v3520
    %3584 = vmatpush1.msra.mxu0 %v3519
    %3585 = vmatprep.subr.mxu0 %v3522
    %3586 = vmatpush1.msra.mxu0 %v3521
    %3587 = vmatprep.subr.mxu0 %v3524
    %3588 = vmatpush1.msra.mxu0 %v3523
    %3589 = vmatprep.subr.mxu0 %v3526
    %3590 = vmatpush1.msra.mxu0 %v3525
    %3591 = vmatprep.subr.mxu0 %v3528
    %3592 = vmatpush1.msra.mxu0 %v3527
    %3593 = vmatprep.mubr.f32.mxu0 %v2404
    %3594 = vmatmul.mubr.f32.gmra.mrb[0].mxu0 %v2403
    %v3595 = vpop.f32.mrb[0].mxu0
    %v3596 = vadd.f32 0.0, %v3595
    %v3597 = vpop.f32.mrb[0].mxu0
    %v3598 = vadd.f32 0.0, %v3597
    %3599 = vdwg.mxu0
    %s3600 = scalar_lea.vmem [#allocation11], 40
    %v3601 = vld [vmem:[%s3600] sm:$0xff]
    %v3603 = vsel %vm2386, %v3601, 0
    %3605 = vmatprep.subr.mxu0 %v3598
    %3606 = vmatpush1.msra.mxu0 %v3596
    %3607 = vmatprep.subr.mxu0 0.0
    %3608 = vmatpush1.msra.mxu0 0.0
    %3609 = vmatprep.subr.mxu0 0.0
    %3610 = vmatpush1.msra.mxu0 0.0
    %3611 = vmatprep.subr.mxu0 0.0
    %3612 = vmatpush1.msra.mxu0 0.0
    %3613 = vmatprep.subr.mxu0 0.0
    %3614 = vmatpush1.msra.mxu0 0.0
    %3615 = vmatprep.subr.mxu0 0.0
    %3616 = vmatpush1.msra.mxu0 0.0
    %3617 = vmatprep.subr.mxu0 0.0
    %3618 = vmatpush1.msra.mxu0 0.0
    %3619 = vmatprep.subr.mxu0 0.0
    %3620 = vmatpush1.msra.mxu0 0.0
    %3621 = vmatprep.subr.mxu0 0.0
    %3622 = vmatpush1.msra.mxu0 0.0
    %3623 = vmatprep.subr.mxu0 0.0
    %3624 = vmatpush1.msra.mxu0 0.0
    %3625 = vmatprep.subr.mxu0 0.0
    %3626 = vmatpush1.msra.mxu0 0.0
    %3627 = vmatprep.subr.mxu0 0.0
    %3628 = vmatpush1.msra.mxu0 0.0
    %3629 = vmatprep.subr.mxu0 0.0
    %3630 = vmatpush1.msra.mxu0 0.0
    %3631 = vmatprep.subr.mxu0 0.0
    %3632 = vmatpush1.msra.mxu0 0.0
    %3633 = vmatprep.subr.mxu0 0.0
    %3634 = vmatpush1.msra.mxu0 0.0
    %3635 = vmatprep.subr.mxu0 0.0
    %3636 = vmatpush1.msra.mxu0 0.0
    %3637 = vmatprep.subr.mxu0 0.0
    %3638 = vmatpush1.msra.mxu0 0.0
    %3639 = vmatprep.subr.mxu0 0.0
    %3640 = vmatpush1.msra.mxu0 0.0
    %3641 = vmatprep.subr.mxu0 0.0
    %3642 = vmatpush1.msra.mxu0 0.0
    %3643 = vmatprep.subr.mxu0 0.0
    %3644 = vmatpush1.msra.mxu0 0.0
    %3645 = vmatprep.subr.mxu0 0.0
    %3646 = vmatpush1.msra.mxu0 0.0
    %3647 = vmatprep.subr.mxu0 0.0
    %3648 = vmatpush1.msra.mxu0 0.0
    %3649 = vmatprep.subr.mxu0 0.0
    %3650 = vmatpush1.msra.mxu0 0.0
    %3651 = vmatprep.subr.mxu0 0.0
    %3652 = vmatpush1.msra.mxu0 0.0
    %3653 = vmatprep.subr.mxu0 0.0
    %3654 = vmatpush1.msra.mxu0 0.0
    %3655 = vmatprep.subr.mxu0 0.0
    %3656 = vmatpush1.msra.mxu0 0.0
    %3657 = vmatprep.subr.mxu0 0.0
    %3658 = vmatpush1.msra.mxu0 0.0
    %3659 = vmatprep.subr.mxu0 0.0
    %3660 = vmatpush1.msra.mxu0 0.0
    %3661 = vmatprep.subr.mxu0 0.0
    %3662 = vmatpush1.msra.mxu0 0.0
    %3663 = vmatprep.subr.mxu0 0.0
    %3664 = vmatpush1.msra.mxu0 0.0
    %3665 = vmatprep.subr.mxu0 0.0
    %3666 = vmatpush1.msra.mxu0 0.0
    %3667 = vmatprep.subr.mxu0 0.0
    %3668 = vmatpush1.msra.mxu0 0.0
    %3669 = vmatprep.mubr.f32.mxu0 0.0
    %3670 = vmatmul.mubr.f32.gmra.mrb[0].mxu0 %v3603
    %v3671 = vpop.f32.mrb[0].mxu0
    %v3672 = vadd.f32 0.0, %v3671
    %v3673 = vpop.f32.mrb[0].mxu0
    %v3674 = vadd.f32 0.0, %v3673
    %3675 = vdwg.mxu0
    %v3676 = vadd.f32 %v3463, %v3672
    %v3677 = vadd.f32 %v3464, %v3674
    %v3678 = vld [vmem:[%s1647] sm:$0xff]
    %v3679 = vld [vmem:[%s1647 + $0x8] sm:$0xff]
    %v3680 = vld [vmem:[%s1647 + $0x10] sm:$0xff]
    %v3681 = vld [vmem:[%s1647 + $0x18] sm:$0xff]
    %v3682 = vld [vmem:[%s1647 + $0x20] sm:$0xff]
    %v3683 = vld [vmem:[%s1647 + $0x28] sm:$0xff]
    %v3684 = vld [vmem:[%s1647 + $0x30] sm:$0xff]
    %v3685 = vld [vmem:[%s1647 + $0x38] sm:$0xff]
    %v3686 = vld [vmem:[%s1647 + $0x40] sm:$0xff]
    %v3687 = vld [vmem:[%s1647 + $0x48] sm:$0xff]
    %v3688 = vld [vmem:[%s1647 + $0x50] sm:$0xff]
    %v3689 = vld [vmem:[%s1647 + $0x58] sm:$0xff]
    %v3690 = vld [vmem:[%s1647 + $0x60] sm:$0xff]
    %v3691 = vld [vmem:[%s1647 + $0x68] sm:$0xff]
    %v3692 = vld [vmem:[%s1647 + $0x70] sm:$0xff]
    %v3693 = vld [vmem:[%s1647 + $0x78] sm:$0xff]
    %v3694 = vld [vmem:[%s1647 + $0x80] sm:$0xff]
    %v3695 = vld [vmem:[%s1647 + $0x88] sm:$0xff]
    %v3696 = vld [vmem:[%s1647 + $0x90] sm:$0xff]
    %v3697 = vld [vmem:[%s1647 + $0x98] sm:$0xff]
    %v3698 = vld [vmem:[%s1647 + $0xa0] sm:$0xff]
    %v3699 = vld [vmem:[%s1647 + $0xa8] sm:$0xff]
    %v3700 = vld [vmem:[%s1647 + $0xb0] sm:$0xff]
    %v3701 = vld [vmem:[%s1647 + $0xb8] sm:$0xff]
    %v3702 = vld [vmem:[%s1647 + $0xc0] sm:$0xff]
    %v3703 = vld [vmem:[%s1647 + $0xc8] sm:$0xff]
    %v3704 = vld [vmem:[%s1647 + $0xd0] sm:$0xff]
    %v3705 = vld [vmem:[%s1647 + $0xd8] sm:$0xff]
    %v3706 = vld [vmem:[%s1647 + $0xe0] sm:$0xff]
    %v3707 = vld [vmem:[%s1647 + $0xe8] sm:$0xff]
    %v3708 = vld [vmem:[%s1647 + $0xf0] sm:$0xff]
    %v3709 = vld [vmem:[%s1647 + $0xf8] sm:$0xff]
    %v3710 = vld [vmem:[%s1647 + $0x100] sm:$0xff]
    %v3711 = vld [vmem:[%s1647 + $0x108] sm:$0xff]
    %v3712 = vld [vmem:[%s1647 + $0x110] sm:$0xff]
    %v3713 = vld [vmem:[%s1647 + $0x118] sm:$0xff]
    %v3714 = vld [vmem:[%s1647 + $0x120] sm:$0xff]
    %v3715 = vld [vmem:[%s1647 + $0x128] sm:$0xff]
    %v3716 = vld [vmem:[%s1647 + $0x130] sm:$0xff]
    %v3717 = vld [vmem:[%s1647 + $0x138] sm:$0xff]
    %v3718 = vld [vmem:[%s1647 + $0x140] sm:$0xff]
    %v3719 = vld [vmem:[%s1647 + $0x148] sm:$0xff]
    %v3720 = vld [vmem:[%s1647 + $0x150] sm:$0xff]
    %v3721 = vld [vmem:[%s1647 + $0x158] sm:$0xff]
    %v3722 = vld [vmem:[%s1647 + $0x160] sm:$0xff]
    %v3723 = vld [vmem:[%s1647 + $0x168] sm:$0xff]
    %v3724 = vld [vmem:[%s1647 + $0x170] sm:$0xff]
    %v3725 = vld [vmem:[%s1647 + $0x178] sm:$0xff]
    %v3726 = vld [vmem:[%s1647 + $0x180] sm:$0xff]
    %v3727 = vld [vmem:[%s1647 + $0x188] sm:$0xff]
    %v3728 = vld [vmem:[%s1647 + $0x190] sm:$0xff]
    %v3729 = vld [vmem:[%s1647 + $0x198] sm:$0xff]
    %v3730 = vld [vmem:[%s1647 + $0x1a0] sm:$0xff]
    %v3731 = vld [vmem:[%s1647 + $0x1a8] sm:$0xff]
    %v3732 = vld [vmem:[%s1647 + $0x1b0] sm:$0xff]
    %v3733 = vld [vmem:[%s1647 + $0x1b8] sm:$0xff]
    %v3734 = vld [vmem:[%s1647 + $0x1c0] sm:$0xff]
    %v3735 = vld [vmem:[%s1647 + $0x1c8] sm:$0xff]
    %v3736 = vld [vmem:[%s1647 + $0x1d0] sm:$0xff]
    %v3737 = vld [vmem:[%s1647 + $0x1d8] sm:$0xff]
    %v3738 = vld [vmem:[%s1647 + $0x1e0] sm:$0xff]
    %v3739 = vld [vmem:[%s1647 + $0x1e8] sm:$0xff]
    %v3740 = vld [vmem:[%s1647 + $0x1f0] sm:$0xff]
    %v3741 = vld [vmem:[%s1647 + $0x1f8] sm:$0xff]
    %3742 = vmatprep.subr.mxu0 %v3679
    %3743 = vmatpush1.msra.mxu0 %v3678
    %3744 = vmatprep.subr.mxu0 %v3681
    %3745 = vmatpush1.msra.mxu0 %v3680
    %3746 = vmatprep.subr.mxu0 %v3683
    %3747 = vmatpush1.msra.mxu0 %v3682
    %3748 = vmatprep.subr.mxu0 %v3685
    %3749 = vmatpush1.msra.mxu0 %v3684
    %3750 = vmatprep.subr.mxu0 %v3687
    %3751 = vmatpush1.msra.mxu0 %v3686
    %3752 = vmatprep.subr.mxu0 %v3689
    %3753 = vmatpush1.msra.mxu0 %v3688
    %3754 = vmatprep.subr.mxu0 %v3691
    %3755 = vmatpush1.msra.mxu0 %v3690
    %3756 = vmatprep.subr.mxu0 %v3693
    %3757 = vmatpush1.msra.mxu0 %v3692
    %3758 = vmatprep.subr.mxu0 %v3695
    %3759 = vmatpush1.msra.mxu0 %v3694
    %3760 = vmatprep.subr.mxu0 %v3697
    %3761 = vmatpush1.msra.mxu0 %v3696
    %3762 = vmatprep.subr.mxu0 %v3699
    %3763 = vmatpush1.msra.mxu0 %v3698
    %3764 = vmatprep.subr.mxu0 %v3701
    %3765 = vmatpush1.msra.mxu0 %v3700
    %3766 = vmatprep.subr.mxu0 %v3703
    %3767 = vmatpush1.msra.mxu0 %v3702
    %3768 = vmatprep.subr.mxu0 %v3705
    %3769 = vmatpush1.msra.mxu0 %v3704
    %3770 = vmatprep.subr.mxu0 %v3707
    %3771 = vmatpush1.msra.mxu0 %v3706
    %3772 = vmatprep.subr.mxu0 %v3709
    %3773 = vmatpush1.msra.mxu0 %v3708
    %3774 = vmatprep.subr.mxu0 %v3711
    %3775 = vmatpush1.msra.mxu0 %v3710
    %3776 = vmatprep.subr.mxu0 %v3713
    %3777 = vmatpush1.msra.mxu0 %v3712
    %3778 = vmatprep.subr.mxu0 %v3715
    %3779 = vmatpush1.msra.mxu0 %v3714
    %3780 = vmatprep.subr.mxu0 %v3717
    %3781 = vmatpush1.msra.mxu0 %v3716
    %3782 = vmatprep.subr.mxu0 %v3719
    %3783 = vmatpush1.msra.mxu0 %v3718
    %3784 = vmatprep.subr.mxu0 %v3721
    %3785 = vmatpush1.msra.mxu0 %v3720
    %3786 = vmatprep.subr.mxu0 %v3723
    %3787 = vmatpush1.msra.mxu0 %v3722
    %3788 = vmatprep.subr.mxu0 %v3725
    %3789 = vmatpush1.msra.mxu0 %v3724
    %3790 = vmatprep.subr.mxu0 %v3727
    %3791 = vmatpush1.msra.mxu0 %v3726
    %3792 = vmatprep.subr.mxu0 %v3729
    %3793 = vmatpush1.msra.mxu0 %v3728
    %3794 = vmatprep.subr.mxu0 %v3731
    %3795 = vmatpush1.msra.mxu0 %v3730
    %3796 = vmatprep.subr.mxu0 %v3733
    %3797 = vmatpush1.msra.mxu0 %v3732
    %3798 = vmatprep.subr.mxu0 %v3735
    %3799 = vmatpush1.msra.mxu0 %v3734
    %3800 = vmatprep.subr.mxu0 %v3737
    %3801 = vmatpush1.msra.mxu0 %v3736
    %3802 = vmatprep.subr.mxu0 %v3739
    %3803 = vmatpush1.msra.mxu0 %v3738
    %3804 = vmatprep.subr.mxu0 %v3741
    %3805 = vmatpush1.msra.mxu0 %v3740
    %3806 = vmatprep.mubr.f32.mxu0 %v2404
    %3807 = vmatmul.mubr.f32.gmra.mrb[0].mxu0 %v2403
    %v3808 = vpop.f32.mrb[0].mxu0
    %v3809 = vadd.f32 0.0, %v3808
    %v3810 = vpop.f32.mrb[0].mxu0
    %v3811 = vadd.f32 0.0, %v3810
    %3812 = vdwg.mxu0
    %s3813 = scalar_lea.vmem [#allocation11], 48
    %v3814 = vld [vmem:[%s3813] sm:$0xff]
    %v3816 = vsel %vm2386, %v3814, 0
    %3818 = vmatprep.subr.mxu0 %v3811
    %3819 = vmatpush1.msra.mxu0 %v3809
    %3820 = vmatprep.subr.mxu0 0.0
    %3821 = vmatpush1.msra.mxu0 0.0
    %3822 = vmatprep.subr.mxu0 0.0
    %3823 = vmatpush1.msra.mxu0 0.0
    %3824 = vmatprep.subr.mxu0 0.0
    %3825 = vmatpush1.msra.mxu0 0.0
    %3826 = vmatprep.subr.mxu0 0.0
    %3827 = vmatpush1.msra.mxu0 0.0
    %3828 = vmatprep.subr.mxu0 0.0
    %3829 = vmatpush1.msra.mxu0 0.0
    %3830 = vmatprep.subr.mxu0 0.0
    %3831 = vmatpush1.msra.mxu0 0.0
    %3832 = vmatprep.subr.mxu0 0.0
    %3833 = vmatpush1.msra.mxu0 0.0
    %3834 = vmatprep.subr.mxu0 0.0
    %3835 = vmatpush1.msra.mxu0 0.0
    %3836 = vmatprep.subr.mxu0 0.0
    %3837 = vmatpush1.msra.mxu0 0.0
    %3838 = vmatprep.subr.mxu0 0.0
    %3839 = vmatpush1.msra.mxu0 0.0
    %3840 = vmatprep.subr.mxu0 0.0
    %3841 = vmatpush1.msra.mxu0 0.0
    %3842 = vmatprep.subr.mxu0 0.0
    %3843 = vmatpush1.msra.mxu0 0.0
    %3844 = vmatprep.subr.mxu0 0.0
    %3845 = vmatpush1.msra.mxu0 0.0
    %3846 = vmatprep.subr.mxu0 0.0
    %3847 = vmatpush1.msra.mxu0 0.0
    %3848 = vmatprep.subr.mxu0 0.0
    %3849 = vmatpush1.msra.mxu0 0.0
    %3850 = vmatprep.subr.mxu0 0.0
    %3851 = vmatpush1.msra.mxu0 0.0
    %3852 = vmatprep.subr.mxu0 0.0
    %3853 = vmatpush1.msra.mxu0 0.0
    %3854 = vmatprep.subr.mxu0 0.0
    %3855 = vmatpush1.msra.mxu0 0.0
    %3856 = vmatprep.subr.mxu0 0.0
    %3857 = vmatpush1.msra.mxu0 0.0
    %3858 = vmatprep.subr.mxu0 0.0
    %3859 = vmatpush1.msra.mxu0 0.0
    %3860 = vmatprep.subr.mxu0 0.0
    %3861 = vmatpush1.msra.mxu0 0.0
    %3862 = vmatprep.subr.mxu0 0.0
    %3863 = vmatpush1.msra.mxu0 0.0
    %3864 = vmatprep.subr.mxu0 0.0
    %3865 = vmatpush1.msra.mxu0 0.0
    %3866 = vmatprep.subr.mxu0 0.0
    %3867 = vmatpush1.msra.mxu0 0.0
    %3868 = vmatprep.subr.mxu0 0.0
    %3869 = vmatpush1.msra.mxu0 0.0
    %3870 = vmatprep.subr.mxu0 0.0
    %3871 = vmatpush1.msra.mxu0 0.0
    %3872 = vmatprep.subr.mxu0 0.0
    %3873 = vmatpush1.msra.mxu0 0.0
    %3874 = vmatprep.subr.mxu0 0.0
    %3875 = vmatpush1.msra.mxu0 0.0
    %3876 = vmatprep.subr.mxu0 0.0
    %3877 = vmatpush1.msra.mxu0 0.0
    %3878 = vmatprep.subr.mxu0 0.0
    %3879 = vmatpush1.msra.mxu0 0.0
    %3880 = vmatprep.subr.mxu0 0.0
    %3881 = vmatpush1.msra.mxu0 0.0
    %3882 = vmatprep.mubr.f32.mxu0 0.0
    %3883 = vmatmul.mubr.f32.gmra.mrb[0].mxu0 %v3816
    %v3884 = vpop.f32.mrb[0].mxu0
    %v3885 = vadd.f32 0.0, %v3884
    %v3886 = vpop.f32.mrb[0].mxu0
    %v3887 = vadd.f32 0.0, %v3886
    %3888 = vdwg.mxu0
    %v3889 = vadd.f32 %v3676, %v3885
    %v3890 = vadd.f32 %v3677, %v3887
    %v3891 = vld [vmem:[%s1867] sm:$0xff]
    %v3892 = vld [vmem:[%s1867 + $0x8] sm:$0xff]
    %v3893 = vld [vmem:[%s1867 + $0x10] sm:$0xff]
    %v3894 = vld [vmem:[%s1867 + $0x18] sm:$0xff]
    %v3895 = vld [vmem:[%s1867 + $0x20] sm:$0xff]
    %v3896 = vld [vmem:[%s1867 + $0x28] sm:$0xff]
    %v3897 = vld [vmem:[%s1867 + $0x30] sm:$0xff]
    %v3898 = vld [vmem:[%s1867 + $0x38] sm:$0xff]
    %v3899 = vld [vmem:[%s1867 + $0x40] sm:$0xff]
    %v3900 = vld [vmem:[%s1867 + $0x48] sm:$0xff]
    %v3901 = vld [vmem:[%s1867 + $0x50] sm:$0xff]
    %v3902 = vld [vmem:[%s1867 + $0x58] sm:$0xff]
    %v3903 = vld [vmem:[%s1867 + $0x60] sm:$0xff]
    %v3904 = vld [vmem:[%s1867 + $0x68] sm:$0xff]
    %v3905 = vld [vmem:[%s1867 + $0x70] sm:$0xff]
    %v3906 = vld [vmem:[%s1867 + $0x78] sm:$0xff]
    %v3907 = vld [vmem:[%s1867 + $0x80] sm:$0xff]
    %v3908 = vld [vmem:[%s1867 + $0x88] sm:$0xff]
    %v3909 = vld [vmem:[%s1867 + $0x90] sm:$0xff]
    %v3910 = vld [vmem:[%s1867 + $0x98] sm:$0xff]
    %v3911 = vld [vmem:[%s1867 + $0xa0] sm:$0xff]
    %v3912 = vld [vmem:[%s1867 + $0xa8] sm:$0xff]
    %v3913 = vld [vmem:[%s1867 + $0xb0] sm:$0xff]
    %v3914 = vld [vmem:[%s1867 + $0xb8] sm:$0xff]
    %v3915 = vld [vmem:[%s1867 + $0xc0] sm:$0xff]
    %v3916 = vld [vmem:[%s1867 + $0xc8] sm:$0xff]
    %v3917 = vld [vmem:[%s1867 + $0xd0] sm:$0xff]
    %v3918 = vld [vmem:[%s1867 + $0xd8] sm:$0xff]
    %v3919 = vld [vmem:[%s1867 + $0xe0] sm:$0xff]
    %v3920 = vld [vmem:[%s1867 + $0xe8] sm:$0xff]
    %v3921 = vld [vmem:[%s1867 + $0xf0] sm:$0xff]
    %v3922 = vld [vmem:[%s1867 + $0xf8] sm:$0xff]
    %v3923 = vld [vmem:[%s1867 + $0x100] sm:$0xff]
    %v3924 = vld [vmem:[%s1867 + $0x108] sm:$0xff]
    %v3925 = vld [vmem:[%s1867 + $0x110] sm:$0xff]
    %v3926 = vld [vmem:[%s1867 + $0x118] sm:$0xff]
    %v3927 = vld [vmem:[%s1867 + $0x120] sm:$0xff]
    %v3928 = vld [vmem:[%s1867 + $0x128] sm:$0xff]
    %v3929 = vld [vmem:[%s1867 + $0x130] sm:$0xff]
    %v3930 = vld [vmem:[%s1867 + $0x138] sm:$0xff]
    %v3931 = vld [vmem:[%s1867 + $0x140] sm:$0xff]
    %v3932 = vld [vmem:[%s1867 + $0x148] sm:$0xff]
    %v3933 = vld [vmem:[%s1867 + $0x150] sm:$0xff]
    %v3934 = vld [vmem:[%s1867 + $0x158] sm:$0xff]
    %v3935 = vld [vmem:[%s1867 + $0x160] sm:$0xff]
    %v3936 = vld [vmem:[%s1867 + $0x168] sm:$0xff]
    %v3937 = vld [vmem:[%s1867 + $0x170] sm:$0xff]
    %v3938 = vld [vmem:[%s1867 + $0x178] sm:$0xff]
    %v3939 = vld [vmem:[%s1867 + $0x180] sm:$0xff]
    %v3940 = vld [vmem:[%s1867 + $0x188] sm:$0xff]
    %v3941 = vld [vmem:[%s1867 + $0x190] sm:$0xff]
    %v3942 = vld [vmem:[%s1867 + $0x198] sm:$0xff]
    %v3943 = vld [vmem:[%s1867 + $0x1a0] sm:$0xff]
    %v3944 = vld [vmem:[%s1867 + $0x1a8] sm:$0xff]
    %v3945 = vld [vmem:[%s1867 + $0x1b0] sm:$0xff]
    %v3946 = vld [vmem:[%s1867 + $0x1b8] sm:$0xff]
    %v3947 = vld [vmem:[%s1867 + $0x1c0] sm:$0xff]
    %v3948 = vld [vmem:[%s1867 + $0x1c8] sm:$0xff]
    %v3949 = vld [vmem:[%s1867 + $0x1d0] sm:$0xff]
    %v3950 = vld [vmem:[%s1867 + $0x1d8] sm:$0xff]
    %v3951 = vld [vmem:[%s1867 + $0x1e0] sm:$0xff]
    %v3952 = vld [vmem:[%s1867 + $0x1e8] sm:$0xff]
    %v3953 = vld [vmem:[%s1867 + $0x1f0] sm:$0xff]
    %v3954 = vld [vmem:[%s1867 + $0x1f8] sm:$0xff]
    %3955 = vmatprep.subr.mxu0 %v3892
    %3956 = vmatpush1.msra.mxu0 %v3891
    %3957 = vmatprep.subr.mxu0 %v3894
    %3958 = vmatpush1.msra.mxu0 %v3893
    %3959 = vmatprep.subr.mxu0 %v3896
    %3960 = vmatpush1.msra.mxu0 %v3895
    %3961 = vmatprep.subr.mxu0 %v3898
    %3962 = vmatpush1.msra.mxu0 %v3897
    %3963 = vmatprep.subr.mxu0 %v3900
    %3964 = vmatpush1.msra.mxu0 %v3899
    %3965 = vmatprep.subr.mxu0 %v3902
    %3966 = vmatpush1.msra.mxu0 %v3901
    %3967 = vmatprep.subr.mxu0 %v3904
    %3968 = vmatpush1.msra.mxu0 %v3903
    %3969 = vmatprep.subr.mxu0 %v3906
    %3970 = vmatpush1.msra.mxu0 %v3905
    %3971 = vmatprep.subr.mxu0 %v3908
    %3972 = vmatpush1.msra.mxu0 %v3907
    %3973 = vmatprep.subr.mxu0 %v3910
    %3974 = vmatpush1.msra.mxu0 %v3909
    %3975 = vmatprep.subr.mxu0 %v3912
    %3976 = vmatpush1.msra.mxu0 %v3911
    %3977 = vmatprep.subr.mxu0 %v3914
    %3978 = vmatpush1.msra.mxu0 %v3913
    %3979 = vmatprep.subr.mxu0 %v3916
    %3980 = vmatpush1.msra.mxu0 %v3915
    %3981 = vmatprep.subr.mxu0 %v3918
    %3982 = vmatpush1.msra.mxu0 %v3917
    %3983 = vmatprep.subr.mxu0 %v3920
    %3984 = vmatpush1.msra.mxu0 %v3919
    %3985 = vmatprep.subr.mxu0 %v3922
    %3986 = vmatpush1.msra.mxu0 %v3921
    %3987 = vmatprep.subr.mxu0 %v3924
    %3988 = vmatpush1.msra.mxu0 %v3923
    %3989 = vmatprep.subr.mxu0 %v3926
    %3990 = vmatpush1.msra.mxu0 %v3925
    %3991 = vmatprep.subr.mxu0 %v3928
    %3992 = vmatpush1.msra.mxu0 %v3927
    %3993 = vmatprep.subr.mxu0 %v3930
    %3994 = vmatpush1.msra.mxu0 %v3929
    %3995 = vmatprep.subr.mxu0 %v3932
    %3996 = vmatpush1.msra.mxu0 %v3931
    %3997 = vmatprep.subr.mxu0 %v3934
    %3998 = vmatpush1.msra.mxu0 %v3933
    %3999 = vmatprep.subr.mxu0 %v3936
    %4000 = vmatpush1.msra.mxu0 %v3935
    %4001 = vmatprep.subr.mxu0 %v3938
    %4002 = vmatpush1.msra.mxu0 %v3937
    %4003 = vmatprep.subr.mxu0 %v3940
    %4004 = vmatpush1.msra.mxu0 %v3939
    %4005 = vmatprep.subr.mxu0 %v3942
    %4006 = vmatpush1.msra.mxu0 %v3941
    %4007 = vmatprep.subr.mxu0 %v3944
    %4008 = vmatpush1.msra.mxu0 %v3943
    %4009 = vmatprep.subr.mxu0 %v3946
    %4010 = vmatpush1.msra.mxu0 %v3945
    %4011 = vmatprep.subr.mxu0 %v3948
    %4012 = vmatpush1.msra.mxu0 %v3947
    %4013 = vmatprep.subr.mxu0 %v3950
    %4014 = vmatpush1.msra.mxu0 %v3949
    %4015 = vmatprep.subr.mxu0 %v3952
    %4016 = vmatpush1.msra.mxu0 %v3951
    %4017 = vmatprep.subr.mxu0 %v3954
    %4018 = vmatpush1.msra.mxu0 %v3953
    %4019 = vmatprep.mubr.f32.mxu0 %v2404
    %4020 = vmatmul.mubr.f32.gmra.mrb[0].mxu0 %v2403
    %v4021 = vpop.f32.mrb[0].mxu0
    %v4022 = vadd.f32 0.0, %v4021
    %v4023 = vpop.f32.mrb[0].mxu0
    %v4024 = vadd.f32 0.0, %v4023
    %4025 = vdwg.mxu0
    %s4026 = scalar_lea.vmem [#allocation11], 56
    %v4027 = vld [vmem:[%s4026] sm:$0xff]
    %v4029 = vsel %vm2386, %v4027, 0
    %4031 = vmatprep.subr.mxu0 %v4024
    %4032 = vmatpush1.msra.mxu0 %v4022
    %4033 = vmatprep.subr.mxu0 0.0
    %4034 = vmatpush1.msra.mxu0 0.0
    %4035 = vmatprep.subr.mxu0 0.0
    %4036 = vmatpush1.msra.mxu0 0.0
    %4037 = vmatprep.subr.mxu0 0.0
    %4038 = vmatpush1.msra.mxu0 0.0
    %4039 = vmatprep.subr.mxu0 0.0
    %4040 = vmatpush1.msra.mxu0 0.0
    %4041 = vmatprep.subr.mxu0 0.0
    %4042 = vmatpush1.msra.mxu0 0.0
    %4043 = vmatprep.subr.mxu0 0.0
    %4044 = vmatpush1.msra.mxu0 0.0
    %4045 = vmatprep.subr.mxu0 0.0
    %4046 = vmatpush1.msra.mxu0 0.0
    %4047 = vmatprep.subr.mxu0 0.0
    %4048 = vmatpush1.msra.mxu0 0.0
    %4049 = vmatprep.subr.mxu0 0.0
    %4050 = vmatpush1.msra.mxu0 0.0
    %4051 = vmatprep.subr.mxu0 0.0
    %4052 = vmatpush1.msra.mxu0 0.0
    %4053 = vmatprep.subr.mxu0 0.0
    %4054 = vmatpush1.msra.mxu0 0.0
    %4055 = vmatprep.subr.mxu0 0.0
    %4056 = vmatpush1.msra.mxu0 0.0
    %4057 = vmatprep.subr.mxu0 0.0
    %4058 = vmatpush1.msra.mxu0 0.0
    %4059 = vmatprep.subr.mxu0 0.0
    %4060 = vmatpush1.msra.mxu0 0.0
    %4061 = vmatprep.subr.mxu0 0.0
    %4062 = vmatpush1.msra.mxu0 0.0
    %4063 = vmatprep.subr.mxu0 0.0
    %4064 = vmatpush1.msra.mxu0 0.0
    %4065 = vmatprep.subr.mxu0 0.0
    %4066 = vmatpush1.msra.mxu0 0.0
    %4067 = vmatprep.subr.mxu0 0.0
    %4068 = vmatpush1.msra.mxu0 0.0
    %4069 = vmatprep.subr.mxu0 0.0
    %4070 = vmatpush1.msra.mxu0 0.0
    %4071 = vmatprep.subr.mxu0 0.0
    %4072 = vmatpush1.msra.mxu0 0.0
    %4073 = vmatprep.subr.mxu0 0.0
    %4074 = vmatpush1.msra.mxu0 0.0
    %4075 = vmatprep.subr.mxu0 0.0
    %4076 = vmatpush1.msra.mxu0 0.0
    %4077 = vmatprep.subr.mxu0 0.0
    %4078 = vmatpush1.msra.mxu0 0.0
    %4079 = vmatprep.subr.mxu0 0.0
    %4080 = vmatpush1.msra.mxu0 0.0
    %4081 = vmatprep.subr.mxu0 0.0
    %4082 = vmatpush1.msra.mxu0 0.0
    %4083 = vmatprep.subr.mxu0 0.0
    %4084 = vmatpush1.msra.mxu0 0.0
    %4085 = vmatprep.subr.mxu0 0.0
    %4086 = vmatpush1.msra.mxu0 0.0
    %4087 = vmatprep.subr.mxu0 0.0
    %4088 = vmatpush1.msra.mxu0 0.0
    %4089 = vmatprep.subr.mxu0 0.0
    %4090 = vmatpush1.msra.mxu0 0.0
    %4091 = vmatprep.subr.mxu0 0.0
    %4092 = vmatpush1.msra.mxu0 0.0
    %4093 = vmatprep.subr.mxu0 0.0
    %4094 = vmatpush1.msra.mxu0 0.0
    %4095 = vmatprep.mubr.f32.mxu0 0.0
    %4096 = vmatmul.mubr.f32.gmra.mrb[0].mxu0 %v4029
    %v4097 = vpop.f32.mrb[0].mxu0
    %v4098 = vadd.f32 0.0, %v4097
    %v4099 = vpop.f32.mrb[0].mxu0
    %v4100 = vadd.f32 0.0, %v4099
    %4101 = vdwg.mxu0
    %v4102 = vadd.f32 %v3889, %v4098
    %v4103 = vadd.f32 %v3890, %v4100
    %v4104 = vld [vmem:[%s2087] sm:$0xff]
    %v4105 = vld [vmem:[%s2087 + $0x8] sm:$0xff]
    %v4106 = vld [vmem:[%s2087 + $0x10] sm:$0xff]
    %v4107 = vld [vmem:[%s2087 + $0x18] sm:$0xff]
    %v4108 = vld [vmem:[%s2087 + $0x20] sm:$0xff]
    %v4109 = vld [vmem:[%s2087 + $0x28] sm:$0xff]
    %v4110 = vld [vmem:[%s2087 + $0x30] sm:$0xff]
    %v4111 = vld [vmem:[%s2087 + $0x38] sm:$0xff]
    %v4112 = vld [vmem:[%s2087 + $0x40] sm:$0xff]
    %v4113 = vld [vmem:[%s2087 + $0x48] sm:$0xff]
    %v4114 = vld [vmem:[%s2087 + $0x50] sm:$0xff]
    %v4115 = vld [vmem:[%s2087 + $0x58] sm:$0xff]
    %v4116 = vld [vmem:[%s2087 + $0x60] sm:$0xff]
    %v4117 = vld [vmem:[%s2087 + $0x68] sm:$0xff]
    %v4118 = vld [vmem:[%s2087 + $0x70] sm:$0xff]
    %v4119 = vld [vmem:[%s2087 + $0x78] sm:$0xff]
    %v4120 = vld [vmem:[%s2087 + $0x80] sm:$0xff]
    %v4121 = vld [vmem:[%s2087 + $0x88] sm:$0xff]
    %v4122 = vld [vmem:[%s2087 + $0x90] sm:$0xff]
    %v4123 = vld [vmem:[%s2087 + $0x98] sm:$0xff]
    %v4124 = vld [vmem:[%s2087 + $0xa0] sm:$0xff]
    %v4125 = vld [vmem:[%s2087 + $0xa8] sm:$0xff]
    %v4126 = vld [vmem:[%s2087 + $0xb0] sm:$0xff]
    %v4127 = vld [vmem:[%s2087 + $0xb8] sm:$0xff]
    %v4128 = vld [vmem:[%s2087 + $0xc0] sm:$0xff]
    %v4129 = vld [vmem:[%s2087 + $0xc8] sm:$0xff]
    %v4130 = vld [vmem:[%s2087 + $0xd0] sm:$0xff]
    %v4131 = vld [vmem:[%s2087 + $0xd8] sm:$0xff]
    %v4132 = vld [vmem:[%s2087 + $0xe0] sm:$0xff]
    %v4133 = vld [vmem:[%s2087 + $0xe8] sm:$0xff]
    %v4134 = vld [vmem:[%s2087 + $0xf0] sm:$0xff]
    %v4135 = vld [vmem:[%s2087 + $0xf8] sm:$0xff]
    %v4136 = vld [vmem:[%s2087 + $0x100] sm:$0xff]
    %v4137 = vld [vmem:[%s2087 + $0x108] sm:$0xff]
    %v4138 = vld [vmem:[%s2087 + $0x110] sm:$0xff]
    %v4139 = vld [vmem:[%s2087 + $0x118] sm:$0xff]
    %v4140 = vld [vmem:[%s2087 + $0x120] sm:$0xff]
    %v4141 = vld [vmem:[%s2087 + $0x128] sm:$0xff]
    %v4142 = vld [vmem:[%s2087 + $0x130] sm:$0xff]
    %v4143 = vld [vmem:[%s2087 + $0x138] sm:$0xff]
    %v4144 = vld [vmem:[%s2087 + $0x140] sm:$0xff]
    %v4145 = vld [vmem:[%s2087 + $0x148] sm:$0xff]
    %v4146 = vld [vmem:[%s2087 + $0x150] sm:$0xff]
    %v4147 = vld [vmem:[%s2087 + $0x158] sm:$0xff]
    %v4148 = vld [vmem:[%s2087 + $0x160] sm:$0xff]
    %v4149 = vld [vmem:[%s2087 + $0x168] sm:$0xff]
    %v4150 = vld [vmem:[%s2087 + $0x170] sm:$0xff]
    %v4151 = vld [vmem:[%s2087 + $0x178] sm:$0xff]
    %v4152 = vld [vmem:[%s2087 + $0x180] sm:$0xff]
    %v4153 = vld [vmem:[%s2087 + $0x188] sm:$0xff]
    %v4154 = vld [vmem:[%s2087 + $0x190] sm:$0xff]
    %v4155 = vld [vmem:[%s2087 + $0x198] sm:$0xff]
    %v4156 = vld [vmem:[%s2087 + $0x1a0] sm:$0xff]
    %v4157 = vld [vmem:[%s2087 + $0x1a8] sm:$0xff]
    %v4158 = vld [vmem:[%s2087 + $0x1b0] sm:$0xff]
    %v4159 = vld [vmem:[%s2087 + $0x1b8] sm:$0xff]
    %v4160 = vld [vmem:[%s2087 + $0x1c0] sm:$0xff]
    %v4161 = vld [vmem:[%s2087 + $0x1c8] sm:$0xff]
    %v4162 = vld [vmem:[%s2087 + $0x1d0] sm:$0xff]
    %v4163 = vld [vmem:[%s2087 + $0x1d8] sm:$0xff]
    %v4164 = vld [vmem:[%s2087 + $0x1e0] sm:$0xff]
    %v4165 = vld [vmem:[%s2087 + $0x1e8] sm:$0xff]
    %v4166 = vld [vmem:[%s2087 + $0x1f0] sm:$0xff]
    %v4167 = vld [vmem:[%s2087 + $0x1f8] sm:$0xff]
    %4168 = vmatprep.subr.mxu0 %v4105
    %4169 = vmatpush1.msra.mxu0 %v4104
    %4170 = vmatprep.subr.mxu0 %v4107
    %4171 = vmatpush1.msra.mxu0 %v4106
    %4172 = vmatprep.subr.mxu0 %v4109
    %4173 = vmatpush1.msra.mxu0 %v4108
    %4174 = vmatprep.subr.mxu0 %v4111
    %4175 = vmatpush1.msra.mxu0 %v4110
    %4176 = vmatprep.subr.mxu0 %v4113
    %4177 = vmatpush1.msra.mxu0 %v4112
    %4178 = vmatprep.subr.mxu0 %v4115
    %4179 = vmatpush1.msra.mxu0 %v4114
    %4180 = vmatprep.subr.mxu0 %v4117
    %4181 = vmatpush1.msra.mxu0 %v4116
    %4182 = vmatprep.subr.mxu0 %v4119
    %4183 = vmatpush1.msra.mxu0 %v4118
    %4184 = vmatprep.subr.mxu0 %v4121
    %4185 = vmatpush1.msra.mxu0 %v4120
    %4186 = vmatprep.subr.mxu0 %v4123
    %4187 = vmatpush1.msra.mxu0 %v4122
    %4188 = vmatprep.subr.mxu0 %v4125
    %4189 = vmatpush1.msra.mxu0 %v4124
    %4190 = vmatprep.subr.mxu0 %v4127
    %4191 = vmatpush1.msra.mxu0 %v4126
    %4192 = vmatprep.subr.mxu0 %v4129
    %4193 = vmatpush1.msra.mxu0 %v4128
    %4194 = vmatprep.subr.mxu0 %v4131
    %4195 = vmatpush1.msra.mxu0 %v4130
    %4196 = vmatprep.subr.mxu0 %v4133
    %4197 = vmatpush1.msra.mxu0 %v4132
    %4198 = vmatprep.subr.mxu0 %v4135
    %4199 = vmatpush1.msra.mxu0 %v4134
    %4200 = vmatprep.subr.mxu0 %v4137
    %4201 = vmatpush1.msra.mxu0 %v4136
    %4202 = vmatprep.subr.mxu0 %v4139
    %4203 = vmatpush1.msra.mxu0 %v4138
    %4204 = vmatprep.subr.mxu0 %v4141
    %4205 = vmatpush1.msra.mxu0 %v4140
    %4206 = vmatprep.subr.mxu0 %v4143
    %4207 = vmatpush1.msra.mxu0 %v4142
    %4208 = vmatprep.subr.mxu0 %v4145
    %4209 = vmatpush1.msra.mxu0 %v4144
    %4210 = vmatprep.subr.mxu0 %v4147
    %4211 = vmatpush1.msra.mxu0 %v4146
    %4212 = vmatprep.subr.mxu0 %v4149
    %4213 = vmatpush1.msra.mxu0 %v4148
    %4214 = vmatprep.subr.mxu0 %v4151
    %4215 = vmatpush1.msra.mxu0 %v4150
    %4216 = vmatprep.subr.mxu0 %v4153
    %4217 = vmatpush1.msra.mxu0 %v4152
    %4218 = vmatprep.subr.mxu0 %v4155
    %4219 = vmatpush1.msra.mxu0 %v4154
    %4220 = vmatprep.subr.mxu0 %v4157
    %4221 = vmatpush1.msra.mxu0 %v4156
    %4222 = vmatprep.subr.mxu0 %v4159
    %4223 = vmatpush1.msra.mxu0 %v4158
    %4224 = vmatprep.subr.mxu0 %v4161
    %4225 = vmatpush1.msra.mxu0 %v4160
    %4226 = vmatprep.subr.mxu0 %v4163
    %4227 = vmatpush1.msra.mxu0 %v4162
    %4228 = vmatprep.subr.mxu0 %v4165
    %4229 = vmatpush1.msra.mxu0 %v4164
    %4230 = vmatprep.subr.mxu0 %v4167
    %4231 = vmatpush1.msra.mxu0 %v4166
    %4232 = vmatprep.mubr.f32.mxu0 %v2404
    %4233 = vmatmul.mubr.f32.gmra.mrb[0].mxu0 %v2403
    %v4234 = vpop.f32.mrb[0].mxu0
    %v4235 = vadd.f32 0.0, %v4234
    %v4236 = vpop.f32.mrb[0].mxu0
    %v4237 = vadd.f32 0.0, %v4236
    %4238 = vdwg.mxu0
    %s4239 = scalar_lea.vmem [#allocation11], 64
    %v4240 = vld [vmem:[%s4239] sm:$0xff]
    %v4242 = vsel %vm2386, %v4240, 0
    %4244 = vmatprep.subr.mxu0 %v4237
    %4245 = vmatpush1.msra.mxu0 %v4235
    %4246 = vmatprep.subr.mxu0 0.0
    %4247 = vmatpush1.msra.mxu0 0.0
    %4248 = vmatprep.subr.mxu0 0.0
    %4249 = vmatpush1.msra.mxu0 0.0
    %4250 = vmatprep.subr.mxu0 0.0
    %4251 = vmatpush1.msra.mxu0 0.0
    %4252 = vmatprep.subr.mxu0 0.0
    %4253 = vmatpush1.msra.mxu0 0.0
    %4254 = vmatprep.subr.mxu0 0.0
    %4255 = vmatpush1.msra.mxu0 0.0
    %4256 = vmatprep.subr.mxu0 0.0
    %4257 = vmatpush1.msra.mxu0 0.0
    %4258 = vmatprep.subr.mxu0 0.0
    %4259 = vmatpush1.msra.mxu0 0.0
    %4260 = vmatprep.subr.mxu0 0.0
    %4261 = vmatpush1.msra.mxu0 0.0
    %4262 = vmatprep.subr.mxu0 0.0
    %4263 = vmatpush1.msra.mxu0 0.0
    %4264 = vmatprep.subr.mxu0 0.0
    %4265 = vmatpush1.msra.mxu0 0.0
    %4266 = vmatprep.subr.mxu0 0.0
    %4267 = vmatpush1.msra.mxu0 0.0
    %4268 = vmatprep.subr.mxu0 0.0
    %4269 = vmatpush1.msra.mxu0 0.0
    %4270 = vmatprep.subr.mxu0 0.0
    %4271 = vmatpush1.msra.mxu0 0.0
    %4272 = vmatprep.subr.mxu0 0.0
    %4273 = vmatpush1.msra.mxu0 0.0
    %4274 = vmatprep.subr.mxu0 0.0
    %4275 = vmatpush1.msra.mxu0 0.0
    %4276 = vmatprep.subr.mxu0 0.0
    %4277 = vmatpush1.msra.mxu0 0.0
    %4278 = vmatprep.subr.mxu0 0.0
    %4279 = vmatpush1.msra.mxu0 0.0
    %4280 = vmatprep.subr.mxu0 0.0
    %4281 = vmatpush1.msra.mxu0 0.0
    %4282 = vmatprep.subr.mxu0 0.0
    %4283 = vmatpush1.msra.mxu0 0.0
    %4284 = vmatprep.subr.mxu0 0.0
    %4285 = vmatpush1.msra.mxu0 0.0
    %4286 = vmatprep.subr.mxu0 0.0
    %4287 = vmatpush1.msra.mxu0 0.0
    %4288 = vmatprep.subr.mxu0 0.0
    %4289 = vmatpush1.msra.mxu0 0.0
    %4290 = vmatprep.subr.mxu0 0.0
    %4291 = vmatpush1.msra.mxu0 0.0
    %4292 = vmatprep.subr.mxu0 0.0
    %4293 = vmatpush1.msra.mxu0 0.0
    %4294 = vmatprep.subr.mxu0 0.0
    %4295 = vmatpush1.msra.mxu0 0.0
    %4296 = vmatprep.subr.mxu0 0.0
    %4297 = vmatpush1.msra.mxu0 0.0
    %4298 = vmatprep.subr.mxu0 0.0
    %4299 = vmatpush1.msra.mxu0 0.0
    %4300 = vmatprep.subr.mxu0 0.0
    %4301 = vmatpush1.msra.mxu0 0.0
    %4302 = vmatprep.subr.mxu0 0.0
    %4303 = vmatpush1.msra.mxu0 0.0
    %4304 = vmatprep.subr.mxu0 0.0
    %4305 = vmatpush1.msra.mxu0 0.0
    %4306 = vmatprep.subr.mxu0 0.0
    %4307 = vmatpush1.msra.mxu0 0.0
    %4308 = vmatprep.mubr.f32.mxu0 0.0
    %4309 = vmatmul.mubr.f32.gmra.mrb[0].mxu0 %v4242
    %v4310 = vpop.f32.mrb[0].mxu0
    %v4311 = vadd.f32 0.0, %v4310
    %v4312 = vpop.f32.mrb[0].mxu0
    %v4313 = vadd.f32 0.0, %v4312
    %4314 = vdwg.mxu0
    %v4315 = vadd.f32 %v4102, %v4311
    %v4316 = vadd.f32 %v4103, %v4313
    %v4317 = vld [vmem:[#allocation13] sm:$0xff]
    %4319 = vset.pattern.permute.xlu0 0
    %4320 = vperm.xlu0 %4319, %v4317
    %v4321 = vpop.permute.xlu0 %4320
    %v4323 = vadd.f32 %v4315, %v4321
    %v4324 = vadd.f32 %v4316, %v4321
    %4325 = vmatprep.subr.mxu0 %v4324
    %4326 = vmatpush1.xpose.msra.mxu0 %v4323
    %4327 = vmatprep.subr.mxu0 0.0
    %4328 = vmatpush1.xpose.msra.mxu0 0.0
    %4329 = vmatprep.subr.mxu0 0.0
    %4330 = vmatpush1.xpose.msra.mxu0 0.0
    %4331 = vmatprep.subr.mxu0 0.0
    %4332 = vmatpush1.xpose.msra.mxu0 0.0
    %4333 = vmatprep.subr.mxu0 0.0
    %4334 = vmatpush1.xpose.msra.mxu0 0.0
    %4335 = vmatprep.subr.mxu0 0.0
    %4336 = vmatpush1.xpose.msra.mxu0 0.0
    %4337 = vmatprep.subr.mxu0 0.0
    %4338 = vmatpush1.xpose.msra.mxu0 0.0
    %4339 = vmatprep.subr.mxu0 0.0
    %4340 = vmatpush1.xpose.msra.mxu0 0.0
    %4341 = vmatprep.subr.mxu0 0.0
    %4342 = vmatpush1.xpose.msra.mxu0 0.0
    %4343 = vmatprep.subr.mxu0 0.0
    %4344 = vmatpush1.xpose.msra.mxu0 0.0
    %4345 = vmatprep.subr.mxu0 0.0
    %4346 = vmatpush1.xpose.msra.mxu0 0.0
    %4347 = vmatprep.subr.mxu0 0.0
    %4348 = vmatpush1.xpose.msra.mxu0 0.0
    %4349 = vmatprep.subr.mxu0 0.0
    %4350 = vmatpush1.xpose.msra.mxu0 0.0
    %4351 = vmatprep.subr.mxu0 0.0
    %4352 = vmatpush1.xpose.msra.mxu0 0.0
    %4353 = vmatprep.subr.mxu0 0.0
    %4354 = vmatpush1.xpose.msra.mxu0 0.0
    %4355 = vmatprep.subr.mxu0 0.0
    %4356 = vmatpush1.xpose.msra.mxu0 0.0
    %4357 = vmatprep.subr.mxu0 0.0
    %4358 = vmatpush1.xpose.msra.mxu0 0.0
    %4359 = vmatprep.subr.mxu0 0.0
    %4360 = vmatpush1.xpose.msra.mxu0 0.0
    %4361 = vmatprep.subr.mxu0 0.0
    %4362 = vmatpush1.xpose.msra.mxu0 0.0
    %4363 = vmatprep.subr.mxu0 0.0
    %4364 = vmatpush1.xpose.msra.mxu0 0.0
    %4365 = vmatprep.subr.mxu0 0.0
    %4366 = vmatpush1.xpose.msra.mxu0 0.0
    %4367 = vmatprep.subr.mxu0 0.0
    %4368 = vmatpush1.xpose.msra.mxu0 0.0
    %4369 = vmatprep.subr.mxu0 0.0
    %4370 = vmatpush1.xpose.msra.mxu0 0.0
    %4371 = vmatprep.subr.mxu0 0.0
    %4372 = vmatpush1.xpose.msra.mxu0 0.0
    %4373 = vmatprep.subr.mxu0 0.0
    %4374 = vmatpush1.xpose.msra.mxu0 0.0
    %4375 = vmatprep.subr.mxu0 0.0
    %4376 = vmatpush1.xpose.msra.mxu0 0.0
    %4377 = vmatprep.subr.mxu0 0.0
    %4378 = vmatpush1.xpose.msra.mxu0 0.0
    %4379 = vmatprep.subr.mxu0 0.0
    %4380 = vmatpush1.xpose.msra.mxu0 0.0
    %4381 = vmatprep.subr.mxu0 0.0
    %4382 = vmatpush1.xpose.msra.mxu0 0.0
    %4383 = vmatprep.subr.mxu0 0.0
    %4384 = vmatpush1.xpose.msra.mxu0 0.0
    %4385 = vmatprep.subr.mxu0 0.0
    %4386 = vmatpush1.xpose.msra.mxu0 0.0
    %4387 = vmatprep.subr.mxu0 0.0
    %4388 = vmatpush1.xpose.msra.mxu0 0.0
    %4389 = vmatprep.mubr.f32.mxu0 %v4324
    %4390 = vmatmul.mubr.f32.gmra.mrb[0].mxu0 %v4323
    %v4391 = vpop.f32.mrb[0].mxu0
    %v4392 = vadd.f32 0.0, %v4391
    %v4393 = vpop.f32.mrb[0].mxu0
    %4394 = vdwg.mxu0
    %v4395 = vmul.f32 %v4392, 0.00048828125
    %4396 = vst.msk [vmem:[#allocation34] sm:$0xff] %vm2386, %v4395
    %v4397 = vld [vmem:[#allocation28] sm:$0xff]
    %v4398 = vsub.f32 %v4395, %v4397
    %v4399 = vmul.f32 %v4398, %v4398
    %v4400 = vsel %vm2386, %v4399, 0.0
    %4401 = vadd.xlane.f32.xlu0 %v4400
    %v4402 = vpop.xlane.xlu0 %4401
    %v4403 = vrot.slane %v4402, 4
    %v4404 = vadd.f32 %v4402, %v4403
    %v4405 = vrot.slane %v4404, 2
    %v4406 = vadd.f32 %v4404, %v4405
    %v4407 = vrot.slane %v4406, 1
    %v4408 = vadd.f32 %v4406, %v4407
    %v4409 = vmul.f32 %v4408, 0.015625
    %4410 = vst.msk [vmem:[#allocation37] sm:$0x1] %vm2401, %v4409
    %v4411 = vmax.f32 %v4323, 0.0
    %v4412 = vmax.f32 %v4324, 0.0
    %v4413 = vld [vmem:[#allocation20] sm:$0xff]
    %v4414 = vld [vmem:[#allocation20 + $0x8] sm:$0xff]
    %v4415 = vld [vmem:[#allocation20 + $0x10] sm:$0xff]
    %v4416 = vld [vmem:[#allocation20 + $0x18] sm:$0xff]
    %v4417 = vld [vmem:[#allocation20 + $0x20] sm:$0xff]
    %v4418 = vld [vmem:[#allocation20 + $0x28] sm:$0xff]
    %v4419 = vld [vmem:[#allocation20 + $0x30] sm:$0xff]
    %v4420 = vld [vmem:[#allocation20 + $0x38] sm:$0xff]
    %v4421 = vld [vmem:[#allocation20 + $0x40] sm:$0xff]
    %v4422 = vld [vmem:[#allocation20 + $0x48] sm:$0xff]
    %v4423 = vld [vmem:[#allocation20 + $0x50] sm:$0xff]
    %v4424 = vld [vmem:[#allocation20 + $0x58] sm:$0xff]
    %v4425 = vld [vmem:[#allocation20 + $0x60] sm:$0xff]
    %v4426 = vld [vmem:[#allocation20 + $0x68] sm:$0xff]
    %v4427 = vld [vmem:[#allocation20 + $0x70] sm:$0xff]
    %v4428 = vld [vmem:[#allocation20 + $0x78] sm:$0xff]
    %v4429 = vld [vmem:[#allocation20 + $0x80] sm:$0xff]
    %v4430 = vld [vmem:[#allocation20 + $0x88] sm:$0xff]
    %v4431 = vld [vmem:[#allocation20 + $0x90] sm:$0xff]
    %v4432 = vld [vmem:[#allocation20 + $0x98] sm:$0xff]
    %v4433 = vld [vmem:[#allocation20 + $0xa0] sm:$0xff]
    %v4434 = vld [vmem:[#allocation20 + $0xa8] sm:$0xff]
    %v4435 = vld [vmem:[#allocation20 + $0xb0] sm:$0xff]
    %v4436 = vld [vmem:[#allocation20 + $0xb8] sm:$0xff]
    %v4437 = vld [vmem:[#allocation20 + $0xc0] sm:$0xff]
    %v4438 = vld [vmem:[#allocation20 + $0xc8] sm:$0xff]
    %v4439 = vld [vmem:[#allocation20 + $0xd0] sm:$0xff]
    %v4440 = vld [vmem:[#allocation20 + $0xd8] sm:$0xff]
    %v4441 = vld [vmem:[#allocation20 + $0xe0] sm:$0xff]
    %v4442 = vld [vmem:[#allocation20 + $0xe8] sm:$0xff]
    %v4443 = vld [vmem:[#allocation20 + $0xf0] sm:$0xff]
    %v4444 = vld [vmem:[#allocation20 + $0xf8] sm:$0xff]
    %v4445 = vld [vmem:[#allocation20 + $0x100] sm:$0xff]
    %v4446 = vld [vmem:[#allocation20 + $0x108] sm:$0xff]
    %v4447 = vld [vmem:[#allocation20 + $0x110] sm:$0xff]
    %v4448 = vld [vmem:[#allocation20 + $0x118] sm:$0xff]
    %v4449 = vld [vmem:[#allocation20 + $0x120] sm:$0xff]
    %v4450 = vld [vmem:[#allocation20 + $0x128] sm:$0xff]
    %v4451 = vld [vmem:[#allocation20 + $0x130] sm:$0xff]
    %v4452 = vld [vmem:[#allocation20 + $0x138] sm:$0xff]
    %v4453 = vld [vmem:[#allocation20 + $0x140] sm:$0xff]
    %v4454 = vld [vmem:[#allocation20 + $0x148] sm:$0xff]
    %v4455 = vld [vmem:[#allocation20 + $0x150] sm:$0xff]
    %v4456 = vld [vmem:[#allocation20 + $0x158] sm:$0xff]
    %v4457 = vld [vmem:[#allocation20 + $0x160] sm:$0xff]
    %v4458 = vld [vmem:[#allocation20 + $0x168] sm:$0xff]
    %v4459 = vld [vmem:[#allocation20 + $0x170] sm:$0xff]
    %v4460 = vld [vmem:[#allocation20 + $0x178] sm:$0xff]
    %v4461 = vld [vmem:[#allocation20 + $0x180] sm:$0xff]
    %v4462 = vld [vmem:[#allocation20 + $0x188] sm:$0xff]
    %v4463 = vld [vmem:[#allocation20 + $0x190] sm:$0xff]
    %v4464 = vld [vmem:[#allocation20 + $0x198] sm:$0xff]
    %v4465 = vld [vmem:[#allocation20 + $0x1a0] sm:$0xff]
    %v4466 = vld [vmem:[#allocation20 + $0x1a8] sm:$0xff]
    %v4467 = vld [vmem:[#allocation20 + $0x1b0] sm:$0xff]
    %v4468 = vld [vmem:[#allocation20 + $0x1b8] sm:$0xff]
    %v4469 = vld [vmem:[#allocation20 + $0x1c0] sm:$0xff]
    %v4470 = vld [vmem:[#allocation20 + $0x1c8] sm:$0xff]
    %v4471 = vld [vmem:[#allocation20 + $0x1d0] sm:$0xff]
    %v4472 = vld [vmem:[#allocation20 + $0x1d8] sm:$0xff]
    %v4473 = vld [vmem:[#allocation20 + $0x1e0] sm:$0xff]
    %v4474 = vld [vmem:[#allocation20 + $0x1e8] sm:$0xff]
    %v4475 = vld [vmem:[#allocation20 + $0x1f0] sm:$0xff]
    %v4476 = vld [vmem:[#allocation20 + $0x1f8] sm:$0xff]
    %4477 = vmatprep.subr.mxu0 %v4414
    %4478 = vmatpush1.msra.mxu0 %v4413
    %4479 = vmatprep.subr.mxu0 %v4416
    %4480 = vmatpush1.msra.mxu0 %v4415
    %4481 = vmatprep.subr.mxu0 %v4418
    %4482 = vmatpush1.msra.mxu0 %v4417
    %4483 = vmatprep.subr.mxu0 %v4420
    %4484 = vmatpush1.msra.mxu0 %v4419
    %4485 = vmatprep.subr.mxu0 %v4422
    %4486 = vmatpush1.msra.mxu0 %v4421
    %4487 = vmatprep.subr.mxu0 %v4424
    %4488 = vmatpush1.msra.mxu0 %v4423
    %4489 = vmatprep.subr.mxu0 %v4426
    %4490 = vmatpush1.msra.mxu0 %v4425
    %4491 = vmatprep.subr.mxu0 %v4428
    %4492 = vmatpush1.msra.mxu0 %v4427
    %4493 = vmatprep.subr.mxu0 %v4430
    %4494 = vmatpush1.msra.mxu0 %v4429
    %4495 = vmatprep.subr.mxu0 %v4432
    %4496 = vmatpush1.msra.mxu0 %v4431
    %4497 = vmatprep.subr.mxu0 %v4434
    %4498 = vmatpush1.msra.mxu0 %v4433
    %4499 = vmatprep.subr.mxu0 %v4436
    %4500 = vmatpush1.msra.mxu0 %v4435
    %4501 = vmatprep.subr.mxu0 %v4438
    %4502 = vmatpush1.msra.mxu0 %v4437
    %4503 = vmatprep.subr.mxu0 %v4440
    %4504 = vmatpush1.msra.mxu0 %v4439
    %4505 = vmatprep.subr.mxu0 %v4442
    %4506 = vmatpush1.msra.mxu0 %v4441
    %4507 = vmatprep.subr.mxu0 %v4444
    %4508 = vmatpush1.msra.mxu0 %v4443
    %4509 = vmatprep.subr.mxu0 %v4446
    %4510 = vmatpush1.msra.mxu0 %v4445
    %4511 = vmatprep.subr.mxu0 %v4448
    %4512 = vmatpush1.msra.mxu0 %v4447
    %4513 = vmatprep.subr.mxu0 %v4450
    %4514 = vmatpush1.msra.mxu0 %v4449
    %4515 = vmatprep.subr.mxu0 %v4452
    %4516 = vmatpush1.msra.mxu0 %v4451
    %4517 = vmatprep.subr.mxu0 %v4454
    %4518 = vmatpush1.msra.mxu0 %v4453
    %4519 = vmatprep.subr.mxu0 %v4456
    %4520 = vmatpush1.msra.mxu0 %v4455
    %4521 = vmatprep.subr.mxu0 %v4458
    %4522 = vmatpush1.msra.mxu0 %v4457
    %4523 = vmatprep.subr.mxu0 %v4460
    %4524 = vmatpush1.msra.mxu0 %v4459
    %4525 = vmatprep.subr.mxu0 %v4462
    %4526 = vmatpush1.msra.mxu0 %v4461
    %4527 = vmatprep.subr.mxu0 %v4464
    %4528 = vmatpush1.msra.mxu0 %v4463
    %4529 = vmatprep.subr.mxu0 %v4466
    %4530 = vmatpush1.msra.mxu0 %v4465
    %4531 = vmatprep.subr.mxu0 %v4468
    %4532 = vmatpush1.msra.mxu0 %v4467
    %4533 = vmatprep.subr.mxu0 %v4470
    %4534 = vmatpush1.msra.mxu0 %v4469
    %4535 = vmatprep.subr.mxu0 %v4472
    %4536 = vmatpush1.msra.mxu0 %v4471
    %4537 = vmatprep.subr.mxu0 %v4474
    %4538 = vmatpush1.msra.mxu0 %v4473
    %4539 = vmatprep.subr.mxu0 %v4476
    %4540 = vmatpush1.msra.mxu0 %v4475
    %4541 = vmatprep.mubr.f32.mxu0 %v4412
    %4542 = vmatmul.mubr.f32.gmra.mrb[0].mxu0 %v4411
    %v4543 = vpop.f32.mrb[0].mxu0
    %v4544 = vadd.f32 0.0, %v4543
    %v4545 = vpop.f32.mrb[0].mxu0
    %v4546 = vadd.f32 0.0, %v4545
    %4547 = vdwg.mxu0
    %v4548 = vmax.f32 %v4411, %v4544
    %v4549 = vmax.f32 %v4412, %v4546
    %v4550 = vld [vmem:[#allocation22] sm:$0xff]
    %v4551 = vld [vmem:[#allocation22 + $0x8] sm:$0xff]
    %v4552 = vld [vmem:[#allocation22 + $0x10] sm:$0xff]
    %v4553 = vld [vmem:[#allocation22 + $0x18] sm:$0xff]
    %v4554 = vld [vmem:[#allocation22 + $0x20] sm:$0xff]
    %v4555 = vld [vmem:[#allocation22 + $0x28] sm:$0xff]
    %v4556 = vld [vmem:[#allocation22 + $0x30] sm:$0xff]
    %v4557 = vld [vmem:[#allocation22 + $0x38] sm:$0xff]
    %v4558 = vld [vmem:[#allocation22 + $0x40] sm:$0xff]
    %v4559 = vld [vmem:[#allocation22 + $0x48] sm:$0xff]
    %v4560 = vld [vmem:[#allocation22 + $0x50] sm:$0xff]
    %v4561 = vld [vmem:[#allocation22 + $0x58] sm:$0xff]
    %v4562 = vld [vmem:[#allocation22 + $0x60] sm:$0xff]
    %v4563 = vld [vmem:[#allocation22 + $0x68] sm:$0xff]
    %v4564 = vld [vmem:[#allocation22 + $0x70] sm:$0xff]
    %v4565 = vld [vmem:[#allocation22 + $0x78] sm:$0xff]
    %v4566 = vld [vmem:[#allocation22 + $0x80] sm:$0xff]
    %v4567 = vld [vmem:[#allocation22 + $0x88] sm:$0xff]
    %v4568 = vld [vmem:[#allocation22 + $0x90] sm:$0xff]
    %v4569 = vld [vmem:[#allocation22 + $0x98] sm:$0xff]
    %v4570 = vld [vmem:[#allocation22 + $0xa0] sm:$0xff]
    %v4571 = vld [vmem:[#allocation22 + $0xa8] sm:$0xff]
    %v4572 = vld [vmem:[#allocation22 + $0xb0] sm:$0xff]
    %v4573 = vld [vmem:[#allocation22 + $0xb8] sm:$0xff]
    %v4574 = vld [vmem:[#allocation22 + $0xc0] sm:$0xff]
    %v4575 = vld [vmem:[#allocation22 + $0xc8] sm:$0xff]
    %v4576 = vld [vmem:[#allocation22 + $0xd0] sm:$0xff]
    %v4577 = vld [vmem:[#allocation22 + $0xd8] sm:$0xff]
    %v4578 = vld [vmem:[#allocation22 + $0xe0] sm:$0xff]
    %v4579 = vld [vmem:[#allocation22 + $0xe8] sm:$0xff]
    %v4580 = vld [vmem:[#allocation22 + $0xf0] sm:$0xff]
    %v4581 = vld [vmem:[#allocation22 + $0xf8] sm:$0xff]
    %4582 = vmatprep.subr.mxu0 0.0
    %4583 = vmatpush1.msra.mxu0 %v4550
    %4584 = vmatprep.subr.mxu0 0.0
    %4585 = vmatpush1.msra.mxu0 %v4551
    %4586 = vmatprep.subr.mxu0 0.0
    %4587 = vmatpush1.msra.mxu0 %v4552
    %4588 = vmatprep.subr.mxu0 0.0
    %4589 = vmatpush1.msra.mxu0 %v4553
    %4590 = vmatprep.subr.mxu0 0.0
    %4591 = vmatpush1.msra.mxu0 %v4554
    %4592 = vmatprep.subr.mxu0 0.0
    %4593 = vmatpush1.msra.mxu0 %v4555
    %4594 = vmatprep.subr.mxu0 0.0
    %4595 = vmatpush1.msra.mxu0 %v4556
    %4596 = vmatprep.subr.mxu0 0.0
    %4597 = vmatpush1.msra.mxu0 %v4557
    %4598 = vmatprep.subr.mxu0 0.0
    %4599 = vmatpush1.msra.mxu0 %v4558
    %4600 = vmatprep.subr.mxu0 0.0
    %4601 = vmatpush1.msra.mxu0 %v4559
    %4602 = vmatprep.subr.mxu0 0.0
    %4603 = vmatpush1.msra.mxu0 %v4560
    %4604 = vmatprep.subr.mxu0 0.0
    %4605 = vmatpush1.msra.mxu0 %v4561
    %4606 = vmatprep.subr.mxu0 0.0
    %4607 = vmatpush1.msra.mxu0 %v4562
    %4608 = vmatprep.subr.mxu0 0.0
    %4609 = vmatpush1.msra.mxu0 %v4563
    %4610 = vmatprep.subr.mxu0 0.0
    %4611 = vmatpush1.msra.mxu0 %v4564
    %4612 = vmatprep.subr.mxu0 0.0
    %4613 = vmatpush1.msra.mxu0 %v4565
    %4614 = vmatprep.subr.mxu0 0.0
    %4615 = vmatpush1.msra.mxu0 %v4566
    %4616 = vmatprep.subr.mxu0 0.0
    %4617 = vmatpush1.msra.mxu0 %v4567
    %4618 = vmatprep.subr.mxu0 0.0
    %4619 = vmatpush1.msra.mxu0 %v4568
    %4620 = vmatprep.subr.mxu0 0.0
    %4621 = vmatpush1.msra.mxu0 %v4569
    %4622 = vmatprep.subr.mxu0 0.0
    %4623 = vmatpush1.msra.mxu0 %v4570
    %4624 = vmatprep.subr.mxu0 0.0
    %4625 = vmatpush1.msra.mxu0 %v4571
    %4626 = vmatprep.subr.mxu0 0.0
    %4627 = vmatpush1.msra.mxu0 %v4572
    %4628 = vmatprep.subr.mxu0 0.0
    %4629 = vmatpush1.msra.mxu0 %v4573
    %4630 = vmatprep.subr.mxu0 0.0
    %4631 = vmatpush1.msra.mxu0 %v4574
    %4632 = vmatprep.subr.mxu0 0.0
    %4633 = vmatpush1.msra.mxu0 %v4575
    %4634 = vmatprep.subr.mxu0 0.0
    %4635 = vmatpush1.msra.mxu0 %v4576
    %4636 = vmatprep.subr.mxu0 0.0
    %4637 = vmatpush1.msra.mxu0 %v4577
    %4638 = vmatprep.subr.mxu0 0.0
    %4639 = vmatpush1.msra.mxu0 %v4578
    %4640 = vmatprep.subr.mxu0 0.0
    %4641 = vmatpush1.msra.mxu0 %v4579
    %4642 = vmatprep.subr.mxu0 0.0
    %4643 = vmatpush1.msra.mxu0 %v4580
    %4644 = vmatprep.subr.mxu0 0.0
    %4645 = vmatpush1.msra.mxu0 %v4581
    %4646 = vmatprep.mubr.f32.mxu0 %v4549
    %4647 = vmatmul.mubr.f32.gmra.mrb[0].mxu0 %v4548
    %v4648 = vpop.f32.mrb[0].mxu0
    %v4649 = vadd.f32 0.0, %v4648
    %v4650 = vpop.f32.mrb[0].mxu0
    %4651 = vdwg.mxu0
    %v4652 = vld [vmem:[#allocation23] sm:$0xff]
    %v4653 = vld [vmem:[#allocation23 + $0x8] sm:$0xff]
    %v4654 = vld [vmem:[#allocation23 + $0x10] sm:$0xff]
    %v4655 = vld [vmem:[#allocation23 + $0x18] sm:$0xff]
    %v4656 = vld [vmem:[#allocation23 + $0x20] sm:$0xff]
    %v4657 = vld [vmem:[#allocation23 + $0x28] sm:$0xff]
    %v4658 = vld [vmem:[#allocation23 + $0x30] sm:$0xff]
    %v4659 = vld [vmem:[#allocation23 + $0x38] sm:$0xff]
    %v4660 = vld [vmem:[#allocation23 + $0x40] sm:$0xff]
    %v4661 = vld [vmem:[#allocation23 + $0x48] sm:$0xff]
    %v4662 = vld [vmem:[#allocation23 + $0x50] sm:$0xff]
    %v4663 = vld [vmem:[#allocation23 + $0x58] sm:$0xff]
    %v4664 = vld [vmem:[#allocation23 + $0x60] sm:$0xff]
    %v4665 = vld [vmem:[#allocation23 + $0x68] sm:$0xff]
    %v4666 = vld [vmem:[#allocation23 + $0x70] sm:$0xff]
    %v4667 = vld [vmem:[#allocation23 + $0x78] sm:$0xff]
    %4668 = vmatprep.subr.mxu0 0.0
    %4669 = vmatpush1.msra.mxu0 %v4652
    %4670 = vmatprep.subr.mxu0 0.0
    %4671 = vmatpush1.msra.mxu0 %v4653
    %4672 = vmatprep.subr.mxu0 0.0
    %4673 = vmatpush1.msra.mxu0 %v4654
    %4674 = vmatprep.subr.mxu0 0.0
    %4675 = vmatpush1.msra.mxu0 %v4655
    %4676 = vmatprep.subr.mxu0 0.0
    %4677 = vmatpush1.msra.mxu0 %v4656
    %4678 = vmatprep.subr.mxu0 0.0
    %4679 = vmatpush1.msra.mxu0 %v4657
    %4680 = vmatprep.subr.mxu0 0.0
    %4681 = vmatpush1.msra.mxu0 %v4658
    %4682 = vmatprep.subr.mxu0 0.0
    %4683 = vmatpush1.msra.mxu0 %v4659
    %4684 = vmatprep.subr.mxu0 0.0
    %4685 = vmatpush1.msra.mxu0 %v4660
    %4686 = vmatprep.subr.mxu0 0.0
    %4687 = vmatpush1.msra.mxu0 %v4661
    %4688 = vmatprep.subr.mxu0 0.0
    %4689 = vmatpush1.msra.mxu0 %v4662
    %4690 = vmatprep.subr.mxu0 0.0
    %4691 = vmatpush1.msra.mxu0 %v4663
    %4692 = vmatprep.subr.mxu0 0.0
    %4693 = vmatpush1.msra.mxu0 %v4664
    %4694 = vmatprep.subr.mxu0 0.0
    %4695 = vmatpush1.msra.mxu0 %v4665
    %4696 = vmatprep.subr.mxu0 0.0
    %4697 = vmatpush1.msra.mxu0 %v4666
    %4698 = vmatprep.subr.mxu0 0.0
    %4699 = vmatpush1.msra.mxu0 %v4667
    %4700 = vmatprep.subr.mxu0 0.0
    %4701 = vmatpush1.msra.mxu0 0.0
    %4702 = vmatprep.subr.mxu0 0.0
    %4703 = vmatpush1.msra.mxu0 0.0
    %4704 = vmatprep.subr.mxu0 0.0
    %4705 = vmatpush1.msra.mxu0 0.0
    %4706 = vmatprep.subr.mxu0 0.0
    %4707 = vmatpush1.msra.mxu0 0.0
    %4708 = vmatprep.subr.mxu0 0.0
    %4709 = vmatpush1.msra.mxu0 0.0
    %4710 = vmatprep.subr.mxu0 0.0
    %4711 = vmatpush1.msra.mxu0 0.0
    %4712 = vmatprep.subr.mxu0 0.0
    %4713 = vmatpush1.msra.mxu0 0.0
    %4714 = vmatprep.subr.mxu0 0.0
    %4715 = vmatpush1.msra.mxu0 0.0
    %4716 = vmatprep.subr.mxu0 0.0
    %4717 = vmatpush1.msra.mxu0 0.0
    %4718 = vmatprep.subr.mxu0 0.0
    %4719 = vmatpush1.msra.mxu0 0.0
    %4720 = vmatprep.subr.mxu0 0.0
    %4721 = vmatpush1.msra.mxu0 0.0
    %4722 = vmatprep.subr.mxu0 0.0
    %4723 = vmatpush1.msra.mxu0 0.0
    %4724 = vmatprep.subr.mxu0 0.0
    %4725 = vmatpush1.msra.mxu0 0.0
    %4726 = vmatprep.subr.mxu0 0.0
    %4727 = vmatpush1.msra.mxu0 0.0
    %4728 = vmatprep.subr.mxu0 0.0
    %4729 = vmatpush1.msra.mxu0 0.0
    %4730 = vmatprep.subr.mxu0 0.0
    %4731 = vmatpush1.msra.mxu0 0.0
    %4732 = vmatprep.mubr.f32.mxu0 0.0
    %4733 = vmatmul.mubr.f32.gmra.mrb[0].mxu0 %v4649
    %v4734 = vpop.f32.mrb[0].mxu0
    %v4735 = vadd.f32 0.0, %v4734
    %v4736 = vpop.f32.mrb[0].mxu0
    %4737 = vdwg.mxu0
    %v4738 = vmax.f32 %v4649, %v4735
    %v4739 = vld [vmem:[#allocation25] sm:$0xff]
    %v4740 = vld [vmem:[#allocation25 + $0x8] sm:$0xff]
    %v4741 = vld [vmem:[#allocation25 + $0x10] sm:$0xff]
    %v4742 = vld [vmem:[#allocation25 + $0x18] sm:$0xff]
    %v4743 = vld [vmem:[#allocation25 + $0x20] sm:$0xff]
    %v4744 = vld [vmem:[#allocation25 + $0x28] sm:$0xff]
    %v4745 = vld [vmem:[#allocation25 + $0x30] sm:$0xff]
    %v4746 = vld [vmem:[#allocation25 + $0x38] sm:$0xff]
    %v4747 = vld [vmem:[#allocation25 + $0x40] sm:$0xff]
    %v4748 = vld [vmem:[#allocation25 + $0x48] sm:$0xff]
    %v4749 = vld [vmem:[#allocation25 + $0x50] sm:$0xff]
    %v4750 = vld [vmem:[#allocation25 + $0x58] sm:$0xff]
    %v4751 = vld [vmem:[#allocation25 + $0x60] sm:$0xff]
    %v4752 = vld [vmem:[#allocation25 + $0x68] sm:$0xff]
    %v4753 = vld [vmem:[#allocation25 + $0x70] sm:$0xff]
    %v4754 = vld [vmem:[#allocation25 + $0x78] sm:$0xff]
    %4755 = vmatprep.subr.mxu0 0.0
    %4756 = vmatpush1.msra.mxu0 %v4739
    %4757 = vmatprep.subr.mxu0 0.0
    %4758 = vmatpush1.msra.mxu0 %v4740
    %4759 = vmatprep.subr.mxu0 0.0
    %4760 = vmatpush1.msra.mxu0 %v4741
    %4761 = vmatprep.subr.mxu0 0.0
    %4762 = vmatpush1.msra.mxu0 %v4742
    %4763 = vmatprep.subr.mxu0 0.0
    %4764 = vmatpush1.msra.mxu0 %v4743
    %4765 = vmatprep.subr.mxu0 0.0
    %4766 = vmatpush1.msra.mxu0 %v4744
    %4767 = vmatprep.subr.mxu0 0.0
    %4768 = vmatpush1.msra.mxu0 %v4745
    %4769 = vmatprep.subr.mxu0 0.0
    %4770 = vmatpush1.msra.mxu0 %v4746
    %4771 = vmatprep.subr.mxu0 0.0
    %4772 = vmatpush1.msra.mxu0 %v4747
    %4773 = vmatprep.subr.mxu0 0.0
    %4774 = vmatpush1.msra.mxu0 %v4748
    %4775 = vmatprep.subr.mxu0 0.0
    %4776 = vmatpush1.msra.mxu0 %v4749
    %4777 = vmatprep.subr.mxu0 0.0
    %4778 = vmatpush1.msra.mxu0 %v4750
    %4779 = vmatprep.subr.mxu0 0.0
    %4780 = vmatpush1.msra.mxu0 %v4751
    %4781 = vmatprep.subr.mxu0 0.0
    %4782 = vmatpush1.msra.mxu0 %v4752
    %4783 = vmatprep.subr.mxu0 0.0
    %4784 = vmatpush1.msra.mxu0 %v4753
    %4785 = vmatprep.subr.mxu0 0.0
    %4786 = vmatpush1.msra.mxu0 %v4754
    %4787 = vmatprep.subr.mxu0 0.0
    %4788 = vmatpush1.msra.mxu0 0.0
    %4789 = vmatprep.subr.mxu0 0.0
    %4790 = vmatpush1.msra.mxu0 0.0
    %4791 = vmatprep.subr.mxu0 0.0
    %4792 = vmatpush1.msra.mxu0 0.0
    %4793 = vmatprep.subr.mxu0 0.0
    %4794 = vmatpush1.msra.mxu0 0.0
    %4795 = vmatprep.subr.mxu0 0.0
    %4796 = vmatpush1.msra.mxu0 0.0
    %4797 = vmatprep.subr.mxu0 0.0
    %4798 = vmatpush1.msra.mxu0 0.0
    %4799 = vmatprep.subr.mxu0 0.0
    %4800 = vmatpush1.msra.mxu0 0.0
    %4801 = vmatprep.subr.mxu0 0.0
    %4802 = vmatpush1.msra.mxu0 0.0
    %4803 = vmatprep.subr.mxu0 0.0
    %4804 = vmatpush1.msra.mxu0 0.0
    %4805 = vmatprep.subr.mxu0 0.0
    %4806 = vmatpush1.msra.mxu0 0.0
    %4807 = vmatprep.subr.mxu0 0.0
    %4808 = vmatpush1.msra.mxu0 0.0
    %4809 = vmatprep.subr.mxu0 0.0
    %4810 = vmatpush1.msra.mxu0 0.0
    %4811 = vmatprep.subr.mxu0 0.0
    %4812 = vmatpush1.msra.mxu0 0.0
    %4813 = vmatprep.subr.mxu0 0.0
    %4814 = vmatpush1.msra.mxu0 0.0
    %4815 = vmatprep.subr.mxu0 0.0
    %4816 = vmatpush1.msra.mxu0 0.0
    %4817 = vmatprep.subr.mxu0 0.0
    %4818 = vmatpush1.msra.mxu0 0.0
    %4819 = vmatprep.mubr.f32.mxu0 0.0
    %4820 = vmatmul.mubr.f32.gmra.mrb[0].mxu0 %v4738
    %v4821 = vpop.f32.mrb[0].mxu0
    %v4822 = vadd.f32 0.0, %v4821
    %v4823 = vpop.f32.mrb[0].mxu0
    %4824 = vdwg.mxu0
    %v4825 = vld [vmem:[#allocation19] sm:$0xff]
    %v4826 = vld [vmem:[#allocation19 + $0x8] sm:$0xff]
    %v4827 = vld [vmem:[#allocation19 + $0x10] sm:$0xff]
    %v4828 = vld [vmem:[#allocation19 + $0x18] sm:$0xff]
    %v4829 = vld [vmem:[#allocation19 + $0x20] sm:$0xff]
    %v4830 = vld [vmem:[#allocation19 + $0x28] sm:$0xff]
    %v4831 = vld [vmem:[#allocation19 + $0x30] sm:$0xff]
    %v4832 = vld [vmem:[#allocation19 + $0x38] sm:$0xff]
    %v4833 = vld [vmem:[#allocation19 + $0x40] sm:$0xff]
    %v4834 = vld [vmem:[#allocation19 + $0x48] sm:$0xff]
    %v4835 = vld [vmem:[#allocation19 + $0x50] sm:$0xff]
    %v4836 = vld [vmem:[#allocation19 + $0x58] sm:$0xff]
    %v4837 = vld [vmem:[#allocation19 + $0x60] sm:$0xff]
    %v4838 = vld [vmem:[#allocation19 + $0x68] sm:$0xff]
    %v4839 = vld [vmem:[#allocation19 + $0x70] sm:$0xff]
    %v4840 = vld [vmem:[#allocation19 + $0x78] sm:$0xff]
    %4841 = vmatprep.subr.mxu0 0.0
    %4842 = vmatpush1.msra.mxu0 %v4825
    %4843 = vmatprep.subr.mxu0 0.0
    %4844 = vmatpush1.msra.mxu0 %v4826
    %4845 = vmatprep.subr.mxu0 0.0
    %4846 = vmatpush1.msra.mxu0 %v4827
    %4847 = vmatprep.subr.mxu0 0.0
    %4848 = vmatpush1.msra.mxu0 %v4828
    %4849 = vmatprep.subr.mxu0 0.0
    %4850 = vmatpush1.msra.mxu0 %v4829
    %4851 = vmatprep.subr.mxu0 0.0
    %4852 = vmatpush1.msra.mxu0 %v4830
    %4853 = vmatprep.subr.mxu0 0.0
    %4854 = vmatpush1.msra.mxu0 %v4831
    %4855 = vmatprep.subr.mxu0 0.0
    %4856 = vmatpush1.msra.mxu0 %v4832
    %4857 = vmatprep.subr.mxu0 0.0
    %4858 = vmatpush1.msra.mxu0 %v4833
    %4859 = vmatprep.subr.mxu0 0.0
    %4860 = vmatpush1.msra.mxu0 %v4834
    %4861 = vmatprep.subr.mxu0 0.0
    %4862 = vmatpush1.msra.mxu0 %v4835
    %4863 = vmatprep.subr.mxu0 0.0
    %4864 = vmatpush1.msra.mxu0 %v4836
    %4865 = vmatprep.subr.mxu0 0.0
    %4866 = vmatpush1.msra.mxu0 %v4837
    %4867 = vmatprep.subr.mxu0 0.0
    %4868 = vmatpush1.msra.mxu0 %v4838
    %4869 = vmatprep.subr.mxu0 0.0
    %4870 = vmatpush1.msra.mxu0 %v4839
    %4871 = vmatprep.subr.mxu0 0.0
    %4872 = vmatpush1.msra.mxu0 %v4840
    %4873 = vmatprep.subr.mxu0 0.0
    %4874 = vmatpush1.msra.mxu0 0.0
    %4875 = vmatprep.subr.mxu0 0.0
    %4876 = vmatpush1.msra.mxu0 0.0
    %4877 = vmatprep.subr.mxu0 0.0
    %4878 = vmatpush1.msra.mxu0 0.0
    %4879 = vmatprep.subr.mxu0 0.0
    %4880 = vmatpush1.msra.mxu0 0.0
    %4881 = vmatprep.subr.mxu0 0.0
    %4882 = vmatpush1.msra.mxu0 0.0
    %4883 = vmatprep.subr.mxu0 0.0
    %4884 = vmatpush1.msra.mxu0 0.0
    %4885 = vmatprep.subr.mxu0 0.0
    %4886 = vmatpush1.msra.mxu0 0.0
    %4887 = vmatprep.subr.mxu0 0.0
    %4888 = vmatpush1.msra.mxu0 0.0
    %4889 = vmatprep.subr.mxu0 0.0
    %4890 = vmatpush1.msra.mxu0 0.0
    %4891 = vmatprep.subr.mxu0 0.0
    %4892 = vmatpush1.msra.mxu0 0.0
    %4893 = vmatprep.subr.mxu0 0.0
    %4894 = vmatpush1.msra.mxu0 0.0
    %4895 = vmatprep.subr.mxu0 0.0
    %4896 = vmatpush1.msra.mxu0 0.0
    %4897 = vmatprep.subr.mxu0 0.0
    %4898 = vmatpush1.msra.mxu0 0.0
    %4899 = vmatprep.subr.mxu0 0.0
    %4900 = vmatpush1.msra.mxu0 0.0
    %4901 = vmatprep.subr.mxu0 0.0
    %4902 = vmatpush1.msra.mxu0 0.0
    %4903 = vmatprep.subr.mxu0 0.0
    %4904 = vmatpush1.msra.mxu0 0.0
    %4905 = vmatprep.mubr.f32.mxu0 0.0
    %4906 = vmatmul.mubr.f32.gmra.mrb[0].mxu0 %v4822
    %v4907 = vpop.f32.mrb[0].mxu0
    %v4908 = vadd.f32 0.0, %v4907
    %v4909 = vpop.f32.mrb[0].mxu0
    %4910 = vdwg.mxu0
    %v4911 = vld [vmem:[#allocation14] sm:$0xff]
    %v4912 = vld [vmem:[#allocation14 + $0x8] sm:$0xff]
    %s4913 = scalar_lea.vmem [#allocation19], 128
    %v4914 = vld [vmem:[%s4913] sm:$0xff]
    %v4915 = vld [vmem:[%s4913 + $0x8] sm:$0xff]
    %v4916 = vld [vmem:[%s4913 + $0x10] sm:$0xff]
    %v4917 = vld [vmem:[%s4913 + $0x18] sm:$0xff]
    %v4918 = vld [vmem:[%s4913 + $0x20] sm:$0xff]
    %v4919 = vld [vmem:[%s4913 + $0x28] sm:$0xff]
    %v4920 = vld [vmem:[%s4913 + $0x30] sm:$0xff]
    %v4921 = vld [vmem:[%s4913 + $0x38] sm:$0xff]
    %v4922 = vld [vmem:[%s4913 + $0x40] sm:$0xff]
    %v4923 = vld [vmem:[%s4913 + $0x48] sm:$0xff]
    %v4924 = vld [vmem:[%s4913 + $0x50] sm:$0xff]
    %v4925 = vld [vmem:[%s4913 + $0x58] sm:$0xff]
    %v4926 = vld [vmem:[%s4913 + $0x60] sm:$0xff]
    %v4927 = vld [vmem:[%s4913 + $0x68] sm:$0xff]
    %v4928 = vld [vmem:[%s4913 + $0x70] sm:$0xff]
    %v4929 = vld [vmem:[%s4913 + $0x78] sm:$0xff]
    %4930 = vmatprep.subr.mxu0 0.0
    %4931 = vmatpush1.msra.mxu0 %v4914
    %4932 = vmatprep.subr.mxu0 0.0
    %4933 = vmatpush1.msra.mxu0 %v4915
    %4934 = vmatprep.subr.mxu0 0.0
    %4935 = vmatpush1.msra.mxu0 %v4916
    %4936 = vmatprep.subr.mxu0 0.0
    %4937 = vmatpush1.msra.mxu0 %v4917
    %4938 = vmatprep.subr.mxu0 0.0
    %4939 = vmatpush1.msra.mxu0 %v4918
    %4940 = vmatprep.subr.mxu0 0.0
    %4941 = vmatpush1.msra.mxu0 %v4919
    %4942 = vmatprep.subr.mxu0 0.0
    %4943 = vmatpush1.msra.mxu0 %v4920
    %4944 = vmatprep.subr.mxu0 0.0
    %4945 = vmatpush1.msra.mxu0 %v4921
    %4946 = vmatprep.subr.mxu0 0.0
    %4947 = vmatpush1.msra.mxu0 %v4922
    %4948 = vmatprep.subr.mxu0 0.0
    %4949 = vmatpush1.msra.mxu0 %v4923
    %4950 = vmatprep.subr.mxu0 0.0
    %4951 = vmatpush1.msra.mxu0 %v4924
    %4952 = vmatprep.subr.mxu0 0.0
    %4953 = vmatpush1.msra.mxu0 %v4925
    %4954 = vmatprep.subr.mxu0 0.0
    %4955 = vmatpush1.msra.mxu0 %v4926
    %4956 = vmatprep.subr.mxu0 0.0
    %4957 = vmatpush1.msra.mxu0 %v4927
    %4958 = vmatprep.subr.mxu0 0.0
    %4959 = vmatpush1.msra.mxu0 %v4928
    %4960 = vmatprep.subr.mxu0 0.0
    %4961 = vmatpush1.msra.mxu0 %v4929
    %4962 = vmatprep.subr.mxu0 0.0
    %4963 = vmatpush1.msra.mxu0 0.0
    %4964 = vmatprep.subr.mxu0 0.0
    %4965 = vmatpush1.msra.mxu0 0.0
    %4966 = vmatprep.subr.mxu0 0.0
    %4967 = vmatpush1.msra.mxu0 0.0
    %4968 = vmatprep.subr.mxu0 0.0
    %4969 = vmatpush1.msra.mxu0 0.0
    %4970 = vmatprep.subr.mxu0 0.0
    %4971 = vmatpush1.msra.mxu0 0.0
    %4972 = vmatprep.subr.mxu0 0.0
    %4973 = vmatpush1.msra.mxu0 0.0
    %4974 = vmatprep.subr.mxu0 0.0
    %4975 = vmatpush1.msra.mxu0 0.0
    %4976 = vmatprep.subr.mxu0 0.0
    %4977 = vmatpush1.msra.mxu0 0.0
    %4978 = vmatprep.subr.mxu0 0.0
    %4979 = vmatpush1.msra.mxu0 0.0
    %4980 = vmatprep.subr.mxu0 0.0
    %4981 = vmatpush1.msra.mxu0 0.0
    %4982 = vmatprep.subr.mxu0 0.0
    %4983 = vmatpush1.msra.mxu0 0.0
    %4984 = vmatprep.subr.mxu0 0.0
    %4985 = vmatpush1.msra.mxu0 0.0
    %4986 = vmatprep.subr.mxu0 0.0
    %4987 = vmatpush1.msra.mxu0 0.0
    %4988 = vmatprep.subr.mxu0 0.0
    %4989 = vmatpush1.msra.mxu0 0.0
    %4990 = vmatprep.subr.mxu0 0.0
    %4991 = vmatpush1.msra.mxu0 0.0
    %4992 = vmatprep.subr.mxu0 0.0
    %4993 = vmatpush1.msra.mxu0 0.0
    %4994 = vmatprep.mubr.f32.mxu0 0.0
    %4995 = vmatmul.mubr.f32.gmra.mrb[0].mxu0 %v4822
    %v4996 = vpop.f32.mrb[0].mxu0
    %v4997 = vadd.f32 0.0, %v4996
    %v4998 = vpop.f32.mrb[0].mxu0
    %4999 = vdwg.mxu0
    %s5000 = scalar_lea.vmem [#allocation14], 16
    %v5001 = vld [vmem:[%s5000] sm:$0xff]
    %v5002 = vld [vmem:[%s5000 + $0x8] sm:$0xff]
    %v5004 = vsel %vm2386, %v5001, 0
    %v5007 = vsel %vm2386, %v5002, 0
    %5009 = vmatprep.subr.mxu0 0.0
    %5010 = vmatpush1.msra.mxu0 %v4997
    %5011 = vmatprep.subr.mxu0 0.0
    %5012 = vmatpush1.msra.mxu0 0.0
    %5013 = vmatprep.subr.mxu0 0.0
    %5014 = vmatpush1.msra.mxu0 0.0
    %5015 = vmatprep.subr.mxu0 0.0
    %5016 = vmatpush1.msra.mxu0 0.0
    %5017 = vmatprep.subr.mxu0 0.0
    %5018 = vmatpush1.msra.mxu0 0.0
    %5019 = vmatprep.subr.mxu0 0.0
    %5020 = vmatpush1.msra.mxu0 0.0
    %5021 = vmatprep.subr.mxu0 0.0
    %5022 = vmatpush1.msra.mxu0 0.0
    %5023 = vmatprep.subr.mxu0 0.0
    %5024 = vmatpush1.msra.mxu0 0.0
    %5025 = vmatprep.subr.mxu0 0.0
    %5026 = vmatpush1.msra.mxu0 0.0
    %5027 = vmatprep.subr.mxu0 0.0
    %5028 = vmatpush1.msra.mxu0 0.0
    %5029 = vmatprep.subr.mxu0 0.0
    %5030 = vmatpush1.msra.mxu0 0.0
    %5031 = vmatprep.subr.mxu0 0.0
    %5032 = vmatpush1.msra.mxu0 0.0
    %5033 = vmatprep.subr.mxu0 0.0
    %5034 = vmatpush1.msra.mxu0 0.0
    %5035 = vmatprep.subr.mxu0 0.0
    %5036 = vmatpush1.msra.mxu0 0.0
    %5037 = vmatprep.subr.mxu0 0.0
    %5038 = vmatpush1.msra.mxu0 0.0
    %5039 = vmatprep.subr.mxu0 0.0
    %5040 = vmatpush1.msra.mxu0 0.0
    %5041 = vmatprep.subr.mxu0 0.0
    %5042 = vmatpush1.msra.mxu0 0.0
    %5043 = vmatprep.subr.mxu0 0.0
    %5044 = vmatpush1.msra.mxu0 0.0
    %5045 = vmatprep.subr.mxu0 0.0
    %5046 = vmatpush1.msra.mxu0 0.0
    %5047 = vmatprep.subr.mxu0 0.0
    %5048 = vmatpush1.msra.mxu0 0.0
    %5049 = vmatprep.subr.mxu0 0.0
    %5050 = vmatpush1.msra.mxu0 0.0
    %5051 = vmatprep.subr.mxu0 0.0
    %5052 = vmatpush1.msra.mxu0 0.0
    %5053 = vmatprep.subr.mxu0 0.0
    %5054 = vmatpush1.msra.mxu0 0.0
    %5055 = vmatprep.subr.mxu0 0.0
    %5056 = vmatpush1.msra.mxu0 0.0
    %5057 = vmatprep.subr.mxu0 0.0
    %5058 = vmatpush1.msra.mxu0 0.0
    %5059 = vmatprep.subr.mxu0 0.0
    %5060 = vmatpush1.msra.mxu0 0.0
    %5061 = vmatprep.subr.mxu0 0.0
    %5062 = vmatpush1.msra.mxu0 0.0
    %5063 = vmatprep.subr.mxu0 0.0
    %5064 = vmatpush1.msra.mxu0 0.0
    %5065 = vmatprep.subr.mxu0 0.0
    %5066 = vmatpush1.msra.mxu0 0.0
    %5067 = vmatprep.subr.mxu0 0.0
    %5068 = vmatpush1.msra.mxu0 0.0
    %5069 = vmatprep.subr.mxu0 0.0
    %5070 = vmatpush1.msra.mxu0 0.0
    %5071 = vmatprep.subr.mxu0 0.0
    %5072 = vmatpush1.msra.mxu0 0.0
    %5073 = vmatprep.mubr.f32.mxu0 0.0
    %5074 = vmatmul.mubr.f32.gmra.mrb[0].mxu0 %v5004
    %v5075 = vpop.f32.mrb[0].mxu0
    %v5076 = vadd.f32 0.0, %v5075
    %v5077 = vpop.f32.mrb[0].mxu0
    %5078 = vmatprep.mubr.f32.mxu0 0.0
    %5079 = vmatmul.mubr.f32.gmra.mrb[0].mxu0 %v5007
    %v5080 = vpop.f32.mrb[0].mxu0
    %v5081 = vadd.f32 0.0, %v5080
    %v5082 = vpop.f32.mrb[0].mxu0
    %5083 = vdwg.mxu0
    %v5085 = vsel %vm2386, %v4911, 0
    %v5088 = vsel %vm2386, %v4912, 0
    %5090 = vmatprep.subr.mxu0 0.0
    %5091 = vmatpush1.msra.mxu0 %v4908
    %5092 = vmatprep.subr.mxu0 0.0
    %5093 = vmatpush1.msra.mxu0 0.0
    %5094 = vmatprep.subr.mxu0 0.0
    %5095 = vmatpush1.msra.mxu0 0.0
    %5096 = vmatprep.subr.mxu0 0.0
    %5097 = vmatpush1.msra.mxu0 0.0
    %5098 = vmatprep.subr.mxu0 0.0
    %5099 = vmatpush1.msra.mxu0 0.0
    %5100 = vmatprep.subr.mxu0 0.0
    %5101 = vmatpush1.msra.mxu0 0.0
    %5102 = vmatprep.subr.mxu0 0.0
    %5103 = vmatpush1.msra.mxu0 0.0
    %5104 = vmatprep.subr.mxu0 0.0
    %5105 = vmatpush1.msra.mxu0 0.0
    %5106 = vmatprep.subr.mxu0 0.0
    %5107 = vmatpush1.msra.mxu0 0.0
    %5108 = vmatprep.subr.mxu0 0.0
    %5109 = vmatpush1.msra.mxu0 0.0
    %5110 = vmatprep.subr.mxu0 0.0
    %5111 = vmatpush1.msra.mxu0 0.0
    %5112 = vmatprep.subr.mxu0 0.0
    %5113 = vmatpush1.msra.mxu0 0.0
    %5114 = vmatprep.subr.mxu0 0.0
    %5115 = vmatpush1.msra.mxu0 0.0
    %5116 = vmatprep.subr.mxu0 0.0
    %5117 = vmatpush1.msra.mxu0 0.0
    %5118 = vmatprep.subr.mxu0 0.0
    %5119 = vmatpush1.msra.mxu0 0.0
    %5120 = vmatprep.subr.mxu0 0.0
    %5121 = vmatpush1.msra.mxu0 0.0
    %5122 = vmatprep.subr.mxu0 0.0
    %5123 = vmatpush1.msra.mxu0 0.0
    %5124 = vmatprep.subr.mxu0 0.0
    %5125 = vmatpush1.msra.mxu0 0.0
    %5126 = vmatprep.subr.mxu0 0.0
    %5127 = vmatpush1.msra.mxu0 0.0
    %5128 = vmatprep.subr.mxu0 0.0
    %5129 = vmatpush1.msra.mxu0 0.0
    %5130 = vmatprep.subr.mxu0 0.0
    %5131 = vmatpush1.msra.mxu0 0.0
    %5132 = vmatprep.subr.mxu0 0.0
    %5133 = vmatpush1.msra.mxu0 0.0
    %5134 = vmatprep.subr.mxu0 0.0
    %5135 = vmatpush1.msra.mxu0 0.0
    %5136 = vmatprep.subr.mxu0 0.0
    %5137 = vmatpush1.msra.mxu0 0.0
    %5138 = vmatprep.subr.mxu0 0.0
    %5139 = vmatpush1.msra.mxu0 0.0
    %5140 = vmatprep.subr.mxu0 0.0
    %5141 = vmatpush1.msra.mxu0 0.0
    %5142 = vmatprep.subr.mxu0 0.0
    %5143 = vmatpush1.msra.mxu0 0.0
    %5144 = vmatprep.subr.mxu0 0.0
    %5145 = vmatpush1.msra.mxu0 0.0
    %5146 = vmatprep.subr.mxu0 0.0
    %5147 = vmatpush1.msra.mxu0 0.0
    %5148 = vmatprep.subr.mxu0 0.0
    %5149 = vmatpush1.msra.mxu0 0.0
    %5150 = vmatprep.subr.mxu0 0.0
    %5151 = vmatpush1.msra.mxu0 0.0
    %5152 = vmatprep.subr.mxu0 0.0
    %5153 = vmatpush1.msra.mxu0 0.0
    %5154 = vmatprep.mubr.f32.mxu0 0.0
    %5155 = vmatmul.mubr.f32.gmra.mrb[0].mxu0 %v5085
    %v5156 = vpop.f32.mrb[0].mxu0
    %v5157 = vadd.f32 %v5076, %v5156
    %v5158 = vpop.f32.mrb[0].mxu0
    %5159 = vmatprep.mubr.f32.mxu0 0.0
    %5160 = vmatmul.mubr.f32.gmra.mrb[0].mxu0 %v5088
    %v5161 = vpop.f32.mrb[0].mxu0
    %v5162 = vadd.f32 %v5081, %v5161
    %v5163 = vpop.f32.mrb[0].mxu0
    %5164 = vdwg.mxu0
    %s5165 = scalar_lea.vmem [#allocation19], 256
    %v5166 = vld [vmem:[%s5165] sm:$0xff]
    %v5167 = vld [vmem:[%s5165 + $0x8] sm:$0xff]
    %v5168 = vld [vmem:[%s5165 + $0x10] sm:$0xff]
    %v5169 = vld [vmem:[%s5165 + $0x18] sm:$0xff]
    %v5170 = vld [vmem:[%s5165 + $0x20] sm:$0xff]
    %v5171 = vld [vmem:[%s5165 + $0x28] sm:$0xff]
    %v5172 = vld [vmem:[%s5165 + $0x30] sm:$0xff]
    %v5173 = vld [vmem:[%s5165 + $0x38] sm:$0xff]
    %v5174 = vld [vmem:[%s5165 + $0x40] sm:$0xff]
    %v5175 = vld [vmem:[%s5165 + $0x48] sm:$0xff]
    %v5176 = vld [vmem:[%s5165 + $0x50] sm:$0xff]
    %v5177 = vld [vmem:[%s5165 + $0x58] sm:$0xff]
    %v5178 = vld [vmem:[%s5165 + $0x60] sm:$0xff]
    %v5179 = vld [vmem:[%s5165 + $0x68] sm:$0xff]
    %v5180 = vld [vmem:[%s5165 + $0x70] sm:$0xff]
    %v5181 = vld [vmem:[%s5165 + $0x78] sm:$0xff]
    %5182 = vmatprep.subr.mxu0 0.0
    %5183 = vmatpush1.msra.mxu0 %v5166
    %5184 = vmatprep.subr.mxu0 0.0
    %5185 = vmatpush1.msra.mxu0 %v5167
    %5186 = vmatprep.subr.mxu0 0.0
    %5187 = vmatpush1.msra.mxu0 %v5168
    %5188 = vmatprep.subr.mxu0 0.0
    %5189 = vmatpush1.msra.mxu0 %v5169
    %5190 = vmatprep.subr.mxu0 0.0
    %5191 = vmatpush1.msra.mxu0 %v5170
    %5192 = vmatprep.subr.mxu0 0.0
    %5193 = vmatpush1.msra.mxu0 %v5171
    %5194 = vmatprep.subr.mxu0 0.0
    %5195 = vmatpush1.msra.mxu0 %v5172
    %5196 = vmatprep.subr.mxu0 0.0
    %5197 = vmatpush1.msra.mxu0 %v5173
    %5198 = vmatprep.subr.mxu0 0.0
    %5199 = vmatpush1.msra.mxu0 %v5174
    %5200 = vmatprep.subr.mxu0 0.0
    %5201 = vmatpush1.msra.mxu0 %v5175
    %5202 = vmatprep.subr.mxu0 0.0
    %5203 = vmatpush1.msra.mxu0 %v5176
    %5204 = vmatprep.subr.mxu0 0.0
    %5205 = vmatpush1.msra.mxu0 %v5177
    %5206 = vmatprep.subr.mxu0 0.0
    %5207 = vmatpush1.msra.mxu0 %v5178
    %5208 = vmatprep.subr.mxu0 0.0
    %5209 = vmatpush1.msra.mxu0 %v5179
    %5210 = vmatprep.subr.mxu0 0.0
    %5211 = vmatpush1.msra.mxu0 %v5180
    %5212 = vmatprep.subr.mxu0 0.0
    %5213 = vmatpush1.msra.mxu0 %v5181
    %5214 = vmatprep.subr.mxu0 0.0
    %5215 = vmatpush1.msra.mxu0 0.0
    %5216 = vmatprep.subr.mxu0 0.0
    %5217 = vmatpush1.msra.mxu0 0.0
    %5218 = vmatprep.subr.mxu0 0.0
    %5219 = vmatpush1.msra.mxu0 0.0
    %5220 = vmatprep.subr.mxu0 0.0
    %5221 = vmatpush1.msra.mxu0 0.0
    %5222 = vmatprep.subr.mxu0 0.0
    %5223 = vmatpush1.msra.mxu0 0.0
    %5224 = vmatprep.subr.mxu0 0.0
    %5225 = vmatpush1.msra.mxu0 0.0
    %5226 = vmatprep.subr.mxu0 0.0
    %5227 = vmatpush1.msra.mxu0 0.0
    %5228 = vmatprep.subr.mxu0 0.0
    %5229 = vmatpush1.msra.mxu0 0.0
    %5230 = vmatprep.subr.mxu0 0.0
    %5231 = vmatpush1.msra.mxu0 0.0
    %5232 = vmatprep.subr.mxu0 0.0
    %5233 = vmatpush1.msra.mxu0 0.0
    %5234 = vmatprep.subr.mxu0 0.0
    %5235 = vmatpush1.msra.mxu0 0.0
    %5236 = vmatprep.subr.mxu0 0.0
    %5237 = vmatpush1.msra.mxu0 0.0
    %5238 = vmatprep.subr.mxu0 0.0
    %5239 = vmatpush1.msra.mxu0 0.0
    %5240 = vmatprep.subr.mxu0 0.0
    %5241 = vmatpush1.msra.mxu0 0.0
    %5242 = vmatprep.subr.mxu0 0.0
    %5243 = vmatpush1.msra.mxu0 0.0
    %5244 = vmatprep.subr.mxu0 0.0
    %5245 = vmatpush1.msra.mxu0 0.0
    %5246 = vmatprep.mubr.f32.mxu0 0.0
    %5247 = vmatmul.mubr.f32.gmra.mrb[0].mxu0 %v4822
    %v5248 = vpop.f32.mrb[0].mxu0
    %v5249 = vadd.f32 0.0, %v5248
    %v5250 = vpop.f32.mrb[0].mxu0
    %5251 = vdwg.mxu0
    %s5252 = scalar_lea.vmem [#allocation14], 32
    %v5253 = vld [vmem:[%s5252] sm:$0xff]
    %v5254 = vld [vmem:[%s5252 + $0x8] sm:$0xff]
    %v5256 = vsel %vm2386, %v5253, 0
    %v5259 = vsel %vm2386, %v5254, 0
    %5261 = vmatprep.subr.mxu0 0.0
    %5262 = vmatpush1.msra.mxu0 %v5249
    %5263 = vmatprep.subr.mxu0 0.0
    %5264 = vmatpush1.msra.mxu0 0.0
    %5265 = vmatprep.subr.mxu0 0.0
    %5266 = vmatpush1.msra.mxu0 0.0
    %5267 = vmatprep.subr.mxu0 0.0
    %5268 = vmatpush1.msra.mxu0 0.0
    %5269 = vmatprep.subr.mxu0 0.0
    %5270 = vmatpush1.msra.mxu0 0.0
    %5271 = vmatprep.subr.mxu0 0.0
    %5272 = vmatpush1.msra.mxu0 0.0
    %5273 = vmatprep.subr.mxu0 0.0
    %5274 = vmatpush1.msra.mxu0 0.0
    %5275 = vmatprep.subr.mxu0 0.0
    %5276 = vmatpush1.msra.mxu0 0.0
    %5277 = vmatprep.subr.mxu0 0.0
    %5278 = vmatpush1.msra.mxu0 0.0
    %5279 = vmatprep.subr.mxu0 0.0
    %5280 = vmatpush1.msra.mxu0 0.0
    %5281 = vmatprep.subr.mxu0 0.0
    %5282 = vmatpush1.msra.mxu0 0.0
    %5283 = vmatprep.subr.mxu0 0.0
    %5284 = vmatpush1.msra.mxu0 0.0
    %5285 = vmatprep.subr.mxu0 0.0
    %5286 = vmatpush1.msra.mxu0 0.0
    %5287 = vmatprep.subr.mxu0 0.0
    %5288 = vmatpush1.msra.mxu0 0.0
    %5289 = vmatprep.subr.mxu0 0.0
    %5290 = vmatpush1.msra.mxu0 0.0
    %5291 = vmatprep.subr.mxu0 0.0
    %5292 = vmatpush1.msra.mxu0 0.0
    %5293 = vmatprep.subr.mxu0 0.0
    %5294 = vmatpush1.msra.mxu0 0.0
    %5295 = vmatprep.subr.mxu0 0.0
    %5296 = vmatpush1.msra.mxu0 0.0
    %5297 = vmatprep.subr.mxu0 0.0
    %5298 = vmatpush1.msra.mxu0 0.0
    %5299 = vmatprep.subr.mxu0 0.0
    %5300 = vmatpush1.msra.mxu0 0.0
    %5301 = vmatprep.subr.mxu0 0.0
    %5302 = vmatpush1.msra.mxu0 0.0
    %5303 = vmatprep.subr.mxu0 0.0
    %5304 = vmatpush1.msra.mxu0 0.0
    %5305 = vmatprep.subr.mxu0 0.0
    %5306 = vmatpush1.msra.mxu0 0.0
    %5307 = vmatprep.subr.mxu0 0.0
    %5308 = vmatpush1.msra.mxu0 0.0
    %5309 = vmatprep.subr.mxu0 0.0
    %5310 = vmatpush1.msra.mxu0 0.0
    %5311 = vmatprep.subr.mxu0 0.0
    %5312 = vmatpush1.msra.mxu0 0.0
    %5313 = vmatprep.subr.mxu0 0.0
    %5314 = vmatpush1.msra.mxu0 0.0
    %5315 = vmatprep.subr.mxu0 0.0
    %5316 = vmatpush1.msra.mxu0 0.0
    %5317 = vmatprep.subr.mxu0 0.0
    %5318 = vmatpush1.msra.mxu0 0.0
    %5319 = vmatprep.subr.mxu0 0.0
    %5320 = vmatpush1.msra.mxu0 0.0
    %5321 = vmatprep.subr.mxu0 0.0
    %5322 = vmatpush1.msra.mxu0 0.0
    %5323 = vmatprep.subr.mxu0 0.0
    %5324 = vmatpush1.msra.mxu0 0.0
    %5325 = vmatprep.mubr.f32.mxu0 0.0
    %5326 = vmatmul.mubr.f32.gmra.mrb[0].mxu0 %v5256
    %v5327 = vpop.f32.mrb[0].mxu0
    %v5328 = vadd.f32 0.0, %v5327
    %v5329 = vpop.f32.mrb[0].mxu0
    %5330 = vmatprep.mubr.f32.mxu0 0.0
    %5331 = vmatmul.mubr.f32.gmra.mrb[0].mxu0 %v5259
    %v5332 = vpop.f32.mrb[0].mxu0
    %v5333 = vadd.f32 0.0, %v5332
    %v5334 = vpop.f32.mrb[0].mxu0
    %5335 = vdwg.mxu0
    %v5336 = vadd.f32 %v5157, %v5328
    %v5337 = vadd.f32 %v5162, %v5333
    %s5338 = scalar_lea.vmem [#allocation19], 384
    %v5339 = vld [vmem:[%s5338] sm:$0xff]
    %v5340 = vld [vmem:[%s5338 + $0x8] sm:$0xff]
    %v5341 = vld [vmem:[%s5338 + $0x10] sm:$0xff]
    %v5342 = vld [vmem:[%s5338 + $0x18] sm:$0xff]
    %v5343 = vld [vmem:[%s5338 + $0x20] sm:$0xff]
    %v5344 = vld [vmem:[%s5338 + $0x28] sm:$0xff]
    %v5345 = vld [vmem:[%s5338 + $0x30] sm:$0xff]
    %v5346 = vld [vmem:[%s5338 + $0x38] sm:$0xff]
    %v5347 = vld [vmem:[%s5338 + $0x40] sm:$0xff]
    %v5348 = vld [vmem:[%s5338 + $0x48] sm:$0xff]
    %v5349 = vld [vmem:[%s5338 + $0x50] sm:$0xff]
    %v5350 = vld [vmem:[%s5338 + $0x58] sm:$0xff]
    %v5351 = vld [vmem:[%s5338 + $0x60] sm:$0xff]
    %v5352 = vld [vmem:[%s5338 + $0x68] sm:$0xff]
    %v5353 = vld [vmem:[%s5338 + $0x70] sm:$0xff]
    %v5354 = vld [vmem:[%s5338 + $0x78] sm:$0xff]
    %5355 = vmatprep.subr.mxu0 0.0
    %5356 = vmatpush1.msra.mxu0 %v5339
    %5357 = vmatprep.subr.mxu0 0.0
    %5358 = vmatpush1.msra.mxu0 %v5340
    %5359 = vmatprep.subr.mxu0 0.0
    %5360 = vmatpush1.msra.mxu0 %v5341
    %5361 = vmatprep.subr.mxu0 0.0
    %5362 = vmatpush1.msra.mxu0 %v5342
    %5363 = vmatprep.subr.mxu0 0.0
    %5364 = vmatpush1.msra.mxu0 %v5343
    %5365 = vmatprep.subr.mxu0 0.0
    %5366 = vmatpush1.msra.mxu0 %v5344
    %5367 = vmatprep.subr.mxu0 0.0
    %5368 = vmatpush1.msra.mxu0 %v5345
    %5369 = vmatprep.subr.mxu0 0.0
    %5370 = vmatpush1.msra.mxu0 %v5346
    %5371 = vmatprep.subr.mxu0 0.0
    %5372 = vmatpush1.msra.mxu0 %v5347
    %5373 = vmatprep.subr.mxu0 0.0
    %5374 = vmatpush1.msra.mxu0 %v5348
    %5375 = vmatprep.subr.mxu0 0.0
    %5376 = vmatpush1.msra.mxu0 %v5349
    %5377 = vmatprep.subr.mxu0 0.0
    %5378 = vmatpush1.msra.mxu0 %v5350
    %5379 = vmatprep.subr.mxu0 0.0
    %5380 = vmatpush1.msra.mxu0 %v5351
    %5381 = vmatprep.subr.mxu0 0.0
    %5382 = vmatpush1.msra.mxu0 %v5352
    %5383 = vmatprep.subr.mxu0 0.0
    %5384 = vmatpush1.msra.mxu0 %v5353
    %5385 = vmatprep.subr.mxu0 0.0
    %5386 = vmatpush1.msra.mxu0 %v5354
    %5387 = vmatprep.subr.mxu0 0.0
    %5388 = vmatpush1.msra.mxu0 0.0
    %5389 = vmatprep.subr.mxu0 0.0
    %5390 = vmatpush1.msra.mxu0 0.0
    %5391 = vmatprep.subr.mxu0 0.0
    %5392 = vmatpush1.msra.mxu0 0.0
    %5393 = vmatprep.subr.mxu0 0.0
    %5394 = vmatpush1.msra.mxu0 0.0
    %5395 = vmatprep.subr.mxu0 0.0
    %5396 = vmatpush1.msra.mxu0 0.0
    %5397 = vmatprep.subr.mxu0 0.0
    %5398 = vmatpush1.msra.mxu0 0.0
    %5399 = vmatprep.subr.mxu0 0.0
    %5400 = vmatpush1.msra.mxu0 0.0
    %5401 = vmatprep.subr.mxu0 0.0
    %5402 = vmatpush1.msra.mxu0 0.0
    %5403 = vmatprep.subr.mxu0 0.0
    %5404 = vmatpush1.msra.mxu0 0.0
    %5405 = vmatprep.subr.mxu0 0.0
    %5406 = vmatpush1.msra.mxu0 0.0
    %5407 = vmatprep.subr.mxu0 0.0
    %5408 = vmatpush1.msra.mxu0 0.0
    %5409 = vmatprep.subr.mxu0 0.0
    %5410 = vmatpush1.msra.mxu0 0.0
    %5411 = vmatprep.subr.mxu0 0.0
    %5412 = vmatpush1.msra.mxu0 0.0
    %5413 = vmatprep.subr.mxu0 0.0
    %5414 = vmatpush1.msra.mxu0 0.0
    %5415 = vmatprep.subr.mxu0 0.0
    %5416 = vmatpush1.msra.mxu0 0.0
    %5417 = vmatprep.subr.mxu0 0.0
    %5418 = vmatpush1.msra.mxu0 0.0
    %5419 = vmatprep.mubr.f32.mxu0 0.0
    %5420 = vmatmul.mubr.f32.gmra.mrb[0].mxu0 %v4822
    %v5421 = vpop.f32.mrb[0].mxu0
    %v5422 = vadd.f32 0.0, %v5421
    %v5423 = vpop.f32.mrb[0].mxu0
    %5424 = vdwg.mxu0
    %s5425 = scalar_lea.vmem [#allocation14], 48
    %v5426 = vld [vmem:[%s5425] sm:$0xff]
    %v5427 = vld [vmem:[%s5425 + $0x8] sm:$0xff]
    %v5429 = vsel %vm2386, %v5426, 0
    %v5432 = vsel %vm2386, %v5427, 0
    %5434 = vmatprep.subr.mxu0 0.0
    %5435 = vmatpush1.msra.mxu0 %v5422
    %5436 = vmatprep.subr.mxu0 0.0
    %5437 = vmatpush1.msra.mxu0 0.0
    %5438 = vmatprep.subr.mxu0 0.0
    %5439 = vmatpush1.msra.mxu0 0.0
    %5440 = vmatprep.subr.mxu0 0.0
    %5441 = vmatpush1.msra.mxu0 0.0
    %5442 = vmatprep.subr.mxu0 0.0
    %5443 = vmatpush1.msra.mxu0 0.0
    %5444 = vmatprep.subr.mxu0 0.0
    %5445 = vmatpush1.msra.mxu0 0.0
    %5446 = vmatprep.subr.mxu0 0.0
    %5447 = vmatpush1.msra.mxu0 0.0
    %5448 = vmatprep.subr.mxu0 0.0
    %5449 = vmatpush1.msra.mxu0 0.0
    %5450 = vmatprep.subr.mxu0 0.0
    %5451 = vmatpush1.msra.mxu0 0.0
    %5452 = vmatprep.subr.mxu0 0.0
    %5453 = vmatpush1.msra.mxu0 0.0
    %5454 = vmatprep.subr.mxu0 0.0
    %5455 = vmatpush1.msra.mxu0 0.0
    %5456 = vmatprep.subr.mxu0 0.0
    %5457 = vmatpush1.msra.mxu0 0.0
    %5458 = vmatprep.subr.mxu0 0.0
    %5459 = vmatpush1.msra.mxu0 0.0
    %5460 = vmatprep.subr.mxu0 0.0
    %5461 = vmatpush1.msra.mxu0 0.0
    %5462 = vmatprep.subr.mxu0 0.0
    %5463 = vmatpush1.msra.mxu0 0.0
    %5464 = vmatprep.subr.mxu0 0.0
    %5465 = vmatpush1.msra.mxu0 0.0
    %5466 = vmatprep.subr.mxu0 0.0
    %5467 = vmatpush1.msra.mxu0 0.0
    %5468 = vmatprep.subr.mxu0 0.0
    %5469 = vmatpush1.msra.mxu0 0.0
    %5470 = vmatprep.subr.mxu0 0.0
    %5471 = vmatpush1.msra.mxu0 0.0
    %5472 = vmatprep.subr.mxu0 0.0
    %5473 = vmatpush1.msra.mxu0 0.0
    %5474 = vmatprep.subr.mxu0 0.0
    %5475 = vmatpush1.msra.mxu0 0.0
    %5476 = vmatprep.subr.mxu0 0.0
    %5477 = vmatpush1.msra.mxu0 0.0
    %5478 = vmatprep.subr.mxu0 0.0
    %5479 = vmatpush1.msra.mxu0 0.0
    %5480 = vmatprep.subr.mxu0 0.0
    %5481 = vmatpush1.msra.mxu0 0.0
    %5482 = vmatprep.subr.mxu0 0.0
    %5483 = vmatpush1.msra.mxu0 0.0
    %5484 = vmatprep.subr.mxu0 0.0
    %5485 = vmatpush1.msra.mxu0 0.0
    %5486 = vmatprep.subr.mxu0 0.0
    %5487 = vmatpush1.msra.mxu0 0.0
    %5488 = vmatprep.subr.mxu0 0.0
    %5489 = vmatpush1.msra.mxu0 0.0
    %5490 = vmatprep.subr.mxu0 0.0
    %5491 = vmatpush1.msra.mxu0 0.0
    %5492 = vmatprep.subr.mxu0 0.0
    %5493 = vmatpush1.msra.mxu0 0.0
    %5494 = vmatprep.subr.mxu0 0.0
    %5495 = vmatpush1.msra.mxu0 0.0
    %5496 = vmatprep.subr.mxu0 0.0
    %5497 = vmatpush1.msra.mxu0 0.0
    %5498 = vmatprep.mubr.f32.mxu0 0.0
    %5499 = vmatmul.mubr.f32.gmra.mrb[0].mxu0 %v5429
    %v5500 = vpop.f32.mrb[0].mxu0
    %v5501 = vadd.f32 0.0, %v5500
    %v5502 = vpop.f32.mrb[0].mxu0
    %5503 = vmatprep.mubr.f32.mxu0 0.0
    %5504 = vmatmul.mubr.f32.gmra.mrb[0].mxu0 %v5432
    %v5505 = vpop.f32.mrb[0].mxu0
    %v5506 = vadd.f32 0.0, %v5505
    %v5507 = vpop.f32.mrb[0].mxu0
    %5508 = vdwg.mxu0
    %v5509 = vadd.f32 %v5336, %v5501
    %v5510 = vadd.f32 %v5337, %v5506
    %s5511 = scalar_lea.vmem [#allocation19], 512
    %v5512 = vld [vmem:[%s5511] sm:$0xff]
    %v5513 = vld [vmem:[%s5511 + $0x8] sm:$0xff]
    %v5514 = vld [vmem:[%s5511 + $0x10] sm:$0xff]
    %v5515 = vld [vmem:[%s5511 + $0x18] sm:$0xff]
    %v5516 = vld [vmem:[%s5511 + $0x20] sm:$0xff]
    %v5517 = vld [vmem:[%s5511 + $0x28] sm:$0xff]
    %v5518 = vld [vmem:[%s5511 + $0x30] sm:$0xff]
    %v5519 = vld [vmem:[%s5511 + $0x38] sm:$0xff]
    %v5520 = vld [vmem:[%s5511 + $0x40] sm:$0xff]
    %v5521 = vld [vmem:[%s5511 + $0x48] sm:$0xff]
    %v5522 = vld [vmem:[%s5511 + $0x50] sm:$0xff]
    %v5523 = vld [vmem:[%s5511 + $0x58] sm:$0xff]
    %v5524 = vld [vmem:[%s5511 + $0x60] sm:$0xff]
    %v5525 = vld [vmem:[%s5511 + $0x68] sm:$0xff]
    %v5526 = vld [vmem:[%s5511 + $0x70] sm:$0xff]
    %v5527 = vld [vmem:[%s5511 + $0x78] sm:$0xff]
    %5528 = vmatprep.subr.mxu0 0.0
    %5529 = vmatpush1.msra.mxu0 %v5512
    %5530 = vmatprep.subr.mxu0 0.0
    %5531 = vmatpush1.msra.mxu0 %v5513
    %5532 = vmatprep.subr.mxu0 0.0
    %5533 = vmatpush1.msra.mxu0 %v5514
    %5534 = vmatprep.subr.mxu0 0.0
    %5535 = vmatpush1.msra.mxu0 %v5515
    %5536 = vmatprep.subr.mxu0 0.0
    %5537 = vmatpush1.msra.mxu0 %v5516
    %5538 = vmatprep.subr.mxu0 0.0
    %5539 = vmatpush1.msra.mxu0 %v5517
    %5540 = vmatprep.subr.mxu0 0.0
    %5541 = vmatpush1.msra.mxu0 %v5518
    %5542 = vmatprep.subr.mxu0 0.0
    %5543 = vmatpush1.msra.mxu0 %v5519
    %5544 = vmatprep.subr.mxu0 0.0
    %5545 = vmatpush1.msra.mxu0 %v5520
    %5546 = vmatprep.subr.mxu0 0.0
    %5547 = vmatpush1.msra.mxu0 %v5521
    %5548 = vmatprep.subr.mxu0 0.0
    %5549 = vmatpush1.msra.mxu0 %v5522
    %5550 = vmatprep.subr.mxu0 0.0
    %5551 = vmatpush1.msra.mxu0 %v5523
    %5552 = vmatprep.subr.mxu0 0.0
    %5553 = vmatpush1.msra.mxu0 %v5524
    %5554 = vmatprep.subr.mxu0 0.0
    %5555 = vmatpush1.msra.mxu0 %v5525
    %5556 = vmatprep.subr.mxu0 0.0
    %5557 = vmatpush1.msra.mxu0 %v5526
    %5558 = vmatprep.subr.mxu0 0.0
    %5559 = vmatpush1.msra.mxu0 %v5527
    %5560 = vmatprep.subr.mxu0 0.0
    %5561 = vmatpush1.msra.mxu0 0.0
    %5562 = vmatprep.subr.mxu0 0.0
    %5563 = vmatpush1.msra.mxu0 0.0
    %5564 = vmatprep.subr.mxu0 0.0
    %5565 = vmatpush1.msra.mxu0 0.0
    %5566 = vmatprep.subr.mxu0 0.0
    %5567 = vmatpush1.msra.mxu0 0.0
    %5568 = vmatprep.subr.mxu0 0.0
    %5569 = vmatpush1.msra.mxu0 0.0
    %5570 = vmatprep.subr.mxu0 0.0
    %5571 = vmatpush1.msra.mxu0 0.0
    %5572 = vmatprep.subr.mxu0 0.0
    %5573 = vmatpush1.msra.mxu0 0.0
    %5574 = vmatprep.subr.mxu0 0.0
    %5575 = vmatpush1.msra.mxu0 0.0
    %5576 = vmatprep.subr.mxu0 0.0
    %5577 = vmatpush1.msra.mxu0 0.0
    %5578 = vmatprep.subr.mxu0 0.0
    %5579 = vmatpush1.msra.mxu0 0.0
    %5580 = vmatprep.subr.mxu0 0.0
    %5581 = vmatpush1.msra.mxu0 0.0
    %5582 = vmatprep.subr.mxu0 0.0
    %5583 = vmatpush1.msra.mxu0 0.0
    %5584 = vmatprep.subr.mxu0 0.0
    %5585 = vmatpush1.msra.mxu0 0.0
    %5586 = vmatprep.subr.mxu0 0.0
    %5587 = vmatpush1.msra.mxu0 0.0
    %5588 = vmatprep.subr.mxu0 0.0
    %5589 = vmatpush1.msra.mxu0 0.0
    %5590 = vmatprep.subr.mxu0 0.0
    %5591 = vmatpush1.msra.mxu0 0.0
    %5592 = vmatprep.mubr.f32.mxu0 0.0
    %5593 = vmatmul.mubr.f32.gmra.mrb[0].mxu0 %v4822
    %v5594 = vpop.f32.mrb[0].mxu0
    %v5595 = vadd.f32 0.0, %v5594
    %v5596 = vpop.f32.mrb[0].mxu0
    %5597 = vdwg.mxu0
    %s5598 = scalar_lea.vmem [#allocation14], 64
    %v5599 = vld [vmem:[%s5598] sm:$0xff]
    %v5600 = vld [vmem:[%s5598 + $0x8] sm:$0xff]
    %v5602 = vsel %vm2386, %v5599, 0
    %v5605 = vsel %vm2386, %v5600, 0
    %5607 = vmatprep.subr.mxu0 0.0
    %5608 = vmatpush1.msra.mxu0 %v5595
    %5609 = vmatprep.subr.mxu0 0.0
    %5610 = vmatpush1.msra.mxu0 0.0
    %5611 = vmatprep.subr.mxu0 0.0
    %5612 = vmatpush1.msra.mxu0 0.0
    %5613 = vmatprep.subr.mxu0 0.0
    %5614 = vmatpush1.msra.mxu0 0.0
    %5615 = vmatprep.subr.mxu0 0.0
    %5616 = vmatpush1.msra.mxu0 0.0
    %5617 = vmatprep.subr.mxu0 0.0
    %5618 = vmatpush1.msra.mxu0 0.0
    %5619 = vmatprep.subr.mxu0 0.0
    %5620 = vmatpush1.msra.mxu0 0.0
    %5621 = vmatprep.subr.mxu0 0.0
    %5622 = vmatpush1.msra.mxu0 0.0
    %5623 = vmatprep.subr.mxu0 0.0
    %5624 = vmatpush1.msra.mxu0 0.0
    %5625 = vmatprep.subr.mxu0 0.0
    %5626 = vmatpush1.msra.mxu0 0.0
    %5627 = vmatprep.subr.mxu0 0.0
    %5628 = vmatpush1.msra.mxu0 0.0
    %5629 = vmatprep.subr.mxu0 0.0
    %5630 = vmatpush1.msra.mxu0 0.0
    %5631 = vmatprep.subr.mxu0 0.0
    %5632 = vmatpush1.msra.mxu0 0.0
    %5633 = vmatprep.subr.mxu0 0.0
    %5634 = vmatpush1.msra.mxu0 0.0
    %5635 = vmatprep.subr.mxu0 0.0
    %5636 = vmatpush1.msra.mxu0 0.0
    %5637 = vmatprep.subr.mxu0 0.0
    %5638 = vmatpush1.msra.mxu0 0.0
    %5639 = vmatprep.subr.mxu0 0.0
    %5640 = vmatpush1.msra.mxu0 0.0
    %5641 = vmatprep.subr.mxu0 0.0
    %5642 = vmatpush1.msra.mxu0 0.0
    %5643 = vmatprep.subr.mxu0 0.0
    %5644 = vmatpush1.msra.mxu0 0.0
    %5645 = vmatprep.subr.mxu0 0.0
    %5646 = vmatpush1.msra.mxu0 0.0
    %5647 = vmatprep.subr.mxu0 0.0
    %5648 = vmatpush1.msra.mxu0 0.0
    %5649 = vmatprep.subr.mxu0 0.0
    %5650 = vmatpush1.msra.mxu0 0.0
    %5651 = vmatprep.subr.mxu0 0.0
    %5652 = vmatpush1.msra.mxu0 0.0
    %5653 = vmatprep.subr.mxu0 0.0
    %5654 = vmatpush1.msra.mxu0 0.0
    %5655 = vmatprep.subr.mxu0 0.0
    %5656 = vmatpush1.msra.mxu0 0.0
    %5657 = vmatprep.subr.mxu0 0.0
    %5658 = vmatpush1.msra.mxu0 0.0
    %5659 = vmatprep.subr.mxu0 0.0
    %5660 = vmatpush1.msra.mxu0 0.0
    %5661 = vmatprep.subr.mxu0 0.0
    %5662 = vmatpush1.msra.mxu0 0.0
    %5663 = vmatprep.subr.mxu0 0.0
    %5664 = vmatpush1.msra.mxu0 0.0
    %5665 = vmatprep.subr.mxu0 0.0
    %5666 = vmatpush1.msra.mxu0 0.0
    %5667 = vmatprep.subr.mxu0 0.0
    %5668 = vmatpush1.msra.mxu0 0.0
    %5669 = vmatprep.subr.mxu0 0.0
    %5670 = vmatpush1.msra.mxu0 0.0
    %5671 = vmatprep.mubr.f32.mxu0 0.0
    %5672 = vmatmul.mubr.f32.gmra.mrb[0].mxu0 %v5602
    %v5673 = vpop.f32.mrb[0].mxu0
    %v5674 = vadd.f32 0.0, %v5673
    %v5675 = vpop.f32.mrb[0].mxu0
    %5676 = vmatprep.mubr.f32.mxu0 0.0
    %5677 = vmatmul.mubr.f32.gmra.mrb[0].mxu0 %v5605
    %v5678 = vpop.f32.mrb[0].mxu0
    %v5679 = vadd.f32 0.0, %v5678
    %v5680 = vpop.f32.mrb[0].mxu0
    %5681 = vdwg.mxu0
    %v5682 = vadd.f32 %v5509, %v5674
    %v5683 = vadd.f32 %v5510, %v5679
    %s5684 = scalar_lea.vmem [#allocation19], 640
    %v5685 = vld [vmem:[%s5684] sm:$0xff]
    %v5686 = vld [vmem:[%s5684 + $0x8] sm:$0xff]
    %v5687 = vld [vmem:[%s5684 + $0x10] sm:$0xff]
    %v5688 = vld [vmem:[%s5684 + $0x18] sm:$0xff]
    %v5689 = vld [vmem:[%s5684 + $0x20] sm:$0xff]
    %v5690 = vld [vmem:[%s5684 + $0x28] sm:$0xff]
    %v5691 = vld [vmem:[%s5684 + $0x30] sm:$0xff]
    %v5692 = vld [vmem:[%s5684 + $0x38] sm:$0xff]
    %v5693 = vld [vmem:[%s5684 + $0x40] sm:$0xff]
    %v5694 = vld [vmem:[%s5684 + $0x48] sm:$0xff]
    %v5695 = vld [vmem:[%s5684 + $0x50] sm:$0xff]
    %v5696 = vld [vmem:[%s5684 + $0x58] sm:$0xff]
    %v5697 = vld [vmem:[%s5684 + $0x60] sm:$0xff]
    %v5698 = vld [vmem:[%s5684 + $0x68] sm:$0xff]
    %v5699 = vld [vmem:[%s5684 + $0x70] sm:$0xff]
    %v5700 = vld [vmem:[%s5684 + $0x78] sm:$0xff]
    %5701 = vmatprep.subr.mxu0 0.0
    %5702 = vmatpush1.msra.mxu0 %v5685
    %5703 = vmatprep.subr.mxu0 0.0
    %5704 = vmatpush1.msra.mxu0 %v5686
    %5705 = vmatprep.subr.mxu0 0.0
    %5706 = vmatpush1.msra.mxu0 %v5687
    %5707 = vmatprep.subr.mxu0 0.0
    %5708 = vmatpush1.msra.mxu0 %v5688
    %5709 = vmatprep.subr.mxu0 0.0
    %5710 = vmatpush1.msra.mxu0 %v5689
    %5711 = vmatprep.subr.mxu0 0.0
    %5712 = vmatpush1.msra.mxu0 %v5690
    %5713 = vmatprep.subr.mxu0 0.0
    %5714 = vmatpush1.msra.mxu0 %v5691
    %5715 = vmatprep.subr.mxu0 0.0
    %5716 = vmatpush1.msra.mxu0 %v5692
    %5717 = vmatprep.subr.mxu0 0.0
    %5718 = vmatpush1.msra.mxu0 %v5693
    %5719 = vmatprep.subr.mxu0 0.0
    %5720 = vmatpush1.msra.mxu0 %v5694
    %5721 = vmatprep.subr.mxu0 0.0
    %5722 = vmatpush1.msra.mxu0 %v5695
    %5723 = vmatprep.subr.mxu0 0.0
    %5724 = vmatpush1.msra.mxu0 %v5696
    %5725 = vmatprep.subr.mxu0 0.0
    %5726 = vmatpush1.msra.mxu0 %v5697
    %5727 = vmatprep.subr.mxu0 0.0
    %5728 = vmatpush1.msra.mxu0 %v5698
    %5729 = vmatprep.subr.mxu0 0.0
    %5730 = vmatpush1.msra.mxu0 %v5699
    %5731 = vmatprep.subr.mxu0 0.0
    %5732 = vmatpush1.msra.mxu0 %v5700
    %5733 = vmatprep.subr.mxu0 0.0
    %5734 = vmatpush1.msra.mxu0 0.0
    %5735 = vmatprep.subr.mxu0 0.0
    %5736 = vmatpush1.msra.mxu0 0.0
    %5737 = vmatprep.subr.mxu0 0.0
    %5738 = vmatpush1.msra.mxu0 0.0
    %5739 = vmatprep.subr.mxu0 0.0
    %5740 = vmatpush1.msra.mxu0 0.0
    %5741 = vmatprep.subr.mxu0 0.0
    %5742 = vmatpush1.msra.mxu0 0.0
    %5743 = vmatprep.subr.mxu0 0.0
    %5744 = vmatpush1.msra.mxu0 0.0
    %5745 = vmatprep.subr.mxu0 0.0
    %5746 = vmatpush1.msra.mxu0 0.0
    %5747 = vmatprep.subr.mxu0 0.0
    %5748 = vmatpush1.msra.mxu0 0.0
    %5749 = vmatprep.subr.mxu0 0.0
    %5750 = vmatpush1.msra.mxu0 0.0
    %5751 = vmatprep.subr.mxu0 0.0
    %5752 = vmatpush1.msra.mxu0 0.0
    %5753 = vmatprep.subr.mxu0 0.0
    %5754 = vmatpush1.msra.mxu0 0.0
    %5755 = vmatprep.subr.mxu0 0.0
    %5756 = vmatpush1.msra.mxu0 0.0
    %5757 = vmatprep.subr.mxu0 0.0
    %5758 = vmatpush1.msra.mxu0 0.0
    %5759 = vmatprep.subr.mxu0 0.0
    %5760 = vmatpush1.msra.mxu0 0.0
    %5761 = vmatprep.subr.mxu0 0.0
    %5762 = vmatpush1.msra.mxu0 0.0
    %5763 = vmatprep.subr.mxu0 0.0
    %5764 = vmatpush1.msra.mxu0 0.0
    %5765 = vmatprep.mubr.f32.mxu0 0.0
    %5766 = vmatmul.mubr.f32.gmra.mrb[0].mxu0 %v4822
    %v5767 = vpop.f32.mrb[0].mxu0
    %v5768 = vadd.f32 0.0, %v5767
    %v5769 = vpop.f32.mrb[0].mxu0
    %5770 = vdwg.mxu0
    %s5771 = scalar_lea.vmem [#allocation14], 80
    %v5772 = vld [vmem:[%s5771] sm:$0xff]
    %v5773 = vld [vmem:[%s5771 + $0x8] sm:$0xff]
    %v5775 = vsel %vm2386, %v5772, 0
    %v5778 = vsel %vm2386, %v5773, 0
    %5780 = vmatprep.subr.mxu0 0.0
    %5781 = vmatpush1.msra.mxu0 %v5768
    %5782 = vmatprep.subr.mxu0 0.0
    %5783 = vmatpush1.msra.mxu0 0.0
    %5784 = vmatprep.subr.mxu0 0.0
    %5785 = vmatpush1.msra.mxu0 0.0
    %5786 = vmatprep.subr.mxu0 0.0
    %5787 = vmatpush1.msra.mxu0 0.0
    %5788 = vmatprep.subr.mxu0 0.0
    %5789 = vmatpush1.msra.mxu0 0.0
    %5790 = vmatprep.subr.mxu0 0.0
    %5791 = vmatpush1.msra.mxu0 0.0
    %5792 = vmatprep.subr.mxu0 0.0
    %5793 = vmatpush1.msra.mxu0 0.0
    %5794 = vmatprep.subr.mxu0 0.0
    %5795 = vmatpush1.msra.mxu0 0.0
    %5796 = vmatprep.subr.mxu0 0.0
    %5797 = vmatpush1.msra.mxu0 0.0
    %5798 = vmatprep.subr.mxu0 0.0
    %5799 = vmatpush1.msra.mxu0 0.0
    %5800 = vmatprep.subr.mxu0 0.0
    %5801 = vmatpush1.msra.mxu0 0.0
    %5802 = vmatprep.subr.mxu0 0.0
    %5803 = vmatpush1.msra.mxu0 0.0
    %5804 = vmatprep.subr.mxu0 0.0
    %5805 = vmatpush1.msra.mxu0 0.0
    %5806 = vmatprep.subr.mxu0 0.0
    %5807 = vmatpush1.msra.mxu0 0.0
    %5808 = vmatprep.subr.mxu0 0.0
    %5809 = vmatpush1.msra.mxu0 0.0
    %5810 = vmatprep.subr.mxu0 0.0
    %5811 = vmatpush1.msra.mxu0 0.0
    %5812 = vmatprep.subr.mxu0 0.0
    %5813 = vmatpush1.msra.mxu0 0.0
    %5814 = vmatprep.subr.mxu0 0.0
    %5815 = vmatpush1.msra.mxu0 0.0
    %5816 = vmatprep.subr.mxu0 0.0
    %5817 = vmatpush1.msra.mxu0 0.0
    %5818 = vmatprep.subr.mxu0 0.0
    %5819 = vmatpush1.msra.mxu0 0.0
    %5820 = vmatprep.subr.mxu0 0.0
    %5821 = vmatpush1.msra.mxu0 0.0
    %5822 = vmatprep.subr.mxu0 0.0
    %5823 = vmatpush1.msra.mxu0 0.0
    %5824 = vmatprep.subr.mxu0 0.0
    %5825 = vmatpush1.msra.mxu0 0.0
    %5826 = vmatprep.subr.mxu0 0.0
    %5827 = vmatpush1.msra.mxu0 0.0
    %5828 = vmatprep.subr.mxu0 0.0
    %5829 = vmatpush1.msra.mxu0 0.0
    %5830 = vmatprep.subr.mxu0 0.0
    %5831 = vmatpush1.msra.mxu0 0.0
    %5832 = vmatprep.subr.mxu0 0.0
    %5833 = vmatpush1.msra.mxu0 0.0
    %5834 = vmatprep.subr.mxu0 0.0
    %5835 = vmatpush1.msra.mxu0 0.0
    %5836 = vmatprep.subr.mxu0 0.0
    %5837 = vmatpush1.msra.mxu0 0.0
    %5838 = vmatprep.subr.mxu0 0.0
    %5839 = vmatpush1.msra.mxu0 0.0
    %5840 = vmatprep.subr.mxu0 0.0
    %5841 = vmatpush1.msra.mxu0 0.0
    %5842 = vmatprep.subr.mxu0 0.0
    %5843 = vmatpush1.msra.mxu0 0.0
    %5844 = vmatprep.mubr.f32.mxu0 0.0
    %5845 = vmatmul.mubr.f32.gmra.mrb[0].mxu0 %v5775
    %v5846 = vpop.f32.mrb[0].mxu0
    %v5847 = vadd.f32 0.0, %v5846
    %v5848 = vpop.f32.mrb[0].mxu0
    %5849 = vmatprep.mubr.f32.mxu0 0.0
    %5850 = vmatmul.mubr.f32.gmra.mrb[0].mxu0 %v5778
    %v5851 = vpop.f32.mrb[0].mxu0
    %v5852 = vadd.f32 0.0, %v5851
    %v5853 = vpop.f32.mrb[0].mxu0
    %5854 = vdwg.mxu0
    %v5855 = vadd.f32 %v5682, %v5847
    %v5856 = vadd.f32 %v5683, %v5852
    %s5857 = scalar_lea.vmem [#allocation19], 768
    %v5858 = vld [vmem:[%s5857] sm:$0xff]
    %v5859 = vld [vmem:[%s5857 + $0x8] sm:$0xff]
    %v5860 = vld [vmem:[%s5857 + $0x10] sm:$0xff]
    %v5861 = vld [vmem:[%s5857 + $0x18] sm:$0xff]
    %v5862 = vld [vmem:[%s5857 + $0x20] sm:$0xff]
    %v5863 = vld [vmem:[%s5857 + $0x28] sm:$0xff]
    %v5864 = vld [vmem:[%s5857 + $0x30] sm:$0xff]
    %v5865 = vld [vmem:[%s5857 + $0x38] sm:$0xff]
    %v5866 = vld [vmem:[%s5857 + $0x40] sm:$0xff]
    %v5867 = vld [vmem:[%s5857 + $0x48] sm:$0xff]
    %v5868 = vld [vmem:[%s5857 + $0x50] sm:$0xff]
    %v5869 = vld [vmem:[%s5857 + $0x58] sm:$0xff]
    %v5870 = vld [vmem:[%s5857 + $0x60] sm:$0xff]
    %v5871 = vld [vmem:[%s5857 + $0x68] sm:$0xff]
    %v5872 = vld [vmem:[%s5857 + $0x70] sm:$0xff]
    %v5873 = vld [vmem:[%s5857 + $0x78] sm:$0xff]
    %5874 = vmatprep.subr.mxu0 0.0
    %5875 = vmatpush1.msra.mxu0 %v5858
    %5876 = vmatprep.subr.mxu0 0.0
    %5877 = vmatpush1.msra.mxu0 %v5859
    %5878 = vmatprep.subr.mxu0 0.0
    %5879 = vmatpush1.msra.mxu0 %v5860
    %5880 = vmatprep.subr.mxu0 0.0
    %5881 = vmatpush1.msra.mxu0 %v5861
    %5882 = vmatprep.subr.mxu0 0.0
    %5883 = vmatpush1.msra.mxu0 %v5862
    %5884 = vmatprep.subr.mxu0 0.0
    %5885 = vmatpush1.msra.mxu0 %v5863
    %5886 = vmatprep.subr.mxu0 0.0
    %5887 = vmatpush1.msra.mxu0 %v5864
    %5888 = vmatprep.subr.mxu0 0.0
    %5889 = vmatpush1.msra.mxu0 %v5865
    %5890 = vmatprep.subr.mxu0 0.0
    %5891 = vmatpush1.msra.mxu0 %v5866
    %5892 = vmatprep.subr.mxu0 0.0
    %5893 = vmatpush1.msra.mxu0 %v5867
    %5894 = vmatprep.subr.mxu0 0.0
    %5895 = vmatpush1.msra.mxu0 %v5868
    %5896 = vmatprep.subr.mxu0 0.0
    %5897 = vmatpush1.msra.mxu0 %v5869
    %5898 = vmatprep.subr.mxu0 0.0
    %5899 = vmatpush1.msra.mxu0 %v5870
    %5900 = vmatprep.subr.mxu0 0.0
    %5901 = vmatpush1.msra.mxu0 %v5871
    %5902 = vmatprep.subr.mxu0 0.0
    %5903 = vmatpush1.msra.mxu0 %v5872
    %5904 = vmatprep.subr.mxu0 0.0
    %5905 = vmatpush1.msra.mxu0 %v5873
    %5906 = vmatprep.subr.mxu0 0.0
    %5907 = vmatpush1.msra.mxu0 0.0
    %5908 = vmatprep.subr.mxu0 0.0
    %5909 = vmatpush1.msra.mxu0 0.0
    %5910 = vmatprep.subr.mxu0 0.0
    %5911 = vmatpush1.msra.mxu0 0.0
    %5912 = vmatprep.subr.mxu0 0.0
    %5913 = vmatpush1.msra.mxu0 0.0
    %5914 = vmatprep.subr.mxu0 0.0
    %5915 = vmatpush1.msra.mxu0 0.0
    %5916 = vmatprep.subr.mxu0 0.0
    %5917 = vmatpush1.msra.mxu0 0.0
    %5918 = vmatprep.subr.mxu0 0.0
    %5919 = vmatpush1.msra.mxu0 0.0
    %5920 = vmatprep.subr.mxu0 0.0
    %5921 = vmatpush1.msra.mxu0 0.0
    %5922 = vmatprep.subr.mxu0 0.0
    %5923 = vmatpush1.msra.mxu0 0.0
    %5924 = vmatprep.subr.mxu0 0.0
    %5925 = vmatpush1.msra.mxu0 0.0
    %5926 = vmatprep.subr.mxu0 0.0
    %5927 = vmatpush1.msra.mxu0 0.0
    %5928 = vmatprep.subr.mxu0 0.0
    %5929 = vmatpush1.msra.mxu0 0.0
    %5930 = vmatprep.subr.mxu0 0.0
    %5931 = vmatpush1.msra.mxu0 0.0
    %5932 = vmatprep.subr.mxu0 0.0
    %5933 = vmatpush1.msra.mxu0 0.0
    %5934 = vmatprep.subr.mxu0 0.0
    %5935 = vmatpush1.msra.mxu0 0.0
    %5936 = vmatprep.subr.mxu0 0.0
    %5937 = vmatpush1.msra.mxu0 0.0
    %5938 = vmatprep.mubr.f32.mxu0 0.0
    %5939 = vmatmul.mubr.f32.gmra.mrb[0].mxu0 %v4822
    %v5940 = vpop.f32.mrb[0].mxu0
    %v5941 = vadd.f32 0.0, %v5940
    %v5942 = vpop.f32.mrb[0].mxu0
    %5943 = vdwg.mxu0
    %s5944 = scalar_lea.vmem [#allocation14], 96
    %v5945 = vld [vmem:[%s5944] sm:$0xff]
    %v5946 = vld [vmem:[%s5944 + $0x8] sm:$0xff]
    %v5948 = vsel %vm2386, %v5945, 0
    %v5951 = vsel %vm2386, %v5946, 0
    %5953 = vmatprep.subr.mxu0 0.0
    %5954 = vmatpush1.msra.mxu0 %v5941
    %5955 = vmatprep.subr.mxu0 0.0
    %5956 = vmatpush1.msra.mxu0 0.0
    %5957 = vmatprep.subr.mxu0 0.0
    %5958 = vmatpush1.msra.mxu0 0.0
    %5959 = vmatprep.subr.mxu0 0.0
    %5960 = vmatpush1.msra.mxu0 0.0
    %5961 = vmatprep.subr.mxu0 0.0
    %5962 = vmatpush1.msra.mxu0 0.0
    %5963 = vmatprep.subr.mxu0 0.0
    %5964 = vmatpush1.msra.mxu0 0.0
    %5965 = vmatprep.subr.mxu0 0.0
    %5966 = vmatpush1.msra.mxu0 0.0
    %5967 = vmatprep.subr.mxu0 0.0
    %5968 = vmatpush1.msra.mxu0 0.0
    %5969 = vmatprep.subr.mxu0 0.0
    %5970 = vmatpush1.msra.mxu0 0.0
    %5971 = vmatprep.subr.mxu0 0.0
    %5972 = vmatpush1.msra.mxu0 0.0
    %5973 = vmatprep.subr.mxu0 0.0
    %5974 = vmatpush1.msra.mxu0 0.0
    %5975 = vmatprep.subr.mxu0 0.0
    %5976 = vmatpush1.msra.mxu0 0.0
    %5977 = vmatprep.subr.mxu0 0.0
    %5978 = vmatpush1.msra.mxu0 0.0
    %5979 = vmatprep.subr.mxu0 0.0
    %5980 = vmatpush1.msra.mxu0 0.0
    %5981 = vmatprep.subr.mxu0 0.0
    %5982 = vmatpush1.msra.mxu0 0.0
    %5983 = vmatprep.subr.mxu0 0.0
    %5984 = vmatpush1.msra.mxu0 0.0
    %5985 = vmatprep.subr.mxu0 0.0
    %5986 = vmatpush1.msra.mxu0 0.0
    %5987 = vmatprep.subr.mxu0 0.0
    %5988 = vmatpush1.msra.mxu0 0.0
    %5989 = vmatprep.subr.mxu0 0.0
    %5990 = vmatpush1.msra.mxu0 0.0
    %5991 = vmatprep.subr.mxu0 0.0
    %5992 = vmatpush1.msra.mxu0 0.0
    %5993 = vmatprep.subr.mxu0 0.0
    %5994 = vmatpush1.msra.mxu0 0.0
    %5995 = vmatprep.subr.mxu0 0.0
    %5996 = vmatpush1.msra.mxu0 0.0
    %5997 = vmatprep.subr.mxu0 0.0
    %5998 = vmatpush1.msra.mxu0 0.0
    %5999 = vmatprep.subr.mxu0 0.0
    %6000 = vmatpush1.msra.mxu0 0.0
    %6001 = vmatprep.subr.mxu0 0.0
    %6002 = vmatpush1.msra.mxu0 0.0
    %6003 = vmatprep.subr.mxu0 0.0
    %6004 = vmatpush1.msra.mxu0 0.0
    %6005 = vmatprep.subr.mxu0 0.0
    %6006 = vmatpush1.msra.mxu0 0.0
    %6007 = vmatprep.subr.mxu0 0.0
    %6008 = vmatpush1.msra.mxu0 0.0
    %6009 = vmatprep.subr.mxu0 0.0
    %6010 = vmatpush1.msra.mxu0 0.0
    %6011 = vmatprep.subr.mxu0 0.0
    %6012 = vmatpush1.msra.mxu0 0.0
    %6013 = vmatprep.subr.mxu0 0.0
    %6014 = vmatpush1.msra.mxu0 0.0
    %6015 = vmatprep.subr.mxu0 0.0
    %6016 = vmatpush1.msra.mxu0 0.0
    %6017 = vmatprep.mubr.f32.mxu0 0.0
    %6018 = vmatmul.mubr.f32.gmra.mrb[0].mxu0 %v5948
    %v6019 = vpop.f32.mrb[0].mxu0
    %v6020 = vadd.f32 0.0, %v6019
    %v6021 = vpop.f32.mrb[0].mxu0
    %6022 = vmatprep.mubr.f32.mxu0 0.0
    %6023 = vmatmul.mubr.f32.gmra.mrb[0].mxu0 %v5951
    %v6024 = vpop.f32.mrb[0].mxu0
    %v6025 = vadd.f32 0.0, %v6024
    %v6026 = vpop.f32.mrb[0].mxu0
    %6027 = vdwg.mxu0
    %v6028 = vadd.f32 %v5855, %v6020
    %v6029 = vadd.f32 %v5856, %v6025
    %s6030 = scalar_lea.vmem [#allocation19], 896
    %v6031 = vld [vmem:[%s6030] sm:$0xff]
    %v6032 = vld [vmem:[%s6030 + $0x8] sm:$0xff]
    %v6033 = vld [vmem:[%s6030 + $0x10] sm:$0xff]
    %v6034 = vld [vmem:[%s6030 + $0x18] sm:$0xff]
    %v6035 = vld [vmem:[%s6030 + $0x20] sm:$0xff]
    %v6036 = vld [vmem:[%s6030 + $0x28] sm:$0xff]
    %v6037 = vld [vmem:[%s6030 + $0x30] sm:$0xff]
    %v6038 = vld [vmem:[%s6030 + $0x38] sm:$0xff]
    %v6039 = vld [vmem:[%s6030 + $0x40] sm:$0xff]
    %v6040 = vld [vmem:[%s6030 + $0x48] sm:$0xff]
    %v6041 = vld [vmem:[%s6030 + $0x50] sm:$0xff]
    %v6042 = vld [vmem:[%s6030 + $0x58] sm:$0xff]
    %v6043 = vld [vmem:[%s6030 + $0x60] sm:$0xff]
    %v6044 = vld [vmem:[%s6030 + $0x68] sm:$0xff]
    %v6045 = vld [vmem:[%s6030 + $0x70] sm:$0xff]
    %v6046 = vld [vmem:[%s6030 + $0x78] sm:$0xff]
    %6047 = vmatprep.subr.mxu0 0.0
    %6048 = vmatpush1.msra.mxu0 %v6031
    %6049 = vmatprep.subr.mxu0 0.0
    %6050 = vmatpush1.msra.mxu0 %v6032
    %6051 = vmatprep.subr.mxu0 0.0
    %6052 = vmatpush1.msra.mxu0 %v6033
    %6053 = vmatprep.subr.mxu0 0.0
    %6054 = vmatpush1.msra.mxu0 %v6034
    %6055 = vmatprep.subr.mxu0 0.0
    %6056 = vmatpush1.msra.mxu0 %v6035
    %6057 = vmatprep.subr.mxu0 0.0
    %6058 = vmatpush1.msra.mxu0 %v6036
    %6059 = vmatprep.subr.mxu0 0.0
    %6060 = vmatpush1.msra.mxu0 %v6037
    %6061 = vmatprep.subr.mxu0 0.0
    %6062 = vmatpush1.msra.mxu0 %v6038
    %6063 = vmatprep.subr.mxu0 0.0
    %6064 = vmatpush1.msra.mxu0 %v6039
    %6065 = vmatprep.subr.mxu0 0.0
    %6066 = vmatpush1.msra.mxu0 %v6040
    %6067 = vmatprep.subr.mxu0 0.0
    %6068 = vmatpush1.msra.mxu0 %v6041
    %6069 = vmatprep.subr.mxu0 0.0
    %6070 = vmatpush1.msra.mxu0 %v6042
    %6071 = vmatprep.subr.mxu0 0.0
    %6072 = vmatpush1.msra.mxu0 %v6043
    %6073 = vmatprep.subr.mxu0 0.0
    %6074 = vmatpush1.msra.mxu0 %v6044
    %6075 = vmatprep.subr.mxu0 0.0
    %6076 = vmatpush1.msra.mxu0 %v6045
    %6077 = vmatprep.subr.mxu0 0.0
    %6078 = vmatpush1.msra.mxu0 %v6046
    %6079 = vmatprep.subr.mxu0 0.0
    %6080 = vmatpush1.msra.mxu0 0.0
    %6081 = vmatprep.subr.mxu0 0.0
    %6082 = vmatpush1.msra.mxu0 0.0
    %6083 = vmatprep.subr.mxu0 0.0
    %6084 = vmatpush1.msra.mxu0 0.0
    %6085 = vmatprep.subr.mxu0 0.0
    %6086 = vmatpush1.msra.mxu0 0.0
    %6087 = vmatprep.subr.mxu0 0.0
    %6088 = vmatpush1.msra.mxu0 0.0
    %6089 = vmatprep.subr.mxu0 0.0
    %6090 = vmatpush1.msra.mxu0 0.0
    %6091 = vmatprep.subr.mxu0 0.0
    %6092 = vmatpush1.msra.mxu0 0.0
    %6093 = vmatprep.subr.mxu0 0.0
    %6094 = vmatpush1.msra.mxu0 0.0
    %6095 = vmatprep.subr.mxu0 0.0
    %6096 = vmatpush1.msra.mxu0 0.0
    %6097 = vmatprep.subr.mxu0 0.0
    %6098 = vmatpush1.msra.mxu0 0.0
    %6099 = vmatprep.subr.mxu0 0.0
    %6100 = vmatpush1.msra.mxu0 0.0
    %6101 = vmatprep.subr.mxu0 0.0
    %6102 = vmatpush1.msra.mxu0 0.0
    %6103 = vmatprep.subr.mxu0 0.0
    %6104 = vmatpush1.msra.mxu0 0.0
    %6105 = vmatprep.subr.mxu0 0.0
    %6106 = vmatpush1.msra.mxu0 0.0
    %6107 = vmatprep.subr.mxu0 0.0
    %6108 = vmatpush1.msra.mxu0 0.0
    %6109 = vmatprep.subr.mxu0 0.0
    %6110 = vmatpush1.msra.mxu0 0.0
    %6111 = vmatprep.mubr.f32.mxu0 0.0
    %6112 = vmatmul.mubr.f32.gmra.mrb[0].mxu0 %v4822
    %v6113 = vpop.f32.mrb[0].mxu0
    %v6114 = vadd.f32 0.0, %v6113
    %v6115 = vpop.f32.mrb[0].mxu0
    %6116 = vdwg.mxu0
    %s6117 = scalar_lea.vmem [#allocation14], 112
    %v6118 = vld [vmem:[%s6117] sm:$0xff]
    %v6119 = vld [vmem:[%s6117 + $0x8] sm:$0xff]
    %v6121 = vsel %vm2386, %v6118, 0
    %v6124 = vsel %vm2386, %v6119, 0
    %6126 = vmatprep.subr.mxu0 0.0
    %6127 = vmatpush1.msra.mxu0 %v6114
    %6128 = vmatprep.subr.mxu0 0.0
    %6129 = vmatpush1.msra.mxu0 0.0
    %6130 = vmatprep.subr.mxu0 0.0
    %6131 = vmatpush1.msra.mxu0 0.0
    %6132 = vmatprep.subr.mxu0 0.0
    %6133 = vmatpush1.msra.mxu0 0.0
    %6134 = vmatprep.subr.mxu0 0.0
    %6135 = vmatpush1.msra.mxu0 0.0
    %6136 = vmatprep.subr.mxu0 0.0
    %6137 = vmatpush1.msra.mxu0 0.0
    %6138 = vmatprep.subr.mxu0 0.0
    %6139 = vmatpush1.msra.mxu0 0.0
    %6140 = vmatprep.subr.mxu0 0.0
    %6141 = vmatpush1.msra.mxu0 0.0
    %6142 = vmatprep.subr.mxu0 0.0
    %6143 = vmatpush1.msra.mxu0 0.0
    %6144 = vmatprep.subr.mxu0 0.0
    %6145 = vmatpush1.msra.mxu0 0.0
    %6146 = vmatprep.subr.mxu0 0.0
    %6147 = vmatpush1.msra.mxu0 0.0
    %6148 = vmatprep.subr.mxu0 0.0
    %6149 = vmatpush1.msra.mxu0 0.0
    %6150 = vmatprep.subr.mxu0 0.0
    %6151 = vmatpush1.msra.mxu0 0.0
    %6152 = vmatprep.subr.mxu0 0.0
    %6153 = vmatpush1.msra.mxu0 0.0
    %6154 = vmatprep.subr.mxu0 0.0
    %6155 = vmatpush1.msra.mxu0 0.0
    %6156 = vmatprep.subr.mxu0 0.0
    %6157 = vmatpush1.msra.mxu0 0.0
    %6158 = vmatprep.subr.mxu0 0.0
    %6159 = vmatpush1.msra.mxu0 0.0
    %6160 = vmatprep.subr.mxu0 0.0
    %6161 = vmatpush1.msra.mxu0 0.0
    %6162 = vmatprep.subr.mxu0 0.0
    %6163 = vmatpush1.msra.mxu0 0.0
    %6164 = vmatprep.subr.mxu0 0.0
    %6165 = vmatpush1.msra.mxu0 0.0
    %6166 = vmatprep.subr.mxu0 0.0
    %6167 = vmatpush1.msra.mxu0 0.0
    %6168 = vmatprep.subr.mxu0 0.0
    %6169 = vmatpush1.msra.mxu0 0.0
    %6170 = vmatprep.subr.mxu0 0.0
    %6171 = vmatpush1.msra.mxu0 0.0
    %6172 = vmatprep.subr.mxu0 0.0
    %6173 = vmatpush1.msra.mxu0 0.0
    %6174 = vmatprep.subr.mxu0 0.0
    %6175 = vmatpush1.msra.mxu0 0.0
    %6176 = vmatprep.subr.mxu0 0.0
    %6177 = vmatpush1.msra.mxu0 0.0
    %6178 = vmatprep.subr.mxu0 0.0
    %6179 = vmatpush1.msra.mxu0 0.0
    %6180 = vmatprep.subr.mxu0 0.0
    %6181 = vmatpush1.msra.mxu0 0.0
    %6182 = vmatprep.subr.mxu0 0.0
    %6183 = vmatpush1.msra.mxu0 0.0
    %6184 = vmatprep.subr.mxu0 0.0
    %6185 = vmatpush1.msra.mxu0 0.0
    %6186 = vmatprep.subr.mxu0 0.0
    %6187 = vmatpush1.msra.mxu0 0.0
    %6188 = vmatprep.subr.mxu0 0.0
    %6189 = vmatpush1.msra.mxu0 0.0
    %6190 = vmatprep.mubr.f32.mxu0 0.0
    %6191 = vmatmul.mubr.f32.gmra.mrb[0].mxu0 %v6121
    %v6192 = vpop.f32.mrb[0].mxu0
    %v6193 = vadd.f32 0.0, %v6192
    %v6194 = vpop.f32.mrb[0].mxu0
    %6195 = vmatprep.mubr.f32.mxu0 0.0
    %6196 = vmatmul.mubr.f32.gmra.mrb[0].mxu0 %v6124
    %v6197 = vpop.f32.mrb[0].mxu0
    %v6198 = vadd.f32 0.0, %v6197
    %v6199 = vpop.f32.mrb[0].mxu0
    %6200 = vdwg.mxu0
    %v6201 = vadd.f32 %v6028, %v6193
    %v6202 = vadd.f32 %v6029, %v6198
    %s6203 = scalar_lea.vmem [#allocation19], 1024
    %v6204 = vld [vmem:[%s6203] sm:$0xff]
    %v6205 = vld [vmem:[%s6203 + $0x8] sm:$0xff]
    %v6206 = vld [vmem:[%s6203 + $0x10] sm:$0xff]
    %v6207 = vld [vmem:[%s6203 + $0x18] sm:$0xff]
    %v6208 = vld [vmem:[%s6203 + $0x20] sm:$0xff]
    %v6209 = vld [vmem:[%s6203 + $0x28] sm:$0xff]
    %v6210 = vld [vmem:[%s6203 + $0x30] sm:$0xff]
    %v6211 = vld [vmem:[%s6203 + $0x38] sm:$0xff]
    %v6212 = vld [vmem:[%s6203 + $0x40] sm:$0xff]
    %v6213 = vld [vmem:[%s6203 + $0x48] sm:$0xff]
    %v6214 = vld [vmem:[%s6203 + $0x50] sm:$0xff]
    %v6215 = vld [vmem:[%s6203 + $0x58] sm:$0xff]
    %v6216 = vld [vmem:[%s6203 + $0x60] sm:$0xff]
    %v6217 = vld [vmem:[%s6203 + $0x68] sm:$0xff]
    %v6218 = vld [vmem:[%s6203 + $0x70] sm:$0xff]
    %v6219 = vld [vmem:[%s6203 + $0x78] sm:$0xff]
    %6220 = vmatprep.subr.mxu0 0.0
    %6221 = vmatpush1.msra.mxu0 %v6204
    %6222 = vmatprep.subr.mxu0 0.0
    %6223 = vmatpush1.msra.mxu0 %v6205
    %6224 = vmatprep.subr.mxu0 0.0
    %6225 = vmatpush1.msra.mxu0 %v6206
    %6226 = vmatprep.subr.mxu0 0.0
    %6227 = vmatpush1.msra.mxu0 %v6207
    %6228 = vmatprep.subr.mxu0 0.0
    %6229 = vmatpush1.msra.mxu0 %v6208
    %6230 = vmatprep.subr.mxu0 0.0
    %6231 = vmatpush1.msra.mxu0 %v6209
    %6232 = vmatprep.subr.mxu0 0.0
    %6233 = vmatpush1.msra.mxu0 %v6210
    %6234 = vmatprep.subr.mxu0 0.0
    %6235 = vmatpush1.msra.mxu0 %v6211
    %6236 = vmatprep.subr.mxu0 0.0
    %6237 = vmatpush1.msra.mxu0 %v6212
    %6238 = vmatprep.subr.mxu0 0.0
    %6239 = vmatpush1.msra.mxu0 %v6213
    %6240 = vmatprep.subr.mxu0 0.0
    %6241 = vmatpush1.msra.mxu0 %v6214
    %6242 = vmatprep.subr.mxu0 0.0
    %6243 = vmatpush1.msra.mxu0 %v6215
    %6244 = vmatprep.subr.mxu0 0.0
    %6245 = vmatpush1.msra.mxu0 %v6216
    %6246 = vmatprep.subr.mxu0 0.0
    %6247 = vmatpush1.msra.mxu0 %v6217
    %6248 = vmatprep.subr.mxu0 0.0
    %6249 = vmatpush1.msra.mxu0 %v6218
    %6250 = vmatprep.subr.mxu0 0.0
    %6251 = vmatpush1.msra.mxu0 %v6219
    %6252 = vmatprep.subr.mxu0 0.0
    %6253 = vmatpush1.msra.mxu0 0.0
    %6254 = vmatprep.subr.mxu0 0.0
    %6255 = vmatpush1.msra.mxu0 0.0
    %6256 = vmatprep.subr.mxu0 0.0
    %6257 = vmatpush1.msra.mxu0 0.0
    %6258 = vmatprep.subr.mxu0 0.0
    %6259 = vmatpush1.msra.mxu0 0.0
    %6260 = vmatprep.subr.mxu0 0.0
    %6261 = vmatpush1.msra.mxu0 0.0
    %6262 = vmatprep.subr.mxu0 0.0
    %6263 = vmatpush1.msra.mxu0 0.0
    %6264 = vmatprep.subr.mxu0 0.0
    %6265 = vmatpush1.msra.mxu0 0.0
    %6266 = vmatprep.subr.mxu0 0.0
    %6267 = vmatpush1.msra.mxu0 0.0
    %6268 = vmatprep.subr.mxu0 0.0
    %6269 = vmatpush1.msra.mxu0 0.0
    %6270 = vmatprep.subr.mxu0 0.0
    %6271 = vmatpush1.msra.mxu0 0.0
    %6272 = vmatprep.subr.mxu0 0.0
    %6273 = vmatpush1.msra.mxu0 0.0
    %6274 = vmatprep.subr.mxu0 0.0
    %6275 = vmatpush1.msra.mxu0 0.0
    %6276 = vmatprep.subr.mxu0 0.0
    %6277 = vmatpush1.msra.mxu0 0.0
    %6278 = vmatprep.subr.mxu0 0.0
    %6279 = vmatpush1.msra.mxu0 0.0
    %6280 = vmatprep.subr.mxu0 0.0
    %6281 = vmatpush1.msra.mxu0 0.0
    %6282 = vmatprep.subr.mxu0 0.0
    %6283 = vmatpush1.msra.mxu0 0.0
    %6284 = vmatprep.mubr.f32.mxu0 0.0
    %6285 = vmatmul.mubr.f32.gmra.mrb[0].mxu0 %v4822
    %v6286 = vpop.f32.mrb[0].mxu0
    %v6287 = vadd.f32 0.0, %v6286
    %v6288 = vpop.f32.mrb[0].mxu0
    %6289 = vdwg.mxu0
    %s6290 = scalar_lea.vmem [#allocation14], 128
    %v6291 = vld [vmem:[%s6290] sm:$0xff]
    %v6292 = vld [vmem:[%s6290 + $0x8] sm:$0xff]
    %v6294 = vsel %vm2386, %v6291, 0
    %v6297 = vsel %vm2386, %v6292, 0
    %6299 = vmatprep.subr.mxu0 0.0
    %6300 = vmatpush1.msra.mxu0 %v6287
    %6301 = vmatprep.subr.mxu0 0.0
    %6302 = vmatpush1.msra.mxu0 0.0
    %6303 = vmatprep.subr.mxu0 0.0
    %6304 = vmatpush1.msra.mxu0 0.0
    %6305 = vmatprep.subr.mxu0 0.0
    %6306 = vmatpush1.msra.mxu0 0.0
    %6307 = vmatprep.subr.mxu0 0.0
    %6308 = vmatpush1.msra.mxu0 0.0
    %6309 = vmatprep.subr.mxu0 0.0
    %6310 = vmatpush1.msra.mxu0 0.0
    %6311 = vmatprep.subr.mxu0 0.0
    %6312 = vmatpush1.msra.mxu0 0.0
    %6313 = vmatprep.subr.mxu0 0.0
    %6314 = vmatpush1.msra.mxu0 0.0
    %6315 = vmatprep.subr.mxu0 0.0
    %6316 = vmatpush1.msra.mxu0 0.0
    %6317 = vmatprep.subr.mxu0 0.0
    %6318 = vmatpush1.msra.mxu0 0.0
    %6319 = vmatprep.subr.mxu0 0.0
    %6320 = vmatpush1.msra.mxu0 0.0
    %6321 = vmatprep.subr.mxu0 0.0
    %6322 = vmatpush1.msra.mxu0 0.0
    %6323 = vmatprep.subr.mxu0 0.0
    %6324 = vmatpush1.msra.mxu0 0.0
    %6325 = vmatprep.subr.mxu0 0.0
    %6326 = vmatpush1.msra.mxu0 0.0
    %6327 = vmatprep.subr.mxu0 0.0
    %6328 = vmatpush1.msra.mxu0 0.0
    %6329 = vmatprep.subr.mxu0 0.0
    %6330 = vmatpush1.msra.mxu0 0.0
    %6331 = vmatprep.subr.mxu0 0.0
    %6332 = vmatpush1.msra.mxu0 0.0
    %6333 = vmatprep.subr.mxu0 0.0
    %6334 = vmatpush1.msra.mxu0 0.0
    %6335 = vmatprep.subr.mxu0 0.0
    %6336 = vmatpush1.msra.mxu0 0.0
    %6337 = vmatprep.subr.mxu0 0.0
    %6338 = vmatpush1.msra.mxu0 0.0
    %6339 = vmatprep.subr.mxu0 0.0
    %6340 = vmatpush1.msra.mxu0 0.0
    %6341 = vmatprep.subr.mxu0 0.0
    %6342 = vmatpush1.msra.mxu0 0.0
    %6343 = vmatprep.subr.mxu0 0.0
    %6344 = vmatpush1.msra.mxu0 0.0
    %6345 = vmatprep.subr.mxu0 0.0
    %6346 = vmatpush1.msra.mxu0 0.0
    %6347 = vmatprep.subr.mxu0 0.0
    %6348 = vmatpush1.msra.mxu0 0.0
    %6349 = vmatprep.subr.mxu0 0.0
    %6350 = vmatpush1.msra.mxu0 0.0
    %6351 = vmatprep.subr.mxu0 0.0
    %6352 = vmatpush1.msra.mxu0 0.0
    %6353 = vmatprep.subr.mxu0 0.0
    %6354 = vmatpush1.msra.mxu0 0.0
    %6355 = vmatprep.subr.mxu0 0.0
    %6356 = vmatpush1.msra.mxu0 0.0
    %6357 = vmatprep.subr.mxu0 0.0
    %6358 = vmatpush1.msra.mxu0 0.0
    %6359 = vmatprep.subr.mxu0 0.0
    %6360 = vmatpush1.msra.mxu0 0.0
    %6361 = vmatprep.subr.mxu0 0.0
    %6362 = vmatpush1.msra.mxu0 0.0
    %6363 = vmatprep.mubr.f32.mxu0 0.0
    %6364 = vmatmul.mubr.f32.gmra.mrb[0].mxu0 %v6294
    %v6365 = vpop.f32.mrb[0].mxu0
    %v6366 = vadd.f32 0.0, %v6365
    %v6367 = vpop.f32.mrb[0].mxu0
    %6368 = vmatprep.mubr.f32.mxu0 0.0
    %6369 = vmatmul.mubr.f32.gmra.mrb[0].mxu0 %v6297
    %v6370 = vpop.f32.mrb[0].mxu0
    %v6371 = vadd.f32 0.0, %v6370
    %v6372 = vpop.f32.mrb[0].mxu0
    %6373 = vdwg.mxu0
    %v6374 = vadd.f32 %v6201, %v6366
    %v6375 = vadd.f32 %v6202, %v6371
    %v6376 = vld [vmem:[#allocation16] sm:$0xff]
    %v6377 = vld [vmem:[#allocation16 + $0x8] sm:$0xff]
    %6379 = vset.pattern.permute.xlu0 0
    %6380 = vperm.xlu0 %6379, %v6376
    %v6381 = vpop.permute.xlu0 %6380
    %6384 = vset.pattern.permute.xlu0 0
    %6385 = vperm.xlu0 %6384, %v6377
    %v6386 = vpop.permute.xlu0 %6385
    %v6388 = vadd.f32 %v6374, %v6381
    %v6389 = vadd.f32 %v6375, %v6386
    %6390 = vst [vmem:[#allocation31] sm:$0xff] %v6388
    %6391 = vst [vmem:[#allocation31 + $0x8] sm:$0xff] %v6389
    %v6392 = vlaneseq
    %v6393 = vand.u32 %v6392, 127
    %vm6394 = vcmp.lt.s32.totalorder %v6393, 64
    %v6395 = vld [vmem:[#allocation29] sm:$0xff]
    %v6396 = vld [vmem:[#allocation29 + $0x8] sm:$0xff]
    %v6397 = vsub.f32 %v6388, %v6395
    %v6398 = vsub.f32 %v6389, %v6396
    %v6399 = vsel %vm6394, %v6397, 0.0
    %v6400 = vsel %vm6394, %v6398, 0.0
    %v6401 = vmul.f32 %v6399, %v6399
    %v6402 = vmul.f32 %v6400, %v6400
    %6403 = vadd.xlane.f32.xlu0 %v6401
    %v6404 = vpop.xlane.xlu0 %6403
    %6405 = vadd.xlane.f32.xlu0 %v6402
    %v6406 = vpop.xlane.xlu0 %6405
    %v6407 = vadd.f32 %v6404, %v6406
    %v6408 = vrot.slane %v6407, 4
    %v6409 = vadd.f32 %v6407, %v6408
    %v6410 = vrot.slane %v6409, 2
    %v6411 = vadd.f32 %v6409, %v6410
    %v6412 = vrot.slane %v6411, 1
    %v6413 = vadd.f32 %v6411, %v6412
    %v6414 = vmul.f32 %v6413, 0.0009765625
    %6415 = vst.msk [vmem:[#allocation38] sm:$0x1] %vm2401, %v6414
    // Predicated region
    $region146: #{_run_model.1} parent=1 // pred_check
      _
    $region147: #{_run_model.1} parent=1 // pred_check_branch
      %6417 = sbr.rel (0) target = $region149
    $region148: #{_run_model.1} parent=1 // pred_region
      %s6419 = ssub.s32 256, 256
      %6420 = vsyncadd [#allocation4], %s6419
      %s6421 = sshll.u32 [#allocation31], 4
      %s6422 = int_to_ptr.vmem [resolvable:$true] %s6421
      %6427 = dma.vmem_to_hbm [thread:$0]  %s6422, 256, %s18, [#allocation4], 128, 128, 8
    $region149: #{_run_model.1} parent=1 // pred_fallthru
      _
    // Predicated region
    $region150: #{_run_model.1} parent=1 // pred_check
      _
    $region151: #{_run_model.1} parent=1 // pred_check_branch
      %6429 = sbr.rel (0) target = $region153
    $region152: #{_run_model.1} parent=1 // pred_region
      %s6431 = ssub.s32 128, 128
      %6432 = vsyncadd [#allocation33], %s6431
      %s6434 = sshll.u32 [#allocation32], 4
      %s6435 = int_to_ptr.vmem [resolvable:$true] %s6434
      %6437 = dma.vmem_to_hbm [thread:$0]  %s6435, 128, %s19, [#allocation33]
    $region153: #{_run_model.1} parent=1 // pred_fallthru
      _
    // Predicated region
    $region154: #{_run_model.1} parent=1 // pred_check
      _
    $region155: #{_run_model.1} parent=1 // pred_check_branch
      %6439 = sbr.rel (0) target = $region157
    $region156: #{_run_model.1} parent=1 // pred_region
      %s6441 = ssub.s32 128, 128
      %6442 = vsyncadd [#allocation33], %s6441
      %s6444 = sshll.u32 [#allocation34], 4
      %s6445 = int_to_ptr.vmem [resolvable:$true] %s6444
      %6447 = dma.vmem_to_hbm [thread:$0]  %s6445, 128, %s20, [#allocation33]
    $region157: #{_run_model.1} parent=1 // pred_fallthru
      _
    // Predicated region
    $region158: #{_run_model.1} parent=1 // pred_check
      _
    $region159: #{_run_model.1} parent=1 // pred_check_branch
      %6449 = sbr.rel (0) target = $region161
    $region160: #{_run_model.1} parent=1 // pred_region
      %s6451 = ssub.s32 16, 16
      %6452 = vsyncadd [#allocation36], %s6451
      %s6454 = sshll.u32 [#allocation35], 4
      %s6455 = int_to_ptr.vmem [resolvable:$true] %s6454
      %6457 = dma.vmem_to_hbm [thread:$0]  %s6455, 16, %s21, [#allocation36]
    $region161: #{_run_model.1} parent=1 // pred_fallthru
      _
    // Predicated region
    $region162: #{_run_model.1} parent=1 // pred_check
      _
    $region163: #{_run_model.1} parent=1 // pred_check_branch
      %6459 = sbr.rel (0) target = $region165
    $region164: #{_run_model.1} parent=1 // pred_region
      %s6461 = ssub.s32 16, 16
      %6462 = vsyncadd [#allocation36], %s6461
      %s6464 = sshll.u32 [#allocation37], 4
      %s6465 = int_to_ptr.vmem [resolvable:$true] %s6464
      %6467 = dma.vmem_to_hbm [thread:$0]  %s6465, 16, %s22, [#allocation36]
    $region165: #{_run_model.1} parent=1 // pred_fallthru
      _
    // Predicated region
    $region166: #{_run_model.1} parent=1 // pred_check
      _
    $region167: #{_run_model.1} parent=1 // pred_check_branch
      %6469 = sbr.rel (0) target = $region169
    $region168: #{_run_model.1} parent=1 // pred_region
      %s6471 = ssub.s32 16, 16
      %6472 = vsyncadd [#allocation39], %s6471
      %s6474 = sshll.u32 [#allocation38], 4
      %s6475 = int_to_ptr.vmem [resolvable:$true] %s6474
      %6477 = dma.vmem_to_hbm [thread:$0]  %s6475, 16, %s23, [#allocation39]
    $region169: #{_run_model.1} parent=1 // pred_fallthru
      _
    // Predicated region
    $region170: #{_run_model.1} parent=1 // pred_check
      _
    $region171: #{_run_model.1} parent=1 // pred_check_branch
      %6479 = sbr.rel (0) target = $region173
    $region172: #{_run_model.1} parent=1 // pred_region
      %6480 = dma.done [#allocation4], 256
    $region173: #{_run_model.1} parent=1 // pred_fallthru
      _
    // Predicated region
    $region174: #{_run_model.1} parent=1 // pred_check
      _
    $region175: #{_run_model.1} parent=1 // pred_check_branch
      %6482 = sbr.rel (0) target = $region177
    $region176: #{_run_model.1} parent=1 // pred_region
      %6483 = dma.done [#allocation33], 128
    $region177: #{_run_model.1} parent=1 // pred_fallthru
      _
    // Predicated region
    $region178: #{_run_model.1} parent=1 // pred_check
      _
    $region179: #{_run_model.1} parent=1 // pred_check_branch
      %6485 = sbr.rel (0) target = $region181
    $region180: #{_run_model.1} parent=1 // pred_region
      %6486 = dma.done [#allocation33], 128
    $region181: #{_run_model.1} parent=1 // pred_fallthru
      _
    // Predicated region
    $region182: #{_run_model.1} parent=1 // pred_check
      _
    $region183: #{_run_model.1} parent=1 // pred_check_branch
      %6488 = sbr.rel (0) target = $region185
    $region184: #{_run_model.1} parent=1 // pred_region
      %6489 = dma.done [#allocation36], 16
    $region185: #{_run_model.1} parent=1 // pred_fallthru
      _
    // Predicated region
    $region186: #{_run_model.1} parent=1 // pred_check
      _
    $region187: #{_run_model.1} parent=1 // pred_check_branch
      %6491 = sbr.rel (0) target = $region189
    $region188: #{_run_model.1} parent=1 // pred_region
      %6492 = dma.done [#allocation36], 16
    $region189: #{_run_model.1} parent=1 // pred_fallthru
      _
    // Predicated region
    $region190: #{_run_model.1} parent=1 // pred_check
      _
    $region191: #{_run_model.1} parent=1 // pred_check_branch
      %6494 = sbr.rel (0) target = $region193
    $region192: #{_run_model.1} parent=1 // pred_region
      %6495 = dma.done [#allocation39], 16
    $region193: #{_run_model.1} parent=1 // pred_fallthru
      _
    %6496 = vsyncpa [#allocation3], 1
    %6497 = vsyncpa [#allocation6], 1
    %6498 = vsyncpa [#allocation9], 1
    %6499 = vsyncpa [#allocation12], 1
    %6500 = vsyncpa [#allocation15], 1
    %6501 = vsyncpa [#allocation18], 1
    %6502 = vsyncpa [#allocation21], 1
    %6503 = vsyncpa [#allocation24], 1
    %6504 = vsyncpa [#allocation27], 1
    %6505 = vsyncpa [#allocation30], 1
    %6506 = vsyncpa [#allocation4], 1
    %6507 = vsyncpa [#allocation33], 1
    %6508 = vsyncpa [#allocation36], 1
    %6509 = vsyncpa [#allocation39], 1

</llo_original>
